<compile_context>
chip_gen: v7x
topology: tpu7x:2x2x1
jax: 0.10.0
libtpu: 0.0.40
codegen_flags: <defaults>
</compile_context>

<pallas_src>
import jax
import jax.numpy as jnp
from jax.experimental import pallas as pl
from jax.experimental.pallas import tpu as pltpu

_BF16 = jnp.bfloat16
_VMEM_LIMIT = 48 * 1024 * 1024


# ------------------------------ Pallas kernels ------------------------------

def _conv12_kernel(p_ref, w1_ref, b1_ref, w2_ref, b2_ref, q_ref, stats_ref):
    """Fused conv1(+ReLU)+conv2(+ReLU) for one tile of 4x4-output positions.

    p_ref : (4, 4, T, 12)  image patches [cd, ab, rows, (kh,kw,chn)]
    q_ref : (4, T, 128)    conv2 activations, one slab per cd tap
    stats : rows 0/1 = per-channel sum / sum-of-squares (BN1 partials)
    """
    w1 = w1_ref[...]
    b1 = b1_ref[...]
    b2 = b2_ref[...]
    c_out = q_ref.shape[-1]
    s_tot = jnp.zeros((1, c_out), jnp.float32)
    sq_tot = jnp.zeros((1, c_out), jnp.float32)
    for cd in range(4):                    # conv2 position within its conv3 parent
        acc = None
        for ab in range(4):                # conv1 child within this conv2 position
            patch = p_ref[cd, ab, :, :]                              # (T, 12) bf16
            h1 = jnp.dot(patch, w1, preferred_element_type=jnp.float32) + b1
            h1 = jnp.maximum(h1, 0.0).astype(_BF16)                  # conv1 + ReLU
            contrib = jnp.dot(h1, w2_ref[ab, :, :],
                              preferred_element_type=jnp.float32)
            acc = contrib if acc is None else acc + contrib
        y = jnp.maximum(acc + b2, 0.0)                               # conv2 + ReLU
        q_ref[cd, :, :] = y.astype(q_ref.dtype)
        s_tot = s_tot + jnp.sum(y, axis=0, keepdims=True)
        sq_tot = sq_tot + jnp.sum(y * y, axis=0, keepdims=True)
    stats_ref[0:1, :] = s_tot              # rows 2..7 intentionally left unwritten
    stats_ref[1:2, :] = sq_tot


def _slab_conv_kernel(x_ref, w_ref, b_ref, o_ref, stats_ref):
    """Stride-2 2x2 conv as 4 accumulated matmuls over pre-gathered tap slabs.

    x_ref : (4, T, Cin), w_ref : (4, Cin, Cout), o_ref : (T, Cout)
    """
    acc = None
    for j in range(4):
        contrib = jnp.dot(x_ref[j, :, :], w_ref[j, :, :],
                          preferred_element_type=jnp.float32)
        acc = contrib if acc is None else acc + contrib
    y = jnp.maximum(acc + b_ref[...], 0.0)                           # conv + ReLU
    o_ref[...] = y.astype(o_ref.dtype)
    stats_ref[0:1, :] = jnp.sum(y, axis=0, keepdims=True)
    stats_ref[1:2, :] = jnp.sum(y * y, axis=0, keepdims=True)


def _fc_sigmoid_kernel(x_ref, w_ref, b_ref, o_ref):
    """Linear(8192 -> 1) + sigmoid as a VPU multiply + lane reduction."""
    x = x_ref[...].astype(jnp.float32)                               # (T, 8192)
    w = w_ref[...]                                                   # (1, 8192)
    y = jnp.sum(x * w, axis=1, keepdims=True) + b_ref[...]           # (T, 1)
    o_ref[...] = jax.nn.sigmoid(y)


# ------------------------------ tiling helpers -------------------------------

def _pick_rows_tile(m, row_bytes, *, cap_rows=1024, budget=8 * 1024 * 1024):
    """Largest multiple-of-8 divisor of m within the byte budget, preferring
    >=2 grid steps (v7x has 2 TensorCores).  Falls back to a single
    full-extent block only for tiny / indivisible m (e.g. the fc row count)."""
    cands = [t for t in range(8, min(m, cap_rows) + 1, 8)
             if m % t == 0 and t * row_bytes <= budget]
    if not cands:
        return m
    pref = [t for t in cands if m // t >= 2]
    return max(pref) if pref else max(cands)


def _compiler_params(n_axes):
    return pltpu.CompilerParams(
        dimension_semantics=("parallel",) * n_axes,
        vmem_limit_bytes=_VMEM_LIMIT)


def _finish_stats(stats, c):
    st = stats.reshape(-1, 8, c)
    return st[:, 0, :].sum(axis=0), st[:, 1, :].sum(axis=0)


def _bn_scale_shift(s, sq, count, eps=1e-5):
    """Training-mode BatchNorm2d (gamma=1, beta=0) as per-channel scale/shift
    from exact full-batch sum / sum-of-squares (biased variance)."""
    mean = s / count
    var = jnp.maximum(sq / count - mean * mean, 0.0)
    scale = jax.lax.rsqrt(var + eps)
    return scale, -mean * scale


# ------------------------------ layer wrappers -------------------------------

def _conv12(p, w1, b1, w2, b2):
    m = p.shape[3]                                   # N*16 (number of 4x4 positions)
    t = _pick_rows_tile(m, row_bytes=4 * 4 * 12 * 2 + 4 * 128 * 2 + 4 * 128 * 4)
    g = m // t
    out_shape = (jax.ShapeDtypeStruct((4, 4, m, 128), _BF16),
                 jax.ShapeDtypeStruct((4 * g * 8, 128), jnp.float32))
    return pl.pallas_call(
        _conv12_kernel,
        out_shape=out_shape,
        grid=(4, g),
        in_specs=[
            pl.BlockSpec((None, 4, 4, t, 12), lambda ef, i: (ef, 0, 0, i, 0)),
            pl.BlockSpec((12, 128), lambda ef, i: (0, 0)),
            pl.BlockSpec((1, 128), lambda ef, i: (0, 0)),
            pl.BlockSpec((4, 128, 128), lambda ef, i: (0, 0, 0)),
            pl.BlockSpec((1, 128), lambda ef, i: (0, 0)),
        ],
        out_specs=(
            pl.BlockSpec((4, None, t, 128), lambda ef, i: (0, ef, i, 0)),
            pl.BlockSpec((8, 128), lambda ef, i: (ef * g + i, 0)),
        ),
        compiler_params=_compiler_params(2),
    )(p, w1, b1, w2, b2)


def _conv3(q2, w3f, b3f):
    m = q2.shape[2]
    t = _pick_rows_tile(m, row_bytes=4 * 128 * 2 + 256 * 2 + 256 * 4)
    g = m // t
    out_shape = (jax.ShapeDtypeStruct((4, m, 256), _BF16),
                 jax.ShapeDtypeStruct((4 * g * 8, 256), jnp.float32))
    return pl.pallas_call(
        _slab_conv_kernel,
        out_shape=out_shape,
        grid=(4, g),
        in_specs=[
            pl.BlockSpec((4, None, t, 128), lambda ef, i: (0, ef, i, 0)),
            pl.BlockSpec((4, 128, 256), lambda ef, i: (0, 0, 0)),
            pl.BlockSpec((1, 256), lambda ef, i: (0, 0)),
        ],
        out_specs=(
            pl.BlockSpec((None, t, 256), lambda ef, i: (ef, i, 0)),
            pl.BlockSpec((8, 256), lambda ef, i: (ef * g + i, 0)),
        ),
        compiler_params=_compiler_params(2),
    )(q2, w3f, b3f)


def _conv4(q3, w4f, b4f):
    m = q3.shape[1]
    t = _pick_rows_tile(m, row_bytes=4 * 256 * 2 + 512 * 2 + 512 * 4)
    g = m // t
    out_shape = (jax.ShapeDtypeStruct((m, 512), _BF16),
                 jax.ShapeDtypeStruct((g * 8, 512), jnp.float32))
    return pl.pallas_call(
        _slab_conv_kernel,
        out_shape=out_shape,
        grid=(g,),
        in_specs=[
            pl.BlockSpec((4, t, 256), lambda i: (0, i, 0)),
            pl.BlockSpec((4, 256, 512), lambda i: (0, 0, 0)),
            pl.BlockSpec((1, 512), lambda i: (0, 0)),
        ],
        out_specs=(
            pl.BlockSpec((t, 512), lambda i: (i, 0)),
            pl.BlockSpec((8, 512), lambda i: (i, 0)),
        ),
        compiler_params=_compiler_params(1),
    )(q3, w4f, b4f)


def _fc_sigmoid(xflat, w_row, b):
    n, k = xflat.shape
    xin, npad = xflat, n
    if n > 8 and n % 8 != 0:                         # ragged large batch: pad rows
        npad = ((n + 7) // 8) * 8
        xin = jnp.pad(xflat, ((0, npad - n), (0, 0)))
    t = _pick_rows_tile(npad, row_bytes=k * 6, cap_rows=128)
    g = npad // t
    out = pl.pallas_call(
        _fc_sigmoid_kernel,
        out_shape=jax.ShapeDtypeStruct((npad, 1), jnp.float32),
        grid=(g,),
        in_specs=[
            pl.BlockSpec((t, k), lambda i: (i, 0)),
            pl.BlockSpec((1, k), lambda i: (0, 0)),
            pl.BlockSpec((1, 1), lambda i: (0, 0)),
        ],
        out_specs=pl.BlockSpec((t, 1), lambda i: (i, 0)),
        compiler_params=_compiler_params(1),
    )(xin, w_row, b)
    return out[:n]


# ------------------------------- glue (JAX) ----------------------------------

def _conv_w_khwc(w):
    """PyTorch conv weight (Cout, Cin, 2, 2) -> (kh*kw*Cin, Cout) matmul weight."""
    cout = w.shape[0]
    return jnp.transpose(w, (2, 3, 1, 0)).reshape(-1, cout)


def _arrange_input_patches(x):
    """(N, 3, 64, 64) NCHW image -> P (4, 4, 4, N*16, 12).

    P[e*2+f, c*2+d, a*2+b, (n*4+h4)*4+w4, (g*2+hh)*3+ch] = x[n, ch, H, W] with
    H = 16*h4 + 8*e + 4*c + 2*a + g and W = 16*w4 + 8*f + 4*d + 2*b + hh:
    (e,f)/(c,d)/(a,b) are the conv4/conv3/conv2 kernel-tap selectors and
    (g,hh) are conv1's own 2x2 taps.  Done once, on the tiny network input.
    """
    n = x.shape[0]
    t = x.reshape(n, 3, 4, 2, 2, 2, 2, 4, 2, 2, 2, 2)
    #             n ch h4 e  c  a  g  w4 f  d  b  hh
    t = t.transpose(3, 8, 4, 9, 5, 10, 0, 2, 7, 6, 11, 1)
    #               e  f  c  d  a  b   n  h4 w4 g  hh ch
    return t.reshape(4, 4, 4, n * 16, 12)


def init_params(key):
    """Deterministic synthetic parameters matching the module's shapes."""
    filters = 64
    img_chns = 3
    flat = 512 * 4 * 4
    shapes = {
        "w1": (filters, img_chns, 2, 2), "b1": (filters,),
        "w2": (filters * 2, filters, 2, 2), "b2": (filters * 2,),
        "w3": (filters * 4, filters * 2, 2, 2), "b3": (filters * 4,),
        "w4": (filters * 8, filters * 4, 2, 2), "b4": (filters * 8,),
        "wfc": (1, flat), "bfc": (1,),
    }
    params = {}
    keys = jax.random.split(key, len(shapes))
    for k, (name, shp) in zip(keys, shapes.items()):
        if name.startswith("w"):
            fan_in = int(jnp.prod(jnp.array(shp[1:])))
            bound = 1.0 / jnp.sqrt(fan_in)
            params[name] = jax.random.uniform(k, shp, jnp.float32, -bound, bound)
        else:
            params[name] = jax.random.uniform(k, shp, jnp.float32, -0.05, 0.05)
    return params


def discriminator_forward(x, params):
    """x: (N, 3, 64, 64) float32 NCHW  ->  (N, 1) sigmoid outputs."""
    n = x.shape[0]

    # ---- one-time (tiny) weight rearrangements -------------------------
    # conv1: output channels 64 -> 128 zero-padded (matching zero rows in w2)
    # so all in-kernel matmul shapes are full 128-lane multiples.
    w1 = jnp.pad(_conv_w_khwc(params["w1"]), ((0, 0), (0, 64))).astype(_BF16)
    b1 = jnp.pad(params["b1"], (0, 64)).reshape(1, 128).astype(jnp.float32)
    w2 = jnp.transpose(params["w2"], (2, 3, 1, 0))                 # (2,2,64,128)
    w2 = jnp.pad(w2, ((0, 0), (0, 0), (0, 64), (0, 0))).reshape(4, 128, 128)
    w2 = w2.astype(_BF16)
    b2 = params["b2"].reshape(1, 128).astype(jnp.float32)
    w3 = jnp.transpose(params["w3"], (2, 3, 1, 0)).reshape(4, 128, 256)
    b3 = params["b3"].reshape(1, 256)
    w4 = jnp.transpose(params["w4"], (2, 3, 1, 0)).reshape(4, 256, 512)
    b4 = params["b4"].reshape(1, 512)
    # fc columns permuted NCHW -> NHWC once so the runtime flatten is free.
    wfc = params["wfc"].reshape(512, 4, 4).transpose(1, 2, 0).reshape(1, 512 * 16)
    bfc = params["bfc"].reshape(1, 1)

    # ---- image -> per-tap patch layout (the only XLA data movement) -----
    p = _arrange_input_patches(x).astype(_BF16)                    # (4,4,4,N*16,12)

    # ---- conv1 + conv2 fused (64x64 -> 16x16), ReLU, BN1 partials -------
    q2, st = _conv12(p, w1, b1, w2, b2)                            # (4,4,N*16,128)
    s, sq = _finish_stats(st, 128)
    scale1, shift1 = _bn_scale_shift(s, sq, n * 256)

    # ---- conv3 (16x16 -> 8x8), BN1 folded, ReLU, BN2 partials -----------
    w3f = (w3 * scale1[None, :, None]).astype(_BF16)
    b3f = (b3 + shift1[None, :] @ w3.sum(axis=0)).astype(jnp.float32)
    q3, st = _conv3(q2, w3f, b3f)                                  # (4,N*16,256)
    s, sq = _finish_stats(st, 256)
    scale2, shift2 = _bn_scale_shift(s, sq, n * 64)

    # ---- conv4 (8x8 -> 4x4), BN2 folded, ReLU, BN3 partials -------------
    w4f = (w4 * scale2[None, :, None]).astype(_BF16)
    b4f = (b4 + shift2[None, :] @ w4.sum(axis=0)).astype(jnp.float32)
    h4, st = _conv4(q3, w4f, b4f)                                  # (N*16, 512)
    s, sq = _finish_stats(st, 512)
    scale3, shift3 = _bn_scale_shift(s, sq, n * 16)

    # ---- fc (8192 -> 1), BN3 folded, sigmoid -----------------------------
    scale3f = jnp.tile(scale3, 16)
    shift3f = jnp.tile(shift3, 16)
    wfcf = (wfc * scale3f[None, :]).astype(jnp.float32)
    bfcf = (bfc + jnp.sum(shift3f[None, :] * wfc, axis=1, keepdims=True))
    bfcf = bfcf.astype(jnp.float32)
    hflat = h4.reshape(n, 512 * 16)                                # free NHWC flatten
    return _fc_sigmoid(hflat, wfcf, bfcf)


if __name__ == "__main__":
    # The module hard-codes flat = 512*4*4, so the input must be (N, 3, 64, 64).
    key = jax.random.PRNGKey(0)
    x = jax.random.normal(key, (2, 3, 64, 64), dtype=jnp.float32)
    params = init_params(jax.random.PRNGKey(1))

    fwd = jax.jit(discriminator_forward)
    y = fwd(x, params)
    jax.block_until_ready(y)

    assert y.shape == (2, 1)
    assert bool(jnp.all(jnp.isfinite(y)))
    assert bool(jnp.all((y >= 0.0) & (y <= 1.0)))
    print("KERNEL_OK")
</pallas_src>

<mosaic_0001>
module attributes {stable_mosaic.version = 11 : i64} {
  func.func @_conv12_kernel(%arg0: i32, %arg1: i32, %arg2: memref<1x4x4x16x12xbf16, #tpu.memory_space<vmem>>, %arg3: memref<12x128xbf16, #tpu.memory_space<vmem>>, %arg4: memref<1x128xf32, #tpu.memory_space<vmem>>, %arg5: memref<4x128x128xbf16, #tpu.memory_space<vmem>>, %arg6: memref<1x128xf32, #tpu.memory_space<vmem>>, %arg7: memref<4x1x16x128xbf16, #tpu.memory_space<vmem>>, %arg8: memref<8x128xf32, #tpu.memory_space<vmem>>) attributes {dimension_semantics = [#tpu.dimension_semantics<parallel>, #tpu.dimension_semantics<parallel>], iteration_bounds = array<i64: 4, 2>, scalar_prefetch = 0 : i64, scratch_operands = 0 : i64, tpu.core_type = #tpu.core_type<tc>, window_params = [{transform_indices = @transform_0, window_bounds = array<i64: 1, 4, 4, 16, 12>}, {pipeline_mode = #tpu.pipeline_mode<synchronous>, transform_indices = @transform_1, window_bounds = array<i64: 12, 128>}, {pipeline_mode = #tpu.pipeline_mode<synchronous>, transform_indices = @transform_2, window_bounds = array<i64: 1, 128>}, {pipeline_mode = #tpu.pipeline_mode<synchronous>, transform_indices = @transform_3, window_bounds = array<i64: 4, 128, 128>}, {pipeline_mode = #tpu.pipeline_mode<synchronous>, transform_indices = @transform_4, window_bounds = array<i64: 1, 128>}, {transform_indices = @transform_5, window_bounds = array<i64: 4, 1, 16, 128>}, {transform_indices = @transform_6, window_bounds = array<i64: 8, 128>}]} {
    %c0 = arith.constant 0 : index
    %c0_0 = arith.constant 0 : index
    %0 = vector.load %arg3[%c0, %c0_0] : memref<12x128xbf16, #tpu.memory_space<vmem>>, vector<12x128xbf16>
    %c0_1 = arith.constant 0 : index
    %c0_2 = arith.constant 0 : index
    %1 = vector.load %arg4[%c0_1, %c0_2] : memref<1x128xf32, #tpu.memory_space<vmem>>, vector<1x128xf32>
    %c0_3 = arith.constant 0 : index
    %c0_4 = arith.constant 0 : index
    %2 = vector.load %arg6[%c0_3, %c0_4] : memref<1x128xf32, #tpu.memory_space<vmem>>, vector<1x128xf32>
    %cst = arith.constant 0.000000e+00 : f32
    %3 = vector.broadcast %cst : f32 to vector<1x128xf32>
    %cst_5 = arith.constant 0.000000e+00 : f32
    %4 = vector.broadcast %cst_5 : f32 to vector<1x128xf32>
    %c0_6 = arith.constant 0 : index
    %c0_7 = arith.constant 0 : index
    %c0_8 = arith.constant 0 : index
    %c0_9 = arith.constant 0 : index
    %c0_10 = arith.constant 0 : index
    %5 = vector.load %arg2[%c0_6, %c0_7, %c0_8, %c0_9, %c0_10] : memref<1x4x4x16x12xbf16, #tpu.memory_space<vmem>>, vector<1x1x1x16x12xbf16>
    %6 = vector.shape_cast %5 : vector<1x1x1x16x12xbf16> to vector<16x12xbf16>
    %cst_11 = arith.constant dense<0.000000e+00> : vector<16x128xf32>
    %7 = tpu.matmul %6, %0, %cst_11 {dimension_numbers = #tpu.dot_dimension_numbers<[1], [0], [0], [1], [0, 0, 1, 1], [], []>} : vector<16x12xbf16>, vector<12x128xbf16>, vector<16x128xf32> -> vector<16x128xf32>
    %8 = vector.broadcast %1 : vector<1x128xf32> to vector<16x128xf32>
    %9 = arith.addf %7, %8 : vector<16x128xf32>
    %cst_12 = arith.constant 0.000000e+00 : f32
    %10 = vector.broadcast %cst_12 : f32 to vector<16x128xf32>
    %11 = arith.maximumf %9, %10 : vector<16x128xf32>
    %12 = arith.truncf %11 : vector<16x128xf32> to vector<16x128xbf16>
    %c0_13 = arith.constant 0 : index
    %c0_14 = arith.constant 0 : index
    %c0_15 = arith.constant 0 : index
    %13 = vector.load %arg5[%c0_13, %c0_14, %c0_15] : memref<4x128x128xbf16, #tpu.memory_space<vmem>>, vector<1x128x128xbf16>
    %14 = vector.shape_cast %13 : vector<1x128x128xbf16> to vector<128x128xbf16>
    %cst_16 = arith.constant dense<0.000000e+00> : vector<16x128xf32>
    %15 = tpu.matmul %12, %14, %cst_16 {dimension_numbers = #tpu.dot_dimension_numbers<[1], [0], [0], [1], [0, 0, 1, 1], [], []>} : vector<16x128xbf16>, vector<128x128xbf16>, vector<16x128xf32> -> vector<16x128xf32>
    %c0_17 = arith.constant 0 : index
    %c0_18 = arith.constant 0 : index
    %c1 = arith.constant 1 : index
    %c0_19 = arith.constant 0 : index
    %c0_20 = arith.constant 0 : index
    %16 = vector.load %arg2[%c0_17, %c0_18, %c1, %c0_19, %c0_20] : memref<1x4x4x16x12xbf16, #tpu.memory_space<vmem>>, vector<1x1x1x16x12xbf16>
    %17 = vector.shape_cast %16 : vector<1x1x1x16x12xbf16> to vector<16x12xbf16>
    %cst_21 = arith.constant dense<0.000000e+00> : vector<16x128xf32>
    %18 = tpu.matmul %17, %0, %cst_21 {dimension_numbers = #tpu.dot_dimension_numbers<[1], [0], [0], [1], [0, 0, 1, 1], [], []>} : vector<16x12xbf16>, vector<12x128xbf16>, vector<16x128xf32> -> vector<16x128xf32>
    %19 = vector.broadcast %1 : vector<1x128xf32> to vector<16x128xf32>
    %20 = arith.addf %18, %19 : vector<16x128xf32>
    %cst_22 = arith.constant 0.000000e+00 : f32
    %21 = vector.broadcast %cst_22 : f32 to vector<16x128xf32>
    %22 = arith.maximumf %20, %21 : vector<16x128xf32>
    %23 = arith.truncf %22 : vector<16x128xf32> to vector<16x128xbf16>
    %c1_23 = arith.constant 1 : index
    %c0_24 = arith.constant 0 : index
    %c0_25 = arith.constant 0 : index
    %24 = vector.load %arg5[%c1_23, %c0_24, %c0_25] : memref<4x128x128xbf16, #tpu.memory_space<vmem>>, vector<1x128x128xbf16>
    %25 = vector.shape_cast %24 : vector<1x128x128xbf16> to vector<128x128xbf16>
    %cst_26 = arith.constant dense<0.000000e+00> : vector<16x128xf32>
    %26 = tpu.matmul %23, %25, %cst_26 {dimension_numbers = #tpu.dot_dimension_numbers<[1], [0], [0], [1], [0, 0, 1, 1], [], []>} : vector<16x128xbf16>, vector<128x128xbf16>, vector<16x128xf32> -> vector<16x128xf32>
    %27 = arith.addf %15, %26 : vector<16x128xf32>
    %c0_27 = arith.constant 0 : index
    %c0_28 = arith.constant 0 : index
    %c2 = arith.constant 2 : index
    %c0_29 = arith.constant 0 : index
    %c0_30 = arith.constant 0 : index
    %28 = vector.load %arg2[%c0_27, %c0_28, %c2, %c0_29, %c0_30] : memref<1x4x4x16x12xbf16, #tpu.memory_space<vmem>>, vector<1x1x1x16x12xbf16>
    %29 = vector.shape_cast %28 : vector<1x1x1x16x12xbf16> to vector<16x12xbf16>
    %cst_31 = arith.constant dense<0.000000e+00> : vector<16x128xf32>
    %30 = tpu.matmul %29, %0, %cst_31 {dimension_numbers = #tpu.dot_dimension_numbers<[1], [0], [0], [1], [0, 0, 1, 1], [], []>} : vector<16x12xbf16>, vector<12x128xbf16>, vector<16x128xf32> -> vector<16x128xf32>
    %31 = vector.broadcast %1 : vector<1x128xf32> to vector<16x128xf32>
    %32 = arith.addf %30, %31 : vector<16x128xf32>
    %cst_32 = arith.constant 0.000000e+00 : f32
    %33 = vector.broadcast %cst_32 : f32 to vector<16x128xf32>
    %34 = arith.maximumf %32, %33 : vector<16x128xf32>
    %35 = arith.truncf %34 : vector<16x128xf32> to vector<16x128xbf16>
    %c2_33 = arith.constant 2 : index
    %c0_34 = arith.constant 0 : index
    %c0_35 = arith.constant 0 : index
    %36 = vector.load %arg5[%c2_33, %c0_34, %c0_35] : memref<4x128x128xbf16, #tpu.memory_space<vmem>>, vector<1x128x128xbf16>
    %37 = vector.shape_cast %36 : vector<1x128x128xbf16> to vector<128x128xbf16>
    %cst_36 = arith.constant dense<0.000000e+00> : vector<16x128xf32>
    %38 = tpu.matmul %35, %37, %cst_36 {dimension_numbers = #tpu.dot_dimension_numbers<[1], [0], [0], [1], [0, 0, 1, 1], [], []>} : vector<16x128xbf16>, vector<128x128xbf16>, vector<16x128xf32> -> vector<16x128xf32>
    %39 = arith.addf %27, %38 : vector<16x128xf32>
    %c0_37 = arith.constant 0 : index
    %c0_38 = arith.constant 0 : index
    %c3 = arith.constant 3 : index
    %c0_39 = arith.constant 0 : index
    %c0_40 = arith.constant 0 : index
    %40 = vector.load %arg2[%c0_37, %c0_38, %c3, %c0_39, %c0_40] : memref<1x4x4x16x12xbf16, #tpu.memory_space<vmem>>, vector<1x1x1x16x12xbf16>
    %41 = vector.shape_cast %40 : vector<1x1x1x16x12xbf16> to vector<16x12xbf16>
    %cst_41 = arith.constant dense<0.000000e+00> : vector<16x128xf32>
    %42 = tpu.matmul %41, %0, %cst_41 {dimension_numbers = #tpu.dot_dimension_numbers<[1], [0], [0], [1], [0, 0, 1, 1], [], []>} : vector<16x12xbf16>, vector<12x128xbf16>, vector<16x128xf32> -> vector<16x128xf32>
    %43 = vector.broadcast %1 : vector<1x128xf32> to vector<16x128xf32>
    %44 = arith.addf %42, %43 : vector<16x128xf32>
    %cst_42 = arith.constant 0.000000e+00 : f32
    %45 = vector.broadcast %cst_42 : f32 to vector<16x128xf32>
    %46 = arith.maximumf %44, %45 : vector<16x128xf32>
    %47 = arith.truncf %46 : vector<16x128xf32> to vector<16x128xbf16>
    %c3_43 = arith.constant 3 : index
    %c0_44 = arith.constant 0 : index
    %c0_45 = arith.constant 0 : index
    %48 = vector.load %arg5[%c3_43, %c0_44, %c0_45] : memref<4x128x128xbf16, #tpu.memory_space<vmem>>, vector<1x128x128xbf16>
    %49 = vector.shape_cast %48 : vector<1x128x128xbf16> to vector<128x128xbf16>
    %cst_46 = arith.constant dense<0.000000e+00> : vector<16x128xf32>
    %50 = tpu.matmul %47, %49, %cst_46 {dimension_numbers = #tpu.dot_dimension_numbers<[1], [0], [0], [1], [0, 0, 1, 1], [], []>} : vector<16x128xbf16>, vector<128x128xbf16>, vector<16x128xf32> -> vector<16x128xf32>
    %51 = arith.addf %39, %50 : vector<16x128xf32>
    %52 = vector.broadcast %2 : vector<1x128xf32> to vector<16x128xf32>
    %53 = arith.addf %51, %52 : vector<16x128xf32>
    %cst_47 = arith.constant 0.000000e+00 : f32
    %54 = vector.broadcast %cst_47 : f32 to vector<16x128xf32>
    %55 = arith.maximumf %53, %54 : vector<16x128xf32>
    %56 = arith.truncf %55 : vector<16x128xf32> to vector<16x128xbf16>
    %c0_48 = arith.constant 0 : index
    %c0_49 = arith.constant 0 : index
    %c0_50 = arith.constant 0 : index
    %c0_51 = arith.constant 0 : index
    %57 = vector.load %arg7[%c0_48, %c0_49, %c0_50, %c0_51] : memref<4x1x16x128xbf16, #tpu.memory_space<vmem>>, vector<1x1x16x128xbf16>
    %58 = vector.shape_cast %57 : vector<1x1x16x128xbf16> to vector<16x128xbf16>
    %59 = vector.shape_cast %56 : vector<16x128xbf16> to vector<1x1x16x128xbf16>
    tpu.vector_store %arg7[%c0_48, %c0_49, %c0_50, %c0_51], %59 {strides = array<i32>} : memref<4x1x16x128xbf16, #tpu.memory_space<vmem>>, vector<1x1x16x128xbf16>,
    %cst_52 = arith.constant dense<0.000000e+00> : vector<128xf32>
    %60 = vector.multi_reduction <add>, %55, %cst_52 [0] : vector<16x128xf32> to vector<128xf32>
    %61 = vector.shape_cast %60 : vector<128xf32> to vector<1x128xf32>
    %62 = arith.addf %3, %61 : vector<1x128xf32>
    %63 = arith.mulf %55, %55 : vector<16x128xf32>
    %cst_53 = arith.constant dense<0.000000e+00> : vector<128xf32>
    %64 = vector.multi_reduction <add>, %63, %cst_53 [0] : vector<16x128xf32> to vector<128xf32>
    %65 = vector.shape_cast %64 : vector<128xf32> to vector<1x128xf32>
    %66 = arith.addf %4, %65 : vector<1x128xf32>
    %c0_54 = arith.constant 0 : index
    %c1_55 = arith.constant 1 : index
    %c0_56 = arith.constant 0 : index
    %c0_57 = arith.constant 0 : index
    %c0_58 = arith.constant 0 : index
    %67 = vector.load %arg2[%c0_54, %c1_55, %c0_56, %c0_57, %c0_58] : memref<1x4x4x16x12xbf16, #tpu.memory_space<vmem>>, vector<1x1x1x16x12xbf16>
    %68 = vector.shape_cast %67 : vector<1x1x1x16x12xbf16> to vector<16x12xbf16>
    %cst_59 = arith.constant dense<0.000000e+00> : vector<16x128xf32>
    %69 = tpu.matmul %68, %0, %cst_59 {dimension_numbers = #tpu.dot_dimension_numbers<[1], [0], [0], [1], [0, 0, 1, 1], [], []>} : vector<16x12xbf16>, vector<12x128xbf16>, vector<16x128xf32> -> vector<16x128xf32>
    %70 = vector.broadcast %1 : vector<1x128xf32> to vector<16x128xf32>
    %71 = arith.addf %69, %70 : vector<16x128xf32>
    %cst_60 = arith.constant 0.000000e+00 : f32
    %72 = vector.broadcast %cst_60 : f32 to vector<16x128xf32>
    %73 = arith.maximumf %71, %72 : vector<16x128xf32>
    %74 = arith.truncf %73 : vector<16x128xf32> to vector<16x128xbf16>
    %c0_61 = arith.constant 0 : index
    %c0_62 = arith.constant 0 : index
    %c0_63 = arith.constant 0 : index
    %75 = vector.load %arg5[%c0_61, %c0_62, %c0_63] : memref<4x128x128xbf16, #tpu.memory_space<vmem>>, vector<1x128x128xbf16>
    %76 = vector.shape_cast %75 : vector<1x128x128xbf16> to vector<128x128xbf16>
    %cst_64 = arith.constant dense<0.000000e+00> : vector<16x128xf32>
    %77 = tpu.matmul %74, %76, %cst_64 {dimension_numbers = #tpu.dot_dimension_numbers<[1], [0], [0], [1], [0, 0, 1, 1], [], []>} : vector<16x128xbf16>, vector<128x128xbf16>, vector<16x128xf32> -> vector<16x128xf32>
    %c0_65 = arith.constant 0 : index
    %c1_66 = arith.constant 1 : index
    %c1_67 = arith.constant 1 : index
    %c0_68 = arith.constant 0 : index
    %c0_69 = arith.constant 0 : index
    %78 = vector.load %arg2[%c0_65, %c1_66, %c1_67, %c0_68, %c0_69] : memref<1x4x4x16x12xbf16, #tpu.memory_space<vmem>>, vector<1x1x1x16x12xbf16>
    %79 = vector.shape_cast %78 : vector<1x1x1x16x12xbf16> to vector<16x12xbf16>
    %cst_70 = arith.constant dense<0.000000e+00> : vector<16x128xf32>
    %80 = tpu.matmul %79, %0, %cst_70 {dimension_numbers = #tpu.dot_dimension_numbers<[1], [0], [0], [1], [0, 0, 1, 1], [], []>} : vector<16x12xbf16>, vector<12x128xbf16>, vector<16x128xf32> -> vector<16x128xf32>
    %81 = vector.broadcast %1 : vector<1x128xf32> to vector<16x128xf32>
    %82 = arith.addf %80, %81 : vector<16x128xf32>
    %cst_71 = arith.constant 0.000000e+00 : f32
    %83 = vector.broadcast %cst_71 : f32 to vector<16x128xf32>
    %84 = arith.maximumf %82, %83 : vector<16x128xf32>
    %85 = arith.truncf %84 : vector<16x128xf32> to vector<16x128xbf16>
    %c1_72 = arith.constant 1 : index
    %c0_73 = arith.constant 0 : index
    %c0_74 = arith.constant 0 : index
    %86 = vector.load %arg5[%c1_72, %c0_73, %c0_74] : memref<4x128x128xbf16, #tpu.memory_space<vmem>>, vector<1x128x128xbf16>
    %87 = vector.shape_cast %86 : vector<1x128x128xbf16> to vector<128x128xbf16>
    %cst_75 = arith.constant dense<0.000000e+00> : vector<16x128xf32>
    %88 = tpu.matmul %85, %87, %cst_75 {dimension_numbers = #tpu.dot_dimension_numbers<[1], [0], [0], [1], [0, 0, 1, 1], [], []>} : vector<16x128xbf16>, vector<128x128xbf16>, vector<16x128xf32> -> vector<16x128xf32>
    %89 = arith.addf %77, %88 : vector<16x128xf32>
    %c0_76 = arith.constant 0 : index
    %c1_77 = arith.constant 1 : index
    %c2_78 = arith.constant 2 : index
    %c0_79 = arith.constant 0 : index
    %c0_80 = arith.constant 0 : index
    %90 = vector.load %arg2[%c0_76, %c1_77, %c2_78, %c0_79, %c0_80] : memref<1x4x4x16x12xbf16, #tpu.memory_space<vmem>>, vector<1x1x1x16x12xbf16>
    %91 = vector.shape_cast %90 : vector<1x1x1x16x12xbf16> to vector<16x12xbf16>
    %cst_81 = arith.constant dense<0.000000e+00> : vector<16x128xf32>
    %92 = tpu.matmul %91, %0, %cst_81 {dimension_numbers = #tpu.dot_dimension_numbers<[1], [0], [0], [1], [0, 0, 1, 1], [], []>} : vector<16x12xbf16>, vector<12x128xbf16>, vector<16x128xf32> -> vector<16x128xf32>
    %93 = vector.broadcast %1 : vector<1x128xf32> to vector<16x128xf32>
    %94 = arith.addf %92, %93 : vector<16x128xf32>
    %cst_82 = arith.constant 0.000000e+00 : f32
    %95 = vector.broadcast %cst_82 : f32 to vector<16x128xf32>
    %96 = arith.maximumf %94, %95 : vector<16x128xf32>
    %97 = arith.truncf %96 : vector<16x128xf32> to vector<16x128xbf16>
    %c2_83 = arith.constant 2 : index
    %c0_84 = arith.constant 0 : index
    %c0_85 = arith.constant 0 : index
    %98 = vector.load %arg5[%c2_83, %c0_84, %c0_85] : memref<4x128x128xbf16, #tpu.memory_space<vmem>>, vector<1x128x128xbf16>
    %99 = vector.shape_cast %98 : vector<1x128x128xbf16> to vector<128x128xbf16>
    %cst_86 = arith.constant dense<0.000000e+00> : vector<16x128xf32>
    %100 = tpu.matmul %97, %99, %cst_86 {dimension_numbers = #tpu.dot_dimension_numbers<[1], [0], [0], [1], [0, 0, 1, 1], [], []>} : vector<16x128xbf16>, vector<128x128xbf16>, vector<16x128xf32> -> vector<16x128xf32>
    %101 = arith.addf %89, %100 : vector<16x128xf32>
    %c0_87 = arith.constant 0 : index
    %c1_88 = arith.constant 1 : index
    %c3_89 = arith.constant 3 : index
    %c0_90 = arith.constant 0 : index
    %c0_91 = arith.constant 0 : index
    %102 = vector.load %arg2[%c0_87, %c1_88, %c3_89, %c0_90, %c0_91] : memref<1x4x4x16x12xbf16, #tpu.memory_space<vmem>>, vector<1x1x1x16x12xbf16>
    %103 = vector.shape_cast %102 : vector<1x1x1x16x12xbf16> to vector<16x12xbf16>
    %cst_92 = arith.constant dense<0.000000e+00> : vector<16x128xf32>
    %104 = tpu.matmul %103, %0, %cst_92 {dimension_numbers = #tpu.dot_dimension_numbers<[1], [0], [0], [1], [0, 0, 1, 1], [], []>} : vector<16x12xbf16>, vector<12x128xbf16>, vector<16x128xf32> -> vector<16x128xf32>
    %105 = vector.broadcast %1 : vector<1x128xf32> to vector<16x128xf32>
    %106 = arith.addf %104, %105 : vector<16x128xf32>
    %cst_93 = arith.constant 0.000000e+00 : f32
    %107 = vector.broadcast %cst_93 : f32 to vector<16x128xf32>
    %108 = arith.maximumf %106, %107 : vector<16x128xf32>
    %109 = arith.truncf %108 : vector<16x128xf32> to vector<16x128xbf16>
    %c3_94 = arith.constant 3 : index
    %c0_95 = arith.constant 0 : index
    %c0_96 = arith.constant 0 : index
    %110 = vector.load %arg5[%c3_94, %c0_95, %c0_96] : memref<4x128x128xbf16, #tpu.memory_space<vmem>>, vector<1x128x128xbf16>
    %111 = vector.shape_cast %110 : vector<1x128x128xbf16> to vector<128x128xbf16>
    %cst_97 = arith.constant dense<0.000000e+00> : vector<16x128xf32>
    %112 = tpu.matmul %109, %111, %cst_97 {dimension_numbers = #tpu.dot_dimension_numbers<[1], [0], [0], [1], [0, 0, 1, 1], [], []>} : vector<16x128xbf16>, vector<128x128xbf16>, vector<16x128xf32> -> vector<16x128xf32>
    %113 = arith.addf %101, %112 : vector<16x128xf32>
    %114 = vector.broadcast %2 : vector<1x128xf32> to vector<16x128xf32>
    %115 = arith.addf %113, %114 : vector<16x128xf32>
    %cst_98 = arith.constant 0.000000e+00 : f32
    %116 = vector.broadcast %cst_98 : f32 to vector<16x128xf32>
    %117 = arith.maximumf %115, %116 : vector<16x128xf32>
    %118 = arith.truncf %117 : vector<16x128xf32> to vector<16x128xbf16>
    %c1_99 = arith.constant 1 : index
    %c0_100 = arith.constant 0 : index
    %c0_101 = arith.constant 0 : index
    %c0_102 = arith.constant 0 : index
    %119 = vector.load %arg7[%c1_99, %c0_100, %c0_101, %c0_102] : memref<4x1x16x128xbf16, #tpu.memory_space<vmem>>, vector<1x1x16x128xbf16>
    %120 = vector.shape_cast %119 : vector<1x1x16x128xbf16> to vector<16x128xbf16>
    %121 = vector.shape_cast %118 : vector<16x128xbf16> to vector<1x1x16x128xbf16>
    tpu.vector_store %arg7[%c1_99, %c0_100, %c0_101, %c0_102], %121 {strides = array<i32>} : memref<4x1x16x128xbf16, #tpu.memory_space<vmem>>, vector<1x1x16x128xbf16>,
    %cst_103 = arith.constant dense<0.000000e+00> : vector<128xf32>
    %122 = vector.multi_reduction <add>, %117, %cst_103 [0] : vector<16x128xf32> to vector<128xf32>
    %123 = vector.shape_cast %122 : vector<128xf32> to vector<1x128xf32>
    %124 = arith.addf %62, %123 : vector<1x128xf32>
    %125 = arith.mulf %117, %117 : vector<16x128xf32>
    %cst_104 = arith.constant dense<0.000000e+00> : vector<128xf32>
    %126 = vector.multi_reduction <add>, %125, %cst_104 [0] : vector<16x128xf32> to vector<128xf32>
    %127 = vector.shape_cast %126 : vector<128xf32> to vector<1x128xf32>
    %128 = arith.addf %66, %127 : vector<1x128xf32>
    %c0_105 = arith.constant 0 : index
    %c2_106 = arith.constant 2 : index
    %c0_107 = arith.constant 0 : index
    %c0_108 = arith.constant 0 : index
    %c0_109 = arith.constant 0 : index
    %129 = vector.load %arg2[%c0_105, %c2_106, %c0_107, %c0_108, %c0_109] : memref<1x4x4x16x12xbf16, #tpu.memory_space<vmem>>, vector<1x1x1x16x12xbf16>
    %130 = vector.shape_cast %129 : vector<1x1x1x16x12xbf16> to vector<16x12xbf16>
    %cst_110 = arith.constant dense<0.000000e+00> : vector<16x128xf32>
    %131 = tpu.matmul %130, %0, %cst_110 {dimension_numbers = #tpu.dot_dimension_numbers<[1], [0], [0], [1], [0, 0, 1, 1], [], []>} : vector<16x12xbf16>, vector<12x128xbf16>, vector<16x128xf32> -> vector<16x128xf32>
    %132 = vector.broadcast %1 : vector<1x128xf32> to vector<16x128xf32>
    %133 = arith.addf %131, %132 : vector<16x128xf32>
    %cst_111 = arith.constant 0.000000e+00 : f32
    %134 = vector.broadcast %cst_111 : f32 to vector<16x128xf32>
    %135 = arith.maximumf %133, %134 : vector<16x128xf32>
    %136 = arith.truncf %135 : vector<16x128xf32> to vector<16x128xbf16>
    %c0_112 = arith.constant 0 : index
    %c0_113 = arith.constant 0 : index
    %c0_114 = arith.constant 0 : index
    %137 = vector.load %arg5[%c0_112, %c0_113, %c0_114] : memref<4x128x128xbf16, #tpu.memory_space<vmem>>, vector<1x128x128xbf16>
    %138 = vector.shape_cast %137 : vector<1x128x128xbf16> to vector<128x128xbf16>
    %cst_115 = arith.constant dense<0.000000e+00> : vector<16x128xf32>
    %139 = tpu.matmul %136, %138, %cst_115 {dimension_numbers = #tpu.dot_dimension_numbers<[1], [0], [0], [1], [0, 0, 1, 1], [], []>} : vector<16x128xbf16>, vector<128x128xbf16>, vector<16x128xf32> -> vector<16x128xf32>
    %c0_116 = arith.constant 0 : index
    %c2_117 = arith.constant 2 : index
    %c1_118 = arith.constant 1 : index
    %c0_119 = arith.constant 0 : index
    %c0_120 = arith.constant 0 : index
    %140 = vector.load %arg2[%c0_116, %c2_117, %c1_118, %c0_119, %c0_120] : memref<1x4x4x16x12xbf16, #tpu.memory_space<vmem>>, vector<1x1x1x16x12xbf16>
    %141 = vector.shape_cast %140 : vector<1x1x1x16x12xbf16> to vector<16x12xbf16>
    %cst_121 = arith.constant dense<0.000000e+00> : vector<16x128xf32>
    %142 = tpu.matmul %141, %0, %cst_121 {dimension_numbers = #tpu.dot_dimension_numbers<[1], [0], [0], [1], [0, 0, 1, 1], [], []>} : vector<16x12xbf16>, vector<12x128xbf16>, vector<16x128xf32> -> vector<16x128xf32>
    %143 = vector.broadcast %1 : vector<1x128xf32> to vector<16x128xf32>
    %144 = arith.addf %142, %143 : vector<16x128xf32>
    %cst_122 = arith.constant 0.000000e+00 : f32
    %145 = vector.broadcast %cst_122 : f32 to vector<16x128xf32>
    %146 = arith.maximumf %144, %145 : vector<16x128xf32>
    %147 = arith.truncf %146 : vector<16x128xf32> to vector<16x128xbf16>
    %c1_123 = arith.constant 1 : index
    %c0_124 = arith.constant 0 : index
    %c0_125 = arith.constant 0 : index
    %148 = vector.load %arg5[%c1_123, %c0_124, %c0_125] : memref<4x128x128xbf16, #tpu.memory_space<vmem>>, vector<1x128x128xbf16>
    %149 = vector.shape_cast %148 : vector<1x128x128xbf16> to vector<128x128xbf16>
    %cst_126 = arith.constant dense<0.000000e+00> : vector<16x128xf32>
    %150 = tpu.matmul %147, %149, %cst_126 {dimension_numbers = #tpu.dot_dimension_numbers<[1], [0], [0], [1], [0, 0, 1, 1], [], []>} : vector<16x128xbf16>, vector<128x128xbf16>, vector<16x128xf32> -> vector<16x128xf32>
    %151 = arith.addf %139, %150 : vector<16x128xf32>
    %c0_127 = arith.constant 0 : index
    %c2_128 = arith.constant 2 : index
    %c2_129 = arith.constant 2 : index
    %c0_130 = arith.constant 0 : index
    %c0_131 = arith.constant 0 : index
    %152 = vector.load %arg2[%c0_127, %c2_128, %c2_129, %c0_130, %c0_131] : memref<1x4x4x16x12xbf16, #tpu.memory_space<vmem>>, vector<1x1x1x16x12xbf16>
    %153 = vector.shape_cast %152 : vector<1x1x1x16x12xbf16> to vector<16x12xbf16>
    %cst_132 = arith.constant dense<0.000000e+00> : vector<16x128xf32>
    %154 = tpu.matmul %153, %0, %cst_132 {dimension_numbers = #tpu.dot_dimension_numbers<[1], [0], [0], [1], [0, 0, 1, 1], [], []>} : vector<16x12xbf16>, vector<12x128xbf16>, vector<16x128xf32> -> vector<16x128xf32>
    %155 = vector.broadcast %1 : vector<1x128xf32> to vector<16x128xf32>
    %156 = arith.addf %154, %155 : vector<16x128xf32>
    %cst_133 = arith.constant 0.000000e+00 : f32
    %157 = vector.broadcast %cst_133 : f32 to vector<16x128xf32>
    %158 = arith.maximumf %156, %157 : vector<16x128xf32>
    %159 = arith.truncf %158 : vector<16x128xf32> to vector<16x128xbf16>
    %c2_134 = arith.constant 2 : index
    %c0_135 = arith.constant 0 : index
    %c0_136 = arith.constant 0 : index
    %160 = vector.load %arg5[%c2_134, %c0_135, %c0_136] : memref<4x128x128xbf16, #tpu.memory_space<vmem>>, vector<1x128x128xbf16>
    %161 = vector.shape_cast %160 : vector<1x128x128xbf16> to vector<128x128xbf16>
    %cst_137 = arith.constant dense<0.000000e+00> : vector<16x128xf32>
    %162 = tpu.matmul %159, %161, %cst_137 {dimension_numbers = #tpu.dot_dimension_numbers<[1], [0], [0], [1], [0, 0, 1, 1], [], []>} : vector<16x128xbf16>, vector<128x128xbf16>, vector<16x128xf32> -> vector<16x128xf32>
    %163 = arith.addf %151, %162 : vector<16x128xf32>
    %c0_138 = arith.constant 0 : index
    %c2_139 = arith.constant 2 : index
    %c3_140 = arith.constant 3 : index
    %c0_141 = arith.constant 0 : index
    %c0_142 = arith.constant 0 : index
    %164 = vector.load %arg2[%c0_138, %c2_139, %c3_140, %c0_141, %c0_142] : memref<1x4x4x16x12xbf16, #tpu.memory_space<vmem>>, vector<1x1x1x16x12xbf16>
    %165 = vector.shape_cast %164 : vector<1x1x1x16x12xbf16> to vector<16x12xbf16>
    %cst_143 = arith.constant dense<0.000000e+00> : vector<16x128xf32>
    %166 = tpu.matmul %165, %0, %cst_143 {dimension_numbers = #tpu.dot_dimension_numbers<[1], [0], [0], [1], [0, 0, 1, 1], [], []>} : vector<16x12xbf16>, vector<12x128xbf16>, vector<16x128xf32> -> vector<16x128xf32>
    %167 = vector.broadcast %1 : vector<1x128xf32> to vector<16x128xf32>
    %168 = arith.addf %166, %167 : vector<16x128xf32>
    %cst_144 = arith.constant 0.000000e+00 : f32
    %169 = vector.broadcast %cst_144 : f32 to vector<16x128xf32>
    %170 = arith.maximumf %168, %169 : vector<16x128xf32>
    %171 = arith.truncf %170 : vector<16x128xf32> to vector<16x128xbf16>
    %c3_145 = arith.constant 3 : index
    %c0_146 = arith.constant 0 : index
    %c0_147 = arith.constant 0 : index
    %172 = vector.load %arg5[%c3_145, %c0_146, %c0_147] : memref<4x128x128xbf16, #tpu.memory_space<vmem>>, vector<1x128x128xbf16>
    %173 = vector.shape_cast %172 : vector<1x128x128xbf16> to vector<128x128xbf16>
    %cst_148 = arith.constant dense<0.000000e+00> : vector<16x128xf32>
    %174 = tpu.matmul %171, %173, %cst_148 {dimension_numbers = #tpu.dot_dimension_numbers<[1], [0], [0], [1], [0, 0, 1, 1], [], []>} : vector<16x128xbf16>, vector<128x128xbf16>, vector<16x128xf32> -> vector<16x128xf32>
    %175 = arith.addf %163, %174 : vector<16x128xf32>
    %176 = vector.broadcast %2 : vector<1x128xf32> to vector<16x128xf32>
    %177 = arith.addf %175, %176 : vector<16x128xf32>
    %cst_149 = arith.constant 0.000000e+00 : f32
    %178 = vector.broadcast %cst_149 : f32 to vector<16x128xf32>
    %179 = arith.maximumf %177, %178 : vector<16x128xf32>
    %180 = arith.truncf %179 : vector<16x128xf32> to vector<16x128xbf16>
    %c2_150 = arith.constant 2 : index
    %c0_151 = arith.constant 0 : index
    %c0_152 = arith.constant 0 : index
    %c0_153 = arith.constant 0 : index
    %181 = vector.load %arg7[%c2_150, %c0_151, %c0_152, %c0_153] : memref<4x1x16x128xbf16, #tpu.memory_space<vmem>>, vector<1x1x16x128xbf16>
    %182 = vector.shape_cast %181 : vector<1x1x16x128xbf16> to vector<16x128xbf16>
    %183 = vector.shape_cast %180 : vector<16x128xbf16> to vector<1x1x16x128xbf16>
    tpu.vector_store %arg7[%c2_150, %c0_151, %c0_152, %c0_153], %183 {strides = array<i32>} : memref<4x1x16x128xbf16, #tpu.memory_space<vmem>>, vector<1x1x16x128xbf16>,
    %cst_154 = arith.constant dense<0.000000e+00> : vector<128xf32>
    %184 = vector.multi_reduction <add>, %179, %cst_154 [0] : vector<16x128xf32> to vector<128xf32>
    %185 = vector.shape_cast %184 : vector<128xf32> to vector<1x128xf32>
    %186 = arith.addf %124, %185 : vector<1x128xf32>
    %187 = arith.mulf %179, %179 : vector<16x128xf32>
    %cst_155 = arith.constant dense<0.000000e+00> : vector<128xf32>
    %188 = vector.multi_reduction <add>, %187, %cst_155 [0] : vector<16x128xf32> to vector<128xf32>
    %189 = vector.shape_cast %188 : vector<128xf32> to vector<1x128xf32>
    %190 = arith.addf %128, %189 : vector<1x128xf32>
    %c0_156 = arith.constant 0 : index
    %c3_157 = arith.constant 3 : index
    %c0_158 = arith.constant 0 : index
    %c0_159 = arith.constant 0 : index
    %c0_160 = arith.constant 0 : index
    %191 = vector.load %arg2[%c0_156, %c3_157, %c0_158, %c0_159, %c0_160] : memref<1x4x4x16x12xbf16, #tpu.memory_space<vmem>>, vector<1x1x1x16x12xbf16>
    %192 = vector.shape_cast %191 : vector<1x1x1x16x12xbf16> to vector<16x12xbf16>
    %cst_161 = arith.constant dense<0.000000e+00> : vector<16x128xf32>
    %193 = tpu.matmul %192, %0, %cst_161 {dimension_numbers = #tpu.dot_dimension_numbers<[1], [0], [0], [1], [0, 0, 1, 1], [], []>} : vector<16x12xbf16>, vector<12x128xbf16>, vector<16x128xf32> -> vector<16x128xf32>
    %194 = vector.broadcast %1 : vector<1x128xf32> to vector<16x128xf32>
    %195 = arith.addf %193, %194 : vector<16x128xf32>
    %cst_162 = arith.constant 0.000000e+00 : f32
    %196 = vector.broadcast %cst_162 : f32 to vector<16x128xf32>
    %197 = arith.maximumf %195, %196 : vector<16x128xf32>
    %198 = arith.truncf %197 : vector<16x128xf32> to vector<16x128xbf16>
    %c0_163 = arith.constant 0 : index
    %c0_164 = arith.constant 0 : index
    %c0_165 = arith.constant 0 : index
    %199 = vector.load %arg5[%c0_163, %c0_164, %c0_165] : memref<4x128x128xbf16, #tpu.memory_space<vmem>>, vector<1x128x128xbf16>
    %200 = vector.shape_cast %199 : vector<1x128x128xbf16> to vector<128x128xbf16>
    %cst_166 = arith.constant dense<0.000000e+00> : vector<16x128xf32>
    %201 = tpu.matmul %198, %200, %cst_166 {dimension_numbers = #tpu.dot_dimension_numbers<[1], [0], [0], [1], [0, 0, 1, 1], [], []>} : vector<16x128xbf16>, vector<128x128xbf16>, vector<16x128xf32> -> vector<16x128xf32>
    %c0_167 = arith.constant 0 : index
    %c3_168 = arith.constant 3 : index
    %c1_169 = arith.constant 1 : index
    %c0_170 = arith.constant 0 : index
    %c0_171 = arith.constant 0 : index
    %202 = vector.load %arg2[%c0_167, %c3_168, %c1_169, %c0_170, %c0_171] : memref<1x4x4x16x12xbf16, #tpu.memory_space<vmem>>, vector<1x1x1x16x12xbf16>
    %203 = vector.shape_cast %202 : vector<1x1x1x16x12xbf16> to vector<16x12xbf16>
    %cst_172 = arith.constant dense<0.000000e+00> : vector<16x128xf32>
    %204 = tpu.matmul %203, %0, %cst_172 {dimension_numbers = #tpu.dot_dimension_numbers<[1], [0], [0], [1], [0, 0, 1, 1], [], []>} : vector<16x12xbf16>, vector<12x128xbf16>, vector<16x128xf32> -> vector<16x128xf32>
    %205 = vector.broadcast %1 : vector<1x128xf32> to vector<16x128xf32>
    %206 = arith.addf %204, %205 : vector<16x128xf32>
    %cst_173 = arith.constant 0.000000e+00 : f32
    %207 = vector.broadcast %cst_173 : f32 to vector<16x128xf32>
    %208 = arith.maximumf %206, %207 : vector<16x128xf32>
    %209 = arith.truncf %208 : vector<16x128xf32> to vector<16x128xbf16>
    %c1_174 = arith.constant 1 : index
    %c0_175 = arith.constant 0 : index
    %c0_176 = arith.constant 0 : index
    %210 = vector.load %arg5[%c1_174, %c0_175, %c0_176] : memref<4x128x128xbf16, #tpu.memory_space<vmem>>, vector<1x128x128xbf16>
    %211 = vector.shape_cast %210 : vector<1x128x128xbf16> to vector<128x128xbf16>
    %cst_177 = arith.constant dense<0.000000e+00> : vector<16x128xf32>
    %212 = tpu.matmul %209, %211, %cst_177 {dimension_numbers = #tpu.dot_dimension_numbers<[1], [0], [0], [1], [0, 0, 1, 1], [], []>} : vector<16x128xbf16>, vector<128x128xbf16>, vector<16x128xf32> -> vector<16x128xf32>
    %213 = arith.addf %201, %212 : vector<16x128xf32>
    %c0_178 = arith.constant 0 : index
    %c3_179 = arith.constant 3 : index
    %c2_180 = arith.constant 2 : index
    %c0_181 = arith.constant 0 : index
    %c0_182 = arith.constant 0 : index
    %214 = vector.load %arg2[%c0_178, %c3_179, %c2_180, %c0_181, %c0_182] : memref<1x4x4x16x12xbf16, #tpu.memory_space<vmem>>, vector<1x1x1x16x12xbf16>
    %215 = vector.shape_cast %214 : vector<1x1x1x16x12xbf16> to vector<16x12xbf16>
    %cst_183 = arith.constant dense<0.000000e+00> : vector<16x128xf32>
    %216 = tpu.matmul %215, %0, %cst_183 {dimension_numbers = #tpu.dot_dimension_numbers<[1], [0], [0], [1], [0, 0, 1, 1], [], []>} : vector<16x12xbf16>, vector<12x128xbf16>, vector<16x128xf32> -> vector<16x128xf32>
    %217 = vector.broadcast %1 : vector<1x128xf32> to vector<16x128xf32>
    %218 = arith.addf %216, %217 : vector<16x128xf32>
    %cst_184 = arith.constant 0.000000e+00 : f32
    %219 = vector.broadcast %cst_184 : f32 to vector<16x128xf32>
    %220 = arith.maximumf %218, %219 : vector<16x128xf32>
    %221 = arith.truncf %220 : vector<16x128xf32> to vector<16x128xbf16>
    %c2_185 = arith.constant 2 : index
    %c0_186 = arith.constant 0 : index
    %c0_187 = arith.constant 0 : index
    %222 = vector.load %arg5[%c2_185, %c0_186, %c0_187] : memref<4x128x128xbf16, #tpu.memory_space<vmem>>, vector<1x128x128xbf16>
    %223 = vector.shape_cast %222 : vector<1x128x128xbf16> to vector<128x128xbf16>
    %cst_188 = arith.constant dense<0.000000e+00> : vector<16x128xf32>
    %224 = tpu.matmul %221, %223, %cst_188 {dimension_numbers = #tpu.dot_dimension_numbers<[1], [0], [0], [1], [0, 0, 1, 1], [], []>} : vector<16x128xbf16>, vector<128x128xbf16>, vector<16x128xf32> -> vector<16x128xf32>
    %225 = arith.addf %213, %224 : vector<16x128xf32>
    %c0_189 = arith.constant 0 : index
    %c3_190 = arith.constant 3 : index
    %c3_191 = arith.constant 3 : index
    %c0_192 = arith.constant 0 : index
    %c0_193 = arith.constant 0 : index
    %226 = vector.load %arg2[%c0_189, %c3_190, %c3_191, %c0_192, %c0_193] : memref<1x4x4x16x12xbf16, #tpu.memory_space<vmem>>, vector<1x1x1x16x12xbf16>
    %227 = vector.shape_cast %226 : vector<1x1x1x16x12xbf16> to vector<16x12xbf16>
    %cst_194 = arith.constant dense<0.000000e+00> : vector<16x128xf32>
    %228 = tpu.matmul %227, %0, %cst_194 {dimension_numbers = #tpu.dot_dimension_numbers<[1], [0], [0], [1], [0, 0, 1, 1], [], []>} : vector<16x12xbf16>, vector<12x128xbf16>, vector<16x128xf32> -> vector<16x128xf32>
    %229 = vector.broadcast %1 : vector<1x128xf32> to vector<16x128xf32>
    %230 = arith.addf %228, %229 : vector<16x128xf32>
    %cst_195 = arith.constant 0.000000e+00 : f32
    %231 = vector.broadcast %cst_195 : f32 to vector<16x128xf32>
    %232 = arith.maximumf %230, %231 : vector<16x128xf32>
    %233 = arith.truncf %232 : vector<16x128xf32> to vector<16x128xbf16>
    %c3_196 = arith.constant 3 : index
    %c0_197 = arith.constant 0 : index
    %c0_198 = arith.constant 0 : index
    %234 = vector.load %arg5[%c3_196, %c0_197, %c0_198] : memref<4x128x128xbf16, #tpu.memory_space<vmem>>, vector<1x128x128xbf16>
    %235 = vector.shape_cast %234 : vector<1x128x128xbf16> to vector<128x128xbf16>
    %cst_199 = arith.constant dense<0.000000e+00> : vector<16x128xf32>
    %236 = tpu.matmul %233, %235, %cst_199 {dimension_numbers = #tpu.dot_dimension_numbers<[1], [0], [0], [1], [0, 0, 1, 1], [], []>} : vector<16x128xbf16>, vector<128x128xbf16>, vector<16x128xf32> -> vector<16x128xf32>
    %237 = arith.addf %225, %236 : vector<16x128xf32>
    %238 = vector.broadcast %2 : vector<1x128xf32> to vector<16x128xf32>
    %239 = arith.addf %237, %238 : vector<16x128xf32>
    %cst_200 = arith.constant 0.000000e+00 : f32
    %240 = vector.broadcast %cst_200 : f32 to vector<16x128xf32>
    %241 = arith.maximumf %239, %240 : vector<16x128xf32>
    %242 = arith.truncf %241 : vector<16x128xf32> to vector<16x128xbf16>
    %c3_201 = arith.constant 3 : index
    %c0_202 = arith.constant 0 : index
    %c0_203 = arith.constant 0 : index
    %c0_204 = arith.constant 0 : index
    %243 = vector.load %arg7[%c3_201, %c0_202, %c0_203, %c0_204] : memref<4x1x16x128xbf16, #tpu.memory_space<vmem>>, vector<1x1x16x128xbf16>
    %244 = vector.shape_cast %243 : vector<1x1x16x128xbf16> to vector<16x128xbf16>
    %245 = vector.shape_cast %242 : vector<16x128xbf16> to vector<1x1x16x128xbf16>
    tpu.vector_store %arg7[%c3_201, %c0_202, %c0_203, %c0_204], %245 {strides = array<i32>} : memref<4x1x16x128xbf16, #tpu.memory_space<vmem>>, vector<1x1x16x128xbf16>,
    %cst_205 = arith.constant dense<0.000000e+00> : vector<128xf32>
    %246 = vector.multi_reduction <add>, %241, %cst_205 [0] : vector<16x128xf32> to vector<128xf32>
    %247 = vector.shape_cast %246 : vector<128xf32> to vector<1x128xf32>
    %248 = arith.addf %186, %247 : vector<1x128xf32>
    %249 = arith.mulf %241, %241 : vector<16x128xf32>
    %cst_206 = arith.constant dense<0.000000e+00> : vector<128xf32>
    %250 = vector.multi_reduction <add>, %249, %cst_206 [0] : vector<16x128xf32> to vector<128xf32>
    %251 = vector.shape_cast %250 : vector<128xf32> to vector<1x128xf32>
    %252 = arith.addf %190, %251 : vector<1x128xf32>
    %c0_207 = arith.constant 0 : index
    %c0_208 = arith.constant 0 : index
    %253 = vector.load %arg8[%c0_207, %c0_208] : memref<8x128xf32, #tpu.memory_space<vmem>>, vector<1x128xf32>
    tpu.vector_store %arg8[%c0_207, %c0_208], %248 {strides = array<i32>} : memref<8x128xf32, #tpu.memory_space<vmem>>, vector<1x128xf32>,
    %c1_209 = arith.constant 1 : index
    %c0_210 = arith.constant 0 : index
    %254 = vector.load %arg8[%c1_209, %c0_210] : memref<8x128xf32, #tpu.memory_space<vmem>>, vector<1x128xf32>
    tpu.vector_store %arg8[%c1_209, %c0_210], %252 {strides = array<i32>} : memref<8x128xf32, #tpu.memory_space<vmem>>, vector<1x128xf32>,
    return
  }
  func.func @transform_0(%arg0: i32, %arg1: i32) -> (i32, i32, i32, i32, i32) {
    %c0_i32 = arith.constant 0 : i32
    %c0_i32_0 = arith.constant 0 : i32
    %c0_i32_1 = arith.constant 0 : i32
    %c0_i32_2 = arith.constant 0 : i32
    return %arg0, %c0_i32, %c0_i32_0, %arg1, %c0_i32_1 : i32, i32, i32, i32, i32
  }
  func.func @transform_1(%arg0: i32, %arg1: i32) -> (i32, i32) {
    %c0_i32 = arith.constant 0 : i32
    %c0_i32_0 = arith.constant 0 : i32
    %c0_i32_1 = arith.constant 0 : i32
    return %c0_i32, %c0_i32_0 : i32, i32
  }
  func.func @transform_2(%arg0: i32, %arg1: i32) -> (i32, i32) {
    %c0_i32 = arith.constant 0 : i32
    %c0_i32_0 = arith.constant 0 : i32
    %c0_i32_1 = arith.constant 0 : i32
    return %c0_i32, %c0_i32_0 : i32, i32
  }
  func.func @transform_3(%arg0: i32, %arg1: i32) -> (i32, i32, i32) {
    %c0_i32 = arith.constant 0 : i32
    %c0_i32_0 = arith.constant 0 : i32
    %c0_i32_1 = arith.constant 0 : i32
    %c0_i32_2 = arith.constant 0 : i32
    return %c0_i32, %c0_i32_0, %c0_i32_1 : i32, i32, i32
  }
  func.func @transform_4(%arg0: i32, %arg1: i32) -> (i32, i32) {
    %c0_i32 = arith.constant 0 : i32
    %c0_i32_0 = arith.constant 0 : i32
    %c0_i32_1 = arith.constant 0 : i32
    return %c0_i32, %c0_i32_0 : i32, i32
  }
  func.func @transform_5(%arg0: i32, %arg1: i32) -> (i32, i32, i32, i32) {
    %c0_i32 = arith.constant 0 : i32
    %c0_i32_0 = arith.constant 0 : i32
    %c0_i32_1 = arith.constant 0 : i32
    return %c0_i32, %arg0, %arg1, %c0_i32_0 : i32, i32, i32, i32
  }
  func.func @transform_6(%arg0: i32, %arg1: i32) -> (i32, i32) {
    %c2_i32 = arith.constant 2 : i32
    %0 = arith.muli %arg0, %c2_i32 : i32
    %1 = arith.addi %0, %arg1 : i32
    %c0_i32 = arith.constant 0 : i32
    %c0_i32_0 = arith.constant 0 : i32
    return %1, %c0_i32 : i32, i32
  }
}

module attributes {stable_mosaic.version = 11 : i64} {
  func.func @_slab_conv_kernel(%arg0: i32, %arg1: i32, %arg2: memref<4x1x16x128xbf16, #tpu.memory_space<vmem>>, %arg3: memref<4x128x256xbf16, #tpu.memory_space<vmem>>, %arg4: memref<1x256xf32, #tpu.memory_space<vmem>>, %arg5: memref<1x16x256xbf16, #tpu.memory_space<vmem>>, %arg6: memref<8x256xf32, #tpu.memory_space<vmem>>) attributes {dimension_semantics = [#tpu.dimension_semantics<parallel>, #tpu.dimension_semantics<parallel>], iteration_bounds = array<i64: 4, 2>, scalar_prefetch = 0 : i64, scratch_operands = 0 : i64, tpu.core_type = #tpu.core_type<tc>, window_params = [{transform_indices = @transform_0, window_bounds = array<i64: 4, 1, 16, 128>}, {pipeline_mode = #tpu.pipeline_mode<synchronous>, transform_indices = @transform_1, window_bounds = array<i64: 4, 128, 256>}, {pipeline_mode = #tpu.pipeline_mode<synchronous>, transform_indices = @transform_2, window_bounds = array<i64: 1, 256>}, {transform_indices = @transform_3, window_bounds = array<i64: 1, 16, 256>}, {transform_indices = @transform_4, window_bounds = array<i64: 8, 256>}]} {
    %c0 = arith.constant 0 : index
    %c0_0 = arith.constant 0 : index
    %c0_1 = arith.constant 0 : index
    %c0_2 = arith.constant 0 : index
    %0 = vector.load %arg2[%c0, %c0_0, %c0_1, %c0_2] : memref<4x1x16x128xbf16, #tpu.memory_space<vmem>>, vector<1x1x16x128xbf16>
    %1 = vector.shape_cast %0 : vector<1x1x16x128xbf16> to vector<16x128xbf16>
    %c0_3 = arith.constant 0 : index
    %c0_4 = arith.constant 0 : index
    %c0_5 = arith.constant 0 : index
    %2 = vector.load %arg3[%c0_3, %c0_4, %c0_5] : memref<4x128x256xbf16, #tpu.memory_space<vmem>>, vector<1x128x256xbf16>
    %3 = vector.shape_cast %2 : vector<1x128x256xbf16> to vector<128x256xbf16>
    %cst = arith.constant dense<0.000000e+00> : vector<16x256xf32>
    %4 = tpu.matmul %1, %3, %cst {dimension_numbers = #tpu.dot_dimension_numbers<[1], [0], [0], [1], [0, 0, 1, 1], [], []>} : vector<16x128xbf16>, vector<128x256xbf16>, vector<16x256xf32> -> vector<16x256xf32>
    %c1 = arith.constant 1 : index
    %c0_6 = arith.constant 0 : index
    %c0_7 = arith.constant 0 : index
    %c0_8 = arith.constant 0 : index
    %5 = vector.load %arg2[%c1, %c0_6, %c0_7, %c0_8] : memref<4x1x16x128xbf16, #tpu.memory_space<vmem>>, vector<1x1x16x128xbf16>
    %6 = vector.shape_cast %5 : vector<1x1x16x128xbf16> to vector<16x128xbf16>
    %c1_9 = arith.constant 1 : index
    %c0_10 = arith.constant 0 : index
    %c0_11 = arith.constant 0 : index
    %7 = vector.load %arg3[%c1_9, %c0_10, %c0_11] : memref<4x128x256xbf16, #tpu.memory_space<vmem>>, vector<1x128x256xbf16>
    %8 = vector.shape_cast %7 : vector<1x128x256xbf16> to vector<128x256xbf16>
    %cst_12 = arith.constant dense<0.000000e+00> : vector<16x256xf32>
    %9 = tpu.matmul %6, %8, %cst_12 {dimension_numbers = #tpu.dot_dimension_numbers<[1], [0], [0], [1], [0, 0, 1, 1], [], []>} : vector<16x128xbf16>, vector<128x256xbf16>, vector<16x256xf32> -> vector<16x256xf32>
    %10 = arith.addf %4, %9 : vector<16x256xf32>
    %c2 = arith.constant 2 : index
    %c0_13 = arith.constant 0 : index
    %c0_14 = arith.constant 0 : index
    %c0_15 = arith.constant 0 : index
    %11 = vector.load %arg2[%c2, %c0_13, %c0_14, %c0_15] : memref<4x1x16x128xbf16, #tpu.memory_space<vmem>>, vector<1x1x16x128xbf16>
    %12 = vector.shape_cast %11 : vector<1x1x16x128xbf16> to vector<16x128xbf16>
    %c2_16 = arith.constant 2 : index
    %c0_17 = arith.constant 0 : index
    %c0_18 = arith.constant 0 : index
    %13 = vector.load %arg3[%c2_16, %c0_17, %c0_18] : memref<4x128x256xbf16, #tpu.memory_space<vmem>>, vector<1x128x256xbf16>
    %14 = vector.shape_cast %13 : vector<1x128x256xbf16> to vector<128x256xbf16>
    %cst_19 = arith.constant dense<0.000000e+00> : vector<16x256xf32>
    %15 = tpu.matmul %12, %14, %cst_19 {dimension_numbers = #tpu.dot_dimension_numbers<[1], [0], [0], [1], [0, 0, 1, 1], [], []>} : vector<16x128xbf16>, vector<128x256xbf16>, vector<16x256xf32> -> vector<16x256xf32>
    %16 = arith.addf %10, %15 : vector<16x256xf32>
    %c3 = arith.constant 3 : index
    %c0_20 = arith.constant 0 : index
    %c0_21 = arith.constant 0 : index
    %c0_22 = arith.constant 0 : index
    %17 = vector.load %arg2[%c3, %c0_20, %c0_21, %c0_22] : memref<4x1x16x128xbf16, #tpu.memory_space<vmem>>, vector<1x1x16x128xbf16>
    %18 = vector.shape_cast %17 : vector<1x1x16x128xbf16> to vector<16x128xbf16>
    %c3_23 = arith.constant 3 : index
    %c0_24 = arith.constant 0 : index
    %c0_25 = arith.constant 0 : index
    %19 = vector.load %arg3[%c3_23, %c0_24, %c0_25] : memref<4x128x256xbf16, #tpu.memory_space<vmem>>, vector<1x128x256xbf16>
    %20 = vector.shape_cast %19 : vector<1x128x256xbf16> to vector<128x256xbf16>
    %cst_26 = arith.constant dense<0.000000e+00> : vector<16x256xf32>
    %21 = tpu.matmul %18, %20, %cst_26 {dimension_numbers = #tpu.dot_dimension_numbers<[1], [0], [0], [1], [0, 0, 1, 1], [], []>} : vector<16x128xbf16>, vector<128x256xbf16>, vector<16x256xf32> -> vector<16x256xf32>
    %22 = arith.addf %16, %21 : vector<16x256xf32>
    %c0_27 = arith.constant 0 : index
    %c0_28 = arith.constant 0 : index
    %23 = vector.load %arg4[%c0_27, %c0_28] : memref<1x256xf32, #tpu.memory_space<vmem>>, vector<1x256xf32>
    %24 = vector.broadcast %23 : vector<1x256xf32> to vector<16x256xf32>
    %25 = arith.addf %22, %24 : vector<16x256xf32>
    %cst_29 = arith.constant 0.000000e+00 : f32
    %26 = vector.broadcast %cst_29 : f32 to vector<16x256xf32>
    %27 = arith.maximumf %25, %26 : vector<16x256xf32>
    %28 = arith.truncf %27 : vector<16x256xf32> to vector<16x256xbf16>
    %c0_30 = arith.constant 0 : index
    %c0_31 = arith.constant 0 : index
    %c0_32 = arith.constant 0 : index
    %29 = vector.load %arg5[%c0_30, %c0_31, %c0_32] : memref<1x16x256xbf16, #tpu.memory_space<vmem>>, vector<1x16x256xbf16>
    %30 = vector.shape_cast %29 : vector<1x16x256xbf16> to vector<16x256xbf16>
    %31 = vector.shape_cast %28 : vector<16x256xbf16> to vector<1x16x256xbf16>
    tpu.vector_store %arg5[%c0_30, %c0_31, %c0_32], %31 {strides = array<i32>} : memref<1x16x256xbf16, #tpu.memory_space<vmem>>, vector<1x16x256xbf16>,
    %cst_33 = arith.constant dense<0.000000e+00> : vector<256xf32>
    %32 = vector.multi_reduction <add>, %27, %cst_33 [0] : vector<16x256xf32> to vector<256xf32>
    %33 = vector.shape_cast %32 : vector<256xf32> to vector<1x256xf32>
    %c0_34 = arith.constant 0 : index
    %c0_35 = arith.constant 0 : index
    %34 = vector.load %arg6[%c0_34, %c0_35] : memref<8x256xf32, #tpu.memory_space<vmem>>, vector<1x256xf32>
    tpu.vector_store %arg6[%c0_34, %c0_35], %33 {strides = array<i32>} : memref<8x256xf32, #tpu.memory_space<vmem>>, vector<1x256xf32>,
    %35 = arith.mulf %27, %27 : vector<16x256xf32>
    %cst_36 = arith.constant dense<0.000000e+00> : vector<256xf32>
    %36 = vector.multi_reduction <add>, %35, %cst_36 [0] : vector<16x256xf32> to vector<256xf32>
    %37 = vector.shape_cast %36 : vector<256xf32> to vector<1x256xf32>
    %c1_37 = arith.constant 1 : index
    %c0_38 = arith.constant 0 : index
    %38 = vector.load %arg6[%c1_37, %c0_38] : memref<8x256xf32, #tpu.memory_space<vmem>>, vector<1x256xf32>
    tpu.vector_store %arg6[%c1_37, %c0_38], %37 {strides = array<i32>} : memref<8x256xf32, #tpu.memory_space<vmem>>, vector<1x256xf32>,
    return
  }
  func.func @transform_0(%arg0: i32, %arg1: i32) -> (i32, i32, i32, i32) {
    %c0_i32 = arith.constant 0 : i32
    %c0_i32_0 = arith.constant 0 : i32
    %c0_i32_1 = arith.constant 0 : i32
    return %c0_i32, %arg0, %arg1, %c0_i32_0 : i32, i32, i32, i32
  }
  func.func @transform_1(%arg0: i32, %arg1: i32) -> (i32, i32, i32) {
    %c0_i32 = arith.constant 0 : i32
    %c0_i32_0 = arith.constant 0 : i32
    %c0_i32_1 = arith.constant 0 : i32
    %c0_i32_2 = arith.constant 0 : i32
    return %c0_i32, %c0_i32_0, %c0_i32_1 : i32, i32, i32
  }
  func.func @transform_2(%arg0: i32, %arg1: i32) -> (i32, i32) {
    %c0_i32 = arith.constant 0 : i32
    %c0_i32_0 = arith.constant 0 : i32
    %c0_i32_1 = arith.constant 0 : i32
    return %c0_i32, %c0_i32_0 : i32, i32
  }
  func.func @transform_3(%arg0: i32, %arg1: i32) -> (i32, i32, i32) {
    %c0_i32 = arith.constant 0 : i32
    %c0_i32_0 = arith.constant 0 : i32
    return %arg0, %arg1, %c0_i32 : i32, i32, i32
  }
  func.func @transform_4(%arg0: i32, %arg1: i32) -> (i32, i32) {
    %c2_i32 = arith.constant 2 : i32
    %0 = arith.muli %arg0, %c2_i32 : i32
    %1 = arith.addi %0, %arg1 : i32
    %c0_i32 = arith.constant 0 : i32
    %c0_i32_0 = arith.constant 0 : i32
    return %1, %c0_i32 : i32, i32
  }
}

module attributes {stable_mosaic.version = 11 : i64} {
  func.func @_slab_conv_kernel(%arg0: i32, %arg1: memref<4x16x256xbf16, #tpu.memory_space<vmem>>, %arg2: memref<4x256x512xbf16, #tpu.memory_space<vmem>>, %arg3: memref<1x512xf32, #tpu.memory_space<vmem>>, %arg4: memref<16x512xbf16, #tpu.memory_space<vmem>>, %arg5: memref<8x512xf32, #tpu.memory_space<vmem>>) attributes {dimension_semantics = [#tpu.dimension_semantics<parallel>], iteration_bounds = array<i64: 2>, scalar_prefetch = 0 : i64, scratch_operands = 0 : i64, tpu.core_type = #tpu.core_type<tc>, window_params = [{transform_indices = @transform_0, window_bounds = array<i64: 4, 16, 256>}, {pipeline_mode = #tpu.pipeline_mode<synchronous>, transform_indices = @transform_1, window_bounds = array<i64: 4, 256, 512>}, {pipeline_mode = #tpu.pipeline_mode<synchronous>, transform_indices = @transform_2, window_bounds = array<i64: 1, 512>}, {transform_indices = @transform_3, window_bounds = array<i64: 16, 512>}, {transform_indices = @transform_4, window_bounds = array<i64: 8, 512>}]} {
    %c0 = arith.constant 0 : index
    %c0_0 = arith.constant 0 : index
    %c0_1 = arith.constant 0 : index
    %0 = vector.load %arg1[%c0, %c0_0, %c0_1] : memref<4x16x256xbf16, #tpu.memory_space<vmem>>, vector<1x16x256xbf16>
    %1 = vector.shape_cast %0 : vector<1x16x256xbf16> to vector<16x256xbf16>
    %c0_2 = arith.constant 0 : index
    %c0_3 = arith.constant 0 : index
    %c0_4 = arith.constant 0 : index
    %2 = vector.load %arg2[%c0_2, %c0_3, %c0_4] : memref<4x256x512xbf16, #tpu.memory_space<vmem>>, vector<1x256x512xbf16>
    %3 = vector.shape_cast %2 : vector<1x256x512xbf16> to vector<256x512xbf16>
    %cst = arith.constant dense<0.000000e+00> : vector<16x512xf32>
    %4 = tpu.matmul %1, %3, %cst {dimension_numbers = #tpu.dot_dimension_numbers<[1], [0], [0], [1], [0, 0, 1, 1], [], []>} : vector<16x256xbf16>, vector<256x512xbf16>, vector<16x512xf32> -> vector<16x512xf32>
    %c1 = arith.constant 1 : index
    %c0_5 = arith.constant 0 : index
    %c0_6 = arith.constant 0 : index
    %5 = vector.load %arg1[%c1, %c0_5, %c0_6] : memref<4x16x256xbf16, #tpu.memory_space<vmem>>, vector<1x16x256xbf16>
    %6 = vector.shape_cast %5 : vector<1x16x256xbf16> to vector<16x256xbf16>
    %c1_7 = arith.constant 1 : index
    %c0_8 = arith.constant 0 : index
    %c0_9 = arith.constant 0 : index
    %7 = vector.load %arg2[%c1_7, %c0_8, %c0_9] : memref<4x256x512xbf16, #tpu.memory_space<vmem>>, vector<1x256x512xbf16>
    %8 = vector.shape_cast %7 : vector<1x256x512xbf16> to vector<256x512xbf16>
    %cst_10 = arith.constant dense<0.000000e+00> : vector<16x512xf32>
    %9 = tpu.matmul %6, %8, %cst_10 {dimension_numbers = #tpu.dot_dimension_numbers<[1], [0], [0], [1], [0, 0, 1, 1], [], []>} : vector<16x256xbf16>, vector<256x512xbf16>, vector<16x512xf32> -> vector<16x512xf32>
    %10 = arith.addf %4, %9 : vector<16x512xf32>
    %c2 = arith.constant 2 : index
    %c0_11 = arith.constant 0 : index
    %c0_12 = arith.constant 0 : index
    %11 = vector.load %arg1[%c2, %c0_11, %c0_12] : memref<4x16x256xbf16, #tpu.memory_space<vmem>>, vector<1x16x256xbf16>
    %12 = vector.shape_cast %11 : vector<1x16x256xbf16> to vector<16x256xbf16>
    %c2_13 = arith.constant 2 : index
    %c0_14 = arith.constant 0 : index
    %c0_15 = arith.constant 0 : index
    %13 = vector.load %arg2[%c2_13, %c0_14, %c0_15] : memref<4x256x512xbf16, #tpu.memory_space<vmem>>, vector<1x256x512xbf16>
    %14 = vector.shape_cast %13 : vector<1x256x512xbf16> to vector<256x512xbf16>
    %cst_16 = arith.constant dense<0.000000e+00> : vector<16x512xf32>
    %15 = tpu.matmul %12, %14, %cst_16 {dimension_numbers = #tpu.dot_dimension_numbers<[1], [0], [0], [1], [0, 0, 1, 1], [], []>} : vector<16x256xbf16>, vector<256x512xbf16>, vector<16x512xf32> -> vector<16x512xf32>
    %16 = arith.addf %10, %15 : vector<16x512xf32>
    %c3 = arith.constant 3 : index
    %c0_17 = arith.constant 0 : index
    %c0_18 = arith.constant 0 : index
    %17 = vector.load %arg1[%c3, %c0_17, %c0_18] : memref<4x16x256xbf16, #tpu.memory_space<vmem>>, vector<1x16x256xbf16>
    %18 = vector.shape_cast %17 : vector<1x16x256xbf16> to vector<16x256xbf16>
    %c3_19 = arith.constant 3 : index
    %c0_20 = arith.constant 0 : index
    %c0_21 = arith.constant 0 : index
    %19 = vector.load %arg2[%c3_19, %c0_20, %c0_21] : memref<4x256x512xbf16, #tpu.memory_space<vmem>>, vector<1x256x512xbf16>
    %20 = vector.shape_cast %19 : vector<1x256x512xbf16> to vector<256x512xbf16>
    %cst_22 = arith.constant dense<0.000000e+00> : vector<16x512xf32>
    %21 = tpu.matmul %18, %20, %cst_22 {dimension_numbers = #tpu.dot_dimension_numbers<[1], [0], [0], [1], [0, 0, 1, 1], [], []>} : vector<16x256xbf16>, vector<256x512xbf16>, vector<16x512xf32> -> vector<16x512xf32>
    %22 = arith.addf %16, %21 : vector<16x512xf32>
    %c0_23 = arith.constant 0 : index
    %c0_24 = arith.constant 0 : index
    %23 = vector.load %arg3[%c0_23, %c0_24] : memref<1x512xf32, #tpu.memory_space<vmem>>, vector<1x512xf32>
    %24 = vector.broadcast %23 : vector<1x512xf32> to vector<16x512xf32>
    %25 = arith.addf %22, %24 : vector<16x512xf32>
    %cst_25 = arith.constant 0.000000e+00 : f32
    %26 = vector.broadcast %cst_25 : f32 to vector<16x512xf32>
    %27 = arith.maximumf %25, %26 : vector<16x512xf32>
    %28 = arith.truncf %27 : vector<16x512xf32> to vector<16x512xbf16>
    %c0_26 = arith.constant 0 : index
    %c0_27 = arith.constant 0 : index
    %29 = vector.load %arg4[%c0_26, %c0_27] : memref<16x512xbf16, #tpu.memory_space<vmem>>, vector<16x512xbf16>
    tpu.vector_store %arg4[%c0_26, %c0_27], %28 {strides = array<i32>} : memref<16x512xbf16, #tpu.memory_space<vmem>>, vector<16x512xbf16>,
    %cst_28 = arith.constant dense<0.000000e+00> : vector<512xf32>
    %30 = vector.multi_reduction <add>, %27, %cst_28 [0] : vector<16x512xf32> to vector<512xf32>
    %31 = vector.shape_cast %30 : vector<512xf32> to vector<1x512xf32>
    %c0_29 = arith.constant 0 : index
    %c0_30 = arith.constant 0 : index
    %32 = vector.load %arg5[%c0_29, %c0_30] : memref<8x512xf32, #tpu.memory_space<vmem>>, vector<1x512xf32>
    tpu.vector_store %arg5[%c0_29, %c0_30], %31 {strides = array<i32>} : memref<8x512xf32, #tpu.memory_space<vmem>>, vector<1x512xf32>,
    %33 = arith.mulf %27, %27 : vector<16x512xf32>
    %cst_31 = arith.constant dense<0.000000e+00> : vector<512xf32>
    %34 = vector.multi_reduction <add>, %33, %cst_31 [0] : vector<16x512xf32> to vector<512xf32>
    %35 = vector.shape_cast %34 : vector<512xf32> to vector<1x512xf32>
    %c1_32 = arith.constant 1 : index
    %c0_33 = arith.constant 0 : index
    %36 = vector.load %arg5[%c1_32, %c0_33] : memref<8x512xf32, #tpu.memory_space<vmem>>, vector<1x512xf32>
    tpu.vector_store %arg5[%c1_32, %c0_33], %35 {strides = array<i32>} : memref<8x512xf32, #tpu.memory_space<vmem>>, vector<1x512xf32>,
    return
  }
  func.func @transform_0(%arg0: i32) -> (i32, i32, i32) {
    %c0_i32 = arith.constant 0 : i32
    %c0_i32_0 = arith.constant 0 : i32
    %c0_i32_1 = arith.constant 0 : i32
    return %c0_i32, %arg0, %c0_i32_0 : i32, i32, i32
  }
  func.func @transform_1(%arg0: i32) -> (i32, i32, i32) {
    %c0_i32 = arith.constant 0 : i32
    %c0_i32_0 = arith.constant 0 : i32
    %c0_i32_1 = arith.constant 0 : i32
    %c0_i32_2 = arith.constant 0 : i32
    return %c0_i32, %c0_i32_0, %c0_i32_1 : i32, i32, i32
  }
  func.func @transform_2(%arg0: i32) -> (i32, i32) {
    %c0_i32 = arith.constant 0 : i32
    %c0_i32_0 = arith.constant 0 : i32
    %c0_i32_1 = arith.constant 0 : i32
    return %c0_i32, %c0_i32_0 : i32, i32
  }
  func.func @transform_3(%arg0: i32) -> (i32, i32) {
    %c0_i32 = arith.constant 0 : i32
    %c0_i32_0 = arith.constant 0 : i32
    return %arg0, %c0_i32 : i32, i32
  }
  func.func @transform_4(%arg0: i32) -> (i32, i32) {
    %c0_i32 = arith.constant 0 : i32
    %c0_i32_0 = arith.constant 0 : i32
    return %arg0, %c0_i32 : i32, i32
  }
}

module attributes {stable_mosaic.version = 11 : i64} {
  func.func @_fc_sigmoid_kernel(%arg0: i32, %arg1: memref<2x8192xbf16, #tpu.memory_space<vmem>>, %arg2: memref<1x8192xf32, #tpu.memory_space<vmem>>, %arg3: memref<1x1xf32, #tpu.memory_space<vmem>>, %arg4: memref<2x1xf32, #tpu.memory_space<vmem>>) attributes {dimension_semantics = [#tpu.dimension_semantics<parallel>], iteration_bounds = array<i64: 1>, scalar_prefetch = 0 : i64, scratch_operands = 0 : i64, tpu.core_type = #tpu.core_type<tc>, window_params = [{transform_indices = @transform_0, window_bounds = array<i64: 2, 8192>}, {pipeline_mode = #tpu.pipeline_mode<synchronous>, transform_indices = @transform_1, window_bounds = array<i64: 1, 8192>}, {pipeline_mode = #tpu.pipeline_mode<synchronous>, transform_indices = @transform_2, window_bounds = array<i64: 1, 1>}, {transform_indices = @transform_3, window_bounds = array<i64: 2, 1>}]} {
    %c0 = arith.constant 0 : index
    %c0_0 = arith.constant 0 : index
    %0 = vector.load %arg1[%c0, %c0_0] : memref<2x8192xbf16, #tpu.memory_space<vmem>>, vector<2x8192xbf16>
    %1 = arith.extf %0 : vector<2x8192xbf16> to vector<2x8192xf32>
    %c0_1 = arith.constant 0 : index
    %c0_2 = arith.constant 0 : index
    %2 = vector.load %arg2[%c0_1, %c0_2] : memref<1x8192xf32, #tpu.memory_space<vmem>>, vector<1x8192xf32>
    %3 = vector.broadcast %2 : vector<1x8192xf32> to vector<2x8192xf32>
    %4 = arith.mulf %1, %3 : vector<2x8192xf32>
    %cst = arith.constant dense<0.000000e+00> : vector<2xf32>
    %5 = vector.multi_reduction <add>, %4, %cst [1] : vector<2x8192xf32> to vector<2xf32>
    %6 = vector.shape_cast %5 : vector<2xf32> to vector<2x1xf32>
    %c0_3 = arith.constant 0 : index
    %c0_4 = arith.constant 0 : index
    %7 = vector.load %arg3[%c0_3, %c0_4] : memref<1x1xf32, #tpu.memory_space<vmem>>, vector<1x1xf32>
    %8 = vector.broadcast %7 : vector<1x1xf32> to vector<2x1xf32>
    %9 = arith.addf %6, %8 : vector<2x1xf32>
    %10 = arith.negf %9 : vector<2x1xf32>
    %11 = math.exp %10 : vector<2x1xf32>
    %cst_5 = arith.constant 1.000000e+00 : f32
    %12 = vector.broadcast %cst_5 : f32 to vector<2x1xf32>
    %13 = arith.addf %12, %11 : vector<2x1xf32>
    %14 = arith.divf %12, %13 : vector<2x1xf32>
    %c0_6 = arith.constant 0 : index
    %c0_7 = arith.constant 0 : index
    %15 = vector.load %arg4[%c0_6, %c0_7] : memref<2x1xf32, #tpu.memory_space<vmem>>, vector<2x1xf32>
    tpu.vector_store %arg4[%c0_6, %c0_7], %14 {strides = array<i32>} : memref<2x1xf32, #tpu.memory_space<vmem>>, vector<2x1xf32>,
    return
  }
  func.func @transform_0(%arg0: i32) -> (i32, i32) {
    %c0_i32 = arith.constant 0 : i32
    %c0_i32_0 = arith.constant 0 : i32
    return %arg0, %c0_i32 : i32, i32
  }
  func.func @transform_1(%arg0: i32) -> (i32, i32) {
    %c0_i32 = arith.constant 0 : i32
    %c0_i32_0 = arith.constant 0 : i32
    %c0_i32_1 = arith.constant 0 : i32
    return %c0_i32, %c0_i32_0 : i32, i32
  }
  func.func @transform_2(%arg0: i32) -> (i32, i32) {
    %c0_i32 = arith.constant 0 : i32
    %c0_i32_0 = arith.constant 0 : i32
    %c0_i32_1 = arith.constant 0 : i32
    return %c0_i32, %c0_i32_0 : i32, i32
  }
  func.func @transform_3(%arg0: i32) -> (i32, i32) {
    %c0_i32 = arith.constant 0 : i32
    %c0_i32_0 = arith.constant 0 : i32
    return %arg0, %c0_i32 : i32, i32
  }
}

</mosaic_0001>

<llo_original>
// kernel: discriminator_forward.4
$region0: #{discriminator_forward.4}
  #allocation0 [shape = 'u32[]', space=smem, size = 0x4, offset = 0x4, fixed_abs, tag = 'smem constant byte address 0x4 - core index']
  #allocation1 [shape = 'u32[144,128]{1,0:T(1,128)}', space=vmem, size = 0x12000, scoped, tag = 'internal scratch']
  %s0 = inlined_call_operand.vmem [shape: bf16[4,4,4,32,12], index: 0, kind: input, shape index: {}]
  %s1 = inlined_call_operand.vmem [shape: bf16[12,128], index: 1, kind: input, shape index: {}]
  %s2 = inlined_call_operand.vmem [shape: f32[1,128], index: 2, kind: input, shape index: {}]
  %s3 = inlined_call_operand.vmem [shape: bf16[4,128,128], index: 3, kind: input, shape index: {}]
  %s4 = inlined_call_operand.vmem [shape: f32[1,128], index: 4, kind: input, shape index: {}]
  %s5 = inlined_call_operand.vmem [shape: bf16[4,4,32,128], index: 5, kind: output, shape index: {0}]
  %s6 = inlined_call_operand.vmem [shape: f32[64,128], index: 6, kind: output, shape index: {1}]
  %7 = xla_tuple %s5, %s6
  %s8 = sld [smem:[#allocation0]]
  $region139: #{discriminator_forward.4} parent=0
    _
  %s10 = ssub.s32 1, %s8
  %s11 = scalar_select 0, %s10, %s8
  $region1: #{discriminator_forward.4} parent=0
    #allocation2 [shape = 'u8[131072]{0}', space=vmem, size = 0x20000, scoped, tag = 'input window, operand 0']
    #allocation3 [shape = 'u8[32768]{0}', space=vmem, size = 0x8000, scoped, tag = 'output window, operand 0']
    loop: start=0, step=1, limit=10
    $region2: #{discriminator_forward.4} parent=1 // loop_pre_header
      _
    $region3: #{discriminator_forward.4} parent=1 // loop_header
      %s13 = sphi 0, %s17
      %p14 = scmp.ge.s32.totalorder %s13, 10
      %s20 = sphi 0, %s32
      %s21 = sphi 0, %s28
      %s22 = sphi 0, %s20
      %s23 = sphi 0, %s21
      %s24 = sphi 0, %s22
      %s25 = sphi 0, %s23
      %s37 = sphi 0, %s39
      %s40 = sphi 0, %s37
      %s41 = sphi 0, %s40
      %s57 = sphi 0, %s41
      %s61 = sphi 0, %s61
      %s63 = sphi 0, %s61
      %s64 = sphi 0, %s63
      %s78 = sphi 0, %s64
      %s82 = sphi 0, %s82
      %s84 = sphi 0, %s82
      %s85 = sphi 0, %s84
      %s99 = sphi 0, %s85
      %s103 = sphi 0, %s103
      %s105 = sphi 0, %s103
      %s106 = sphi 0, %s105
      %s120 = sphi 0, %s106
      %s124 = sphi 0, %s124
      %s126 = sphi 0, %s124
      %s127 = sphi 0, %s126
      %s141 = sphi 0, %s127
      %s149 = sphi 0, %s151
      %s152 = sphi 0, %s149
      %s153 = sphi 0, %s152
      %s169 = sphi 0, %s153
      %s179 = sphi 0, %s181
      %s182 = sphi 0, %s179
      %s183 = sphi 0, %s182
      %s199 = sphi 0, %s183
    $region4: #{discriminator_forward.4} parent=1 // loop_header_branch
      %16 = sbr.rel (%p14) target = $region8
    $region5: #{discriminator_forward.4} parent=1 // loop_body
      %s18 = ssub.s32 %s13, 1
      %s19 = ssub.s32 %s13, 2
      %s26 = sadd.s32 1, %s21
      %p27 = scmp.ge.s32.totalorder %s26, 2
      %s28 = scalar_select %p27, 0, %s26
      %s29 = sadd.s32 1, %s20
      %s30 = scalar_select %p27, %s29, %s20
      %p31 = scmp.ge.s32.totalorder %s30, 4
      %s32 = scalar_select %p31, 0, %s30
      %s33 = ssub.s32 %s20, %s32
      %s34 = ssub.s32 %s21, %s28
      %s35 = sor.u32 %s33, %s34
      %p36 = scmp.eq.s32.totalorder %s35, 0
      %s38 = sadd.s32 %s37, 1
      %s39 = scalar_select %p36, %s37, %s38
      %p42 = pneg %p36
      %p43 = scmp.eq.s32.totalorder %s13, 7
      %p44 = por %p42, %p43
      %p45 = scmp.ne.s32.totalorder %s37, %s40
      %p46 = scmp.eq.s32.totalorder %s13, 0
      %p47 = por %p45, %p46
      %p48 = scmp.ne.s32.totalorder %s37, %s40
      %p49 = scmp.eq.s32.totalorder %s18, 7
      %p50 = por %p48, %p49
      %p51 = scmp.ne.s32.totalorder %s40, %s41
      %p52 = scmp.eq.s32.totalorder %s18, 0
      %p53 = por %p51, %p52
      %p54 = scmp.ne.s32.totalorder %s40, %s41
      %p55 = scmp.eq.s32.totalorder %s19, 7
      %p56 = por %p54, %p55
      %p58 = scmp.ne.s32.totalorder %s41, %s57
      %p59 = scmp.eq.s32.totalorder %s19, 0
      %p60 = por %p58, %p59
      %s62 = sadd.s32 %s61, 1
      %p65 = scmp.eq.s32.totalorder %s13, 7
      %p66 = scmp.ne.s32.totalorder %s61, %s63
      %p67 = scmp.eq.s32.totalorder %s13, 0
      %p68 = por %p66, %p67
      %p69 = scmp.ne.s32.totalorder %s61, %s63
      %p70 = scmp.eq.s32.totalorder %s18, 7
      %p71 = por %p69, %p70
      %p72 = scmp.ne.s32.totalorder %s63, %s64
      %p73 = scmp.eq.s32.totalorder %s18, 0
      %p74 = por %p72, %p73
      %p75 = scmp.ne.s32.totalorder %s63, %s64
      %p76 = scmp.eq.s32.totalorder %s19, 7
      %p77 = por %p75, %p76
      %p79 = scmp.ne.s32.totalorder %s64, %s78
      %p80 = scmp.eq.s32.totalorder %s19, 0
      %p81 = por %p79, %p80
      %s83 = sadd.s32 %s82, 1
      %p86 = scmp.eq.s32.totalorder %s13, 7
      %p87 = scmp.ne.s32.totalorder %s82, %s84
      %p88 = scmp.eq.s32.totalorder %s13, 0
      %p89 = por %p87, %p88
      %p90 = scmp.ne.s32.totalorder %s82, %s84
      %p91 = scmp.eq.s32.totalorder %s18, 7
      %p92 = por %p90, %p91
      %p93 = scmp.ne.s32.totalorder %s84, %s85
      %p94 = scmp.eq.s32.totalorder %s18, 0
      %p95 = por %p93, %p94
      %p96 = scmp.ne.s32.totalorder %s84, %s85
      %p97 = scmp.eq.s32.totalorder %s19, 7
      %p98 = por %p96, %p97
      %p100 = scmp.ne.s32.totalorder %s85, %s99
      %p101 = scmp.eq.s32.totalorder %s19, 0
      %p102 = por %p100, %p101
      %s104 = sadd.s32 %s103, 1
      %p107 = scmp.eq.s32.totalorder %s13, 7
      %p108 = scmp.ne.s32.totalorder %s103, %s105
      %p109 = scmp.eq.s32.totalorder %s13, 0
      %p110 = por %p108, %p109
      %p111 = scmp.ne.s32.totalorder %s103, %s105
      %p112 = scmp.eq.s32.totalorder %s18, 7
      %p113 = por %p111, %p112
      %p114 = scmp.ne.s32.totalorder %s105, %s106
      %p115 = scmp.eq.s32.totalorder %s18, 0
      %p116 = por %p114, %p115
      %p117 = scmp.ne.s32.totalorder %s105, %s106
      %p118 = scmp.eq.s32.totalorder %s19, 7
      %p119 = por %p117, %p118
      %p121 = scmp.ne.s32.totalorder %s106, %s120
      %p122 = scmp.eq.s32.totalorder %s19, 0
      %p123 = por %p121, %p122
      %s125 = sadd.s32 %s124, 1
      %p128 = scmp.eq.s32.totalorder %s13, 7
      %p129 = scmp.ne.s32.totalorder %s124, %s126
      %p130 = scmp.eq.s32.totalorder %s13, 0
      %p131 = por %p129, %p130
      %p132 = scmp.ne.s32.totalorder %s124, %s126
      %p133 = scmp.eq.s32.totalorder %s18, 7
      %p134 = por %p132, %p133
      %p135 = scmp.ne.s32.totalorder %s126, %s127
      %p136 = scmp.eq.s32.totalorder %s18, 0
      %p137 = por %p135, %p136
      %p138 = scmp.ne.s32.totalorder %s126, %s127
      %p139 = scmp.eq.s32.totalorder %s19, 7
      %p140 = por %p138, %p139
      %p142 = scmp.ne.s32.totalorder %s127, %s141
      %p143 = scmp.eq.s32.totalorder %s19, 0
      %p144 = por %p142, %p143
      %s145 = ssub.s32 %s20, %s32
      %s146 = ssub.s32 %s21, %s28
      %s147 = sor.u32 %s145, %s146
      %p148 = scmp.eq.s32.totalorder %s147, 0
      %s150 = sadd.s32 %s149, 1
      %s151 = scalar_select %p148, %s149, %s150
      %p154 = pneg %p148
      %p155 = scmp.eq.s32.totalorder %s13, 7
      %p156 = por %p154, %p155
      %p157 = scmp.ne.s32.totalorder %s149, %s152
      %p158 = scmp.eq.s32.totalorder %s13, 0
      %p159 = por %p157, %p158
      %p160 = scmp.ne.s32.totalorder %s149, %s152
      %p161 = scmp.eq.s32.totalorder %s18, 7
      %p162 = por %p160, %p161
      %p163 = scmp.ne.s32.totalorder %s152, %s153
      %p164 = scmp.eq.s32.totalorder %s18, 0
      %p165 = por %p163, %p164
      %p166 = scmp.ne.s32.totalorder %s152, %s153
      %p167 = scmp.eq.s32.totalorder %s19, 7
      %p168 = por %p166, %p167
      %p170 = scmp.ne.s32.totalorder %s153, %s169
      %p171 = scmp.eq.s32.totalorder %s19, 0
      %p172 = por %p170, %p171
      %s173 = smul.u32 %s20, 2
      %s174 = sadd.s32 %s173, %s21
      %s175 = smul.u32 %s32, 2
      %s176 = sadd.s32 %s175, %s28
      %s177 = ssub.s32 %s174, %s176
      %p178 = scmp.eq.s32.totalorder %s177, 0
      %s180 = sadd.s32 %s179, 1
      %s181 = scalar_select %p178, %s179, %s180
      %p184 = pneg %p178
      %p185 = scmp.eq.s32.totalorder %s13, 7
      %p186 = por %p184, %p185
      %p187 = scmp.ne.s32.totalorder %s179, %s182
      %p188 = scmp.eq.s32.totalorder %s13, 0
      %p189 = por %p187, %p188
      %p190 = scmp.ne.s32.totalorder %s179, %s182
      %p191 = scmp.eq.s32.totalorder %s18, 7
      %p192 = por %p190, %p191
      %p193 = scmp.ne.s32.totalorder %s182, %s183
      %p194 = scmp.eq.s32.totalorder %s18, 0
      %p195 = por %p193, %p194
      %p196 = scmp.ne.s32.totalorder %s182, %s183
      %p197 = scmp.eq.s32.totalorder %s19, 7
      %p198 = por %p196, %p197
      %p200 = scmp.ne.s32.totalorder %s183, %s199
      %p201 = scmp.eq.s32.totalorder %s19, 0
      %p202 = por %p200, %p201
      %p203 = scmp.le.s32.totalorder 1, %s13
      %p204 = scmp.lt.s32.totalorder %s13, 9
      %p205 = pnand %p203, %p204
      %p206 = pneg %p205
      // Predicated region
      $region9: #{discriminator_forward.4} parent=5 // pred_check
        _
      $region10: #{discriminator_forward.4} parent=5 // pred_check_branch
        %208 = sbr.rel (%p205) target = $region12
      $region11: #{discriminator_forward.4} parent=5 // pred_region
        %s209 = ssub.s32 %s13, 1
        // Predicated region
        $region13: #{discriminator_forward.4} parent=11 // pred_check
          %p210 = pneg %p74
        $region14: #{discriminator_forward.4} parent=11 // pred_check_branch
          %212 = sbr.rel (%p210) target = $region16
        $region15: #{discriminator_forward.4} parent=11 // pred_region
          _
        $region16: #{discriminator_forward.4} parent=11 // pred_fallthru
          _
        // Predicated region
        $region17: #{discriminator_forward.4} parent=11 // pred_check
          %p213 = pneg %p95
        $region18: #{discriminator_forward.4} parent=11 // pred_check_branch
          %215 = sbr.rel (%p213) target = $region20
        $region19: #{discriminator_forward.4} parent=11 // pred_region
          _
        $region20: #{discriminator_forward.4} parent=11 // pred_fallthru
          _
        // Predicated region
        $region21: #{discriminator_forward.4} parent=11 // pred_check
          %p216 = pneg %p116
        $region22: #{discriminator_forward.4} parent=11 // pred_check_branch
          %218 = sbr.rel (%p216) target = $region24
        $region23: #{discriminator_forward.4} parent=11 // pred_region
          _
        $region24: #{discriminator_forward.4} parent=11 // pred_fallthru
          _
        // Predicated region
        $region25: #{discriminator_forward.4} parent=11 // pred_check
          %p219 = pneg %p137
        $region26: #{discriminator_forward.4} parent=11 // pred_check_branch
          %221 = sbr.rel (%p219) target = $region28
        $region27: #{discriminator_forward.4} parent=11 // pred_region
          _
        $region28: #{discriminator_forward.4} parent=11 // pred_fallthru
          _
      $region12: #{discriminator_forward.4} parent=5 // pred_fallthru
        _
      %p222 = scmp.lt.s32.totalorder %s13, 8
      // Predicated region
      $region29: #{discriminator_forward.4} parent=5 // pred_check
        %p223 = pneg %p222
      $region30: #{discriminator_forward.4} parent=5 // pred_check_branch
        %225 = sbr.rel (%p223) target = $region32
      $region31: #{discriminator_forward.4} parent=5 // pred_region
        // Predicated region
        $region33: #{discriminator_forward.4} parent=31 // pred_check
          %p226 = pneg %p47
        $region34: #{discriminator_forward.4} parent=31 // pred_check_branch
          %228 = sbr.rel (%p226) target = $region36
        $region35: #{discriminator_forward.4} parent=31 // pred_region
          %s229 = sand.u32 %s37, 1
          %s230 = sand.u32 %s37, 1
          %s231 = smul.addr %s230, 128
          %s232 = scalar_lea.vmem [#allocation2], %s231
          %s233 = smul.u32 2, %s21
          %s234 = smul.addr %s20, 64
          %s235 = sadd.s32 %s233, %s234
          %s236 = smul.addr %s235, 4
          %s237 = scalar_lea.vmem %s0, %s236
          // Predicated region
          $region37: #{discriminator_forward.4} parent=35 // pred_check
            _
          $region38: #{discriminator_forward.4} parent=35 // pred_check_branch
            %239 = sbr.rel (0) target = $region40
          $region39: #{discriminator_forward.4} parent=35 // pred_region
            // Predicated region
            $region41: #{discriminator_forward.4} parent=39 // pred_check
              _
            $region42: #{discriminator_forward.4} parent=39 // pred_check_branch
              %241 = sbr.rel target = $region44
            $region43: #{discriminator_forward.4} parent=39 // pred_region
              // Predicated region
              $region56: #{discriminator_forward.4} parent=43 // pred_check
                _
              $region57: #{discriminator_forward.4} parent=43 // pred_check_branch
                %318 = sbr.rel (0) target = $region59
              $region58: #{discriminator_forward.4} parent=43 // pred_region
                loop: start=0, step=1, limit=1
                $region60: #{discriminator_forward.4} parent=58 // loop_pre_header
                  _
                $region61: #{discriminator_forward.4} parent=58 // loop_header
                  %s320 = sphi 0, %s324
                  %p321 = scmp.ge.s32.totalorder %s320, 1
                  %s325 = sphi %s237, %s237
                  %s326 = sphi %s232, %s232
                $region62: #{discriminator_forward.4} parent=58 // loop_header_branch
                  %323 = sbr.rel (%p321) target = $region66
                $region63: #{discriminator_forward.4} parent=58 // loop_body
                  _
                $region64: #{discriminator_forward.4} parent=58 // loop_footer
                  %s324 = sadd.s32 1, %s320
                $region65: #{discriminator_forward.4} parent=58 // loop_footer_branch
                  %319 = sbr.rel target = $region61
                $region66: #{discriminator_forward.4} parent=58 // loop_exit
                  _
                loop: start=0, step=1, limit=1
                $region67: #{discriminator_forward.4} parent=58 // loop_pre_header
                  _
                $region68: #{discriminator_forward.4} parent=58 // loop_header
                  %s329 = sphi 0, %s333
                  %p330 = scmp.ge.s32.totalorder %s329, 1
                  %s334 = sphi %s237, %s237
                  %s335 = sphi %s232, %s232
                $region69: #{discriminator_forward.4} parent=58 // loop_header_branch
                  %332 = sbr.rel (%p330) target = $region73
                $region70: #{discriminator_forward.4} parent=58 // loop_body
                  %v336 = vld [vmem:[%s334] sm:$0xf]
                  %337 = vst [vmem:[%s335] sm:$0xf] %v336
                  %v338 = vld [vmem:[%s334 + $0x4] sm:$0xf]
                  %339 = vst [vmem:[%s335 + $0x4] sm:$0xf] %v338
                  %v340 = vld [vmem:[%s334 + $0x10] sm:$0xf]
                  %341 = vst [vmem:[%s335 + $0x8] sm:$0xf] %v340
                  %v342 = vld [vmem:[%s334 + $0x14] sm:$0xf]
                  %343 = vst [vmem:[%s335 + $0xc] sm:$0xf] %v342
                  %v344 = vld [vmem:[%s334 + $0x20] sm:$0xf]
                  %345 = vst [vmem:[%s335 + $0x10] sm:$0xf] %v344
                  %v346 = vld [vmem:[%s334 + $0x24] sm:$0xf]
                  %347 = vst [vmem:[%s335 + $0x14] sm:$0xf] %v346
                  %v348 = vld [vmem:[%s334 + $0x30] sm:$0xf]
                  %349 = vst [vmem:[%s335 + $0x18] sm:$0xf] %v348
                  %v350 = vld [vmem:[%s334 + $0x34] sm:$0xf]
                  %351 = vst [vmem:[%s335 + $0x1c] sm:$0xf] %v350
                  %v352 = vld [vmem:[%s334 + $0x40] sm:$0xf]
                  %353 = vst [vmem:[%s335 + $0x20] sm:$0xf] %v352
                  %v354 = vld [vmem:[%s334 + $0x44] sm:$0xf]
                  %355 = vst [vmem:[%s335 + $0x24] sm:$0xf] %v354
                  %v356 = vld [vmem:[%s334 + $0x50] sm:$0xf]
                  %357 = vst [vmem:[%s335 + $0x28] sm:$0xf] %v356
                  %v358 = vld [vmem:[%s334 + $0x54] sm:$0xf]
                  %359 = vst [vmem:[%s335 + $0x2c] sm:$0xf] %v358
                  %v360 = vld [vmem:[%s334 + $0x60] sm:$0xf]
                  %361 = vst [vmem:[%s335 + $0x30] sm:$0xf] %v360
                  %v362 = vld [vmem:[%s334 + $0x64] sm:$0xf]
                  %363 = vst [vmem:[%s335 + $0x34] sm:$0xf] %v362
                  %v364 = vld [vmem:[%s334 + $0x70] sm:$0xf]
                  %365 = vst [vmem:[%s335 + $0x38] sm:$0xf] %v364
                  %v366 = vld [vmem:[%s334 + $0x74] sm:$0xf]
                  %367 = vst [vmem:[%s335 + $0x3c] sm:$0xf] %v366
                  %v368 = vld [vmem:[%s334 + $0x80] sm:$0xf]
                  %369 = vst [vmem:[%s335 + $0x40] sm:$0xf] %v368
                  %v370 = vld [vmem:[%s334 + $0x84] sm:$0xf]
                  %371 = vst [vmem:[%s335 + $0x44] sm:$0xf] %v370
                  %v372 = vld [vmem:[%s334 + $0x90] sm:$0xf]
                  %373 = vst [vmem:[%s335 + $0x48] sm:$0xf] %v372
                  %v374 = vld [vmem:[%s334 + $0x94] sm:$0xf]
                  %375 = vst [vmem:[%s335 + $0x4c] sm:$0xf] %v374
                  %v376 = vld [vmem:[%s334 + $0xa0] sm:$0xf]
                  %377 = vst [vmem:[%s335 + $0x50] sm:$0xf] %v376
                  %v378 = vld [vmem:[%s334 + $0xa4] sm:$0xf]
                  %379 = vst [vmem:[%s335 + $0x54] sm:$0xf] %v378
                  %v380 = vld [vmem:[%s334 + $0xb0] sm:$0xf]
                  %381 = vst [vmem:[%s335 + $0x58] sm:$0xf] %v380
                  %v382 = vld [vmem:[%s334 + $0xb4] sm:$0xf]
                  %383 = vst [vmem:[%s335 + $0x5c] sm:$0xf] %v382
                  %v384 = vld [vmem:[%s334 + $0xc0] sm:$0xf]
                  %385 = vst [vmem:[%s335 + $0x60] sm:$0xf] %v384
                  %v386 = vld [vmem:[%s334 + $0xc4] sm:$0xf]
                  %387 = vst [vmem:[%s335 + $0x64] sm:$0xf] %v386
                  %v388 = vld [vmem:[%s334 + $0xd0] sm:$0xf]
                  %389 = vst [vmem:[%s335 + $0x68] sm:$0xf] %v388
                  %v390 = vld [vmem:[%s334 + $0xd4] sm:$0xf]
                  %391 = vst [vmem:[%s335 + $0x6c] sm:$0xf] %v390
                  %v392 = vld [vmem:[%s334 + $0xe0] sm:$0xf]
                  %393 = vst [vmem:[%s335 + $0x70] sm:$0xf] %v392
                  %v394 = vld [vmem:[%s334 + $0xe4] sm:$0xf]
                  %395 = vst [vmem:[%s335 + $0x74] sm:$0xf] %v394
                  %v396 = vld [vmem:[%s334 + $0xf0] sm:$0xf]
                  %397 = vst [vmem:[%s335 + $0x78] sm:$0xf] %v396
                  %v398 = vld [vmem:[%s334 + $0xf4] sm:$0xf]
                  %399 = vst [vmem:[%s335 + $0x7c] sm:$0xf] %v398
                $region71: #{discriminator_forward.4} parent=58 // loop_footer
                  %s333 = sadd.s32 1, %s329
                $region72: #{discriminator_forward.4} parent=58 // loop_footer_branch
                  %328 = sbr.rel target = $region68
                $region73: #{discriminator_forward.4} parent=58 // loop_exit
                  _
              $region59: #{discriminator_forward.4} parent=43 // pred_fallthru
                _
            $region44: #{discriminator_forward.4} parent=39 // pred_fallthru
              _
            // Predicated region
            $region45: #{discriminator_forward.4} parent=39 // pred_check
              _
            $region46: #{discriminator_forward.4} parent=39 // pred_check_branch
              %243 = sbr.rel (0) target = $region48
            $region47: #{discriminator_forward.4} parent=39 // pred_region
              loop: start=0, step=1, limit=1
              $region49: #{discriminator_forward.4} parent=47 // loop_pre_header
                _
              $region50: #{discriminator_forward.4} parent=47 // loop_header
                %s246 = sphi 0, %s250
                %p247 = scmp.ge.s32.totalorder %s246, 1
                %s251 = sphi %s237, %s237
                %s252 = sphi %s232, %s232
              $region51: #{discriminator_forward.4} parent=47 // loop_header_branch
                %249 = sbr.rel (%p247) target = $region55
              $region52: #{discriminator_forward.4} parent=47 // loop_body
                %v253 = vld [vmem:[%s251] sm:$0xf]
                %254 = vst [vmem:[%s252] sm:$0xf] %v253
                %v255 = vld [vmem:[%s251 + $0x4] sm:$0xf]
                %256 = vst [vmem:[%s252 + $0x4] sm:$0xf] %v255
                %v257 = vld [vmem:[%s251 + $0x10] sm:$0xf]
                %258 = vst [vmem:[%s252 + $0x8] sm:$0xf] %v257
                %v259 = vld [vmem:[%s251 + $0x14] sm:$0xf]
                %260 = vst [vmem:[%s252 + $0xc] sm:$0xf] %v259
                %v261 = vld [vmem:[%s251 + $0x20] sm:$0xf]
                %262 = vst [vmem:[%s252 + $0x10] sm:$0xf] %v261
                %v263 = vld [vmem:[%s251 + $0x24] sm:$0xf]
                %264 = vst [vmem:[%s252 + $0x14] sm:$0xf] %v263
                %v265 = vld [vmem:[%s251 + $0x30] sm:$0xf]
                %266 = vst [vmem:[%s252 + $0x18] sm:$0xf] %v265
                %v267 = vld [vmem:[%s251 + $0x34] sm:$0xf]
                %268 = vst [vmem:[%s252 + $0x1c] sm:$0xf] %v267
                %v269 = vld [vmem:[%s251 + $0x40] sm:$0xf]
                %270 = vst [vmem:[%s252 + $0x20] sm:$0xf] %v269
                %v271 = vld [vmem:[%s251 + $0x44] sm:$0xf]
                %272 = vst [vmem:[%s252 + $0x24] sm:$0xf] %v271
                %v273 = vld [vmem:[%s251 + $0x50] sm:$0xf]
                %274 = vst [vmem:[%s252 + $0x28] sm:$0xf] %v273
                %v275 = vld [vmem:[%s251 + $0x54] sm:$0xf]
                %276 = vst [vmem:[%s252 + $0x2c] sm:$0xf] %v275
                %v277 = vld [vmem:[%s251 + $0x60] sm:$0xf]
                %278 = vst [vmem:[%s252 + $0x30] sm:$0xf] %v277
                %v279 = vld [vmem:[%s251 + $0x64] sm:$0xf]
                %280 = vst [vmem:[%s252 + $0x34] sm:$0xf] %v279
                %v281 = vld [vmem:[%s251 + $0x70] sm:$0xf]
                %282 = vst [vmem:[%s252 + $0x38] sm:$0xf] %v281
                %v283 = vld [vmem:[%s251 + $0x74] sm:$0xf]
                %284 = vst [vmem:[%s252 + $0x3c] sm:$0xf] %v283
                %v285 = vld [vmem:[%s251 + $0x80] sm:$0xf]
                %286 = vst [vmem:[%s252 + $0x40] sm:$0xf] %v285
                %v287 = vld [vmem:[%s251 + $0x84] sm:$0xf]
                %288 = vst [vmem:[%s252 + $0x44] sm:$0xf] %v287
                %v289 = vld [vmem:[%s251 + $0x90] sm:$0xf]
                %290 = vst [vmem:[%s252 + $0x48] sm:$0xf] %v289
                %v291 = vld [vmem:[%s251 + $0x94] sm:$0xf]
                %292 = vst [vmem:[%s252 + $0x4c] sm:$0xf] %v291
                %v293 = vld [vmem:[%s251 + $0xa0] sm:$0xf]
                %294 = vst [vmem:[%s252 + $0x50] sm:$0xf] %v293
                %v295 = vld [vmem:[%s251 + $0xa4] sm:$0xf]
                %296 = vst [vmem:[%s252 + $0x54] sm:$0xf] %v295
                %v297 = vld [vmem:[%s251 + $0xb0] sm:$0xf]
                %298 = vst [vmem:[%s252 + $0x58] sm:$0xf] %v297
                %v299 = vld [vmem:[%s251 + $0xb4] sm:$0xf]
                %300 = vst [vmem:[%s252 + $0x5c] sm:$0xf] %v299
                %v301 = vld [vmem:[%s251 + $0xc0] sm:$0xf]
                %302 = vst [vmem:[%s252 + $0x60] sm:$0xf] %v301
                %v303 = vld [vmem:[%s251 + $0xc4] sm:$0xf]
                %304 = vst [vmem:[%s252 + $0x64] sm:$0xf] %v303
                %v305 = vld [vmem:[%s251 + $0xd0] sm:$0xf]
                %306 = vst [vmem:[%s252 + $0x68] sm:$0xf] %v305
                %v307 = vld [vmem:[%s251 + $0xd4] sm:$0xf]
                %308 = vst [vmem:[%s252 + $0x6c] sm:$0xf] %v307
                %v309 = vld [vmem:[%s251 + $0xe0] sm:$0xf]
                %310 = vst [vmem:[%s252 + $0x70] sm:$0xf] %v309
                %v311 = vld [vmem:[%s251 + $0xe4] sm:$0xf]
                %312 = vst [vmem:[%s252 + $0x74] sm:$0xf] %v311
                %v313 = vld [vmem:[%s251 + $0xf0] sm:$0xf]
                %314 = vst [vmem:[%s252 + $0x78] sm:$0xf] %v313
                %v315 = vld [vmem:[%s251 + $0xf4] sm:$0xf]
                %316 = vst [vmem:[%s252 + $0x7c] sm:$0xf] %v315
              $region53: #{discriminator_forward.4} parent=47 // loop_footer
                %s250 = sadd.s32 1, %s246
              $region54: #{discriminator_forward.4} parent=47 // loop_footer_branch
                %245 = sbr.rel target = $region50
              $region55: #{discriminator_forward.4} parent=47 // loop_exit
                _
            $region48: #{discriminator_forward.4} parent=39 // pred_fallthru
              _
          $region40: #{discriminator_forward.4} parent=35 // pred_fallthru
            _
          %400 = vnop
        $region36: #{discriminator_forward.4} parent=31 // pred_fallthru
          _
      $region32: #{discriminator_forward.4} parent=5 // pred_fallthru
        _
      %p401 = scmp.le.s32.totalorder 1, %s13
      %p402 = scmp.lt.s32.totalorder %s13, 9
      %p403 = pnand %p401, %p402
      %p404 = pneg %p403
      // Predicated region
      $region74: #{discriminator_forward.4} parent=5 // pred_check
        _
      $region75: #{discriminator_forward.4} parent=5 // pred_check_branch
        %406 = sbr.rel (%p403) target = $region77
      $region76: #{discriminator_forward.4} parent=5 // pred_region
        %s407 = ssub.s32 %s13, 1
        %s408 = sand.u32 %s40, 1
        %s409 = sand.u32 %s40, 1
        %s410 = smul.addr %s409, 128
        %s411 = scalar_lea.vmem [#allocation2], %s410
        // Predicated region
        $region78: #{discriminator_forward.4} parent=76 // pred_check
          %p412 = pneg %p53
        $region79: #{discriminator_forward.4} parent=76 // pred_check_branch
          %414 = sbr.rel (%p412) target = $region81
        $region80: #{discriminator_forward.4} parent=76 // pred_region
          _
        $region81: #{discriminator_forward.4} parent=76 // pred_fallthru
          _
        %s415 = sand.u32 %s40, 1
        %s416 = sand.u32 %s40, 1
        %s417 = smul.addr %s416, 128
        %s418 = scalar_lea.vmem [#allocation2], %s417
        %p419 = pneg %p53
        %p420 = pneg %p50
        %p421 = pneg %p74
        %p422 = pneg %p71
        %p423 = pneg %p95
        %p424 = pneg %p92
        %p425 = pneg %p116
        %p426 = pneg %p113
        %p427 = pneg %p137
        %p428 = pneg %p134
        %p429 = pneg %p165
        %p430 = pneg %p162
        %s431 = sand.u32 %s152, 1
        %s432 = sand.u32 %s152, 1
        %s433 = smul.addr %s432, 32
        %s434 = scalar_lea.vmem [#allocation3], %s433
        %p435 = pneg %p195
        %p436 = pneg %p192
        %s437 = smul.u32 %s22, 2
        %s438 = sadd.s32 %s437, %s23
        %p439 = scmp.lt.s32.totalorder %s438, 7
        %s440 = scalar_select %p439, %s438, 7
        %s441 = smul.addr %s440, 8
        %s442 = scalar_lea.vmem %s6, %s441
        %s443 = smul.u32 2, %s23
        %s444 = smul.u32 2, %s23
        %s445 = smul.u32 %s22, 2
        %s446 = sadd.s32 %s445, %s23
        %p447 = scmp.lt.s32.totalorder %s446, 7
        %s448 = scalar_select %p447, %s446, 7
        %s449 = smul.addr %s448, 8
        %s450 = scalar_lea.vmem %s6, %s449
        %s451 = smul.u32 %s22, 2
        %s452 = sadd.s32 %s451, %s23
        %v454 = vld [vmem:[%s1] sm:$0xf]
        %v455 = vld [vmem:[%s1 + $0x4] sm:$0x3]
        %v456 = vld [vmem:[%s2] sm:$0x1]
        %v457 = vld [vmem:[%s4] sm:$0x1]
        %v458 = vld [vmem:[%s411] sm:$0xf]
        %v459 = vld [vmem:[%s411 + $0x4] sm:$0xf]
        %v461 = vlaneseq
        %v462 = vshrl.u32 %v461, 7
        %v463 = vsub.s32 0, %v462
        %v464 = vrot.slane %v456, %v463
        %v468 = vunpack.c.l.b16 %v458
        %v469 = vunpack.c.l.b16 %v459
        %v470 = vpack.c.b16 %v469, %v468
        %v473 = vunpack.c.l.b16 %v454
        %v474 = vunpack.c.l.b16 %v455
        %v475 = vpack.c.b16 %v474, %v473
        %vm476 = vcmask 97280
        %v478 = vsel %vm476, %v470, 0
        %vm480 = vcmask 1045504
        %v482 = vsel %vm480, %v475, 0
        %484 = vmatprep.subr.bf16.mxu0 0
        %485 = vmatpush1.bf16.msra.mxu0 %v482
        %486 = vmatprep.subr.bf16.mxu0 0
        %487 = vmatpush1.bf16.msra.mxu0 0
        %488 = vmatprep.subr.bf16.mxu0 0
        %489 = vmatpush1.bf16.msra.mxu0 0
        %490 = vmatprep.subr.bf16.mxu0 0
        %491 = vmatpush1.bf16.msra.mxu0 0
        %492 = vmatprep.subr.bf16.mxu0 0
        %493 = vmatpush1.bf16.msra.mxu0 0
        %494 = vmatprep.subr.bf16.mxu0 0
        %495 = vmatpush1.bf16.msra.mxu0 0
        %496 = vmatprep.subr.bf16.mxu0 0
        %497 = vmatpush1.bf16.msra.mxu0 0
        %498 = vmatprep.subr.bf16.mxu0 0
        %499 = vmatpush1.bf16.msra.mxu0 0
        %500 = vmatprep.subr.bf16.mxu0 0
        %501 = vmatpush1.bf16.msra.mxu0 0
        %502 = vmatprep.subr.bf16.mxu0 0
        %503 = vmatpush1.bf16.msra.mxu0 0
        %504 = vmatprep.subr.bf16.mxu0 0
        %505 = vmatpush1.bf16.msra.mxu0 0
        %506 = vmatprep.subr.bf16.mxu0 0
        %507 = vmatpush1.bf16.msra.mxu0 0
        %508 = vmatprep.subr.bf16.mxu0 0
        %509 = vmatpush1.bf16.msra.mxu0 0
        %510 = vmatprep.subr.bf16.mxu0 0
        %511 = vmatpush1.bf16.msra.mxu0 0
        %512 = vmatprep.subr.bf16.mxu0 0
        %513 = vmatpush1.bf16.msra.mxu0 0
        %514 = vmatprep.subr.bf16.mxu0 0
        %515 = vmatpush1.bf16.msra.mxu0 0
        %516 = vmatprep.mubr.bf16.mxu0 0
        %517 = vmatmul.mubr.bf16.gmra.mrb[0].mxu0 %v478
        %v518 = vpop.f32.mrb[0].mxu0
        %v519 = vadd.f32 %v464, %v518
        %v520 = vpop.f32.mrb[0].mxu0
        %v521 = vpop.f32.mrb[0].mxu0
        %v522 = vadd.f32 %v464, %v521
        %v523 = vpop.f32.mrb[0].mxu0
        %524 = vdwg.mxu0
        %v525 = vmax.f32 %v519, 0.0
        %v526 = vmax.f32 %v522, 0.0
        %v527 = vpack.c.bf16 %v526, %v525
        %v528 = vld [vmem:[%s3] sm:$0xf]
        %v529 = vld [vmem:[%s3 + $0x4] sm:$0xf]
        %v530 = vld [vmem:[%s3 + $0x8] sm:$0xf]
        %v531 = vld [vmem:[%s3 + $0xc] sm:$0xf]
        %v532 = vld [vmem:[%s3 + $0x10] sm:$0xf]
        %v533 = vld [vmem:[%s3 + $0x14] sm:$0xf]
        %v534 = vld [vmem:[%s3 + $0x18] sm:$0xf]
        %v535 = vld [vmem:[%s3 + $0x1c] sm:$0xf]
        %v536 = vld [vmem:[%s3 + $0x20] sm:$0xf]
        %v537 = vld [vmem:[%s3 + $0x24] sm:$0xf]
        %v538 = vld [vmem:[%s3 + $0x28] sm:$0xf]
        %v539 = vld [vmem:[%s3 + $0x2c] sm:$0xf]
        %v540 = vld [vmem:[%s3 + $0x30] sm:$0xf]
        %v541 = vld [vmem:[%s3 + $0x34] sm:$0xf]
        %v542 = vld [vmem:[%s3 + $0x38] sm:$0xf]
        %v543 = vld [vmem:[%s3 + $0x3c] sm:$0xf]
        %s544 = scalar_lea.vmem %s411, 8 [#allocation2]
        %v545 = vld [vmem:[%s544] sm:$0xf]
        %v546 = vld [vmem:[%s544 + $0x4] sm:$0xf]
        %v549 = vunpack.c.l.b16 %v545
        %v550 = vunpack.c.l.b16 %v546
        %v551 = vpack.c.b16 %v550, %v549
        %v553 = vsel %vm476, %v551, 0
        %555 = vmatprep.subr.bf16.mxu0 0
        %556 = vmatpush1.bf16.msra.mxu0 %v482
        %557 = vmatprep.subr.bf16.mxu0 0
        %558 = vmatpush1.bf16.msra.mxu0 0
        %559 = vmatprep.subr.bf16.mxu0 0
        %560 = vmatpush1.bf16.msra.mxu0 0
        %561 = vmatprep.subr.bf16.mxu0 0
        %562 = vmatpush1.bf16.msra.mxu0 0
        %563 = vmatprep.subr.bf16.mxu0 0
        %564 = vmatpush1.bf16.msra.mxu0 0
        %565 = vmatprep.subr.bf16.mxu0 0
        %566 = vmatpush1.bf16.msra.mxu0 0
        %567 = vmatprep.subr.bf16.mxu0 0
        %568 = vmatpush1.bf16.msra.mxu0 0
        %569 = vmatprep.subr.bf16.mxu0 0
        %570 = vmatpush1.bf16.msra.mxu0 0
        %571 = vmatprep.subr.bf16.mxu0 0
        %572 = vmatpush1.bf16.msra.mxu0 0
        %573 = vmatprep.subr.bf16.mxu0 0
        %574 = vmatpush1.bf16.msra.mxu0 0
        %575 = vmatprep.subr.bf16.mxu0 0
        %576 = vmatpush1.bf16.msra.mxu0 0
        %577 = vmatprep.subr.bf16.mxu0 0
        %578 = vmatpush1.bf16.msra.mxu0 0
        %579 = vmatprep.subr.bf16.mxu0 0
        %580 = vmatpush1.bf16.msra.mxu0 0
        %581 = vmatprep.subr.bf16.mxu0 0
        %582 = vmatpush1.bf16.msra.mxu0 0
        %583 = vmatprep.subr.bf16.mxu0 0
        %584 = vmatpush1.bf16.msra.mxu0 0
        %585 = vmatprep.subr.bf16.mxu0 0
        %586 = vmatpush1.bf16.msra.mxu0 0
        %587 = vmatprep.mubr.bf16.mxu0 0
        %588 = vmatmul.mubr.bf16.gmra.mrb[0].mxu0 %v553
        %v589 = vpop.f32.mrb[0].mxu0
        %v590 = vadd.f32 %v464, %v589
        %v591 = vpop.f32.mrb[0].mxu0
        %v592 = vpop.f32.mrb[0].mxu0
        %v593 = vadd.f32 %v464, %v592
        %v594 = vpop.f32.mrb[0].mxu0
        %595 = vdwg.mxu0
        %v596 = vmax.f32 %v590, 0.0
        %v597 = vmax.f32 %v593, 0.0
        %v598 = vpack.c.bf16 %v597, %v596
        %s599 = scalar_lea.vmem %s3, 64
        %v600 = vld [vmem:[%s599] sm:$0xf]
        %v601 = vld [vmem:[%s599 + $0x4] sm:$0xf]
        %v602 = vld [vmem:[%s599 + $0x8] sm:$0xf]
        %v603 = vld [vmem:[%s599 + $0xc] sm:$0xf]
        %v604 = vld [vmem:[%s599 + $0x10] sm:$0xf]
        %v605 = vld [vmem:[%s599 + $0x14] sm:$0xf]
        %v606 = vld [vmem:[%s599 + $0x18] sm:$0xf]
        %v607 = vld [vmem:[%s599 + $0x1c] sm:$0xf]
        %v608 = vld [vmem:[%s599 + $0x20] sm:$0xf]
        %v609 = vld [vmem:[%s599 + $0x24] sm:$0xf]
        %v610 = vld [vmem:[%s599 + $0x28] sm:$0xf]
        %v611 = vld [vmem:[%s599 + $0x2c] sm:$0xf]
        %v612 = vld [vmem:[%s599 + $0x30] sm:$0xf]
        %v613 = vld [vmem:[%s599 + $0x34] sm:$0xf]
        %v614 = vld [vmem:[%s599 + $0x38] sm:$0xf]
        %v615 = vld [vmem:[%s599 + $0x3c] sm:$0xf]
        %v632 = vunpack.c.l.b16 %v600
        %v633 = vunpack.c.l.b16 %v601
        %v634 = vunpack.c.l.b16 %v602
        %v635 = vunpack.c.l.b16 %v603
        %v636 = vunpack.c.l.b16 %v604
        %v637 = vunpack.c.l.b16 %v605
        %v638 = vunpack.c.l.b16 %v606
        %v639 = vunpack.c.l.b16 %v607
        %v640 = vunpack.c.l.b16 %v608
        %v641 = vunpack.c.l.b16 %v609
        %v642 = vunpack.c.l.b16 %v610
        %v643 = vunpack.c.l.b16 %v611
        %v644 = vunpack.c.l.b16 %v612
        %v645 = vunpack.c.l.b16 %v613
        %v646 = vunpack.c.l.b16 %v614
        %v647 = vunpack.c.l.b16 %v615
        %v648 = vpack.c.b16 %v633, %v632
        %v649 = vpack.c.b16 %v635, %v634
        %v650 = vpack.c.b16 %v637, %v636
        %v651 = vpack.c.b16 %v639, %v638
        %v652 = vpack.c.b16 %v641, %v640
        %v653 = vpack.c.b16 %v643, %v642
        %v654 = vpack.c.b16 %v645, %v644
        %v655 = vpack.c.b16 %v647, %v646
        %664 = vmatprep.subr.bf16.mxu0 0
        %665 = vmatpush1.bf16.msra.mxu0 %v648
        %666 = vmatprep.subr.bf16.mxu0 0
        %667 = vmatpush1.bf16.msra.mxu0 %v649
        %668 = vmatprep.subr.bf16.mxu0 0
        %669 = vmatpush1.bf16.msra.mxu0 %v650
        %670 = vmatprep.subr.bf16.mxu0 0
        %671 = vmatpush1.bf16.msra.mxu0 %v651
        %672 = vmatprep.subr.bf16.mxu0 0
        %673 = vmatpush1.bf16.msra.mxu0 %v652
        %674 = vmatprep.subr.bf16.mxu0 0
        %675 = vmatpush1.bf16.msra.mxu0 %v653
        %676 = vmatprep.subr.bf16.mxu0 0
        %677 = vmatpush1.bf16.msra.mxu0 %v654
        %678 = vmatprep.subr.bf16.mxu0 0
        %679 = vmatpush1.bf16.msra.mxu0 %v655
        %680 = vmatprep.subr.bf16.mxu0 0
        %681 = vmatpush1.bf16.msra.mxu0 0
        %682 = vmatprep.subr.bf16.mxu0 0
        %683 = vmatpush1.bf16.msra.mxu0 0
        %684 = vmatprep.subr.bf16.mxu0 0
        %685 = vmatpush1.bf16.msra.mxu0 0
        %686 = vmatprep.subr.bf16.mxu0 0
        %687 = vmatpush1.bf16.msra.mxu0 0
        %688 = vmatprep.subr.bf16.mxu0 0
        %689 = vmatpush1.bf16.msra.mxu0 0
        %690 = vmatprep.subr.bf16.mxu0 0
        %691 = vmatpush1.bf16.msra.mxu0 0
        %692 = vmatprep.subr.bf16.mxu0 0
        %693 = vmatpush1.bf16.msra.mxu0 0
        %694 = vmatprep.subr.bf16.mxu0 0
        %695 = vmatpush1.bf16.msra.mxu0 0
        %696 = vmatprep.mubr.bf16.mxu0 0
        %697 = vmatmul.mubr.bf16.gmra.mrb[0].mxu0 %v598
        %v698 = vpop.f32.mrb[0].mxu0
        %v699 = vadd.f32 0.0, %v698
        %v700 = vpop.f32.mrb[0].mxu0
        %v701 = vpop.f32.mrb[0].mxu0
        %v702 = vadd.f32 0.0, %v701
        %v703 = vpop.f32.mrb[0].mxu0
        %704 = vdwg.mxu0
        %v721 = vunpack.c.l.b16 %v528
        %v722 = vunpack.c.l.b16 %v529
        %v723 = vunpack.c.l.b16 %v530
        %v724 = vunpack.c.l.b16 %v531
        %v725 = vunpack.c.l.b16 %v532
        %v726 = vunpack.c.l.b16 %v533
        %v727 = vunpack.c.l.b16 %v534
        %v728 = vunpack.c.l.b16 %v535
        %v729 = vunpack.c.l.b16 %v536
        %v730 = vunpack.c.l.b16 %v537
        %v731 = vunpack.c.l.b16 %v538
        %v732 = vunpack.c.l.b16 %v539
        %v733 = vunpack.c.l.b16 %v540
        %v734 = vunpack.c.l.b16 %v541
        %v735 = vunpack.c.l.b16 %v542
        %v736 = vunpack.c.l.b16 %v543
        %v737 = vpack.c.b16 %v722, %v721
        %v738 = vpack.c.b16 %v724, %v723
        %v739 = vpack.c.b16 %v726, %v725
        %v740 = vpack.c.b16 %v728, %v727
        %v741 = vpack.c.b16 %v730, %v729
        %v742 = vpack.c.b16 %v732, %v731
        %v743 = vpack.c.b16 %v734, %v733
        %v744 = vpack.c.b16 %v736, %v735
        %753 = vmatprep.subr.bf16.mxu0 0
        %754 = vmatpush1.bf16.msra.mxu0 %v737
        %755 = vmatprep.subr.bf16.mxu0 0
        %756 = vmatpush1.bf16.msra.mxu0 %v738
        %757 = vmatprep.subr.bf16.mxu0 0
        %758 = vmatpush1.bf16.msra.mxu0 %v739
        %759 = vmatprep.subr.bf16.mxu0 0
        %760 = vmatpush1.bf16.msra.mxu0 %v740
        %761 = vmatprep.subr.bf16.mxu0 0
        %762 = vmatpush1.bf16.msra.mxu0 %v741
        %763 = vmatprep.subr.bf16.mxu0 0
        %764 = vmatpush1.bf16.msra.mxu0 %v742
        %765 = vmatprep.subr.bf16.mxu0 0
        %766 = vmatpush1.bf16.msra.mxu0 %v743
        %767 = vmatprep.subr.bf16.mxu0 0
        %768 = vmatpush1.bf16.msra.mxu0 %v744
        %769 = vmatprep.subr.bf16.mxu0 0
        %770 = vmatpush1.bf16.msra.mxu0 0
        %771 = vmatprep.subr.bf16.mxu0 0
        %772 = vmatpush1.bf16.msra.mxu0 0
        %773 = vmatprep.subr.bf16.mxu0 0
        %774 = vmatpush1.bf16.msra.mxu0 0
        %775 = vmatprep.subr.bf16.mxu0 0
        %776 = vmatpush1.bf16.msra.mxu0 0
        %777 = vmatprep.subr.bf16.mxu0 0
        %778 = vmatpush1.bf16.msra.mxu0 0
        %779 = vmatprep.subr.bf16.mxu0 0
        %780 = vmatpush1.bf16.msra.mxu0 0
        %781 = vmatprep.subr.bf16.mxu0 0
        %782 = vmatpush1.bf16.msra.mxu0 0
        %783 = vmatprep.subr.bf16.mxu0 0
        %784 = vmatpush1.bf16.msra.mxu0 0
        %785 = vmatprep.mubr.bf16.mxu0 0
        %786 = vmatmul.mubr.bf16.gmra.mrb[0].mxu0 %v527
        %v787 = vpop.f32.mrb[0].mxu0
        %v788 = vadd.f32 %v699, %v787
        %v789 = vpop.f32.mrb[0].mxu0
        %v790 = vpop.f32.mrb[0].mxu0
        %v791 = vadd.f32 %v702, %v790
        %v792 = vpop.f32.mrb[0].mxu0
        %793 = vdwg.mxu0
        %s794 = scalar_lea.vmem %s411, 16 [#allocation2]
        %v795 = vld [vmem:[%s794] sm:$0xf]
        %v796 = vld [vmem:[%s794 + $0x4] sm:$0xf]
        %v799 = vunpack.c.l.b16 %v795
        %v800 = vunpack.c.l.b16 %v796
        %v801 = vpack.c.b16 %v800, %v799
        %v803 = vsel %vm476, %v801, 0
        %805 = vmatprep.subr.bf16.mxu0 0
        %806 = vmatpush1.bf16.msra.mxu0 %v482
        %807 = vmatprep.subr.bf16.mxu0 0
        %808 = vmatpush1.bf16.msra.mxu0 0
        %809 = vmatprep.subr.bf16.mxu0 0
        %810 = vmatpush1.bf16.msra.mxu0 0
        %811 = vmatprep.subr.bf16.mxu0 0
        %812 = vmatpush1.bf16.msra.mxu0 0
        %813 = vmatprep.subr.bf16.mxu0 0
        %814 = vmatpush1.bf16.msra.mxu0 0
        %815 = vmatprep.subr.bf16.mxu0 0
        %816 = vmatpush1.bf16.msra.mxu0 0
        %817 = vmatprep.subr.bf16.mxu0 0
        %818 = vmatpush1.bf16.msra.mxu0 0
        %819 = vmatprep.subr.bf16.mxu0 0
        %820 = vmatpush1.bf16.msra.mxu0 0
        %821 = vmatprep.subr.bf16.mxu0 0
        %822 = vmatpush1.bf16.msra.mxu0 0
        %823 = vmatprep.subr.bf16.mxu0 0
        %824 = vmatpush1.bf16.msra.mxu0 0
        %825 = vmatprep.subr.bf16.mxu0 0
        %826 = vmatpush1.bf16.msra.mxu0 0
        %827 = vmatprep.subr.bf16.mxu0 0
        %828 = vmatpush1.bf16.msra.mxu0 0
        %829 = vmatprep.subr.bf16.mxu0 0
        %830 = vmatpush1.bf16.msra.mxu0 0
        %831 = vmatprep.subr.bf16.mxu0 0
        %832 = vmatpush1.bf16.msra.mxu0 0
        %833 = vmatprep.subr.bf16.mxu0 0
        %834 = vmatpush1.bf16.msra.mxu0 0
        %835 = vmatprep.subr.bf16.mxu0 0
        %836 = vmatpush1.bf16.msra.mxu0 0
        %837 = vmatprep.mubr.bf16.mxu0 0
        %838 = vmatmul.mubr.bf16.gmra.mrb[0].mxu0 %v803
        %v839 = vpop.f32.mrb[0].mxu0
        %v840 = vadd.f32 %v464, %v839
        %v841 = vpop.f32.mrb[0].mxu0
        %v842 = vpop.f32.mrb[0].mxu0
        %v843 = vadd.f32 %v464, %v842
        %v844 = vpop.f32.mrb[0].mxu0
        %845 = vdwg.mxu0
        %v846 = vmax.f32 %v840, 0.0
        %v847 = vmax.f32 %v843, 0.0
        %v848 = vpack.c.bf16 %v847, %v846
        %s849 = scalar_lea.vmem %s3, 128
        %v850 = vld [vmem:[%s849] sm:$0xf]
        %v851 = vld [vmem:[%s849 + $0x4] sm:$0xf]
        %v852 = vld [vmem:[%s849 + $0x8] sm:$0xf]
        %v853 = vld [vmem:[%s849 + $0xc] sm:$0xf]
        %v854 = vld [vmem:[%s849 + $0x10] sm:$0xf]
        %v855 = vld [vmem:[%s849 + $0x14] sm:$0xf]
        %v856 = vld [vmem:[%s849 + $0x18] sm:$0xf]
        %v857 = vld [vmem:[%s849 + $0x1c] sm:$0xf]
        %v858 = vld [vmem:[%s849 + $0x20] sm:$0xf]
        %v859 = vld [vmem:[%s849 + $0x24] sm:$0xf]
        %v860 = vld [vmem:[%s849 + $0x28] sm:$0xf]
        %v861 = vld [vmem:[%s849 + $0x2c] sm:$0xf]
        %v862 = vld [vmem:[%s849 + $0x30] sm:$0xf]
        %v863 = vld [vmem:[%s849 + $0x34] sm:$0xf]
        %v864 = vld [vmem:[%s849 + $0x38] sm:$0xf]
        %v865 = vld [vmem:[%s849 + $0x3c] sm:$0xf]
        %v882 = vunpack.c.l.b16 %v850
        %v883 = vunpack.c.l.b16 %v851
        %v884 = vunpack.c.l.b16 %v852
        %v885 = vunpack.c.l.b16 %v853
        %v886 = vunpack.c.l.b16 %v854
        %v887 = vunpack.c.l.b16 %v855
        %v888 = vunpack.c.l.b16 %v856
        %v889 = vunpack.c.l.b16 %v857
        %v890 = vunpack.c.l.b16 %v858
        %v891 = vunpack.c.l.b16 %v859
        %v892 = vunpack.c.l.b16 %v860
        %v893 = vunpack.c.l.b16 %v861
        %v894 = vunpack.c.l.b16 %v862
        %v895 = vunpack.c.l.b16 %v863
        %v896 = vunpack.c.l.b16 %v864
        %v897 = vunpack.c.l.b16 %v865
        %v898 = vpack.c.b16 %v883, %v882
        %v899 = vpack.c.b16 %v885, %v884
        %v900 = vpack.c.b16 %v887, %v886
        %v901 = vpack.c.b16 %v889, %v888
        %v902 = vpack.c.b16 %v891, %v890
        %v903 = vpack.c.b16 %v893, %v892
        %v904 = vpack.c.b16 %v895, %v894
        %v905 = vpack.c.b16 %v897, %v896
        %914 = vmatprep.subr.bf16.mxu0 0
        %915 = vmatpush1.bf16.msra.mxu0 %v898
        %916 = vmatprep.subr.bf16.mxu0 0
        %917 = vmatpush1.bf16.msra.mxu0 %v899
        %918 = vmatprep.subr.bf16.mxu0 0
        %919 = vmatpush1.bf16.msra.mxu0 %v900
        %920 = vmatprep.subr.bf16.mxu0 0
        %921 = vmatpush1.bf16.msra.mxu0 %v901
        %922 = vmatprep.subr.bf16.mxu0 0
        %923 = vmatpush1.bf16.msra.mxu0 %v902
        %924 = vmatprep.subr.bf16.mxu0 0
        %925 = vmatpush1.bf16.msra.mxu0 %v903
        %926 = vmatprep.subr.bf16.mxu0 0
        %927 = vmatpush1.bf16.msra.mxu0 %v904
        %928 = vmatprep.subr.bf16.mxu0 0
        %929 = vmatpush1.bf16.msra.mxu0 %v905
        %930 = vmatprep.subr.bf16.mxu0 0
        %931 = vmatpush1.bf16.msra.mxu0 0
        %932 = vmatprep.subr.bf16.mxu0 0
        %933 = vmatpush1.bf16.msra.mxu0 0
        %934 = vmatprep.subr.bf16.mxu0 0
        %935 = vmatpush1.bf16.msra.mxu0 0
        %936 = vmatprep.subr.bf16.mxu0 0
        %937 = vmatpush1.bf16.msra.mxu0 0
        %938 = vmatprep.subr.bf16.mxu0 0
        %939 = vmatpush1.bf16.msra.mxu0 0
        %940 = vmatprep.subr.bf16.mxu0 0
        %941 = vmatpush1.bf16.msra.mxu0 0
        %942 = vmatprep.subr.bf16.mxu0 0
        %943 = vmatpush1.bf16.msra.mxu0 0
        %944 = vmatprep.subr.bf16.mxu0 0
        %945 = vmatpush1.bf16.msra.mxu0 0
        %946 = vmatprep.mubr.bf16.mxu0 0
        %947 = vmatmul.mubr.bf16.gmra.mrb[0].mxu0 %v848
        %v948 = vpop.f32.mrb[0].mxu0
        %v949 = vadd.f32 0.0, %v948
        %v950 = vpop.f32.mrb[0].mxu0
        %v951 = vpop.f32.mrb[0].mxu0
        %v952 = vadd.f32 0.0, %v951
        %v953 = vpop.f32.mrb[0].mxu0
        %954 = vdwg.mxu0
        %v955 = vadd.f32 %v788, %v949
        %v956 = vadd.f32 %v791, %v952
        %s957 = scalar_lea.vmem %s411, 24 [#allocation2]
        %v958 = vld [vmem:[%s957] sm:$0xf]
        %v959 = vld [vmem:[%s957 + $0x4] sm:$0xf]
        %v962 = vunpack.c.l.b16 %v958
        %v963 = vunpack.c.l.b16 %v959
        %v964 = vpack.c.b16 %v963, %v962
        %v966 = vsel %vm476, %v964, 0
        %968 = vmatprep.subr.bf16.mxu0 0
        %969 = vmatpush1.bf16.msra.mxu0 %v482
        %970 = vmatprep.subr.bf16.mxu0 0
        %971 = vmatpush1.bf16.msra.mxu0 0
        %972 = vmatprep.subr.bf16.mxu0 0
        %973 = vmatpush1.bf16.msra.mxu0 0
        %974 = vmatprep.subr.bf16.mxu0 0
        %975 = vmatpush1.bf16.msra.mxu0 0
        %976 = vmatprep.subr.bf16.mxu0 0
        %977 = vmatpush1.bf16.msra.mxu0 0
        %978 = vmatprep.subr.bf16.mxu0 0
        %979 = vmatpush1.bf16.msra.mxu0 0
        %980 = vmatprep.subr.bf16.mxu0 0
        %981 = vmatpush1.bf16.msra.mxu0 0
        %982 = vmatprep.subr.bf16.mxu0 0
        %983 = vmatpush1.bf16.msra.mxu0 0
        %984 = vmatprep.subr.bf16.mxu0 0
        %985 = vmatpush1.bf16.msra.mxu0 0
        %986 = vmatprep.subr.bf16.mxu0 0
        %987 = vmatpush1.bf16.msra.mxu0 0
        %988 = vmatprep.subr.bf16.mxu0 0
        %989 = vmatpush1.bf16.msra.mxu0 0
        %990 = vmatprep.subr.bf16.mxu0 0
        %991 = vmatpush1.bf16.msra.mxu0 0
        %992 = vmatprep.subr.bf16.mxu0 0
        %993 = vmatpush1.bf16.msra.mxu0 0
        %994 = vmatprep.subr.bf16.mxu0 0
        %995 = vmatpush1.bf16.msra.mxu0 0
        %996 = vmatprep.subr.bf16.mxu0 0
        %997 = vmatpush1.bf16.msra.mxu0 0
        %998 = vmatprep.subr.bf16.mxu0 0
        %999 = vmatpush1.bf16.msra.mxu0 0
        %1000 = vmatprep.mubr.bf16.mxu0 0
        %1001 = vmatmul.mubr.bf16.gmra.mrb[0].mxu0 %v966
        %v1002 = vpop.f32.mrb[0].mxu0
        %v1003 = vadd.f32 %v464, %v1002
        %v1004 = vpop.f32.mrb[0].mxu0
        %v1005 = vpop.f32.mrb[0].mxu0
        %v1006 = vadd.f32 %v464, %v1005
        %v1007 = vpop.f32.mrb[0].mxu0
        %1008 = vdwg.mxu0
        %v1009 = vmax.f32 %v1003, 0.0
        %v1010 = vmax.f32 %v1006, 0.0
        %v1011 = vpack.c.bf16 %v1010, %v1009
        %s1012 = scalar_lea.vmem %s3, 192
        %v1013 = vld [vmem:[%s1012] sm:$0xf]
        %v1014 = vld [vmem:[%s1012 + $0x4] sm:$0xf]
        %v1015 = vld [vmem:[%s1012 + $0x8] sm:$0xf]
        %v1016 = vld [vmem:[%s1012 + $0xc] sm:$0xf]
        %v1017 = vld [vmem:[%s1012 + $0x10] sm:$0xf]
        %v1018 = vld [vmem:[%s1012 + $0x14] sm:$0xf]
        %v1019 = vld [vmem:[%s1012 + $0x18] sm:$0xf]
        %v1020 = vld [vmem:[%s1012 + $0x1c] sm:$0xf]
        %v1021 = vld [vmem:[%s1012 + $0x20] sm:$0xf]
        %v1022 = vld [vmem:[%s1012 + $0x24] sm:$0xf]
        %v1023 = vld [vmem:[%s1012 + $0x28] sm:$0xf]
        %v1024 = vld [vmem:[%s1012 + $0x2c] sm:$0xf]
        %v1025 = vld [vmem:[%s1012 + $0x30] sm:$0xf]
        %v1026 = vld [vmem:[%s1012 + $0x34] sm:$0xf]
        %v1027 = vld [vmem:[%s1012 + $0x38] sm:$0xf]
        %v1028 = vld [vmem:[%s1012 + $0x3c] sm:$0xf]
        %v1045 = vunpack.c.l.b16 %v1013
        %v1046 = vunpack.c.l.b16 %v1014
        %v1047 = vunpack.c.l.b16 %v1015
        %v1048 = vunpack.c.l.b16 %v1016
        %v1049 = vunpack.c.l.b16 %v1017
        %v1050 = vunpack.c.l.b16 %v1018
        %v1051 = vunpack.c.l.b16 %v1019
        %v1052 = vunpack.c.l.b16 %v1020
        %v1053 = vunpack.c.l.b16 %v1021
        %v1054 = vunpack.c.l.b16 %v1022
        %v1055 = vunpack.c.l.b16 %v1023
        %v1056 = vunpack.c.l.b16 %v1024
        %v1057 = vunpack.c.l.b16 %v1025
        %v1058 = vunpack.c.l.b16 %v1026
        %v1059 = vunpack.c.l.b16 %v1027
        %v1060 = vunpack.c.l.b16 %v1028
        %v1061 = vpack.c.b16 %v1046, %v1045
        %v1062 = vpack.c.b16 %v1048, %v1047
        %v1063 = vpack.c.b16 %v1050, %v1049
        %v1064 = vpack.c.b16 %v1052, %v1051
        %v1065 = vpack.c.b16 %v1054, %v1053
        %v1066 = vpack.c.b16 %v1056, %v1055
        %v1067 = vpack.c.b16 %v1058, %v1057
        %v1068 = vpack.c.b16 %v1060, %v1059
        %1077 = vmatprep.subr.bf16.mxu0 0
        %1078 = vmatpush1.bf16.msra.mxu0 %v1061
        %1079 = vmatprep.subr.bf16.mxu0 0
        %1080 = vmatpush1.bf16.msra.mxu0 %v1062
        %1081 = vmatprep.subr.bf16.mxu0 0
        %1082 = vmatpush1.bf16.msra.mxu0 %v1063
        %1083 = vmatprep.subr.bf16.mxu0 0
        %1084 = vmatpush1.bf16.msra.mxu0 %v1064
        %1085 = vmatprep.subr.bf16.mxu0 0
        %1086 = vmatpush1.bf16.msra.mxu0 %v1065
        %1087 = vmatprep.subr.bf16.mxu0 0
        %1088 = vmatpush1.bf16.msra.mxu0 %v1066
        %1089 = vmatprep.subr.bf16.mxu0 0
        %1090 = vmatpush1.bf16.msra.mxu0 %v1067
        %1091 = vmatprep.subr.bf16.mxu0 0
        %1092 = vmatpush1.bf16.msra.mxu0 %v1068
        %1093 = vmatprep.subr.bf16.mxu0 0
        %1094 = vmatpush1.bf16.msra.mxu0 0
        %1095 = vmatprep.subr.bf16.mxu0 0
        %1096 = vmatpush1.bf16.msra.mxu0 0
        %1097 = vmatprep.subr.bf16.mxu0 0
        %1098 = vmatpush1.bf16.msra.mxu0 0
        %1099 = vmatprep.subr.bf16.mxu0 0
        %1100 = vmatpush1.bf16.msra.mxu0 0
        %1101 = vmatprep.subr.bf16.mxu0 0
        %1102 = vmatpush1.bf16.msra.mxu0 0
        %1103 = vmatprep.subr.bf16.mxu0 0
        %1104 = vmatpush1.bf16.msra.mxu0 0
        %1105 = vmatprep.subr.bf16.mxu0 0
        %1106 = vmatpush1.bf16.msra.mxu0 0
        %1107 = vmatprep.subr.bf16.mxu0 0
        %1108 = vmatpush1.bf16.msra.mxu0 0
        %1109 = vmatprep.mubr.bf16.mxu0 0
        %1110 = vmatmul.mubr.bf16.gmra.mrb[0].mxu0 %v1011
        %v1111 = vpop.f32.mrb[0].mxu0
        %v1112 = vadd.f32 0.0, %v1111
        %v1113 = vpop.f32.mrb[0].mxu0
        %v1114 = vpop.f32.mrb[0].mxu0
        %v1115 = vadd.f32 0.0, %v1114
        %v1116 = vpop.f32.mrb[0].mxu0
        %1117 = vdwg.mxu0
        %v1118 = vadd.f32 %v955, %v1112
        %v1119 = vadd.f32 %v956, %v1115
        %v1121 = vlaneseq
        %v1122 = vshrl.u32 %v1121, 7
        %v1123 = vsub.s32 0, %v1122
        %v1124 = vrot.slane %v457, %v1123
        %v1126 = vadd.f32 %v1118, %v1124
        %v1127 = vadd.f32 %v1119, %v1124
        %v1128 = vmax.f32 %v1126, 0.0
        %v1129 = vmax.f32 %v1127, 0.0
        %v1130 = vpack.c.bf16 %v1129, %v1128
        %v1132 = vunpack.c.l.b16 %v1130
        %v1133 = vunpack.c.h.b16 %v1130
        %v1134 = vpack.c.b16 %v1132, %v1132
        %v1135 = vpack.c.b16 %v1133, %v1133
        %1138 = vst [vmem:[%s434] sm:$0xf] %v1134
        %1139 = vst [vmem:[%s434 + $0x4] sm:$0xf] %v1135
        %v1140 = vadd.f32 %v1128, %v1129
        %v1141 = vrot.slane %v1140, 4
        %v1142 = vadd.f32 %v1140, %v1141
        %v1143 = vrot.slane %v1142, 2
        %v1144 = vadd.f32 %v1142, %v1143
        %v1145 = vrot.slane %v1144, 1
        %v1146 = vadd.f32 %v1144, %v1145
        %v1147 = vadd.f32 %v1146, 0.0
        %v1148 = vmul.f32 %v1128, %v1128
        %v1149 = vmul.f32 %v1129, %v1129
        %v1150 = vadd.f32 %v1148, %v1149
        %v1151 = vrot.slane %v1150, 4
        %v1152 = vadd.f32 %v1150, %v1151
        %v1153 = vrot.slane %v1152, 2
        %v1154 = vadd.f32 %v1152, %v1153
        %v1155 = vrot.slane %v1154, 1
        %v1156 = vadd.f32 %v1154, %v1155
        %v1157 = vadd.f32 %v1156, 0.0
        %s1158 = scalar_lea.vmem %s411, 32 [#allocation2]
        %v1159 = vld [vmem:[%s1158] sm:$0xf]
        %v1160 = vld [vmem:[%s1158 + $0x4] sm:$0xf]
        %v1163 = vunpack.c.l.b16 %v1159
        %v1164 = vunpack.c.l.b16 %v1160
        %v1165 = vpack.c.b16 %v1164, %v1163
        %v1167 = vsel %vm476, %v1165, 0
        %1169 = vmatprep.subr.bf16.mxu0 0
        %1170 = vmatpush1.bf16.msra.mxu0 %v482
        %1171 = vmatprep.subr.bf16.mxu0 0
        %1172 = vmatpush1.bf16.msra.mxu0 0
        %1173 = vmatprep.subr.bf16.mxu0 0
        %1174 = vmatpush1.bf16.msra.mxu0 0
        %1175 = vmatprep.subr.bf16.mxu0 0
        %1176 = vmatpush1.bf16.msra.mxu0 0
        %1177 = vmatprep.subr.bf16.mxu0 0
        %1178 = vmatpush1.bf16.msra.mxu0 0
        %1179 = vmatprep.subr.bf16.mxu0 0
        %1180 = vmatpush1.bf16.msra.mxu0 0
        %1181 = vmatprep.subr.bf16.mxu0 0
        %1182 = vmatpush1.bf16.msra.mxu0 0
        %1183 = vmatprep.subr.bf16.mxu0 0
        %1184 = vmatpush1.bf16.msra.mxu0 0
        %1185 = vmatprep.subr.bf16.mxu0 0
        %1186 = vmatpush1.bf16.msra.mxu0 0
        %1187 = vmatprep.subr.bf16.mxu0 0
        %1188 = vmatpush1.bf16.msra.mxu0 0
        %1189 = vmatprep.subr.bf16.mxu0 0
        %1190 = vmatpush1.bf16.msra.mxu0 0
        %1191 = vmatprep.subr.bf16.mxu0 0
        %1192 = vmatpush1.bf16.msra.mxu0 0
        %1193 = vmatprep.subr.bf16.mxu0 0
        %1194 = vmatpush1.bf16.msra.mxu0 0
        %1195 = vmatprep.subr.bf16.mxu0 0
        %1196 = vmatpush1.bf16.msra.mxu0 0
        %1197 = vmatprep.subr.bf16.mxu0 0
        %1198 = vmatpush1.bf16.msra.mxu0 0
        %1199 = vmatprep.subr.bf16.mxu0 0
        %1200 = vmatpush1.bf16.msra.mxu0 0
        %1201 = vmatprep.mubr.bf16.mxu0 0
        %1202 = vmatmul.mubr.bf16.gmra.mrb[0].mxu0 %v1167
        %v1203 = vpop.f32.mrb[0].mxu0
        %v1204 = vadd.f32 %v464, %v1203
        %v1205 = vpop.f32.mrb[0].mxu0
        %v1206 = vpop.f32.mrb[0].mxu0
        %v1207 = vadd.f32 %v464, %v1206
        %v1208 = vpop.f32.mrb[0].mxu0
        %1209 = vdwg.mxu0
        %v1210 = vmax.f32 %v1204, 0.0
        %v1211 = vmax.f32 %v1207, 0.0
        %v1212 = vpack.c.bf16 %v1211, %v1210
        %v1213 = vld [vmem:[%s3] sm:$0xf]
        %v1214 = vld [vmem:[%s3 + $0x4] sm:$0xf]
        %v1215 = vld [vmem:[%s3 + $0x8] sm:$0xf]
        %v1216 = vld [vmem:[%s3 + $0xc] sm:$0xf]
        %v1217 = vld [vmem:[%s3 + $0x10] sm:$0xf]
        %v1218 = vld [vmem:[%s3 + $0x14] sm:$0xf]
        %v1219 = vld [vmem:[%s3 + $0x18] sm:$0xf]
        %v1220 = vld [vmem:[%s3 + $0x1c] sm:$0xf]
        %v1221 = vld [vmem:[%s3 + $0x20] sm:$0xf]
        %v1222 = vld [vmem:[%s3 + $0x24] sm:$0xf]
        %v1223 = vld [vmem:[%s3 + $0x28] sm:$0xf]
        %v1224 = vld [vmem:[%s3 + $0x2c] sm:$0xf]
        %v1225 = vld [vmem:[%s3 + $0x30] sm:$0xf]
        %v1226 = vld [vmem:[%s3 + $0x34] sm:$0xf]
        %v1227 = vld [vmem:[%s3 + $0x38] sm:$0xf]
        %v1228 = vld [vmem:[%s3 + $0x3c] sm:$0xf]
        %s1229 = scalar_lea.vmem %s411, 40 [#allocation2]
        %v1230 = vld [vmem:[%s1229] sm:$0xf]
        %v1231 = vld [vmem:[%s1229 + $0x4] sm:$0xf]
        %v1234 = vunpack.c.l.b16 %v1230
        %v1235 = vunpack.c.l.b16 %v1231
        %v1236 = vpack.c.b16 %v1235, %v1234
        %v1238 = vsel %vm476, %v1236, 0
        %1240 = vmatprep.subr.bf16.mxu0 0
        %1241 = vmatpush1.bf16.msra.mxu0 %v482
        %1242 = vmatprep.subr.bf16.mxu0 0
        %1243 = vmatpush1.bf16.msra.mxu0 0
        %1244 = vmatprep.subr.bf16.mxu0 0
        %1245 = vmatpush1.bf16.msra.mxu0 0
        %1246 = vmatprep.subr.bf16.mxu0 0
        %1247 = vmatpush1.bf16.msra.mxu0 0
        %1248 = vmatprep.subr.bf16.mxu0 0
        %1249 = vmatpush1.bf16.msra.mxu0 0
        %1250 = vmatprep.subr.bf16.mxu0 0
        %1251 = vmatpush1.bf16.msra.mxu0 0
        %1252 = vmatprep.subr.bf16.mxu0 0
        %1253 = vmatpush1.bf16.msra.mxu0 0
        %1254 = vmatprep.subr.bf16.mxu0 0
        %1255 = vmatpush1.bf16.msra.mxu0 0
        %1256 = vmatprep.subr.bf16.mxu0 0
        %1257 = vmatpush1.bf16.msra.mxu0 0
        %1258 = vmatprep.subr.bf16.mxu0 0
        %1259 = vmatpush1.bf16.msra.mxu0 0
        %1260 = vmatprep.subr.bf16.mxu0 0
        %1261 = vmatpush1.bf16.msra.mxu0 0
        %1262 = vmatprep.subr.bf16.mxu0 0
        %1263 = vmatpush1.bf16.msra.mxu0 0
        %1264 = vmatprep.subr.bf16.mxu0 0
        %1265 = vmatpush1.bf16.msra.mxu0 0
        %1266 = vmatprep.subr.bf16.mxu0 0
        %1267 = vmatpush1.bf16.msra.mxu0 0
        %1268 = vmatprep.subr.bf16.mxu0 0
        %1269 = vmatpush1.bf16.msra.mxu0 0
        %1270 = vmatprep.subr.bf16.mxu0 0
        %1271 = vmatpush1.bf16.msra.mxu0 0
        %1272 = vmatprep.mubr.bf16.mxu0 0
        %1273 = vmatmul.mubr.bf16.gmra.mrb[0].mxu0 %v1238
        %v1274 = vpop.f32.mrb[0].mxu0
        %v1275 = vadd.f32 %v464, %v1274
        %v1276 = vpop.f32.mrb[0].mxu0
        %v1277 = vpop.f32.mrb[0].mxu0
        %v1278 = vadd.f32 %v464, %v1277
        %v1279 = vpop.f32.mrb[0].mxu0
        %1280 = vdwg.mxu0
        %v1281 = vmax.f32 %v1275, 0.0
        %v1282 = vmax.f32 %v1278, 0.0
        %v1283 = vpack.c.bf16 %v1282, %v1281
        %v1284 = vld [vmem:[%s599] sm:$0xf]
        %v1285 = vld [vmem:[%s599 + $0x4] sm:$0xf]
        %v1286 = vld [vmem:[%s599 + $0x8] sm:$0xf]
        %v1287 = vld [vmem:[%s599 + $0xc] sm:$0xf]
        %v1288 = vld [vmem:[%s599 + $0x10] sm:$0xf]
        %v1289 = vld [vmem:[%s599 + $0x14] sm:$0xf]
        %v1290 = vld [vmem:[%s599 + $0x18] sm:$0xf]
        %v1291 = vld [vmem:[%s599 + $0x1c] sm:$0xf]
        %v1292 = vld [vmem:[%s599 + $0x20] sm:$0xf]
        %v1293 = vld [vmem:[%s599 + $0x24] sm:$0xf]
        %v1294 = vld [vmem:[%s599 + $0x28] sm:$0xf]
        %v1295 = vld [vmem:[%s599 + $0x2c] sm:$0xf]
        %v1296 = vld [vmem:[%s599 + $0x30] sm:$0xf]
        %v1297 = vld [vmem:[%s599 + $0x34] sm:$0xf]
        %v1298 = vld [vmem:[%s599 + $0x38] sm:$0xf]
        %v1299 = vld [vmem:[%s599 + $0x3c] sm:$0xf]
        %v1316 = vunpack.c.l.b16 %v1284
        %v1317 = vunpack.c.l.b16 %v1285
        %v1318 = vunpack.c.l.b16 %v1286
        %v1319 = vunpack.c.l.b16 %v1287
        %v1320 = vunpack.c.l.b16 %v1288
        %v1321 = vunpack.c.l.b16 %v1289
        %v1322 = vunpack.c.l.b16 %v1290
        %v1323 = vunpack.c.l.b16 %v1291
        %v1324 = vunpack.c.l.b16 %v1292
        %v1325 = vunpack.c.l.b16 %v1293
        %v1326 = vunpack.c.l.b16 %v1294
        %v1327 = vunpack.c.l.b16 %v1295
        %v1328 = vunpack.c.l.b16 %v1296
        %v1329 = vunpack.c.l.b16 %v1297
        %v1330 = vunpack.c.l.b16 %v1298
        %v1331 = vunpack.c.l.b16 %v1299
        %v1332 = vpack.c.b16 %v1317, %v1316
        %v1333 = vpack.c.b16 %v1319, %v1318
        %v1334 = vpack.c.b16 %v1321, %v1320
        %v1335 = vpack.c.b16 %v1323, %v1322
        %v1336 = vpack.c.b16 %v1325, %v1324
        %v1337 = vpack.c.b16 %v1327, %v1326
        %v1338 = vpack.c.b16 %v1329, %v1328
        %v1339 = vpack.c.b16 %v1331, %v1330
        %1348 = vmatprep.subr.bf16.mxu0 0
        %1349 = vmatpush1.bf16.msra.mxu0 %v1332
        %1350 = vmatprep.subr.bf16.mxu0 0
        %1351 = vmatpush1.bf16.msra.mxu0 %v1333
        %1352 = vmatprep.subr.bf16.mxu0 0
        %1353 = vmatpush1.bf16.msra.mxu0 %v1334
        %1354 = vmatprep.subr.bf16.mxu0 0
        %1355 = vmatpush1.bf16.msra.mxu0 %v1335
        %1356 = vmatprep.subr.bf16.mxu0 0
        %1357 = vmatpush1.bf16.msra.mxu0 %v1336
        %1358 = vmatprep.subr.bf16.mxu0 0
        %1359 = vmatpush1.bf16.msra.mxu0 %v1337
        %1360 = vmatprep.subr.bf16.mxu0 0
        %1361 = vmatpush1.bf16.msra.mxu0 %v1338
        %1362 = vmatprep.subr.bf16.mxu0 0
        %1363 = vmatpush1.bf16.msra.mxu0 %v1339
        %1364 = vmatprep.subr.bf16.mxu0 0
        %1365 = vmatpush1.bf16.msra.mxu0 0
        %1366 = vmatprep.subr.bf16.mxu0 0
        %1367 = vmatpush1.bf16.msra.mxu0 0
        %1368 = vmatprep.subr.bf16.mxu0 0
        %1369 = vmatpush1.bf16.msra.mxu0 0
        %1370 = vmatprep.subr.bf16.mxu0 0
        %1371 = vmatpush1.bf16.msra.mxu0 0
        %1372 = vmatprep.subr.bf16.mxu0 0
        %1373 = vmatpush1.bf16.msra.mxu0 0
        %1374 = vmatprep.subr.bf16.mxu0 0
        %1375 = vmatpush1.bf16.msra.mxu0 0
        %1376 = vmatprep.subr.bf16.mxu0 0
        %1377 = vmatpush1.bf16.msra.mxu0 0
        %1378 = vmatprep.subr.bf16.mxu0 0
        %1379 = vmatpush1.bf16.msra.mxu0 0
        %1380 = vmatprep.mubr.bf16.mxu0 0
        %1381 = vmatmul.mubr.bf16.gmra.mrb[0].mxu0 %v1283
        %v1382 = vpop.f32.mrb[0].mxu0
        %v1383 = vadd.f32 0.0, %v1382
        %v1384 = vpop.f32.mrb[0].mxu0
        %v1385 = vpop.f32.mrb[0].mxu0
        %v1386 = vadd.f32 0.0, %v1385
        %v1387 = vpop.f32.mrb[0].mxu0
        %1388 = vdwg.mxu0
        %v1405 = vunpack.c.l.b16 %v1213
        %v1406 = vunpack.c.l.b16 %v1214
        %v1407 = vunpack.c.l.b16 %v1215
        %v1408 = vunpack.c.l.b16 %v1216
        %v1409 = vunpack.c.l.b16 %v1217
        %v1410 = vunpack.c.l.b16 %v1218
        %v1411 = vunpack.c.l.b16 %v1219
        %v1412 = vunpack.c.l.b16 %v1220
        %v1413 = vunpack.c.l.b16 %v1221
        %v1414 = vunpack.c.l.b16 %v1222
        %v1415 = vunpack.c.l.b16 %v1223
        %v1416 = vunpack.c.l.b16 %v1224
        %v1417 = vunpack.c.l.b16 %v1225
        %v1418 = vunpack.c.l.b16 %v1226
        %v1419 = vunpack.c.l.b16 %v1227
        %v1420 = vunpack.c.l.b16 %v1228
        %v1421 = vpack.c.b16 %v1406, %v1405
        %v1422 = vpack.c.b16 %v1408, %v1407
        %v1423 = vpack.c.b16 %v1410, %v1409
        %v1424 = vpack.c.b16 %v1412, %v1411
        %v1425 = vpack.c.b16 %v1414, %v1413
        %v1426 = vpack.c.b16 %v1416, %v1415
        %v1427 = vpack.c.b16 %v1418, %v1417
        %v1428 = vpack.c.b16 %v1420, %v1419
        %1437 = vmatprep.subr.bf16.mxu0 0
        %1438 = vmatpush1.bf16.msra.mxu0 %v1421
        %1439 = vmatprep.subr.bf16.mxu0 0
        %1440 = vmatpush1.bf16.msra.mxu0 %v1422
        %1441 = vmatprep.subr.bf16.mxu0 0
        %1442 = vmatpush1.bf16.msra.mxu0 %v1423
        %1443 = vmatprep.subr.bf16.mxu0 0
        %1444 = vmatpush1.bf16.msra.mxu0 %v1424
        %1445 = vmatprep.subr.bf16.mxu0 0
        %1446 = vmatpush1.bf16.msra.mxu0 %v1425
        %1447 = vmatprep.subr.bf16.mxu0 0
        %1448 = vmatpush1.bf16.msra.mxu0 %v1426
        %1449 = vmatprep.subr.bf16.mxu0 0
        %1450 = vmatpush1.bf16.msra.mxu0 %v1427
        %1451 = vmatprep.subr.bf16.mxu0 0
        %1452 = vmatpush1.bf16.msra.mxu0 %v1428
        %1453 = vmatprep.subr.bf16.mxu0 0
        %1454 = vmatpush1.bf16.msra.mxu0 0
        %1455 = vmatprep.subr.bf16.mxu0 0
        %1456 = vmatpush1.bf16.msra.mxu0 0
        %1457 = vmatprep.subr.bf16.mxu0 0
        %1458 = vmatpush1.bf16.msra.mxu0 0
        %1459 = vmatprep.subr.bf16.mxu0 0
        %1460 = vmatpush1.bf16.msra.mxu0 0
        %1461 = vmatprep.subr.bf16.mxu0 0
        %1462 = vmatpush1.bf16.msra.mxu0 0
        %1463 = vmatprep.subr.bf16.mxu0 0
        %1464 = vmatpush1.bf16.msra.mxu0 0
        %1465 = vmatprep.subr.bf16.mxu0 0
        %1466 = vmatpush1.bf16.msra.mxu0 0
        %1467 = vmatprep.subr.bf16.mxu0 0
        %1468 = vmatpush1.bf16.msra.mxu0 0
        %1469 = vmatprep.mubr.bf16.mxu0 0
        %1470 = vmatmul.mubr.bf16.gmra.mrb[0].mxu0 %v1212
        %v1471 = vpop.f32.mrb[0].mxu0
        %v1472 = vadd.f32 %v1383, %v1471
        %v1473 = vpop.f32.mrb[0].mxu0
        %v1474 = vpop.f32.mrb[0].mxu0
        %v1475 = vadd.f32 %v1386, %v1474
        %v1476 = vpop.f32.mrb[0].mxu0
        %1477 = vdwg.mxu0
        %s1478 = scalar_lea.vmem %s411, 48 [#allocation2]
        %v1479 = vld [vmem:[%s1478] sm:$0xf]
        %v1480 = vld [vmem:[%s1478 + $0x4] sm:$0xf]
        %v1483 = vunpack.c.l.b16 %v1479
        %v1484 = vunpack.c.l.b16 %v1480
        %v1485 = vpack.c.b16 %v1484, %v1483
        %v1487 = vsel %vm476, %v1485, 0
        %1489 = vmatprep.subr.bf16.mxu0 0
        %1490 = vmatpush1.bf16.msra.mxu0 %v482
        %1491 = vmatprep.subr.bf16.mxu0 0
        %1492 = vmatpush1.bf16.msra.mxu0 0
        %1493 = vmatprep.subr.bf16.mxu0 0
        %1494 = vmatpush1.bf16.msra.mxu0 0
        %1495 = vmatprep.subr.bf16.mxu0 0
        %1496 = vmatpush1.bf16.msra.mxu0 0
        %1497 = vmatprep.subr.bf16.mxu0 0
        %1498 = vmatpush1.bf16.msra.mxu0 0
        %1499 = vmatprep.subr.bf16.mxu0 0
        %1500 = vmatpush1.bf16.msra.mxu0 0
        %1501 = vmatprep.subr.bf16.mxu0 0
        %1502 = vmatpush1.bf16.msra.mxu0 0
        %1503 = vmatprep.subr.bf16.mxu0 0
        %1504 = vmatpush1.bf16.msra.mxu0 0
        %1505 = vmatprep.subr.bf16.mxu0 0
        %1506 = vmatpush1.bf16.msra.mxu0 0
        %1507 = vmatprep.subr.bf16.mxu0 0
        %1508 = vmatpush1.bf16.msra.mxu0 0
        %1509 = vmatprep.subr.bf16.mxu0 0
        %1510 = vmatpush1.bf16.msra.mxu0 0
        %1511 = vmatprep.subr.bf16.mxu0 0
        %1512 = vmatpush1.bf16.msra.mxu0 0
        %1513 = vmatprep.subr.bf16.mxu0 0
        %1514 = vmatpush1.bf16.msra.mxu0 0
        %1515 = vmatprep.subr.bf16.mxu0 0
        %1516 = vmatpush1.bf16.msra.mxu0 0
        %1517 = vmatprep.subr.bf16.mxu0 0
        %1518 = vmatpush1.bf16.msra.mxu0 0
        %1519 = vmatprep.subr.bf16.mxu0 0
        %1520 = vmatpush1.bf16.msra.mxu0 0
        %1521 = vmatprep.mubr.bf16.mxu0 0
        %1522 = vmatmul.mubr.bf16.gmra.mrb[0].mxu0 %v1487
        %v1523 = vpop.f32.mrb[0].mxu0
        %v1524 = vadd.f32 %v464, %v1523
        %v1525 = vpop.f32.mrb[0].mxu0
        %v1526 = vpop.f32.mrb[0].mxu0
        %v1527 = vadd.f32 %v464, %v1526
        %v1528 = vpop.f32.mrb[0].mxu0
        %1529 = vdwg.mxu0
        %v1530 = vmax.f32 %v1524, 0.0
        %v1531 = vmax.f32 %v1527, 0.0
        %v1532 = vpack.c.bf16 %v1531, %v1530
        %v1533 = vld [vmem:[%s849] sm:$0xf]
        %v1534 = vld [vmem:[%s849 + $0x4] sm:$0xf]
        %v1535 = vld [vmem:[%s849 + $0x8] sm:$0xf]
        %v1536 = vld [vmem:[%s849 + $0xc] sm:$0xf]
        %v1537 = vld [vmem:[%s849 + $0x10] sm:$0xf]
        %v1538 = vld [vmem:[%s849 + $0x14] sm:$0xf]
        %v1539 = vld [vmem:[%s849 + $0x18] sm:$0xf]
        %v1540 = vld [vmem:[%s849 + $0x1c] sm:$0xf]
        %v1541 = vld [vmem:[%s849 + $0x20] sm:$0xf]
        %v1542 = vld [vmem:[%s849 + $0x24] sm:$0xf]
        %v1543 = vld [vmem:[%s849 + $0x28] sm:$0xf]
        %v1544 = vld [vmem:[%s849 + $0x2c] sm:$0xf]
        %v1545 = vld [vmem:[%s849 + $0x30] sm:$0xf]
        %v1546 = vld [vmem:[%s849 + $0x34] sm:$0xf]
        %v1547 = vld [vmem:[%s849 + $0x38] sm:$0xf]
        %v1548 = vld [vmem:[%s849 + $0x3c] sm:$0xf]
        %v1565 = vunpack.c.l.b16 %v1533
        %v1566 = vunpack.c.l.b16 %v1534
        %v1567 = vunpack.c.l.b16 %v1535
        %v1568 = vunpack.c.l.b16 %v1536
        %v1569 = vunpack.c.l.b16 %v1537
        %v1570 = vunpack.c.l.b16 %v1538
        %v1571 = vunpack.c.l.b16 %v1539
        %v1572 = vunpack.c.l.b16 %v1540
        %v1573 = vunpack.c.l.b16 %v1541
        %v1574 = vunpack.c.l.b16 %v1542
        %v1575 = vunpack.c.l.b16 %v1543
        %v1576 = vunpack.c.l.b16 %v1544
        %v1577 = vunpack.c.l.b16 %v1545
        %v1578 = vunpack.c.l.b16 %v1546
        %v1579 = vunpack.c.l.b16 %v1547
        %v1580 = vunpack.c.l.b16 %v1548
        %v1581 = vpack.c.b16 %v1566, %v1565
        %v1582 = vpack.c.b16 %v1568, %v1567
        %v1583 = vpack.c.b16 %v1570, %v1569
        %v1584 = vpack.c.b16 %v1572, %v1571
        %v1585 = vpack.c.b16 %v1574, %v1573
        %v1586 = vpack.c.b16 %v1576, %v1575
        %v1587 = vpack.c.b16 %v1578, %v1577
        %v1588 = vpack.c.b16 %v1580, %v1579
        %1597 = vmatprep.subr.bf16.mxu0 0
        %1598 = vmatpush1.bf16.msra.mxu0 %v1581
        %1599 = vmatprep.subr.bf16.mxu0 0
        %1600 = vmatpush1.bf16.msra.mxu0 %v1582
        %1601 = vmatprep.subr.bf16.mxu0 0
        %1602 = vmatpush1.bf16.msra.mxu0 %v1583
        %1603 = vmatprep.subr.bf16.mxu0 0
        %1604 = vmatpush1.bf16.msra.mxu0 %v1584
        %1605 = vmatprep.subr.bf16.mxu0 0
        %1606 = vmatpush1.bf16.msra.mxu0 %v1585
        %1607 = vmatprep.subr.bf16.mxu0 0
        %1608 = vmatpush1.bf16.msra.mxu0 %v1586
        %1609 = vmatprep.subr.bf16.mxu0 0
        %1610 = vmatpush1.bf16.msra.mxu0 %v1587
        %1611 = vmatprep.subr.bf16.mxu0 0
        %1612 = vmatpush1.bf16.msra.mxu0 %v1588
        %1613 = vmatprep.subr.bf16.mxu0 0
        %1614 = vmatpush1.bf16.msra.mxu0 0
        %1615 = vmatprep.subr.bf16.mxu0 0
        %1616 = vmatpush1.bf16.msra.mxu0 0
        %1617 = vmatprep.subr.bf16.mxu0 0
        %1618 = vmatpush1.bf16.msra.mxu0 0
        %1619 = vmatprep.subr.bf16.mxu0 0
        %1620 = vmatpush1.bf16.msra.mxu0 0
        %1621 = vmatprep.subr.bf16.mxu0 0
        %1622 = vmatpush1.bf16.msra.mxu0 0
        %1623 = vmatprep.subr.bf16.mxu0 0
        %1624 = vmatpush1.bf16.msra.mxu0 0
        %1625 = vmatprep.subr.bf16.mxu0 0
        %1626 = vmatpush1.bf16.msra.mxu0 0
        %1627 = vmatprep.subr.bf16.mxu0 0
        %1628 = vmatpush1.bf16.msra.mxu0 0
        %1629 = vmatprep.mubr.bf16.mxu0 0
        %1630 = vmatmul.mubr.bf16.gmra.mrb[0].mxu0 %v1532
        %v1631 = vpop.f32.mrb[0].mxu0
        %v1632 = vadd.f32 0.0, %v1631
        %v1633 = vpop.f32.mrb[0].mxu0
        %v1634 = vpop.f32.mrb[0].mxu0
        %v1635 = vadd.f32 0.0, %v1634
        %v1636 = vpop.f32.mrb[0].mxu0
        %1637 = vdwg.mxu0
        %v1638 = vadd.f32 %v1472, %v1632
        %v1639 = vadd.f32 %v1475, %v1635
        %s1640 = scalar_lea.vmem %s411, 56 [#allocation2]
        %v1641 = vld [vmem:[%s1640] sm:$0xf]
        %v1642 = vld [vmem:[%s1640 + $0x4] sm:$0xf]
        %v1645 = vunpack.c.l.b16 %v1641
        %v1646 = vunpack.c.l.b16 %v1642
        %v1647 = vpack.c.b16 %v1646, %v1645
        %v1649 = vsel %vm476, %v1647, 0
        %1651 = vmatprep.subr.bf16.mxu0 0
        %1652 = vmatpush1.bf16.msra.mxu0 %v482
        %1653 = vmatprep.subr.bf16.mxu0 0
        %1654 = vmatpush1.bf16.msra.mxu0 0
        %1655 = vmatprep.subr.bf16.mxu0 0
        %1656 = vmatpush1.bf16.msra.mxu0 0
        %1657 = vmatprep.subr.bf16.mxu0 0
        %1658 = vmatpush1.bf16.msra.mxu0 0
        %1659 = vmatprep.subr.bf16.mxu0 0
        %1660 = vmatpush1.bf16.msra.mxu0 0
        %1661 = vmatprep.subr.bf16.mxu0 0
        %1662 = vmatpush1.bf16.msra.mxu0 0
        %1663 = vmatprep.subr.bf16.mxu0 0
        %1664 = vmatpush1.bf16.msra.mxu0 0
        %1665 = vmatprep.subr.bf16.mxu0 0
        %1666 = vmatpush1.bf16.msra.mxu0 0
        %1667 = vmatprep.subr.bf16.mxu0 0
        %1668 = vmatpush1.bf16.msra.mxu0 0
        %1669 = vmatprep.subr.bf16.mxu0 0
        %1670 = vmatpush1.bf16.msra.mxu0 0
        %1671 = vmatprep.subr.bf16.mxu0 0
        %1672 = vmatpush1.bf16.msra.mxu0 0
        %1673 = vmatprep.subr.bf16.mxu0 0
        %1674 = vmatpush1.bf16.msra.mxu0 0
        %1675 = vmatprep.subr.bf16.mxu0 0
        %1676 = vmatpush1.bf16.msra.mxu0 0
        %1677 = vmatprep.subr.bf16.mxu0 0
        %1678 = vmatpush1.bf16.msra.mxu0 0
        %1679 = vmatprep.subr.bf16.mxu0 0
        %1680 = vmatpush1.bf16.msra.mxu0 0
        %1681 = vmatprep.subr.bf16.mxu0 0
        %1682 = vmatpush1.bf16.msra.mxu0 0
        %1683 = vmatprep.mubr.bf16.mxu0 0
        %1684 = vmatmul.mubr.bf16.gmra.mrb[0].mxu0 %v1649
        %v1685 = vpop.f32.mrb[0].mxu0
        %v1686 = vadd.f32 %v464, %v1685
        %v1687 = vpop.f32.mrb[0].mxu0
        %v1688 = vpop.f32.mrb[0].mxu0
        %v1689 = vadd.f32 %v464, %v1688
        %v1690 = vpop.f32.mrb[0].mxu0
        %1691 = vdwg.mxu0
        %v1692 = vmax.f32 %v1686, 0.0
        %v1693 = vmax.f32 %v1689, 0.0
        %v1694 = vpack.c.bf16 %v1693, %v1692
        %v1695 = vld [vmem:[%s1012] sm:$0xf]
        %v1696 = vld [vmem:[%s1012 + $0x4] sm:$0xf]
        %v1697 = vld [vmem:[%s1012 + $0x8] sm:$0xf]
        %v1698 = vld [vmem:[%s1012 + $0xc] sm:$0xf]
        %v1699 = vld [vmem:[%s1012 + $0x10] sm:$0xf]
        %v1700 = vld [vmem:[%s1012 + $0x14] sm:$0xf]
        %v1701 = vld [vmem:[%s1012 + $0x18] sm:$0xf]
        %v1702 = vld [vmem:[%s1012 + $0x1c] sm:$0xf]
        %v1703 = vld [vmem:[%s1012 + $0x20] sm:$0xf]
        %v1704 = vld [vmem:[%s1012 + $0x24] sm:$0xf]
        %v1705 = vld [vmem:[%s1012 + $0x28] sm:$0xf]
        %v1706 = vld [vmem:[%s1012 + $0x2c] sm:$0xf]
        %v1707 = vld [vmem:[%s1012 + $0x30] sm:$0xf]
        %v1708 = vld [vmem:[%s1012 + $0x34] sm:$0xf]
        %v1709 = vld [vmem:[%s1012 + $0x38] sm:$0xf]
        %v1710 = vld [vmem:[%s1012 + $0x3c] sm:$0xf]
        %v1727 = vunpack.c.l.b16 %v1695
        %v1728 = vunpack.c.l.b16 %v1696
        %v1729 = vunpack.c.l.b16 %v1697
        %v1730 = vunpack.c.l.b16 %v1698
        %v1731 = vunpack.c.l.b16 %v1699
        %v1732 = vunpack.c.l.b16 %v1700
        %v1733 = vunpack.c.l.b16 %v1701
        %v1734 = vunpack.c.l.b16 %v1702
        %v1735 = vunpack.c.l.b16 %v1703
        %v1736 = vunpack.c.l.b16 %v1704
        %v1737 = vunpack.c.l.b16 %v1705
        %v1738 = vunpack.c.l.b16 %v1706
        %v1739 = vunpack.c.l.b16 %v1707
        %v1740 = vunpack.c.l.b16 %v1708
        %v1741 = vunpack.c.l.b16 %v1709
        %v1742 = vunpack.c.l.b16 %v1710
        %v1743 = vpack.c.b16 %v1728, %v1727
        %v1744 = vpack.c.b16 %v1730, %v1729
        %v1745 = vpack.c.b16 %v1732, %v1731
        %v1746 = vpack.c.b16 %v1734, %v1733
        %v1747 = vpack.c.b16 %v1736, %v1735
        %v1748 = vpack.c.b16 %v1738, %v1737
        %v1749 = vpack.c.b16 %v1740, %v1739
        %v1750 = vpack.c.b16 %v1742, %v1741
        %1759 = vmatprep.subr.bf16.mxu0 0
        %1760 = vmatpush1.bf16.msra.mxu0 %v1743
        %1761 = vmatprep.subr.bf16.mxu0 0
        %1762 = vmatpush1.bf16.msra.mxu0 %v1744
        %1763 = vmatprep.subr.bf16.mxu0 0
        %1764 = vmatpush1.bf16.msra.mxu0 %v1745
        %1765 = vmatprep.subr.bf16.mxu0 0
        %1766 = vmatpush1.bf16.msra.mxu0 %v1746
        %1767 = vmatprep.subr.bf16.mxu0 0
        %1768 = vmatpush1.bf16.msra.mxu0 %v1747
        %1769 = vmatprep.subr.bf16.mxu0 0
        %1770 = vmatpush1.bf16.msra.mxu0 %v1748
        %1771 = vmatprep.subr.bf16.mxu0 0
        %1772 = vmatpush1.bf16.msra.mxu0 %v1749
        %1773 = vmatprep.subr.bf16.mxu0 0
        %1774 = vmatpush1.bf16.msra.mxu0 %v1750
        %1775 = vmatprep.subr.bf16.mxu0 0
        %1776 = vmatpush1.bf16.msra.mxu0 0
        %1777 = vmatprep.subr.bf16.mxu0 0
        %1778 = vmatpush1.bf16.msra.mxu0 0
        %1779 = vmatprep.subr.bf16.mxu0 0
        %1780 = vmatpush1.bf16.msra.mxu0 0
        %1781 = vmatprep.subr.bf16.mxu0 0
        %1782 = vmatpush1.bf16.msra.mxu0 0
        %1783 = vmatprep.subr.bf16.mxu0 0
        %1784 = vmatpush1.bf16.msra.mxu0 0
        %1785 = vmatprep.subr.bf16.mxu0 0
        %1786 = vmatpush1.bf16.msra.mxu0 0
        %1787 = vmatprep.subr.bf16.mxu0 0
        %1788 = vmatpush1.bf16.msra.mxu0 0
        %1789 = vmatprep.subr.bf16.mxu0 0
        %1790 = vmatpush1.bf16.msra.mxu0 0
        %1791 = vmatprep.mubr.bf16.mxu0 0
        %1792 = vmatmul.mubr.bf16.gmra.mrb[0].mxu0 %v1694
        %v1793 = vpop.f32.mrb[0].mxu0
        %v1794 = vadd.f32 0.0, %v1793
        %v1795 = vpop.f32.mrb[0].mxu0
        %v1796 = vpop.f32.mrb[0].mxu0
        %v1797 = vadd.f32 0.0, %v1796
        %v1798 = vpop.f32.mrb[0].mxu0
        %1799 = vdwg.mxu0
        %v1800 = vadd.f32 %v1638, %v1794
        %v1801 = vadd.f32 %v1639, %v1797
        %v1802 = vadd.f32 %v1800, %v1124
        %v1803 = vadd.f32 %v1801, %v1124
        %v1804 = vmax.f32 %v1802, 0.0
        %v1805 = vmax.f32 %v1803, 0.0
        %v1806 = vpack.c.bf16 %v1805, %v1804
        %v1808 = vunpack.c.l.b16 %v1806
        %v1809 = vunpack.c.h.b16 %v1806
        %v1810 = vpack.c.b16 %v1808, %v1808
        %v1811 = vpack.c.b16 %v1809, %v1809
        %s1814 = scalar_lea.vmem %s434, 8 [#allocation3]
        %1815 = vst [vmem:[%s1814] sm:$0xf] %v1810
        %1816 = vst [vmem:[%s1814 + $0x4] sm:$0xf] %v1811
        %v1817 = vadd.f32 %v1804, %v1805
        %v1818 = vrot.slane %v1817, 4
        %v1819 = vadd.f32 %v1817, %v1818
        %v1820 = vrot.slane %v1819, 2
        %v1821 = vadd.f32 %v1819, %v1820
        %v1822 = vrot.slane %v1821, 1
        %v1823 = vadd.f32 %v1821, %v1822
        %v1824 = vadd.f32 %v1147, %v1823
        %v1825 = vmul.f32 %v1804, %v1804
        %v1826 = vmul.f32 %v1805, %v1805
        %v1827 = vadd.f32 %v1825, %v1826
        %v1828 = vrot.slane %v1827, 4
        %v1829 = vadd.f32 %v1827, %v1828
        %v1830 = vrot.slane %v1829, 2
        %v1831 = vadd.f32 %v1829, %v1830
        %v1832 = vrot.slane %v1831, 1
        %v1833 = vadd.f32 %v1831, %v1832
        %v1834 = vadd.f32 %v1157, %v1833
        %s1835 = scalar_lea.vmem %s411, 64 [#allocation2]
        %v1836 = vld [vmem:[%s1835] sm:$0xf]
        %v1837 = vld [vmem:[%s1835 + $0x4] sm:$0xf]
        %v1840 = vunpack.c.l.b16 %v1836
        %v1841 = vunpack.c.l.b16 %v1837
        %v1842 = vpack.c.b16 %v1841, %v1840
        %v1844 = vsel %vm476, %v1842, 0
        %1846 = vmatprep.subr.bf16.mxu0 0
        %1847 = vmatpush1.bf16.msra.mxu0 %v482
        %1848 = vmatprep.subr.bf16.mxu0 0
        %1849 = vmatpush1.bf16.msra.mxu0 0
        %1850 = vmatprep.subr.bf16.mxu0 0
        %1851 = vmatpush1.bf16.msra.mxu0 0
        %1852 = vmatprep.subr.bf16.mxu0 0
        %1853 = vmatpush1.bf16.msra.mxu0 0
        %1854 = vmatprep.subr.bf16.mxu0 0
        %1855 = vmatpush1.bf16.msra.mxu0 0
        %1856 = vmatprep.subr.bf16.mxu0 0
        %1857 = vmatpush1.bf16.msra.mxu0 0
        %1858 = vmatprep.subr.bf16.mxu0 0
        %1859 = vmatpush1.bf16.msra.mxu0 0
        %1860 = vmatprep.subr.bf16.mxu0 0
        %1861 = vmatpush1.bf16.msra.mxu0 0
        %1862 = vmatprep.subr.bf16.mxu0 0
        %1863 = vmatpush1.bf16.msra.mxu0 0
        %1864 = vmatprep.subr.bf16.mxu0 0
        %1865 = vmatpush1.bf16.msra.mxu0 0
        %1866 = vmatprep.subr.bf16.mxu0 0
        %1867 = vmatpush1.bf16.msra.mxu0 0
        %1868 = vmatprep.subr.bf16.mxu0 0
        %1869 = vmatpush1.bf16.msra.mxu0 0
        %1870 = vmatprep.subr.bf16.mxu0 0
        %1871 = vmatpush1.bf16.msra.mxu0 0
        %1872 = vmatprep.subr.bf16.mxu0 0
        %1873 = vmatpush1.bf16.msra.mxu0 0
        %1874 = vmatprep.subr.bf16.mxu0 0
        %1875 = vmatpush1.bf16.msra.mxu0 0
        %1876 = vmatprep.subr.bf16.mxu0 0
        %1877 = vmatpush1.bf16.msra.mxu0 0
        %1878 = vmatprep.mubr.bf16.mxu0 0
        %1879 = vmatmul.mubr.bf16.gmra.mrb[0].mxu0 %v1844
        %v1880 = vpop.f32.mrb[0].mxu0
        %v1881 = vadd.f32 %v464, %v1880
        %v1882 = vpop.f32.mrb[0].mxu0
        %v1883 = vpop.f32.mrb[0].mxu0
        %v1884 = vadd.f32 %v464, %v1883
        %v1885 = vpop.f32.mrb[0].mxu0
        %1886 = vdwg.mxu0
        %v1887 = vmax.f32 %v1881, 0.0
        %v1888 = vmax.f32 %v1884, 0.0
        %v1889 = vpack.c.bf16 %v1888, %v1887
        %v1890 = vld [vmem:[%s3] sm:$0xf]
        %v1891 = vld [vmem:[%s3 + $0x4] sm:$0xf]
        %v1892 = vld [vmem:[%s3 + $0x8] sm:$0xf]
        %v1893 = vld [vmem:[%s3 + $0xc] sm:$0xf]
        %v1894 = vld [vmem:[%s3 + $0x10] sm:$0xf]
        %v1895 = vld [vmem:[%s3 + $0x14] sm:$0xf]
        %v1896 = vld [vmem:[%s3 + $0x18] sm:$0xf]
        %v1897 = vld [vmem:[%s3 + $0x1c] sm:$0xf]
        %v1898 = vld [vmem:[%s3 + $0x20] sm:$0xf]
        %v1899 = vld [vmem:[%s3 + $0x24] sm:$0xf]
        %v1900 = vld [vmem:[%s3 + $0x28] sm:$0xf]
        %v1901 = vld [vmem:[%s3 + $0x2c] sm:$0xf]
        %v1902 = vld [vmem:[%s3 + $0x30] sm:$0xf]
        %v1903 = vld [vmem:[%s3 + $0x34] sm:$0xf]
        %v1904 = vld [vmem:[%s3 + $0x38] sm:$0xf]
        %v1905 = vld [vmem:[%s3 + $0x3c] sm:$0xf]
        %s1906 = scalar_lea.vmem %s411, 72 [#allocation2]
        %v1907 = vld [vmem:[%s1906] sm:$0xf]
        %v1908 = vld [vmem:[%s1906 + $0x4] sm:$0xf]
        %v1911 = vunpack.c.l.b16 %v1907
        %v1912 = vunpack.c.l.b16 %v1908
        %v1913 = vpack.c.b16 %v1912, %v1911
        %v1915 = vsel %vm476, %v1913, 0
        %1917 = vmatprep.subr.bf16.mxu0 0
        %1918 = vmatpush1.bf16.msra.mxu0 %v482
        %1919 = vmatprep.subr.bf16.mxu0 0
        %1920 = vmatpush1.bf16.msra.mxu0 0
        %1921 = vmatprep.subr.bf16.mxu0 0
        %1922 = vmatpush1.bf16.msra.mxu0 0
        %1923 = vmatprep.subr.bf16.mxu0 0
        %1924 = vmatpush1.bf16.msra.mxu0 0
        %1925 = vmatprep.subr.bf16.mxu0 0
        %1926 = vmatpush1.bf16.msra.mxu0 0
        %1927 = vmatprep.subr.bf16.mxu0 0
        %1928 = vmatpush1.bf16.msra.mxu0 0
        %1929 = vmatprep.subr.bf16.mxu0 0
        %1930 = vmatpush1.bf16.msra.mxu0 0
        %1931 = vmatprep.subr.bf16.mxu0 0
        %1932 = vmatpush1.bf16.msra.mxu0 0
        %1933 = vmatprep.subr.bf16.mxu0 0
        %1934 = vmatpush1.bf16.msra.mxu0 0
        %1935 = vmatprep.subr.bf16.mxu0 0
        %1936 = vmatpush1.bf16.msra.mxu0 0
        %1937 = vmatprep.subr.bf16.mxu0 0
        %1938 = vmatpush1.bf16.msra.mxu0 0
        %1939 = vmatprep.subr.bf16.mxu0 0
        %1940 = vmatpush1.bf16.msra.mxu0 0
        %1941 = vmatprep.subr.bf16.mxu0 0
        %1942 = vmatpush1.bf16.msra.mxu0 0
        %1943 = vmatprep.subr.bf16.mxu0 0
        %1944 = vmatpush1.bf16.msra.mxu0 0
        %1945 = vmatprep.subr.bf16.mxu0 0
        %1946 = vmatpush1.bf16.msra.mxu0 0
        %1947 = vmatprep.subr.bf16.mxu0 0
        %1948 = vmatpush1.bf16.msra.mxu0 0
        %1949 = vmatprep.mubr.bf16.mxu0 0
        %1950 = vmatmul.mubr.bf16.gmra.mrb[0].mxu0 %v1915
        %v1951 = vpop.f32.mrb[0].mxu0
        %v1952 = vadd.f32 %v464, %v1951
        %v1953 = vpop.f32.mrb[0].mxu0
        %v1954 = vpop.f32.mrb[0].mxu0
        %v1955 = vadd.f32 %v464, %v1954
        %v1956 = vpop.f32.mrb[0].mxu0
        %1957 = vdwg.mxu0
        %v1958 = vmax.f32 %v1952, 0.0
        %v1959 = vmax.f32 %v1955, 0.0
        %v1960 = vpack.c.bf16 %v1959, %v1958
        %v1961 = vld [vmem:[%s599] sm:$0xf]
        %v1962 = vld [vmem:[%s599 + $0x4] sm:$0xf]
        %v1963 = vld [vmem:[%s599 + $0x8] sm:$0xf]
        %v1964 = vld [vmem:[%s599 + $0xc] sm:$0xf]
        %v1965 = vld [vmem:[%s599 + $0x10] sm:$0xf]
        %v1966 = vld [vmem:[%s599 + $0x14] sm:$0xf]
        %v1967 = vld [vmem:[%s599 + $0x18] sm:$0xf]
        %v1968 = vld [vmem:[%s599 + $0x1c] sm:$0xf]
        %v1969 = vld [vmem:[%s599 + $0x20] sm:$0xf]
        %v1970 = vld [vmem:[%s599 + $0x24] sm:$0xf]
        %v1971 = vld [vmem:[%s599 + $0x28] sm:$0xf]
        %v1972 = vld [vmem:[%s599 + $0x2c] sm:$0xf]
        %v1973 = vld [vmem:[%s599 + $0x30] sm:$0xf]
        %v1974 = vld [vmem:[%s599 + $0x34] sm:$0xf]
        %v1975 = vld [vmem:[%s599 + $0x38] sm:$0xf]
        %v1976 = vld [vmem:[%s599 + $0x3c] sm:$0xf]
        %v1993 = vunpack.c.l.b16 %v1961
        %v1994 = vunpack.c.l.b16 %v1962
        %v1995 = vunpack.c.l.b16 %v1963
        %v1996 = vunpack.c.l.b16 %v1964
        %v1997 = vunpack.c.l.b16 %v1965
        %v1998 = vunpack.c.l.b16 %v1966
        %v1999 = vunpack.c.l.b16 %v1967
        %v2000 = vunpack.c.l.b16 %v1968
        %v2001 = vunpack.c.l.b16 %v1969
        %v2002 = vunpack.c.l.b16 %v1970
        %v2003 = vunpack.c.l.b16 %v1971
        %v2004 = vunpack.c.l.b16 %v1972
        %v2005 = vunpack.c.l.b16 %v1973
        %v2006 = vunpack.c.l.b16 %v1974
        %v2007 = vunpack.c.l.b16 %v1975
        %v2008 = vunpack.c.l.b16 %v1976
        %v2009 = vpack.c.b16 %v1994, %v1993
        %v2010 = vpack.c.b16 %v1996, %v1995
        %v2011 = vpack.c.b16 %v1998, %v1997
        %v2012 = vpack.c.b16 %v2000, %v1999
        %v2013 = vpack.c.b16 %v2002, %v2001
        %v2014 = vpack.c.b16 %v2004, %v2003
        %v2015 = vpack.c.b16 %v2006, %v2005
        %v2016 = vpack.c.b16 %v2008, %v2007
        %2025 = vmatprep.subr.bf16.mxu0 0
        %2026 = vmatpush1.bf16.msra.mxu0 %v2009
        %2027 = vmatprep.subr.bf16.mxu0 0
        %2028 = vmatpush1.bf16.msra.mxu0 %v2010
        %2029 = vmatprep.subr.bf16.mxu0 0
        %2030 = vmatpush1.bf16.msra.mxu0 %v2011
        %2031 = vmatprep.subr.bf16.mxu0 0
        %2032 = vmatpush1.bf16.msra.mxu0 %v2012
        %2033 = vmatprep.subr.bf16.mxu0 0
        %2034 = vmatpush1.bf16.msra.mxu0 %v2013
        %2035 = vmatprep.subr.bf16.mxu0 0
        %2036 = vmatpush1.bf16.msra.mxu0 %v2014
        %2037 = vmatprep.subr.bf16.mxu0 0
        %2038 = vmatpush1.bf16.msra.mxu0 %v2015
        %2039 = vmatprep.subr.bf16.mxu0 0
        %2040 = vmatpush1.bf16.msra.mxu0 %v2016
        %2041 = vmatprep.subr.bf16.mxu0 0
        %2042 = vmatpush1.bf16.msra.mxu0 0
        %2043 = vmatprep.subr.bf16.mxu0 0
        %2044 = vmatpush1.bf16.msra.mxu0 0
        %2045 = vmatprep.subr.bf16.mxu0 0
        %2046 = vmatpush1.bf16.msra.mxu0 0
        %2047 = vmatprep.subr.bf16.mxu0 0
        %2048 = vmatpush1.bf16.msra.mxu0 0
        %2049 = vmatprep.subr.bf16.mxu0 0
        %2050 = vmatpush1.bf16.msra.mxu0 0
        %2051 = vmatprep.subr.bf16.mxu0 0
        %2052 = vmatpush1.bf16.msra.mxu0 0
        %2053 = vmatprep.subr.bf16.mxu0 0
        %2054 = vmatpush1.bf16.msra.mxu0 0
        %2055 = vmatprep.subr.bf16.mxu0 0
        %2056 = vmatpush1.bf16.msra.mxu0 0
        %2057 = vmatprep.mubr.bf16.mxu0 0
        %2058 = vmatmul.mubr.bf16.gmra.mrb[0].mxu0 %v1960
        %v2059 = vpop.f32.mrb[0].mxu0
        %v2060 = vadd.f32 0.0, %v2059
        %v2061 = vpop.f32.mrb[0].mxu0
        %v2062 = vpop.f32.mrb[0].mxu0
        %v2063 = vadd.f32 0.0, %v2062
        %v2064 = vpop.f32.mrb[0].mxu0
        %2065 = vdwg.mxu0
        %v2082 = vunpack.c.l.b16 %v1890
        %v2083 = vunpack.c.l.b16 %v1891
        %v2084 = vunpack.c.l.b16 %v1892
        %v2085 = vunpack.c.l.b16 %v1893
        %v2086 = vunpack.c.l.b16 %v1894
        %v2087 = vunpack.c.l.b16 %v1895
        %v2088 = vunpack.c.l.b16 %v1896
        %v2089 = vunpack.c.l.b16 %v1897
        %v2090 = vunpack.c.l.b16 %v1898
        %v2091 = vunpack.c.l.b16 %v1899
        %v2092 = vunpack.c.l.b16 %v1900
        %v2093 = vunpack.c.l.b16 %v1901
        %v2094 = vunpack.c.l.b16 %v1902
        %v2095 = vunpack.c.l.b16 %v1903
        %v2096 = vunpack.c.l.b16 %v1904
        %v2097 = vunpack.c.l.b16 %v1905
        %v2098 = vpack.c.b16 %v2083, %v2082
        %v2099 = vpack.c.b16 %v2085, %v2084
        %v2100 = vpack.c.b16 %v2087, %v2086
        %v2101 = vpack.c.b16 %v2089, %v2088
        %v2102 = vpack.c.b16 %v2091, %v2090
        %v2103 = vpack.c.b16 %v2093, %v2092
        %v2104 = vpack.c.b16 %v2095, %v2094
        %v2105 = vpack.c.b16 %v2097, %v2096
        %2114 = vmatprep.subr.bf16.mxu0 0
        %2115 = vmatpush1.bf16.msra.mxu0 %v2098
        %2116 = vmatprep.subr.bf16.mxu0 0
        %2117 = vmatpush1.bf16.msra.mxu0 %v2099
        %2118 = vmatprep.subr.bf16.mxu0 0
        %2119 = vmatpush1.bf16.msra.mxu0 %v2100
        %2120 = vmatprep.subr.bf16.mxu0 0
        %2121 = vmatpush1.bf16.msra.mxu0 %v2101
        %2122 = vmatprep.subr.bf16.mxu0 0
        %2123 = vmatpush1.bf16.msra.mxu0 %v2102
        %2124 = vmatprep.subr.bf16.mxu0 0
        %2125 = vmatpush1.bf16.msra.mxu0 %v2103
        %2126 = vmatprep.subr.bf16.mxu0 0
        %2127 = vmatpush1.bf16.msra.mxu0 %v2104
        %2128 = vmatprep.subr.bf16.mxu0 0
        %2129 = vmatpush1.bf16.msra.mxu0 %v2105
        %2130 = vmatprep.subr.bf16.mxu0 0
        %2131 = vmatpush1.bf16.msra.mxu0 0
        %2132 = vmatprep.subr.bf16.mxu0 0
        %2133 = vmatpush1.bf16.msra.mxu0 0
        %2134 = vmatprep.subr.bf16.mxu0 0
        %2135 = vmatpush1.bf16.msra.mxu0 0
        %2136 = vmatprep.subr.bf16.mxu0 0
        %2137 = vmatpush1.bf16.msra.mxu0 0
        %2138 = vmatprep.subr.bf16.mxu0 0
        %2139 = vmatpush1.bf16.msra.mxu0 0
        %2140 = vmatprep.subr.bf16.mxu0 0
        %2141 = vmatpush1.bf16.msra.mxu0 0
        %2142 = vmatprep.subr.bf16.mxu0 0
        %2143 = vmatpush1.bf16.msra.mxu0 0
        %2144 = vmatprep.subr.bf16.mxu0 0
        %2145 = vmatpush1.bf16.msra.mxu0 0
        %2146 = vmatprep.mubr.bf16.mxu0 0
        %2147 = vmatmul.mubr.bf16.gmra.mrb[0].mxu0 %v1889
        %v2148 = vpop.f32.mrb[0].mxu0
        %v2149 = vadd.f32 %v2060, %v2148
        %v2150 = vpop.f32.mrb[0].mxu0
        %v2151 = vpop.f32.mrb[0].mxu0
        %v2152 = vadd.f32 %v2063, %v2151
        %v2153 = vpop.f32.mrb[0].mxu0
        %2154 = vdwg.mxu0
        %s2155 = scalar_lea.vmem %s411, 80 [#allocation2]
        %v2156 = vld [vmem:[%s2155] sm:$0xf]
        %v2157 = vld [vmem:[%s2155 + $0x4] sm:$0xf]
        %v2160 = vunpack.c.l.b16 %v2156
        %v2161 = vunpack.c.l.b16 %v2157
        %v2162 = vpack.c.b16 %v2161, %v2160
        %v2164 = vsel %vm476, %v2162, 0
        %2166 = vmatprep.subr.bf16.mxu0 0
        %2167 = vmatpush1.bf16.msra.mxu0 %v482
        %2168 = vmatprep.subr.bf16.mxu0 0
        %2169 = vmatpush1.bf16.msra.mxu0 0
        %2170 = vmatprep.subr.bf16.mxu0 0
        %2171 = vmatpush1.bf16.msra.mxu0 0
        %2172 = vmatprep.subr.bf16.mxu0 0
        %2173 = vmatpush1.bf16.msra.mxu0 0
        %2174 = vmatprep.subr.bf16.mxu0 0
        %2175 = vmatpush1.bf16.msra.mxu0 0
        %2176 = vmatprep.subr.bf16.mxu0 0
        %2177 = vmatpush1.bf16.msra.mxu0 0
        %2178 = vmatprep.subr.bf16.mxu0 0
        %2179 = vmatpush1.bf16.msra.mxu0 0
        %2180 = vmatprep.subr.bf16.mxu0 0
        %2181 = vmatpush1.bf16.msra.mxu0 0
        %2182 = vmatprep.subr.bf16.mxu0 0
        %2183 = vmatpush1.bf16.msra.mxu0 0
        %2184 = vmatprep.subr.bf16.mxu0 0
        %2185 = vmatpush1.bf16.msra.mxu0 0
        %2186 = vmatprep.subr.bf16.mxu0 0
        %2187 = vmatpush1.bf16.msra.mxu0 0
        %2188 = vmatprep.subr.bf16.mxu0 0
        %2189 = vmatpush1.bf16.msra.mxu0 0
        %2190 = vmatprep.subr.bf16.mxu0 0
        %2191 = vmatpush1.bf16.msra.mxu0 0
        %2192 = vmatprep.subr.bf16.mxu0 0
        %2193 = vmatpush1.bf16.msra.mxu0 0
        %2194 = vmatprep.subr.bf16.mxu0 0
        %2195 = vmatpush1.bf16.msra.mxu0 0
        %2196 = vmatprep.subr.bf16.mxu0 0
        %2197 = vmatpush1.bf16.msra.mxu0 0
        %2198 = vmatprep.mubr.bf16.mxu0 0
        %2199 = vmatmul.mubr.bf16.gmra.mrb[0].mxu0 %v2164
        %v2200 = vpop.f32.mrb[0].mxu0
        %v2201 = vadd.f32 %v464, %v2200
        %v2202 = vpop.f32.mrb[0].mxu0
        %v2203 = vpop.f32.mrb[0].mxu0
        %v2204 = vadd.f32 %v464, %v2203
        %v2205 = vpop.f32.mrb[0].mxu0
        %2206 = vdwg.mxu0
        %v2207 = vmax.f32 %v2201, 0.0
        %v2208 = vmax.f32 %v2204, 0.0
        %v2209 = vpack.c.bf16 %v2208, %v2207
        %v2210 = vld [vmem:[%s849] sm:$0xf]
        %v2211 = vld [vmem:[%s849 + $0x4] sm:$0xf]
        %v2212 = vld [vmem:[%s849 + $0x8] sm:$0xf]
        %v2213 = vld [vmem:[%s849 + $0xc] sm:$0xf]
        %v2214 = vld [vmem:[%s849 + $0x10] sm:$0xf]
        %v2215 = vld [vmem:[%s849 + $0x14] sm:$0xf]
        %v2216 = vld [vmem:[%s849 + $0x18] sm:$0xf]
        %v2217 = vld [vmem:[%s849 + $0x1c] sm:$0xf]
        %v2218 = vld [vmem:[%s849 + $0x20] sm:$0xf]
        %v2219 = vld [vmem:[%s849 + $0x24] sm:$0xf]
        %v2220 = vld [vmem:[%s849 + $0x28] sm:$0xf]
        %v2221 = vld [vmem:[%s849 + $0x2c] sm:$0xf]
        %v2222 = vld [vmem:[%s849 + $0x30] sm:$0xf]
        %v2223 = vld [vmem:[%s849 + $0x34] sm:$0xf]
        %v2224 = vld [vmem:[%s849 + $0x38] sm:$0xf]
        %v2225 = vld [vmem:[%s849 + $0x3c] sm:$0xf]
        %v2242 = vunpack.c.l.b16 %v2210
        %v2243 = vunpack.c.l.b16 %v2211
        %v2244 = vunpack.c.l.b16 %v2212
        %v2245 = vunpack.c.l.b16 %v2213
        %v2246 = vunpack.c.l.b16 %v2214
        %v2247 = vunpack.c.l.b16 %v2215
        %v2248 = vunpack.c.l.b16 %v2216
        %v2249 = vunpack.c.l.b16 %v2217
        %v2250 = vunpack.c.l.b16 %v2218
        %v2251 = vunpack.c.l.b16 %v2219
        %v2252 = vunpack.c.l.b16 %v2220
        %v2253 = vunpack.c.l.b16 %v2221
        %v2254 = vunpack.c.l.b16 %v2222
        %v2255 = vunpack.c.l.b16 %v2223
        %v2256 = vunpack.c.l.b16 %v2224
        %v2257 = vunpack.c.l.b16 %v2225
        %v2258 = vpack.c.b16 %v2243, %v2242
        %v2259 = vpack.c.b16 %v2245, %v2244
        %v2260 = vpack.c.b16 %v2247, %v2246
        %v2261 = vpack.c.b16 %v2249, %v2248
        %v2262 = vpack.c.b16 %v2251, %v2250
        %v2263 = vpack.c.b16 %v2253, %v2252
        %v2264 = vpack.c.b16 %v2255, %v2254
        %v2265 = vpack.c.b16 %v2257, %v2256
        %2274 = vmatprep.subr.bf16.mxu0 0
        %2275 = vmatpush1.bf16.msra.mxu0 %v2258
        %2276 = vmatprep.subr.bf16.mxu0 0
        %2277 = vmatpush1.bf16.msra.mxu0 %v2259
        %2278 = vmatprep.subr.bf16.mxu0 0
        %2279 = vmatpush1.bf16.msra.mxu0 %v2260
        %2280 = vmatprep.subr.bf16.mxu0 0
        %2281 = vmatpush1.bf16.msra.mxu0 %v2261
        %2282 = vmatprep.subr.bf16.mxu0 0
        %2283 = vmatpush1.bf16.msra.mxu0 %v2262
        %2284 = vmatprep.subr.bf16.mxu0 0
        %2285 = vmatpush1.bf16.msra.mxu0 %v2263
        %2286 = vmatprep.subr.bf16.mxu0 0
        %2287 = vmatpush1.bf16.msra.mxu0 %v2264
        %2288 = vmatprep.subr.bf16.mxu0 0
        %2289 = vmatpush1.bf16.msra.mxu0 %v2265
        %2290 = vmatprep.subr.bf16.mxu0 0
        %2291 = vmatpush1.bf16.msra.mxu0 0
        %2292 = vmatprep.subr.bf16.mxu0 0
        %2293 = vmatpush1.bf16.msra.mxu0 0
        %2294 = vmatprep.subr.bf16.mxu0 0
        %2295 = vmatpush1.bf16.msra.mxu0 0
        %2296 = vmatprep.subr.bf16.mxu0 0
        %2297 = vmatpush1.bf16.msra.mxu0 0
        %2298 = vmatprep.subr.bf16.mxu0 0
        %2299 = vmatpush1.bf16.msra.mxu0 0
        %2300 = vmatprep.subr.bf16.mxu0 0
        %2301 = vmatpush1.bf16.msra.mxu0 0
        %2302 = vmatprep.subr.bf16.mxu0 0
        %2303 = vmatpush1.bf16.msra.mxu0 0
        %2304 = vmatprep.subr.bf16.mxu0 0
        %2305 = vmatpush1.bf16.msra.mxu0 0
        %2306 = vmatprep.mubr.bf16.mxu0 0
        %2307 = vmatmul.mubr.bf16.gmra.mrb[0].mxu0 %v2209
        %v2308 = vpop.f32.mrb[0].mxu0
        %v2309 = vadd.f32 0.0, %v2308
        %v2310 = vpop.f32.mrb[0].mxu0
        %v2311 = vpop.f32.mrb[0].mxu0
        %v2312 = vadd.f32 0.0, %v2311
        %v2313 = vpop.f32.mrb[0].mxu0
        %2314 = vdwg.mxu0
        %v2315 = vadd.f32 %v2149, %v2309
        %v2316 = vadd.f32 %v2152, %v2312
        %s2317 = scalar_lea.vmem %s411, 88 [#allocation2]
        %v2318 = vld [vmem:[%s2317] sm:$0xf]
        %v2319 = vld [vmem:[%s2317 + $0x4] sm:$0xf]
        %v2322 = vunpack.c.l.b16 %v2318
        %v2323 = vunpack.c.l.b16 %v2319
        %v2324 = vpack.c.b16 %v2323, %v2322
        %v2326 = vsel %vm476, %v2324, 0
        %2328 = vmatprep.subr.bf16.mxu0 0
        %2329 = vmatpush1.bf16.msra.mxu0 %v482
        %2330 = vmatprep.subr.bf16.mxu0 0
        %2331 = vmatpush1.bf16.msra.mxu0 0
        %2332 = vmatprep.subr.bf16.mxu0 0
        %2333 = vmatpush1.bf16.msra.mxu0 0
        %2334 = vmatprep.subr.bf16.mxu0 0
        %2335 = vmatpush1.bf16.msra.mxu0 0
        %2336 = vmatprep.subr.bf16.mxu0 0
        %2337 = vmatpush1.bf16.msra.mxu0 0
        %2338 = vmatprep.subr.bf16.mxu0 0
        %2339 = vmatpush1.bf16.msra.mxu0 0
        %2340 = vmatprep.subr.bf16.mxu0 0
        %2341 = vmatpush1.bf16.msra.mxu0 0
        %2342 = vmatprep.subr.bf16.mxu0 0
        %2343 = vmatpush1.bf16.msra.mxu0 0
        %2344 = vmatprep.subr.bf16.mxu0 0
        %2345 = vmatpush1.bf16.msra.mxu0 0
        %2346 = vmatprep.subr.bf16.mxu0 0
        %2347 = vmatpush1.bf16.msra.mxu0 0
        %2348 = vmatprep.subr.bf16.mxu0 0
        %2349 = vmatpush1.bf16.msra.mxu0 0
        %2350 = vmatprep.subr.bf16.mxu0 0
        %2351 = vmatpush1.bf16.msra.mxu0 0
        %2352 = vmatprep.subr.bf16.mxu0 0
        %2353 = vmatpush1.bf16.msra.mxu0 0
        %2354 = vmatprep.subr.bf16.mxu0 0
        %2355 = vmatpush1.bf16.msra.mxu0 0
        %2356 = vmatprep.subr.bf16.mxu0 0
        %2357 = vmatpush1.bf16.msra.mxu0 0
        %2358 = vmatprep.subr.bf16.mxu0 0
        %2359 = vmatpush1.bf16.msra.mxu0 0
        %2360 = vmatprep.mubr.bf16.mxu0 0
        %2361 = vmatmul.mubr.bf16.gmra.mrb[0].mxu0 %v2326
        %v2362 = vpop.f32.mrb[0].mxu0
        %v2363 = vadd.f32 %v464, %v2362
        %v2364 = vpop.f32.mrb[0].mxu0
        %v2365 = vpop.f32.mrb[0].mxu0
        %v2366 = vadd.f32 %v464, %v2365
        %v2367 = vpop.f32.mrb[0].mxu0
        %2368 = vdwg.mxu0
        %v2369 = vmax.f32 %v2363, 0.0
        %v2370 = vmax.f32 %v2366, 0.0
        %v2371 = vpack.c.bf16 %v2370, %v2369
        %v2372 = vld [vmem:[%s1012] sm:$0xf]
        %v2373 = vld [vmem:[%s1012 + $0x4] sm:$0xf]
        %v2374 = vld [vmem:[%s1012 + $0x8] sm:$0xf]
        %v2375 = vld [vmem:[%s1012 + $0xc] sm:$0xf]
        %v2376 = vld [vmem:[%s1012 + $0x10] sm:$0xf]
        %v2377 = vld [vmem:[%s1012 + $0x14] sm:$0xf]
        %v2378 = vld [vmem:[%s1012 + $0x18] sm:$0xf]
        %v2379 = vld [vmem:[%s1012 + $0x1c] sm:$0xf]
        %v2380 = vld [vmem:[%s1012 + $0x20] sm:$0xf]
        %v2381 = vld [vmem:[%s1012 + $0x24] sm:$0xf]
        %v2382 = vld [vmem:[%s1012 + $0x28] sm:$0xf]
        %v2383 = vld [vmem:[%s1012 + $0x2c] sm:$0xf]
        %v2384 = vld [vmem:[%s1012 + $0x30] sm:$0xf]
        %v2385 = vld [vmem:[%s1012 + $0x34] sm:$0xf]
        %v2386 = vld [vmem:[%s1012 + $0x38] sm:$0xf]
        %v2387 = vld [vmem:[%s1012 + $0x3c] sm:$0xf]
        %v2404 = vunpack.c.l.b16 %v2372
        %v2405 = vunpack.c.l.b16 %v2373
        %v2406 = vunpack.c.l.b16 %v2374
        %v2407 = vunpack.c.l.b16 %v2375
        %v2408 = vunpack.c.l.b16 %v2376
        %v2409 = vunpack.c.l.b16 %v2377
        %v2410 = vunpack.c.l.b16 %v2378
        %v2411 = vunpack.c.l.b16 %v2379
        %v2412 = vunpack.c.l.b16 %v2380
        %v2413 = vunpack.c.l.b16 %v2381
        %v2414 = vunpack.c.l.b16 %v2382
        %v2415 = vunpack.c.l.b16 %v2383
        %v2416 = vunpack.c.l.b16 %v2384
        %v2417 = vunpack.c.l.b16 %v2385
        %v2418 = vunpack.c.l.b16 %v2386
        %v2419 = vunpack.c.l.b16 %v2387
        %v2420 = vpack.c.b16 %v2405, %v2404
        %v2421 = vpack.c.b16 %v2407, %v2406
        %v2422 = vpack.c.b16 %v2409, %v2408
        %v2423 = vpack.c.b16 %v2411, %v2410
        %v2424 = vpack.c.b16 %v2413, %v2412
        %v2425 = vpack.c.b16 %v2415, %v2414
        %v2426 = vpack.c.b16 %v2417, %v2416
        %v2427 = vpack.c.b16 %v2419, %v2418
        %2436 = vmatprep.subr.bf16.mxu0 0
        %2437 = vmatpush1.bf16.msra.mxu0 %v2420
        %2438 = vmatprep.subr.bf16.mxu0 0
        %2439 = vmatpush1.bf16.msra.mxu0 %v2421
        %2440 = vmatprep.subr.bf16.mxu0 0
        %2441 = vmatpush1.bf16.msra.mxu0 %v2422
        %2442 = vmatprep.subr.bf16.mxu0 0
        %2443 = vmatpush1.bf16.msra.mxu0 %v2423
        %2444 = vmatprep.subr.bf16.mxu0 0
        %2445 = vmatpush1.bf16.msra.mxu0 %v2424
        %2446 = vmatprep.subr.bf16.mxu0 0
        %2447 = vmatpush1.bf16.msra.mxu0 %v2425
        %2448 = vmatprep.subr.bf16.mxu0 0
        %2449 = vmatpush1.bf16.msra.mxu0 %v2426
        %2450 = vmatprep.subr.bf16.mxu0 0
        %2451 = vmatpush1.bf16.msra.mxu0 %v2427
        %2452 = vmatprep.subr.bf16.mxu0 0
        %2453 = vmatpush1.bf16.msra.mxu0 0
        %2454 = vmatprep.subr.bf16.mxu0 0
        %2455 = vmatpush1.bf16.msra.mxu0 0
        %2456 = vmatprep.subr.bf16.mxu0 0
        %2457 = vmatpush1.bf16.msra.mxu0 0
        %2458 = vmatprep.subr.bf16.mxu0 0
        %2459 = vmatpush1.bf16.msra.mxu0 0
        %2460 = vmatprep.subr.bf16.mxu0 0
        %2461 = vmatpush1.bf16.msra.mxu0 0
        %2462 = vmatprep.subr.bf16.mxu0 0
        %2463 = vmatpush1.bf16.msra.mxu0 0
        %2464 = vmatprep.subr.bf16.mxu0 0
        %2465 = vmatpush1.bf16.msra.mxu0 0
        %2466 = vmatprep.subr.bf16.mxu0 0
        %2467 = vmatpush1.bf16.msra.mxu0 0
        %2468 = vmatprep.mubr.bf16.mxu0 0
        %2469 = vmatmul.mubr.bf16.gmra.mrb[0].mxu0 %v2371
        %v2470 = vpop.f32.mrb[0].mxu0
        %v2471 = vadd.f32 0.0, %v2470
        %v2472 = vpop.f32.mrb[0].mxu0
        %v2473 = vpop.f32.mrb[0].mxu0
        %v2474 = vadd.f32 0.0, %v2473
        %v2475 = vpop.f32.mrb[0].mxu0
        %2476 = vdwg.mxu0
        %v2477 = vadd.f32 %v2315, %v2471
        %v2478 = vadd.f32 %v2316, %v2474
        %v2479 = vadd.f32 %v2477, %v1124
        %v2480 = vadd.f32 %v2478, %v1124
        %v2481 = vmax.f32 %v2479, 0.0
        %v2482 = vmax.f32 %v2480, 0.0
        %v2483 = vpack.c.bf16 %v2482, %v2481
        %v2485 = vunpack.c.l.b16 %v2483
        %v2486 = vunpack.c.h.b16 %v2483
        %v2487 = vpack.c.b16 %v2485, %v2485
        %v2488 = vpack.c.b16 %v2486, %v2486
        %s2491 = scalar_lea.vmem %s434, 16 [#allocation3]
        %2492 = vst [vmem:[%s2491] sm:$0xf] %v2487
        %2493 = vst [vmem:[%s2491 + $0x4] sm:$0xf] %v2488
        %v2494 = vadd.f32 %v2481, %v2482
        %v2495 = vrot.slane %v2494, 4
        %v2496 = vadd.f32 %v2494, %v2495
        %v2497 = vrot.slane %v2496, 2
        %v2498 = vadd.f32 %v2496, %v2497
        %v2499 = vrot.slane %v2498, 1
        %v2500 = vadd.f32 %v2498, %v2499
        %v2501 = vadd.f32 %v1824, %v2500
        %v2502 = vmul.f32 %v2481, %v2481
        %v2503 = vmul.f32 %v2482, %v2482
        %v2504 = vadd.f32 %v2502, %v2503
        %v2505 = vrot.slane %v2504, 4
        %v2506 = vadd.f32 %v2504, %v2505
        %v2507 = vrot.slane %v2506, 2
        %v2508 = vadd.f32 %v2506, %v2507
        %v2509 = vrot.slane %v2508, 1
        %v2510 = vadd.f32 %v2508, %v2509
        %v2511 = vadd.f32 %v1834, %v2510
        %s2512 = scalar_lea.vmem %s411, 96 [#allocation2]
        %v2513 = vld [vmem:[%s2512] sm:$0xf]
        %v2514 = vld [vmem:[%s2512 + $0x4] sm:$0xf]
        %v2517 = vunpack.c.l.b16 %v2513
        %v2518 = vunpack.c.l.b16 %v2514
        %v2519 = vpack.c.b16 %v2518, %v2517
        %v2521 = vsel %vm476, %v2519, 0
        %2523 = vmatprep.subr.bf16.mxu0 0
        %2524 = vmatpush1.bf16.msra.mxu0 %v482
        %2525 = vmatprep.subr.bf16.mxu0 0
        %2526 = vmatpush1.bf16.msra.mxu0 0
        %2527 = vmatprep.subr.bf16.mxu0 0
        %2528 = vmatpush1.bf16.msra.mxu0 0
        %2529 = vmatprep.subr.bf16.mxu0 0
        %2530 = vmatpush1.bf16.msra.mxu0 0
        %2531 = vmatprep.subr.bf16.mxu0 0
        %2532 = vmatpush1.bf16.msra.mxu0 0
        %2533 = vmatprep.subr.bf16.mxu0 0
        %2534 = vmatpush1.bf16.msra.mxu0 0
        %2535 = vmatprep.subr.bf16.mxu0 0
        %2536 = vmatpush1.bf16.msra.mxu0 0
        %2537 = vmatprep.subr.bf16.mxu0 0
        %2538 = vmatpush1.bf16.msra.mxu0 0
        %2539 = vmatprep.subr.bf16.mxu0 0
        %2540 = vmatpush1.bf16.msra.mxu0 0
        %2541 = vmatprep.subr.bf16.mxu0 0
        %2542 = vmatpush1.bf16.msra.mxu0 0
        %2543 = vmatprep.subr.bf16.mxu0 0
        %2544 = vmatpush1.bf16.msra.mxu0 0
        %2545 = vmatprep.subr.bf16.mxu0 0
        %2546 = vmatpush1.bf16.msra.mxu0 0
        %2547 = vmatprep.subr.bf16.mxu0 0
        %2548 = vmatpush1.bf16.msra.mxu0 0
        %2549 = vmatprep.subr.bf16.mxu0 0
        %2550 = vmatpush1.bf16.msra.mxu0 0
        %2551 = vmatprep.subr.bf16.mxu0 0
        %2552 = vmatpush1.bf16.msra.mxu0 0
        %2553 = vmatprep.subr.bf16.mxu0 0
        %2554 = vmatpush1.bf16.msra.mxu0 0
        %2555 = vmatprep.mubr.bf16.mxu0 0
        %2556 = vmatmul.mubr.bf16.gmra.mrb[0].mxu0 %v2521
        %v2557 = vpop.f32.mrb[0].mxu0
        %v2558 = vadd.f32 %v464, %v2557
        %v2559 = vpop.f32.mrb[0].mxu0
        %v2560 = vpop.f32.mrb[0].mxu0
        %v2561 = vadd.f32 %v464, %v2560
        %v2562 = vpop.f32.mrb[0].mxu0
        %2563 = vdwg.mxu0
        %v2564 = vmax.f32 %v2558, 0.0
        %v2565 = vmax.f32 %v2561, 0.0
        %v2566 = vpack.c.bf16 %v2565, %v2564
        %v2567 = vld [vmem:[%s3] sm:$0xf]
        %v2568 = vld [vmem:[%s3 + $0x4] sm:$0xf]
        %v2569 = vld [vmem:[%s3 + $0x8] sm:$0xf]
        %v2570 = vld [vmem:[%s3 + $0xc] sm:$0xf]
        %v2571 = vld [vmem:[%s3 + $0x10] sm:$0xf]
        %v2572 = vld [vmem:[%s3 + $0x14] sm:$0xf]
        %v2573 = vld [vmem:[%s3 + $0x18] sm:$0xf]
        %v2574 = vld [vmem:[%s3 + $0x1c] sm:$0xf]
        %v2575 = vld [vmem:[%s3 + $0x20] sm:$0xf]
        %v2576 = vld [vmem:[%s3 + $0x24] sm:$0xf]
        %v2577 = vld [vmem:[%s3 + $0x28] sm:$0xf]
        %v2578 = vld [vmem:[%s3 + $0x2c] sm:$0xf]
        %v2579 = vld [vmem:[%s3 + $0x30] sm:$0xf]
        %v2580 = vld [vmem:[%s3 + $0x34] sm:$0xf]
        %v2581 = vld [vmem:[%s3 + $0x38] sm:$0xf]
        %v2582 = vld [vmem:[%s3 + $0x3c] sm:$0xf]
        %s2583 = scalar_lea.vmem %s411, 104 [#allocation2]
        %v2584 = vld [vmem:[%s2583] sm:$0xf]
        %v2585 = vld [vmem:[%s2583 + $0x4] sm:$0xf]
        %v2588 = vunpack.c.l.b16 %v2584
        %v2589 = vunpack.c.l.b16 %v2585
        %v2590 = vpack.c.b16 %v2589, %v2588
        %v2592 = vsel %vm476, %v2590, 0
        %2594 = vmatprep.subr.bf16.mxu0 0
        %2595 = vmatpush1.bf16.msra.mxu0 %v482
        %2596 = vmatprep.subr.bf16.mxu0 0
        %2597 = vmatpush1.bf16.msra.mxu0 0
        %2598 = vmatprep.subr.bf16.mxu0 0
        %2599 = vmatpush1.bf16.msra.mxu0 0
        %2600 = vmatprep.subr.bf16.mxu0 0
        %2601 = vmatpush1.bf16.msra.mxu0 0
        %2602 = vmatprep.subr.bf16.mxu0 0
        %2603 = vmatpush1.bf16.msra.mxu0 0
        %2604 = vmatprep.subr.bf16.mxu0 0
        %2605 = vmatpush1.bf16.msra.mxu0 0
        %2606 = vmatprep.subr.bf16.mxu0 0
        %2607 = vmatpush1.bf16.msra.mxu0 0
        %2608 = vmatprep.subr.bf16.mxu0 0
        %2609 = vmatpush1.bf16.msra.mxu0 0
        %2610 = vmatprep.subr.bf16.mxu0 0
        %2611 = vmatpush1.bf16.msra.mxu0 0
        %2612 = vmatprep.subr.bf16.mxu0 0
        %2613 = vmatpush1.bf16.msra.mxu0 0
        %2614 = vmatprep.subr.bf16.mxu0 0
        %2615 = vmatpush1.bf16.msra.mxu0 0
        %2616 = vmatprep.subr.bf16.mxu0 0
        %2617 = vmatpush1.bf16.msra.mxu0 0
        %2618 = vmatprep.subr.bf16.mxu0 0
        %2619 = vmatpush1.bf16.msra.mxu0 0
        %2620 = vmatprep.subr.bf16.mxu0 0
        %2621 = vmatpush1.bf16.msra.mxu0 0
        %2622 = vmatprep.subr.bf16.mxu0 0
        %2623 = vmatpush1.bf16.msra.mxu0 0
        %2624 = vmatprep.subr.bf16.mxu0 0
        %2625 = vmatpush1.bf16.msra.mxu0 0
        %2626 = vmatprep.mubr.bf16.mxu0 0
        %2627 = vmatmul.mubr.bf16.gmra.mrb[0].mxu0 %v2592
        %v2628 = vpop.f32.mrb[0].mxu0
        %v2629 = vadd.f32 %v464, %v2628
        %v2630 = vpop.f32.mrb[0].mxu0
        %v2631 = vpop.f32.mrb[0].mxu0
        %v2632 = vadd.f32 %v464, %v2631
        %v2633 = vpop.f32.mrb[0].mxu0
        %2634 = vdwg.mxu0
        %v2635 = vmax.f32 %v2629, 0.0
        %v2636 = vmax.f32 %v2632, 0.0
        %v2637 = vpack.c.bf16 %v2636, %v2635
        %v2638 = vld [vmem:[%s599] sm:$0xf]
        %v2639 = vld [vmem:[%s599 + $0x4] sm:$0xf]
        %v2640 = vld [vmem:[%s599 + $0x8] sm:$0xf]
        %v2641 = vld [vmem:[%s599 + $0xc] sm:$0xf]
        %v2642 = vld [vmem:[%s599 + $0x10] sm:$0xf]
        %v2643 = vld [vmem:[%s599 + $0x14] sm:$0xf]
        %v2644 = vld [vmem:[%s599 + $0x18] sm:$0xf]
        %v2645 = vld [vmem:[%s599 + $0x1c] sm:$0xf]
        %v2646 = vld [vmem:[%s599 + $0x20] sm:$0xf]
        %v2647 = vld [vmem:[%s599 + $0x24] sm:$0xf]
        %v2648 = vld [vmem:[%s599 + $0x28] sm:$0xf]
        %v2649 = vld [vmem:[%s599 + $0x2c] sm:$0xf]
        %v2650 = vld [vmem:[%s599 + $0x30] sm:$0xf]
        %v2651 = vld [vmem:[%s599 + $0x34] sm:$0xf]
        %v2652 = vld [vmem:[%s599 + $0x38] sm:$0xf]
        %v2653 = vld [vmem:[%s599 + $0x3c] sm:$0xf]
        %v2670 = vunpack.c.l.b16 %v2638
        %v2671 = vunpack.c.l.b16 %v2639
        %v2672 = vunpack.c.l.b16 %v2640
        %v2673 = vunpack.c.l.b16 %v2641
        %v2674 = vunpack.c.l.b16 %v2642
        %v2675 = vunpack.c.l.b16 %v2643
        %v2676 = vunpack.c.l.b16 %v2644
        %v2677 = vunpack.c.l.b16 %v2645
        %v2678 = vunpack.c.l.b16 %v2646
        %v2679 = vunpack.c.l.b16 %v2647
        %v2680 = vunpack.c.l.b16 %v2648
        %v2681 = vunpack.c.l.b16 %v2649
        %v2682 = vunpack.c.l.b16 %v2650
        %v2683 = vunpack.c.l.b16 %v2651
        %v2684 = vunpack.c.l.b16 %v2652
        %v2685 = vunpack.c.l.b16 %v2653
        %v2686 = vpack.c.b16 %v2671, %v2670
        %v2687 = vpack.c.b16 %v2673, %v2672
        %v2688 = vpack.c.b16 %v2675, %v2674
        %v2689 = vpack.c.b16 %v2677, %v2676
        %v2690 = vpack.c.b16 %v2679, %v2678
        %v2691 = vpack.c.b16 %v2681, %v2680
        %v2692 = vpack.c.b16 %v2683, %v2682
        %v2693 = vpack.c.b16 %v2685, %v2684
        %2702 = vmatprep.subr.bf16.mxu0 0
        %2703 = vmatpush1.bf16.msra.mxu0 %v2686
        %2704 = vmatprep.subr.bf16.mxu0 0
        %2705 = vmatpush1.bf16.msra.mxu0 %v2687
        %2706 = vmatprep.subr.bf16.mxu0 0
        %2707 = vmatpush1.bf16.msra.mxu0 %v2688
        %2708 = vmatprep.subr.bf16.mxu0 0
        %2709 = vmatpush1.bf16.msra.mxu0 %v2689
        %2710 = vmatprep.subr.bf16.mxu0 0
        %2711 = vmatpush1.bf16.msra.mxu0 %v2690
        %2712 = vmatprep.subr.bf16.mxu0 0
        %2713 = vmatpush1.bf16.msra.mxu0 %v2691
        %2714 = vmatprep.subr.bf16.mxu0 0
        %2715 = vmatpush1.bf16.msra.mxu0 %v2692
        %2716 = vmatprep.subr.bf16.mxu0 0
        %2717 = vmatpush1.bf16.msra.mxu0 %v2693
        %2718 = vmatprep.subr.bf16.mxu0 0
        %2719 = vmatpush1.bf16.msra.mxu0 0
        %2720 = vmatprep.subr.bf16.mxu0 0
        %2721 = vmatpush1.bf16.msra.mxu0 0
        %2722 = vmatprep.subr.bf16.mxu0 0
        %2723 = vmatpush1.bf16.msra.mxu0 0
        %2724 = vmatprep.subr.bf16.mxu0 0
        %2725 = vmatpush1.bf16.msra.mxu0 0
        %2726 = vmatprep.subr.bf16.mxu0 0
        %2727 = vmatpush1.bf16.msra.mxu0 0
        %2728 = vmatprep.subr.bf16.mxu0 0
        %2729 = vmatpush1.bf16.msra.mxu0 0
        %2730 = vmatprep.subr.bf16.mxu0 0
        %2731 = vmatpush1.bf16.msra.mxu0 0
        %2732 = vmatprep.subr.bf16.mxu0 0
        %2733 = vmatpush1.bf16.msra.mxu0 0
        %2734 = vmatprep.mubr.bf16.mxu0 0
        %2735 = vmatmul.mubr.bf16.gmra.mrb[0].mxu0 %v2637
        %v2736 = vpop.f32.mrb[0].mxu0
        %v2737 = vadd.f32 0.0, %v2736
        %v2738 = vpop.f32.mrb[0].mxu0
        %v2739 = vpop.f32.mrb[0].mxu0
        %v2740 = vadd.f32 0.0, %v2739
        %v2741 = vpop.f32.mrb[0].mxu0
        %2742 = vdwg.mxu0
        %v2759 = vunpack.c.l.b16 %v2567
        %v2760 = vunpack.c.l.b16 %v2568
        %v2761 = vunpack.c.l.b16 %v2569
        %v2762 = vunpack.c.l.b16 %v2570
        %v2763 = vunpack.c.l.b16 %v2571
        %v2764 = vunpack.c.l.b16 %v2572
        %v2765 = vunpack.c.l.b16 %v2573
        %v2766 = vunpack.c.l.b16 %v2574
        %v2767 = vunpack.c.l.b16 %v2575
        %v2768 = vunpack.c.l.b16 %v2576
        %v2769 = vunpack.c.l.b16 %v2577
        %v2770 = vunpack.c.l.b16 %v2578
        %v2771 = vunpack.c.l.b16 %v2579
        %v2772 = vunpack.c.l.b16 %v2580
        %v2773 = vunpack.c.l.b16 %v2581
        %v2774 = vunpack.c.l.b16 %v2582
        %v2775 = vpack.c.b16 %v2760, %v2759
        %v2776 = vpack.c.b16 %v2762, %v2761
        %v2777 = vpack.c.b16 %v2764, %v2763
        %v2778 = vpack.c.b16 %v2766, %v2765
        %v2779 = vpack.c.b16 %v2768, %v2767
        %v2780 = vpack.c.b16 %v2770, %v2769
        %v2781 = vpack.c.b16 %v2772, %v2771
        %v2782 = vpack.c.b16 %v2774, %v2773
        %2791 = vmatprep.subr.bf16.mxu0 0
        %2792 = vmatpush1.bf16.msra.mxu0 %v2775
        %2793 = vmatprep.subr.bf16.mxu0 0
        %2794 = vmatpush1.bf16.msra.mxu0 %v2776
        %2795 = vmatprep.subr.bf16.mxu0 0
        %2796 = vmatpush1.bf16.msra.mxu0 %v2777
        %2797 = vmatprep.subr.bf16.mxu0 0
        %2798 = vmatpush1.bf16.msra.mxu0 %v2778
        %2799 = vmatprep.subr.bf16.mxu0 0
        %2800 = vmatpush1.bf16.msra.mxu0 %v2779
        %2801 = vmatprep.subr.bf16.mxu0 0
        %2802 = vmatpush1.bf16.msra.mxu0 %v2780
        %2803 = vmatprep.subr.bf16.mxu0 0
        %2804 = vmatpush1.bf16.msra.mxu0 %v2781
        %2805 = vmatprep.subr.bf16.mxu0 0
        %2806 = vmatpush1.bf16.msra.mxu0 %v2782
        %2807 = vmatprep.subr.bf16.mxu0 0
        %2808 = vmatpush1.bf16.msra.mxu0 0
        %2809 = vmatprep.subr.bf16.mxu0 0
        %2810 = vmatpush1.bf16.msra.mxu0 0
        %2811 = vmatprep.subr.bf16.mxu0 0
        %2812 = vmatpush1.bf16.msra.mxu0 0
        %2813 = vmatprep.subr.bf16.mxu0 0
        %2814 = vmatpush1.bf16.msra.mxu0 0
        %2815 = vmatprep.subr.bf16.mxu0 0
        %2816 = vmatpush1.bf16.msra.mxu0 0
        %2817 = vmatprep.subr.bf16.mxu0 0
        %2818 = vmatpush1.bf16.msra.mxu0 0
        %2819 = vmatprep.subr.bf16.mxu0 0
        %2820 = vmatpush1.bf16.msra.mxu0 0
        %2821 = vmatprep.subr.bf16.mxu0 0
        %2822 = vmatpush1.bf16.msra.mxu0 0
        %2823 = vmatprep.mubr.bf16.mxu0 0
        %2824 = vmatmul.mubr.bf16.gmra.mrb[0].mxu0 %v2566
        %v2825 = vpop.f32.mrb[0].mxu0
        %v2826 = vadd.f32 %v2737, %v2825
        %v2827 = vpop.f32.mrb[0].mxu0
        %v2828 = vpop.f32.mrb[0].mxu0
        %v2829 = vadd.f32 %v2740, %v2828
        %v2830 = vpop.f32.mrb[0].mxu0
        %2831 = vdwg.mxu0
        %s2832 = scalar_lea.vmem %s411, 112 [#allocation2]
        %v2833 = vld [vmem:[%s2832] sm:$0xf]
        %v2834 = vld [vmem:[%s2832 + $0x4] sm:$0xf]
        %v2837 = vunpack.c.l.b16 %v2833
        %v2838 = vunpack.c.l.b16 %v2834
        %v2839 = vpack.c.b16 %v2838, %v2837
        %v2841 = vsel %vm476, %v2839, 0
        %2843 = vmatprep.subr.bf16.mxu0 0
        %2844 = vmatpush1.bf16.msra.mxu0 %v482
        %2845 = vmatprep.subr.bf16.mxu0 0
        %2846 = vmatpush1.bf16.msra.mxu0 0
        %2847 = vmatprep.subr.bf16.mxu0 0
        %2848 = vmatpush1.bf16.msra.mxu0 0
        %2849 = vmatprep.subr.bf16.mxu0 0
        %2850 = vmatpush1.bf16.msra.mxu0 0
        %2851 = vmatprep.subr.bf16.mxu0 0
        %2852 = vmatpush1.bf16.msra.mxu0 0
        %2853 = vmatprep.subr.bf16.mxu0 0
        %2854 = vmatpush1.bf16.msra.mxu0 0
        %2855 = vmatprep.subr.bf16.mxu0 0
        %2856 = vmatpush1.bf16.msra.mxu0 0
        %2857 = vmatprep.subr.bf16.mxu0 0
        %2858 = vmatpush1.bf16.msra.mxu0 0
        %2859 = vmatprep.subr.bf16.mxu0 0
        %2860 = vmatpush1.bf16.msra.mxu0 0
        %2861 = vmatprep.subr.bf16.mxu0 0
        %2862 = vmatpush1.bf16.msra.mxu0 0
        %2863 = vmatprep.subr.bf16.mxu0 0
        %2864 = vmatpush1.bf16.msra.mxu0 0
        %2865 = vmatprep.subr.bf16.mxu0 0
        %2866 = vmatpush1.bf16.msra.mxu0 0
        %2867 = vmatprep.subr.bf16.mxu0 0
        %2868 = vmatpush1.bf16.msra.mxu0 0
        %2869 = vmatprep.subr.bf16.mxu0 0
        %2870 = vmatpush1.bf16.msra.mxu0 0
        %2871 = vmatprep.subr.bf16.mxu0 0
        %2872 = vmatpush1.bf16.msra.mxu0 0
        %2873 = vmatprep.subr.bf16.mxu0 0
        %2874 = vmatpush1.bf16.msra.mxu0 0
        %2875 = vmatprep.mubr.bf16.mxu0 0
        %2876 = vmatmul.mubr.bf16.gmra.mrb[0].mxu0 %v2841
        %v2877 = vpop.f32.mrb[0].mxu0
        %v2878 = vadd.f32 %v464, %v2877
        %v2879 = vpop.f32.mrb[0].mxu0
        %v2880 = vpop.f32.mrb[0].mxu0
        %v2881 = vadd.f32 %v464, %v2880
        %v2882 = vpop.f32.mrb[0].mxu0
        %2883 = vdwg.mxu0
        %v2884 = vmax.f32 %v2878, 0.0
        %v2885 = vmax.f32 %v2881, 0.0
        %v2886 = vpack.c.bf16 %v2885, %v2884
        %v2887 = vld [vmem:[%s849] sm:$0xf]
        %v2888 = vld [vmem:[%s849 + $0x4] sm:$0xf]
        %v2889 = vld [vmem:[%s849 + $0x8] sm:$0xf]
        %v2890 = vld [vmem:[%s849 + $0xc] sm:$0xf]
        %v2891 = vld [vmem:[%s849 + $0x10] sm:$0xf]
        %v2892 = vld [vmem:[%s849 + $0x14] sm:$0xf]
        %v2893 = vld [vmem:[%s849 + $0x18] sm:$0xf]
        %v2894 = vld [vmem:[%s849 + $0x1c] sm:$0xf]
        %v2895 = vld [vmem:[%s849 + $0x20] sm:$0xf]
        %v2896 = vld [vmem:[%s849 + $0x24] sm:$0xf]
        %v2897 = vld [vmem:[%s849 + $0x28] sm:$0xf]
        %v2898 = vld [vmem:[%s849 + $0x2c] sm:$0xf]
        %v2899 = vld [vmem:[%s849 + $0x30] sm:$0xf]
        %v2900 = vld [vmem:[%s849 + $0x34] sm:$0xf]
        %v2901 = vld [vmem:[%s849 + $0x38] sm:$0xf]
        %v2902 = vld [vmem:[%s849 + $0x3c] sm:$0xf]
        %v2919 = vunpack.c.l.b16 %v2887
        %v2920 = vunpack.c.l.b16 %v2888
        %v2921 = vunpack.c.l.b16 %v2889
        %v2922 = vunpack.c.l.b16 %v2890
        %v2923 = vunpack.c.l.b16 %v2891
        %v2924 = vunpack.c.l.b16 %v2892
        %v2925 = vunpack.c.l.b16 %v2893
        %v2926 = vunpack.c.l.b16 %v2894
        %v2927 = vunpack.c.l.b16 %v2895
        %v2928 = vunpack.c.l.b16 %v2896
        %v2929 = vunpack.c.l.b16 %v2897
        %v2930 = vunpack.c.l.b16 %v2898
        %v2931 = vunpack.c.l.b16 %v2899
        %v2932 = vunpack.c.l.b16 %v2900
        %v2933 = vunpack.c.l.b16 %v2901
        %v2934 = vunpack.c.l.b16 %v2902
        %v2935 = vpack.c.b16 %v2920, %v2919
        %v2936 = vpack.c.b16 %v2922, %v2921
        %v2937 = vpack.c.b16 %v2924, %v2923
        %v2938 = vpack.c.b16 %v2926, %v2925
        %v2939 = vpack.c.b16 %v2928, %v2927
        %v2940 = vpack.c.b16 %v2930, %v2929
        %v2941 = vpack.c.b16 %v2932, %v2931
        %v2942 = vpack.c.b16 %v2934, %v2933
        %2951 = vmatprep.subr.bf16.mxu0 0
        %2952 = vmatpush1.bf16.msra.mxu0 %v2935
        %2953 = vmatprep.subr.bf16.mxu0 0
        %2954 = vmatpush1.bf16.msra.mxu0 %v2936
        %2955 = vmatprep.subr.bf16.mxu0 0
        %2956 = vmatpush1.bf16.msra.mxu0 %v2937
        %2957 = vmatprep.subr.bf16.mxu0 0
        %2958 = vmatpush1.bf16.msra.mxu0 %v2938
        %2959 = vmatprep.subr.bf16.mxu0 0
        %2960 = vmatpush1.bf16.msra.mxu0 %v2939
        %2961 = vmatprep.subr.bf16.mxu0 0
        %2962 = vmatpush1.bf16.msra.mxu0 %v2940
        %2963 = vmatprep.subr.bf16.mxu0 0
        %2964 = vmatpush1.bf16.msra.mxu0 %v2941
        %2965 = vmatprep.subr.bf16.mxu0 0
        %2966 = vmatpush1.bf16.msra.mxu0 %v2942
        %2967 = vmatprep.subr.bf16.mxu0 0
        %2968 = vmatpush1.bf16.msra.mxu0 0
        %2969 = vmatprep.subr.bf16.mxu0 0
        %2970 = vmatpush1.bf16.msra.mxu0 0
        %2971 = vmatprep.subr.bf16.mxu0 0
        %2972 = vmatpush1.bf16.msra.mxu0 0
        %2973 = vmatprep.subr.bf16.mxu0 0
        %2974 = vmatpush1.bf16.msra.mxu0 0
        %2975 = vmatprep.subr.bf16.mxu0 0
        %2976 = vmatpush1.bf16.msra.mxu0 0
        %2977 = vmatprep.subr.bf16.mxu0 0
        %2978 = vmatpush1.bf16.msra.mxu0 0
        %2979 = vmatprep.subr.bf16.mxu0 0
        %2980 = vmatpush1.bf16.msra.mxu0 0
        %2981 = vmatprep.subr.bf16.mxu0 0
        %2982 = vmatpush1.bf16.msra.mxu0 0
        %2983 = vmatprep.mubr.bf16.mxu0 0
        %2984 = vmatmul.mubr.bf16.gmra.mrb[0].mxu0 %v2886
        %v2985 = vpop.f32.mrb[0].mxu0
        %v2986 = vadd.f32 0.0, %v2985
        %v2987 = vpop.f32.mrb[0].mxu0
        %v2988 = vpop.f32.mrb[0].mxu0
        %v2989 = vadd.f32 0.0, %v2988
        %v2990 = vpop.f32.mrb[0].mxu0
        %2991 = vdwg.mxu0
        %v2992 = vadd.f32 %v2826, %v2986
        %v2993 = vadd.f32 %v2829, %v2989
        %s2994 = scalar_lea.vmem %s411, 120 [#allocation2]
        %v2995 = vld [vmem:[%s2994] sm:$0xf]
        %v2996 = vld [vmem:[%s2994 + $0x4] sm:$0xf]
        %v2999 = vunpack.c.l.b16 %v2995
        %v3000 = vunpack.c.l.b16 %v2996
        %v3001 = vpack.c.b16 %v3000, %v2999
        %v3003 = vsel %vm476, %v3001, 0
        %3005 = vmatprep.subr.bf16.mxu0 0
        %3006 = vmatpush1.bf16.msra.mxu0 %v482
        %3007 = vmatprep.subr.bf16.mxu0 0
        %3008 = vmatpush1.bf16.msra.mxu0 0
        %3009 = vmatprep.subr.bf16.mxu0 0
        %3010 = vmatpush1.bf16.msra.mxu0 0
        %3011 = vmatprep.subr.bf16.mxu0 0
        %3012 = vmatpush1.bf16.msra.mxu0 0
        %3013 = vmatprep.subr.bf16.mxu0 0
        %3014 = vmatpush1.bf16.msra.mxu0 0
        %3015 = vmatprep.subr.bf16.mxu0 0
        %3016 = vmatpush1.bf16.msra.mxu0 0
        %3017 = vmatprep.subr.bf16.mxu0 0
        %3018 = vmatpush1.bf16.msra.mxu0 0
        %3019 = vmatprep.subr.bf16.mxu0 0
        %3020 = vmatpush1.bf16.msra.mxu0 0
        %3021 = vmatprep.subr.bf16.mxu0 0
        %3022 = vmatpush1.bf16.msra.mxu0 0
        %3023 = vmatprep.subr.bf16.mxu0 0
        %3024 = vmatpush1.bf16.msra.mxu0 0
        %3025 = vmatprep.subr.bf16.mxu0 0
        %3026 = vmatpush1.bf16.msra.mxu0 0
        %3027 = vmatprep.subr.bf16.mxu0 0
        %3028 = vmatpush1.bf16.msra.mxu0 0
        %3029 = vmatprep.subr.bf16.mxu0 0
        %3030 = vmatpush1.bf16.msra.mxu0 0
        %3031 = vmatprep.subr.bf16.mxu0 0
        %3032 = vmatpush1.bf16.msra.mxu0 0
        %3033 = vmatprep.subr.bf16.mxu0 0
        %3034 = vmatpush1.bf16.msra.mxu0 0
        %3035 = vmatprep.subr.bf16.mxu0 0
        %3036 = vmatpush1.bf16.msra.mxu0 0
        %3037 = vmatprep.mubr.bf16.mxu0 0
        %3038 = vmatmul.mubr.bf16.gmra.mrb[0].mxu0 %v3003
        %v3039 = vpop.f32.mrb[0].mxu0
        %v3040 = vadd.f32 %v464, %v3039
        %v3041 = vpop.f32.mrb[0].mxu0
        %v3042 = vpop.f32.mrb[0].mxu0
        %v3043 = vadd.f32 %v464, %v3042
        %v3044 = vpop.f32.mrb[0].mxu0
        %3045 = vdwg.mxu0
        %v3046 = vmax.f32 %v3040, 0.0
        %v3047 = vmax.f32 %v3043, 0.0
        %v3048 = vpack.c.bf16 %v3047, %v3046
        %v3049 = vld [vmem:[%s1012] sm:$0xf]
        %v3050 = vld [vmem:[%s1012 + $0x4] sm:$0xf]
        %v3051 = vld [vmem:[%s1012 + $0x8] sm:$0xf]
        %v3052 = vld [vmem:[%s1012 + $0xc] sm:$0xf]
        %v3053 = vld [vmem:[%s1012 + $0x10] sm:$0xf]
        %v3054 = vld [vmem:[%s1012 + $0x14] sm:$0xf]
        %v3055 = vld [vmem:[%s1012 + $0x18] sm:$0xf]
        %v3056 = vld [vmem:[%s1012 + $0x1c] sm:$0xf]
        %v3057 = vld [vmem:[%s1012 + $0x20] sm:$0xf]
        %v3058 = vld [vmem:[%s1012 + $0x24] sm:$0xf]
        %v3059 = vld [vmem:[%s1012 + $0x28] sm:$0xf]
        %v3060 = vld [vmem:[%s1012 + $0x2c] sm:$0xf]
        %v3061 = vld [vmem:[%s1012 + $0x30] sm:$0xf]
        %v3062 = vld [vmem:[%s1012 + $0x34] sm:$0xf]
        %v3063 = vld [vmem:[%s1012 + $0x38] sm:$0xf]
        %v3064 = vld [vmem:[%s1012 + $0x3c] sm:$0xf]
        %v3081 = vunpack.c.l.b16 %v3049
        %v3082 = vunpack.c.l.b16 %v3050
        %v3083 = vunpack.c.l.b16 %v3051
        %v3084 = vunpack.c.l.b16 %v3052
        %v3085 = vunpack.c.l.b16 %v3053
        %v3086 = vunpack.c.l.b16 %v3054
        %v3087 = vunpack.c.l.b16 %v3055
        %v3088 = vunpack.c.l.b16 %v3056
        %v3089 = vunpack.c.l.b16 %v3057
        %v3090 = vunpack.c.l.b16 %v3058
        %v3091 = vunpack.c.l.b16 %v3059
        %v3092 = vunpack.c.l.b16 %v3060
        %v3093 = vunpack.c.l.b16 %v3061
        %v3094 = vunpack.c.l.b16 %v3062
        %v3095 = vunpack.c.l.b16 %v3063
        %v3096 = vunpack.c.l.b16 %v3064
        %v3097 = vpack.c.b16 %v3082, %v3081
        %v3098 = vpack.c.b16 %v3084, %v3083
        %v3099 = vpack.c.b16 %v3086, %v3085
        %v3100 = vpack.c.b16 %v3088, %v3087
        %v3101 = vpack.c.b16 %v3090, %v3089
        %v3102 = vpack.c.b16 %v3092, %v3091
        %v3103 = vpack.c.b16 %v3094, %v3093
        %v3104 = vpack.c.b16 %v3096, %v3095
        %3113 = vmatprep.subr.bf16.mxu0 0
        %3114 = vmatpush1.bf16.msra.mxu0 %v3097
        %3115 = vmatprep.subr.bf16.mxu0 0
        %3116 = vmatpush1.bf16.msra.mxu0 %v3098
        %3117 = vmatprep.subr.bf16.mxu0 0
        %3118 = vmatpush1.bf16.msra.mxu0 %v3099
        %3119 = vmatprep.subr.bf16.mxu0 0
        %3120 = vmatpush1.bf16.msra.mxu0 %v3100
        %3121 = vmatprep.subr.bf16.mxu0 0
        %3122 = vmatpush1.bf16.msra.mxu0 %v3101
        %3123 = vmatprep.subr.bf16.mxu0 0
        %3124 = vmatpush1.bf16.msra.mxu0 %v3102
        %3125 = vmatprep.subr.bf16.mxu0 0
        %3126 = vmatpush1.bf16.msra.mxu0 %v3103
        %3127 = vmatprep.subr.bf16.mxu0 0
        %3128 = vmatpush1.bf16.msra.mxu0 %v3104
        %3129 = vmatprep.subr.bf16.mxu0 0
        %3130 = vmatpush1.bf16.msra.mxu0 0
        %3131 = vmatprep.subr.bf16.mxu0 0
        %3132 = vmatpush1.bf16.msra.mxu0 0
        %3133 = vmatprep.subr.bf16.mxu0 0
        %3134 = vmatpush1.bf16.msra.mxu0 0
        %3135 = vmatprep.subr.bf16.mxu0 0
        %3136 = vmatpush1.bf16.msra.mxu0 0
        %3137 = vmatprep.subr.bf16.mxu0 0
        %3138 = vmatpush1.bf16.msra.mxu0 0
        %3139 = vmatprep.subr.bf16.mxu0 0
        %3140 = vmatpush1.bf16.msra.mxu0 0
        %3141 = vmatprep.subr.bf16.mxu0 0
        %3142 = vmatpush1.bf16.msra.mxu0 0
        %3143 = vmatprep.subr.bf16.mxu0 0
        %3144 = vmatpush1.bf16.msra.mxu0 0
        %3145 = vmatprep.mubr.bf16.mxu0 0
        %3146 = vmatmul.mubr.bf16.gmra.mrb[0].mxu0 %v3048
        %v3147 = vpop.f32.mrb[0].mxu0
        %v3148 = vadd.f32 0.0, %v3147
        %v3149 = vpop.f32.mrb[0].mxu0
        %v3150 = vpop.f32.mrb[0].mxu0
        %v3151 = vadd.f32 0.0, %v3150
        %v3152 = vpop.f32.mrb[0].mxu0
        %3153 = vdwg.mxu0
        %v3154 = vadd.f32 %v2992, %v3148
        %v3155 = vadd.f32 %v2993, %v3151
        %v3156 = vadd.f32 %v3154, %v1124
        %v3157 = vadd.f32 %v3155, %v1124
        %v3158 = vmax.f32 %v3156, 0.0
        %v3159 = vmax.f32 %v3157, 0.0
        %v3160 = vpack.c.bf16 %v3159, %v3158
        %v3162 = vunpack.c.l.b16 %v3160
        %v3163 = vunpack.c.h.b16 %v3160
        %v3164 = vpack.c.b16 %v3162, %v3162
        %v3165 = vpack.c.b16 %v3163, %v3163
        %s3168 = scalar_lea.vmem %s434, 24 [#allocation3]
        %3169 = vst [vmem:[%s3168] sm:$0xf] %v3164
        %3170 = vst [vmem:[%s3168 + $0x4] sm:$0xf] %v3165
        %v3171 = vadd.f32 %v3158, %v3159
        %v3172 = vrot.slane %v3171, 4
        %v3173 = vadd.f32 %v3171, %v3172
        %v3174 = vrot.slane %v3173, 2
        %v3175 = vadd.f32 %v3173, %v3174
        %v3176 = vrot.slane %v3175, 1
        %v3177 = vadd.f32 %v3175, %v3176
        %v3178 = vadd.f32 %v2501, %v3177
        %v3179 = vmul.f32 %v3158, %v3158
        %v3180 = vmul.f32 %v3159, %v3159
        %v3181 = vadd.f32 %v3179, %v3180
        %v3182 = vrot.slane %v3181, 4
        %v3183 = vadd.f32 %v3181, %v3182
        %v3184 = vrot.slane %v3183, 2
        %v3185 = vadd.f32 %v3183, %v3184
        %v3186 = vrot.slane %v3185, 1
        %v3187 = vadd.f32 %v3185, %v3186
        %v3188 = vadd.f32 %v2511, %v3187
        %3189 = vst [vmem:[%s450] sm:$0x1] %v3178
        %3190 = vst [vmem:[%s450 + $0x1] sm:$0x1] %v3188
        %s3191 = sand.u32 %s152, 1
        %s3192 = sand.u32 %s152, 1
        %s3193 = smul.addr %s3192, 32
        %s3194 = scalar_lea.vmem [#allocation3], %s3193
        %s3195 = smul.u32 %s22, 2
        %s3196 = sadd.s32 %s3195, %s23
        %p3197 = scmp.lt.s32.totalorder %s3196, 7
        %s3198 = scalar_select %p3197, %s3196, 7
        %s3199 = smul.addr %s3198, 8
        %s3200 = scalar_lea.vmem %s6, %s3199
        // Predicated region
        $region82: #{discriminator_forward.4} parent=76 // pred_check
          %p3201 = pneg %p162
        $region83: #{discriminator_forward.4} parent=76 // pred_check_branch
          %3203 = sbr.rel (%p3201) target = $region85
        $region84: #{discriminator_forward.4} parent=76 // pred_region
          %s3204 = smul.u32 2, %s23
          %s3205 = smul.addr %s22, 4
          %s3206 = sadd.s32 %s3204, %s3205
          %s3207 = smul.addr %s3206, 4
          %s3208 = scalar_lea.vmem %s5, %s3207
          // Predicated region
          $region86: #{discriminator_forward.4} parent=84 // pred_check
            _
          $region87: #{discriminator_forward.4} parent=84 // pred_check_branch
            %3210 = sbr.rel (0) target = $region89
          $region88: #{discriminator_forward.4} parent=84 // pred_region
            // Predicated region
            $region90: #{discriminator_forward.4} parent=88 // pred_check
              _
            $region91: #{discriminator_forward.4} parent=88 // pred_check_branch
              %3212 = sbr.rel target = $region93
            $region92: #{discriminator_forward.4} parent=88 // pred_region
              // Predicated region
              $region105: #{discriminator_forward.4} parent=92 // pred_check
                _
              $region106: #{discriminator_forward.4} parent=92 // pred_check_branch
                %3241 = sbr.rel (0) target = $region108
              $region107: #{discriminator_forward.4} parent=92 // pred_region
                loop: start=0, step=1, limit=1
                $region109: #{discriminator_forward.4} parent=107 // loop_pre_header
                  _
                $region110: #{discriminator_forward.4} parent=107 // loop_header
                  %s3243 = sphi 0, %s3247
                  %p3244 = scmp.ge.s32.totalorder %s3243, 1
                  %s3248 = sphi %s3194, %s3194
                  %s3249 = sphi %s3208, %s3208
                $region111: #{discriminator_forward.4} parent=107 // loop_header_branch
                  %3246 = sbr.rel (%p3244) target = $region115
                $region112: #{discriminator_forward.4} parent=107 // loop_body
                  _
                $region113: #{discriminator_forward.4} parent=107 // loop_footer
                  %s3247 = sadd.s32 1, %s3243
                $region114: #{discriminator_forward.4} parent=107 // loop_footer_branch
                  %3242 = sbr.rel target = $region110
                $region115: #{discriminator_forward.4} parent=107 // loop_exit
                  _
                loop: start=0, step=1, limit=1
                $region116: #{discriminator_forward.4} parent=107 // loop_pre_header
                  _
                $region117: #{discriminator_forward.4} parent=107 // loop_header
                  %s3252 = sphi 0, %s3256
                  %p3253 = scmp.ge.s32.totalorder %s3252, 1
                  %s3257 = sphi %s3194, %s3194
                  %s3258 = sphi %s3208, %s3208
                $region118: #{discriminator_forward.4} parent=107 // loop_header_branch
                  %3255 = sbr.rel (%p3253) target = $region122
                $region119: #{discriminator_forward.4} parent=107 // loop_body
                  %v3259 = vld [vmem:[%s3257] sm:$0xf]
                  %3260 = vst [vmem:[%s3258] sm:$0xf] %v3259
                  %v3261 = vld [vmem:[%s3257 + $0x4] sm:$0xf]
                  %3262 = vst [vmem:[%s3258 + $0x4] sm:$0xf] %v3261
                  %v3263 = vld [vmem:[%s3257 + $0x8] sm:$0xf]
                  %3264 = vst [vmem:[%s3258 + $0x40] sm:$0xf] %v3263
                  %v3265 = vld [vmem:[%s3257 + $0xc] sm:$0xf]
                  %3266 = vst [vmem:[%s3258 + $0x44] sm:$0xf] %v3265
                  %v3267 = vld [vmem:[%s3257 + $0x10] sm:$0xf]
                  %3268 = vst [vmem:[%s3258 + $0x80] sm:$0xf] %v3267
                  %v3269 = vld [vmem:[%s3257 + $0x14] sm:$0xf]
                  %3270 = vst [vmem:[%s3258 + $0x84] sm:$0xf] %v3269
                  %v3271 = vld [vmem:[%s3257 + $0x18] sm:$0xf]
                  %3272 = vst [vmem:[%s3258 + $0xc0] sm:$0xf] %v3271
                  %v3273 = vld [vmem:[%s3257 + $0x1c] sm:$0xf]
                  %3274 = vst [vmem:[%s3258 + $0xc4] sm:$0xf] %v3273
                $region120: #{discriminator_forward.4} parent=107 // loop_footer
                  %s3256 = sadd.s32 1, %s3252
                $region121: #{discriminator_forward.4} parent=107 // loop_footer_branch
                  %3251 = sbr.rel target = $region117
                $region122: #{discriminator_forward.4} parent=107 // loop_exit
                  _
              $region108: #{discriminator_forward.4} parent=92 // pred_fallthru
                _
            $region93: #{discriminator_forward.4} parent=88 // pred_fallthru
              _
            // Predicated region
            $region94: #{discriminator_forward.4} parent=88 // pred_check
              _
            $region95: #{discriminator_forward.4} parent=88 // pred_check_branch
              %3214 = sbr.rel (0) target = $region97
            $region96: #{discriminator_forward.4} parent=88 // pred_region
              loop: start=0, step=1, limit=1
              $region98: #{discriminator_forward.4} parent=96 // loop_pre_header
                _
              $region99: #{discriminator_forward.4} parent=96 // loop_header
                %s3217 = sphi 0, %s3221
                %p3218 = scmp.ge.s32.totalorder %s3217, 1
                %s3222 = sphi %s3194, %s3194
                %s3223 = sphi %s3208, %s3208
              $region100: #{discriminator_forward.4} parent=96 // loop_header_branch
                %3220 = sbr.rel (%p3218) target = $region104
              $region101: #{discriminator_forward.4} parent=96 // loop_body
                %v3224 = vld [vmem:[%s3222] sm:$0xf]
                %3225 = vst [vmem:[%s3223] sm:$0xf] %v3224
                %v3226 = vld [vmem:[%s3222 + $0x4] sm:$0xf]
                %3227 = vst [vmem:[%s3223 + $0x4] sm:$0xf] %v3226
                %v3228 = vld [vmem:[%s3222 + $0x8] sm:$0xf]
                %3229 = vst [vmem:[%s3223 + $0x40] sm:$0xf] %v3228
                %v3230 = vld [vmem:[%s3222 + $0xc] sm:$0xf]
                %3231 = vst [vmem:[%s3223 + $0x44] sm:$0xf] %v3230
                %v3232 = vld [vmem:[%s3222 + $0x10] sm:$0xf]
                %3233 = vst [vmem:[%s3223 + $0x80] sm:$0xf] %v3232
                %v3234 = vld [vmem:[%s3222 + $0x14] sm:$0xf]
                %3235 = vst [vmem:[%s3223 + $0x84] sm:$0xf] %v3234
                %v3236 = vld [vmem:[%s3222 + $0x18] sm:$0xf]
                %3237 = vst [vmem:[%s3223 + $0xc0] sm:$0xf] %v3236
                %v3238 = vld [vmem:[%s3222 + $0x1c] sm:$0xf]
                %3239 = vst [vmem:[%s3223 + $0xc4] sm:$0xf] %v3238
              $region102: #{discriminator_forward.4} parent=96 // loop_footer
                %s3221 = sadd.s32 1, %s3217
              $region103: #{discriminator_forward.4} parent=96 // loop_footer_branch
                %3216 = sbr.rel target = $region99
              $region104: #{discriminator_forward.4} parent=96 // loop_exit
                _
            $region97: #{discriminator_forward.4} parent=88 // pred_fallthru
              _
          $region89: #{discriminator_forward.4} parent=84 // pred_fallthru
            _
          %3275 = vnop
        $region85: #{discriminator_forward.4} parent=76 // pred_fallthru
          _
        // Predicated region
        $region123: #{discriminator_forward.4} parent=76 // pred_check
          %p3276 = pneg %p192
        $region124: #{discriminator_forward.4} parent=76 // pred_check_branch
          %3278 = sbr.rel (%p3276) target = $region126
        $region125: #{discriminator_forward.4} parent=76 // pred_region
          %s3279 = smul.u32 %s22, 2
          %s3280 = sadd.s32 %s3279, %s23
        $region126: #{discriminator_forward.4} parent=76 // pred_fallthru
          _
      $region77: #{discriminator_forward.4} parent=5 // pred_fallthru
        _
      %p3281 = scmp.le.s32.totalorder 2, %s13
      // Predicated region
      $region127: #{discriminator_forward.4} parent=5 // pred_check
        %p3282 = pneg %p3281
      $region128: #{discriminator_forward.4} parent=5 // pred_check_branch
        %3284 = sbr.rel (%p3282) target = $region130
      $region129: #{discriminator_forward.4} parent=5 // pred_region
        %s3285 = ssub.s32 %s13, 2
        // Predicated region
        $region131: #{discriminator_forward.4} parent=129 // pred_check
          %p3286 = pneg %p168
        $region132: #{discriminator_forward.4} parent=129 // pred_check_branch
          %3288 = sbr.rel (%p3286) target = $region134
        $region133: #{discriminator_forward.4} parent=129 // pred_region
          %s3289 = sand.u32 %s153, 1
          %s3290 = sand.u32 %s153, 1
          %s3291 = smul.addr %s3290, 32
          %s3292 = scalar_lea.vmem [#allocation3], %s3291
        $region134: #{discriminator_forward.4} parent=129 // pred_fallthru
          _
        // Predicated region
        $region135: #{discriminator_forward.4} parent=129 // pred_check
          %p3293 = pneg %p198
        $region136: #{discriminator_forward.4} parent=129 // pred_check_branch
          %3295 = sbr.rel (%p3293) target = $region138
        $region137: #{discriminator_forward.4} parent=129 // pred_region
          %s3296 = smul.u32 %s24, 2
          %s3297 = sadd.s32 %s3296, %s25
          %p3298 = scmp.lt.s32.totalorder %s3297, 7
          %s3299 = scalar_select %p3298, %s3297, 7
          %s3300 = smul.addr %s3299, 8
          %s3301 = scalar_lea.vmem %s6, %s3300
        $region138: #{discriminator_forward.4} parent=129 // pred_fallthru
          _
      $region130: #{discriminator_forward.4} parent=5 // pred_fallthru
        _
    $region6: #{discriminator_forward.4} parent=1 // loop_footer
      %s17 = sadd.s32 1, %s13
    $region7: #{discriminator_forward.4} parent=1 // loop_footer_branch
      %12 = sbr.rel target = $region3
    $region8: #{discriminator_forward.4} parent=1 // loop_exit
      _

// kernel: discriminator_forward.5
$region0: #{discriminator_forward.5}
  #allocation0 [shape = 'u32[]', space=smem, size = 0x4, offset = 0x4, fixed_abs, tag = 'smem constant byte address 0x4 - core index']
  #allocation1 [shape = 'u32[144,128]{1,0:T(1,128)}', space=vmem, size = 0x12000, scoped, tag = 'internal scratch']
  %s0 = inlined_call_operand.vmem [shape: bf16[4,4,32,128], index: 0, kind: input, shape index: {}]
  %s1 = inlined_call_operand.vmem [shape: bf16[4,128,256], index: 1, kind: input, shape index: {}]
  %s2 = inlined_call_operand.vmem [shape: f32[1,256], index: 2, kind: input, shape index: {}]
  %s3 = inlined_call_operand.vmem [shape: bf16[4,32,256], index: 3, kind: output, shape index: {0}]
  %s4 = inlined_call_operand.vmem [shape: f32[64,256], index: 4, kind: output, shape index: {1}]
  %5 = xla_tuple %s3, %s4
  %s6 = sld [smem:[#allocation0]]
  $region94: #{discriminator_forward.5} parent=0
    _
  %s8 = ssub.s32 1, %s6
  %s9 = scalar_select 0, %s8, %s6
  $region1: #{discriminator_forward.5} parent=0
    #allocation2 [shape = 'u8[32768]{0}', space=vmem, size = 0x8000, scoped, tag = 'input window, operand 0']
    loop: start=0, step=1, limit=10
    $region2: #{discriminator_forward.5} parent=1 // loop_pre_header
      _
    $region3: #{discriminator_forward.5} parent=1 // loop_header
      %s11 = sphi 0, %s15
      %p12 = scmp.ge.s32.totalorder %s11, 10
      %s18 = sphi 0, %s30
      %s19 = sphi 0, %s26
      %s20 = sphi 0, %s18
      %s21 = sphi 0, %s19
      %s22 = sphi 0, %s20
      %s23 = sphi 0, %s21
      %s35 = sphi 0, %s37
      %s38 = sphi 0, %s35
      %s39 = sphi 0, %s38
      %s55 = sphi 0, %s39
      %s59 = sphi 0, %s59
      %s61 = sphi 0, %s59
      %s62 = sphi 0, %s61
      %s76 = sphi 0, %s62
      %s80 = sphi 0, %s80
      %s82 = sphi 0, %s80
      %s83 = sphi 0, %s82
      %s97 = sphi 0, %s83
      %s105 = sphi 0, %s107
      %s108 = sphi 0, %s105
      %s109 = sphi 0, %s108
      %s125 = sphi 0, %s109
      %s135 = sphi 0, %s137
      %s138 = sphi 0, %s135
      %s139 = sphi 0, %s138
      %s155 = sphi 0, %s139
    $region4: #{discriminator_forward.5} parent=1 // loop_header_branch
      %14 = sbr.rel (%p12) target = $region8
    $region5: #{discriminator_forward.5} parent=1 // loop_body
      %s16 = ssub.s32 %s11, 1
      %s17 = ssub.s32 %s11, 2
      %s24 = sadd.s32 1, %s19
      %p25 = scmp.ge.s32.totalorder %s24, 2
      %s26 = scalar_select %p25, 0, %s24
      %s27 = sadd.s32 1, %s18
      %s28 = scalar_select %p25, %s27, %s18
      %p29 = scmp.ge.s32.totalorder %s28, 4
      %s30 = scalar_select %p29, 0, %s28
      %s31 = ssub.s32 %s18, %s30
      %s32 = ssub.s32 %s19, %s26
      %s33 = sor.u32 %s31, %s32
      %p34 = scmp.eq.s32.totalorder %s33, 0
      %s36 = sadd.s32 %s35, 1
      %s37 = scalar_select %p34, %s35, %s36
      %p40 = pneg %p34
      %p41 = scmp.eq.s32.totalorder %s11, 7
      %p42 = por %p40, %p41
      %p43 = scmp.ne.s32.totalorder %s35, %s38
      %p44 = scmp.eq.s32.totalorder %s11, 0
      %p45 = por %p43, %p44
      %p46 = scmp.ne.s32.totalorder %s35, %s38
      %p47 = scmp.eq.s32.totalorder %s16, 7
      %p48 = por %p46, %p47
      %p49 = scmp.ne.s32.totalorder %s38, %s39
      %p50 = scmp.eq.s32.totalorder %s16, 0
      %p51 = por %p49, %p50
      %p52 = scmp.ne.s32.totalorder %s38, %s39
      %p53 = scmp.eq.s32.totalorder %s17, 7
      %p54 = por %p52, %p53
      %p56 = scmp.ne.s32.totalorder %s39, %s55
      %p57 = scmp.eq.s32.totalorder %s17, 0
      %p58 = por %p56, %p57
      %s60 = sadd.s32 %s59, 1
      %p63 = scmp.eq.s32.totalorder %s11, 7
      %p64 = scmp.ne.s32.totalorder %s59, %s61
      %p65 = scmp.eq.s32.totalorder %s11, 0
      %p66 = por %p64, %p65
      %p67 = scmp.ne.s32.totalorder %s59, %s61
      %p68 = scmp.eq.s32.totalorder %s16, 7
      %p69 = por %p67, %p68
      %p70 = scmp.ne.s32.totalorder %s61, %s62
      %p71 = scmp.eq.s32.totalorder %s16, 0
      %p72 = por %p70, %p71
      %p73 = scmp.ne.s32.totalorder %s61, %s62
      %p74 = scmp.eq.s32.totalorder %s17, 7
      %p75 = por %p73, %p74
      %p77 = scmp.ne.s32.totalorder %s62, %s76
      %p78 = scmp.eq.s32.totalorder %s17, 0
      %p79 = por %p77, %p78
      %s81 = sadd.s32 %s80, 1
      %p84 = scmp.eq.s32.totalorder %s11, 7
      %p85 = scmp.ne.s32.totalorder %s80, %s82
      %p86 = scmp.eq.s32.totalorder %s11, 0
      %p87 = por %p85, %p86
      %p88 = scmp.ne.s32.totalorder %s80, %s82
      %p89 = scmp.eq.s32.totalorder %s16, 7
      %p90 = por %p88, %p89
      %p91 = scmp.ne.s32.totalorder %s82, %s83
      %p92 = scmp.eq.s32.totalorder %s16, 0
      %p93 = por %p91, %p92
      %p94 = scmp.ne.s32.totalorder %s82, %s83
      %p95 = scmp.eq.s32.totalorder %s17, 7
      %p96 = por %p94, %p95
      %p98 = scmp.ne.s32.totalorder %s83, %s97
      %p99 = scmp.eq.s32.totalorder %s17, 0
      %p100 = por %p98, %p99
      %s101 = ssub.s32 %s18, %s30
      %s102 = ssub.s32 %s19, %s26
      %s103 = sor.u32 %s101, %s102
      %p104 = scmp.eq.s32.totalorder %s103, 0
      %s106 = sadd.s32 %s105, 1
      %s107 = scalar_select %p104, %s105, %s106
      %p110 = pneg %p104
      %p111 = scmp.eq.s32.totalorder %s11, 7
      %p112 = por %p110, %p111
      %p113 = scmp.ne.s32.totalorder %s105, %s108
      %p114 = scmp.eq.s32.totalorder %s11, 0
      %p115 = por %p113, %p114
      %p116 = scmp.ne.s32.totalorder %s105, %s108
      %p117 = scmp.eq.s32.totalorder %s16, 7
      %p118 = por %p116, %p117
      %p119 = scmp.ne.s32.totalorder %s108, %s109
      %p120 = scmp.eq.s32.totalorder %s16, 0
      %p121 = por %p119, %p120
      %p122 = scmp.ne.s32.totalorder %s108, %s109
      %p123 = scmp.eq.s32.totalorder %s17, 7
      %p124 = por %p122, %p123
      %p126 = scmp.ne.s32.totalorder %s109, %s125
      %p127 = scmp.eq.s32.totalorder %s17, 0
      %p128 = por %p126, %p127
      %s129 = smul.u32 %s18, 2
      %s130 = sadd.s32 %s129, %s19
      %s131 = smul.u32 %s30, 2
      %s132 = sadd.s32 %s131, %s26
      %s133 = ssub.s32 %s130, %s132
      %p134 = scmp.eq.s32.totalorder %s133, 0
      %s136 = sadd.s32 %s135, 1
      %s137 = scalar_select %p134, %s135, %s136
      %p140 = pneg %p134
      %p141 = scmp.eq.s32.totalorder %s11, 7
      %p142 = por %p140, %p141
      %p143 = scmp.ne.s32.totalorder %s135, %s138
      %p144 = scmp.eq.s32.totalorder %s11, 0
      %p145 = por %p143, %p144
      %p146 = scmp.ne.s32.totalorder %s135, %s138
      %p147 = scmp.eq.s32.totalorder %s16, 7
      %p148 = por %p146, %p147
      %p149 = scmp.ne.s32.totalorder %s138, %s139
      %p150 = scmp.eq.s32.totalorder %s16, 0
      %p151 = por %p149, %p150
      %p152 = scmp.ne.s32.totalorder %s138, %s139
      %p153 = scmp.eq.s32.totalorder %s17, 7
      %p154 = por %p152, %p153
      %p156 = scmp.ne.s32.totalorder %s139, %s155
      %p157 = scmp.eq.s32.totalorder %s17, 0
      %p158 = por %p156, %p157
      %p159 = scmp.le.s32.totalorder 1, %s11
      %p160 = scmp.lt.s32.totalorder %s11, 9
      %p161 = pnand %p159, %p160
      %p162 = pneg %p161
      // Predicated region
      $region9: #{discriminator_forward.5} parent=5 // pred_check
        _
      $region10: #{discriminator_forward.5} parent=5 // pred_check_branch
        %164 = sbr.rel (%p161) target = $region12
      $region11: #{discriminator_forward.5} parent=5 // pred_region
        %s165 = ssub.s32 %s11, 1
        // Predicated region
        $region13: #{discriminator_forward.5} parent=11 // pred_check
          %p166 = pneg %p72
        $region14: #{discriminator_forward.5} parent=11 // pred_check_branch
          %168 = sbr.rel (%p166) target = $region16
        $region15: #{discriminator_forward.5} parent=11 // pred_region
          _
        $region16: #{discriminator_forward.5} parent=11 // pred_fallthru
          _
        // Predicated region
        $region17: #{discriminator_forward.5} parent=11 // pred_check
          %p169 = pneg %p93
        $region18: #{discriminator_forward.5} parent=11 // pred_check_branch
          %171 = sbr.rel (%p169) target = $region20
        $region19: #{discriminator_forward.5} parent=11 // pred_region
          _
        $region20: #{discriminator_forward.5} parent=11 // pred_fallthru
          _
      $region12: #{discriminator_forward.5} parent=5 // pred_fallthru
        _
      %p172 = scmp.lt.s32.totalorder %s11, 8
      // Predicated region
      $region21: #{discriminator_forward.5} parent=5 // pred_check
        %p173 = pneg %p172
      $region22: #{discriminator_forward.5} parent=5 // pred_check_branch
        %175 = sbr.rel (%p173) target = $region24
      $region23: #{discriminator_forward.5} parent=5 // pred_region
        // Predicated region
        $region25: #{discriminator_forward.5} parent=23 // pred_check
          %p176 = pneg %p45
        $region26: #{discriminator_forward.5} parent=23 // pred_check_branch
          %178 = sbr.rel (%p176) target = $region28
        $region27: #{discriminator_forward.5} parent=23 // pred_region
          %s179 = sand.u32 %s35, 1
          %s180 = sand.u32 %s35, 1
          %s181 = smul.addr %s180, 32
          %s182 = scalar_lea.vmem [#allocation2], %s181
          %s183 = smul.u32 2, %s19
          %s184 = smul.addr %s18, 4
          %s185 = sadd.s32 %s183, %s184
          %s186 = smul.addr %s185, 4
          %s187 = scalar_lea.vmem %s0, %s186
          // Predicated region
          $region29: #{discriminator_forward.5} parent=27 // pred_check
            _
          $region30: #{discriminator_forward.5} parent=27 // pred_check_branch
            %189 = sbr.rel (0) target = $region32
          $region31: #{discriminator_forward.5} parent=27 // pred_region
            // Predicated region
            $region33: #{discriminator_forward.5} parent=31 // pred_check
              _
            $region34: #{discriminator_forward.5} parent=31 // pred_check_branch
              %191 = sbr.rel target = $region36
            $region35: #{discriminator_forward.5} parent=31 // pred_region
              // Predicated region
              $region48: #{discriminator_forward.5} parent=35 // pred_check
                _
              $region49: #{discriminator_forward.5} parent=35 // pred_check_branch
                %220 = sbr.rel (0) target = $region51
              $region50: #{discriminator_forward.5} parent=35 // pred_region
                loop: start=0, step=1, limit=1
                $region52: #{discriminator_forward.5} parent=50 // loop_pre_header
                  _
                $region53: #{discriminator_forward.5} parent=50 // loop_header
                  %s222 = sphi 0, %s226
                  %p223 = scmp.ge.s32.totalorder %s222, 1
                  %s227 = sphi %s187, %s187
                  %s228 = sphi %s182, %s182
                $region54: #{discriminator_forward.5} parent=50 // loop_header_branch
                  %225 = sbr.rel (%p223) target = $region58
                $region55: #{discriminator_forward.5} parent=50 // loop_body
                  _
                $region56: #{discriminator_forward.5} parent=50 // loop_footer
                  %s226 = sadd.s32 1, %s222
                $region57: #{discriminator_forward.5} parent=50 // loop_footer_branch
                  %221 = sbr.rel target = $region53
                $region58: #{discriminator_forward.5} parent=50 // loop_exit
                  _
                loop: start=0, step=1, limit=1
                $region59: #{discriminator_forward.5} parent=50 // loop_pre_header
                  _
                $region60: #{discriminator_forward.5} parent=50 // loop_header
                  %s231 = sphi 0, %s235
                  %p232 = scmp.ge.s32.totalorder %s231, 1
                  %s236 = sphi %s187, %s187
                  %s237 = sphi %s182, %s182
                $region61: #{discriminator_forward.5} parent=50 // loop_header_branch
                  %234 = sbr.rel (%p232) target = $region65
                $region62: #{discriminator_forward.5} parent=50 // loop_body
                  %v238 = vld [vmem:[%s236] sm:$0xf]
                  %239 = vst [vmem:[%s237] sm:$0xf] %v238
                  %v240 = vld [vmem:[%s236 + $0x4] sm:$0xf]
                  %241 = vst [vmem:[%s237 + $0x4] sm:$0xf] %v240
                  %v242 = vld [vmem:[%s236 + $0x40] sm:$0xf]
                  %243 = vst [vmem:[%s237 + $0x8] sm:$0xf] %v242
                  %v244 = vld [vmem:[%s236 + $0x44] sm:$0xf]
                  %245 = vst [vmem:[%s237 + $0xc] sm:$0xf] %v244
                  %v246 = vld [vmem:[%s236 + $0x80] sm:$0xf]
                  %247 = vst [vmem:[%s237 + $0x10] sm:$0xf] %v246
                  %v248 = vld [vmem:[%s236 + $0x84] sm:$0xf]
                  %249 = vst [vmem:[%s237 + $0x14] sm:$0xf] %v248
                  %v250 = vld [vmem:[%s236 + $0xc0] sm:$0xf]
                  %251 = vst [vmem:[%s237 + $0x18] sm:$0xf] %v250
                  %v252 = vld [vmem:[%s236 + $0xc4] sm:$0xf]
                  %253 = vst [vmem:[%s237 + $0x1c] sm:$0xf] %v252
                $region63: #{discriminator_forward.5} parent=50 // loop_footer
                  %s235 = sadd.s32 1, %s231
                $region64: #{discriminator_forward.5} parent=50 // loop_footer_branch
                  %230 = sbr.rel target = $region60
                $region65: #{discriminator_forward.5} parent=50 // loop_exit
                  _
              $region51: #{discriminator_forward.5} parent=35 // pred_fallthru
                _
            $region36: #{discriminator_forward.5} parent=31 // pred_fallthru
              _
            // Predicated region
            $region37: #{discriminator_forward.5} parent=31 // pred_check
              _
            $region38: #{discriminator_forward.5} parent=31 // pred_check_branch
              %193 = sbr.rel (0) target = $region40
            $region39: #{discriminator_forward.5} parent=31 // pred_region
              loop: start=0, step=1, limit=1
              $region41: #{discriminator_forward.5} parent=39 // loop_pre_header
                _
              $region42: #{discriminator_forward.5} parent=39 // loop_header
                %s196 = sphi 0, %s200
                %p197 = scmp.ge.s32.totalorder %s196, 1
                %s201 = sphi %s187, %s187
                %s202 = sphi %s182, %s182
              $region43: #{discriminator_forward.5} parent=39 // loop_header_branch
                %199 = sbr.rel (%p197) target = $region47
              $region44: #{discriminator_forward.5} parent=39 // loop_body
                %v203 = vld [vmem:[%s201] sm:$0xf]
                %204 = vst [vmem:[%s202] sm:$0xf] %v203
                %v205 = vld [vmem:[%s201 + $0x4] sm:$0xf]
                %206 = vst [vmem:[%s202 + $0x4] sm:$0xf] %v205
                %v207 = vld [vmem:[%s201 + $0x40] sm:$0xf]
                %208 = vst [vmem:[%s202 + $0x8] sm:$0xf] %v207
                %v209 = vld [vmem:[%s201 + $0x44] sm:$0xf]
                %210 = vst [vmem:[%s202 + $0xc] sm:$0xf] %v209
                %v211 = vld [vmem:[%s201 + $0x80] sm:$0xf]
                %212 = vst [vmem:[%s202 + $0x10] sm:$0xf] %v211
                %v213 = vld [vmem:[%s201 + $0x84] sm:$0xf]
                %214 = vst [vmem:[%s202 + $0x14] sm:$0xf] %v213
                %v215 = vld [vmem:[%s201 + $0xc0] sm:$0xf]
                %216 = vst [vmem:[%s202 + $0x18] sm:$0xf] %v215
                %v217 = vld [vmem:[%s201 + $0xc4] sm:$0xf]
                %218 = vst [vmem:[%s202 + $0x1c] sm:$0xf] %v217
              $region45: #{discriminator_forward.5} parent=39 // loop_footer
                %s200 = sadd.s32 1, %s196
              $region46: #{discriminator_forward.5} parent=39 // loop_footer_branch
                %195 = sbr.rel target = $region42
              $region47: #{discriminator_forward.5} parent=39 // loop_exit
                _
            $region40: #{discriminator_forward.5} parent=31 // pred_fallthru
              _
          $region32: #{discriminator_forward.5} parent=27 // pred_fallthru
            _
          %254 = vnop
        $region28: #{discriminator_forward.5} parent=23 // pred_fallthru
          _
      $region24: #{discriminator_forward.5} parent=5 // pred_fallthru
        _
      %p255 = scmp.le.s32.totalorder 1, %s11
      %p256 = scmp.lt.s32.totalorder %s11, 9
      %p257 = pnand %p255, %p256
      %p258 = pneg %p257
      // Predicated region
      $region66: #{discriminator_forward.5} parent=5 // pred_check
        _
      $region67: #{discriminator_forward.5} parent=5 // pred_check_branch
        %260 = sbr.rel (%p257) target = $region69
      $region68: #{discriminator_forward.5} parent=5 // pred_region
        %s261 = ssub.s32 %s11, 1
        %s262 = sand.u32 %s38, 1
        %s263 = sand.u32 %s38, 1
        %s264 = smul.addr %s263, 32
        %s265 = scalar_lea.vmem [#allocation2], %s264
        // Predicated region
        $region70: #{discriminator_forward.5} parent=68 // pred_check
          %p266 = pneg %p51
        $region71: #{discriminator_forward.5} parent=68 // pred_check_branch
          %268 = sbr.rel (%p266) target = $region73
        $region72: #{discriminator_forward.5} parent=68 // pred_region
          _
        $region73: #{discriminator_forward.5} parent=68 // pred_fallthru
          _
        %s269 = sand.u32 %s38, 1
        %s270 = sand.u32 %s38, 1
        %s271 = smul.addr %s270, 32
        %s272 = scalar_lea.vmem [#allocation2], %s271
        %p273 = pneg %p51
        %p274 = pneg %p48
        %p275 = pneg %p72
        %p276 = pneg %p69
        %p277 = pneg %p93
        %p278 = pneg %p90
        %p279 = pneg %p121
        %p280 = pneg %p118
        %s281 = smul.u32 2, %s21
        %p282 = scmp.lt.s32.totalorder %s20, 3
        %s283 = scalar_select %p282, %s20, 3
        %p284 = scmp.lt.s32.totalorder %s281, 3
        %s285 = scalar_select %p284, %s281, 3
        %s286 = smul.addr %s285, 2
        %s287 = smul.addr %s283, 8
        %s288 = sadd.s32 %s286, %s287
        %s289 = smul.addr %s288, 4
        %s290 = scalar_lea.vmem %s3, %s289
        %p291 = pneg %p151
        %p292 = pneg %p148
        %s293 = smul.u32 %s20, 2
        %s294 = sadd.s32 %s293, %s21
        %p295 = scmp.lt.s32.totalorder %s294, 7
        %s296 = scalar_select %p295, %s294, 7
        %s297 = smul.addr %s296, 2
        %s298 = smul.addr %s297, 8
        %s299 = scalar_lea.vmem %s4, %s298
        %s300 = smul.u32 2, %s21
        %s301 = smul.u32 2, %s21
        %p302 = scmp.lt.s32.totalorder %s20, 3
        %s303 = scalar_select %p302, %s20, 3
        %p304 = scmp.lt.s32.totalorder %s301, 3
        %s305 = scalar_select %p304, %s301, 3
        %s306 = smul.addr %s305, 2
        %s307 = smul.addr %s303, 8
        %s308 = sadd.s32 %s306, %s307
        %s309 = smul.addr %s308, 4
        %s310 = scalar_lea.vmem %s3, %s309
        %s311 = smul.u32 2, %s21
        %s312 = smul.u32 %s20, 2
        %s313 = sadd.s32 %s312, %s21
        %p314 = scmp.lt.s32.totalorder %s313, 7
        %s315 = scalar_select %p314, %s313, 7
        %s316 = smul.addr %s315, 2
        %s317 = smul.addr %s316, 8
        %s318 = scalar_lea.vmem %s4, %s317
        %s319 = smul.u32 %s20, 2
        %s320 = sadd.s32 %s319, %s21
        %v322 = vld [vmem:[%s265] sm:$0xf]
        %v323 = vld [vmem:[%s265 + $0x4] sm:$0xf]
        %v324 = vld [vmem:[%s1] sm:$0xff]
        %v325 = vld [vmem:[%s1 + $0x8] sm:$0xff]
        %v326 = vld [vmem:[%s1 + $0x10] sm:$0xff]
        %v327 = vld [vmem:[%s1 + $0x18] sm:$0xff]
        %v328 = vld [vmem:[%s1 + $0x20] sm:$0xff]
        %v329 = vld [vmem:[%s1 + $0x28] sm:$0xff]
        %v330 = vld [vmem:[%s1 + $0x30] sm:$0xff]
        %v331 = vld [vmem:[%s1 + $0x38] sm:$0xff]
        %v332 = vld [vmem:[%s1 + $0x40] sm:$0xff]
        %v333 = vld [vmem:[%s1 + $0x48] sm:$0xff]
        %v334 = vld [vmem:[%s1 + $0x50] sm:$0xff]
        %v335 = vld [vmem:[%s1 + $0x58] sm:$0xff]
        %v336 = vld [vmem:[%s1 + $0x60] sm:$0xff]
        %v337 = vld [vmem:[%s1 + $0x68] sm:$0xff]
        %v338 = vld [vmem:[%s1 + $0x70] sm:$0xff]
        %v339 = vld [vmem:[%s1 + $0x78] sm:$0xff]
        %s340 = scalar_lea.vmem %s265, 8 [#allocation2]
        %v341 = vld [vmem:[%s340] sm:$0xf]
        %v342 = vld [vmem:[%s340 + $0x4] sm:$0xf]
        %s343 = scalar_lea.vmem %s1, 128
        %v344 = vld [vmem:[%s343] sm:$0xff]
        %v345 = vld [vmem:[%s343 + $0x8] sm:$0xff]
        %v346 = vld [vmem:[%s343 + $0x10] sm:$0xff]
        %v347 = vld [vmem:[%s343 + $0x18] sm:$0xff]
        %v348 = vld [vmem:[%s343 + $0x20] sm:$0xff]
        %v349 = vld [vmem:[%s343 + $0x28] sm:$0xff]
        %v350 = vld [vmem:[%s343 + $0x30] sm:$0xff]
        %v351 = vld [vmem:[%s343 + $0x38] sm:$0xff]
        %v352 = vld [vmem:[%s343 + $0x40] sm:$0xff]
        %v353 = vld [vmem:[%s343 + $0x48] sm:$0xff]
        %v354 = vld [vmem:[%s343 + $0x50] sm:$0xff]
        %v355 = vld [vmem:[%s343 + $0x58] sm:$0xff]
        %v356 = vld [vmem:[%s343 + $0x60] sm:$0xff]
        %v357 = vld [vmem:[%s343 + $0x68] sm:$0xff]
        %v358 = vld [vmem:[%s343 + $0x70] sm:$0xff]
        %v359 = vld [vmem:[%s343 + $0x78] sm:$0xff]
        %v362 = vunpack.c.l.b16 %v341
        %v363 = vunpack.c.l.b16 %v342
        %v364 = vpack.c.b16 %v363, %v362
        %v382 = vunpack.c.l.b16 %v344
        %v383 = vunpack.c.h.b16 %v344
        %v384 = vunpack.c.l.b16 %v345
        %v385 = vunpack.c.h.b16 %v345
        %v386 = vunpack.c.l.b16 %v346
        %v387 = vunpack.c.h.b16 %v346
        %v388 = vunpack.c.l.b16 %v347
        %v389 = vunpack.c.h.b16 %v347
        %v390 = vunpack.c.l.b16 %v348
        %v391 = vunpack.c.h.b16 %v348
        %v392 = vunpack.c.l.b16 %v349
        %v393 = vunpack.c.h.b16 %v349
        %v394 = vunpack.c.l.b16 %v350
        %v395 = vunpack.c.h.b16 %v350
        %v396 = vunpack.c.l.b16 %v351
        %v397 = vunpack.c.h.b16 %v351
        %v398 = vunpack.c.l.b16 %v352
        %v399 = vunpack.c.h.b16 %v352
        %v400 = vunpack.c.l.b16 %v353
        %v401 = vunpack.c.h.b16 %v353
        %v402 = vunpack.c.l.b16 %v354
        %v403 = vunpack.c.h.b16 %v354
        %v404 = vunpack.c.l.b16 %v355
        %v405 = vunpack.c.h.b16 %v355
        %v406 = vunpack.c.l.b16 %v356
        %v407 = vunpack.c.h.b16 %v356
        %v408 = vunpack.c.l.b16 %v357
        %v409 = vunpack.c.h.b16 %v357
        %v410 = vunpack.c.l.b16 %v358
        %v411 = vunpack.c.h.b16 %v358
        %v412 = vunpack.c.l.b16 %v359
        %v413 = vunpack.c.h.b16 %v359
        %v414 = vpack.c.b16 %v384, %v382
        %v415 = vpack.c.b16 %v385, %v383
        %v416 = vpack.c.b16 %v388, %v386
        %v417 = vpack.c.b16 %v389, %v387
        %v418 = vpack.c.b16 %v392, %v390
        %v419 = vpack.c.b16 %v393, %v391
        %v420 = vpack.c.b16 %v396, %v394
        %v421 = vpack.c.b16 %v397, %v395
        %v422 = vpack.c.b16 %v400, %v398
        %v423 = vpack.c.b16 %v401, %v399
        %v424 = vpack.c.b16 %v404, %v402
        %v425 = vpack.c.b16 %v405, %v403
        %v426 = vpack.c.b16 %v408, %v406
        %v427 = vpack.c.b16 %v409, %v407
        %v428 = vpack.c.b16 %v412, %v410
        %v429 = vpack.c.b16 %v413, %v411
        %446 = vmatprep.subr.bf16.mxu0 %v415
        %447 = vmatpush1.bf16.msra.mxu0 %v414
        %448 = vmatprep.subr.bf16.mxu0 %v417
        %449 = vmatpush1.bf16.msra.mxu0 %v416
        %450 = vmatprep.subr.bf16.mxu0 %v419
        %451 = vmatpush1.bf16.msra.mxu0 %v418
        %452 = vmatprep.subr.bf16.mxu0 %v421
        %453 = vmatpush1.bf16.msra.mxu0 %v420
        %454 = vmatprep.subr.bf16.mxu0 %v423
        %455 = vmatpush1.bf16.msra.mxu0 %v422
        %456 = vmatprep.subr.bf16.mxu0 %v425
        %457 = vmatpush1.bf16.msra.mxu0 %v424
        %458 = vmatprep.subr.bf16.mxu0 %v427
        %459 = vmatpush1.bf16.msra.mxu0 %v426
        %460 = vmatprep.subr.bf16.mxu0 %v429
        %461 = vmatpush1.bf16.msra.mxu0 %v428
        %462 = vmatprep.subr.bf16.mxu0 0
        %463 = vmatpush1.bf16.msra.mxu0 0
        %464 = vmatprep.subr.bf16.mxu0 0
        %465 = vmatpush1.bf16.msra.mxu0 0
        %466 = vmatprep.subr.bf16.mxu0 0
        %467 = vmatpush1.bf16.msra.mxu0 0
        %468 = vmatprep.subr.bf16.mxu0 0
        %469 = vmatpush1.bf16.msra.mxu0 0
        %470 = vmatprep.subr.bf16.mxu0 0
        %471 = vmatpush1.bf16.msra.mxu0 0
        %472 = vmatprep.subr.bf16.mxu0 0
        %473 = vmatpush1.bf16.msra.mxu0 0
        %474 = vmatprep.subr.bf16.mxu0 0
        %475 = vmatpush1.bf16.msra.mxu0 0
        %476 = vmatprep.subr.bf16.mxu0 0
        %477 = vmatpush1.bf16.msra.mxu0 0
        %478 = vmatprep.mubr.bf16.mxu0 0
        %479 = vmatmul.mubr.bf16.gmra.mrb[0].mxu0 %v364
        %v480 = vpop.f32.mrb[0].mxu0
        %v481 = vadd.f32 0.0, %v480
        %v482 = vpop.f32.mrb[0].mxu0
        %v483 = vadd.f32 0.0, %v482
        %v484 = vpop.f32.mrb[0].mxu0
        %v485 = vadd.f32 0.0, %v484
        %v486 = vpop.f32.mrb[0].mxu0
        %v487 = vadd.f32 0.0, %v486
        %488 = vdwg.mxu0
        %v491 = vunpack.c.l.b16 %v322
        %v492 = vunpack.c.l.b16 %v323
        %v493 = vpack.c.b16 %v492, %v491
        %v511 = vunpack.c.l.b16 %v324
        %v512 = vunpack.c.h.b16 %v324
        %v513 = vunpack.c.l.b16 %v325
        %v514 = vunpack.c.h.b16 %v325
        %v515 = vunpack.c.l.b16 %v326
        %v516 = vunpack.c.h.b16 %v326
        %v517 = vunpack.c.l.b16 %v327
        %v518 = vunpack.c.h.b16 %v327
        %v519 = vunpack.c.l.b16 %v328
        %v520 = vunpack.c.h.b16 %v328
        %v521 = vunpack.c.l.b16 %v329
        %v522 = vunpack.c.h.b16 %v329
        %v523 = vunpack.c.l.b16 %v330
        %v524 = vunpack.c.h.b16 %v330
        %v525 = vunpack.c.l.b16 %v331
        %v526 = vunpack.c.h.b16 %v331
        %v527 = vunpack.c.l.b16 %v332
        %v528 = vunpack.c.h.b16 %v332
        %v529 = vunpack.c.l.b16 %v333
        %v530 = vunpack.c.h.b16 %v333
        %v531 = vunpack.c.l.b16 %v334
        %v532 = vunpack.c.h.b16 %v334
        %v533 = vunpack.c.l.b16 %v335
        %v534 = vunpack.c.h.b16 %v335
        %v535 = vunpack.c.l.b16 %v336
        %v536 = vunpack.c.h.b16 %v336
        %v537 = vunpack.c.l.b16 %v337
        %v538 = vunpack.c.h.b16 %v337
        %v539 = vunpack.c.l.b16 %v338
        %v540 = vunpack.c.h.b16 %v338
        %v541 = vunpack.c.l.b16 %v339
        %v542 = vunpack.c.h.b16 %v339
        %v543 = vpack.c.b16 %v513, %v511
        %v544 = vpack.c.b16 %v514, %v512
        %v545 = vpack.c.b16 %v517, %v515
        %v546 = vpack.c.b16 %v518, %v516
        %v547 = vpack.c.b16 %v521, %v519
        %v548 = vpack.c.b16 %v522, %v520
        %v549 = vpack.c.b16 %v525, %v523
        %v550 = vpack.c.b16 %v526, %v524
        %v551 = vpack.c.b16 %v529, %v527
        %v552 = vpack.c.b16 %v530, %v528
        %v553 = vpack.c.b16 %v533, %v531
        %v554 = vpack.c.b16 %v534, %v532
        %v555 = vpack.c.b16 %v537, %v535
        %v556 = vpack.c.b16 %v538, %v536
        %v557 = vpack.c.b16 %v541, %v539
        %v558 = vpack.c.b16 %v542, %v540
        %575 = vmatprep.subr.bf16.mxu0 %v544
        %576 = vmatpush1.bf16.msra.mxu0 %v543
        %577 = vmatprep.subr.bf16.mxu0 %v546
        %578 = vmatpush1.bf16.msra.mxu0 %v545
        %579 = vmatprep.subr.bf16.mxu0 %v548
        %580 = vmatpush1.bf16.msra.mxu0 %v547
        %581 = vmatprep.subr.bf16.mxu0 %v550
        %582 = vmatpush1.bf16.msra.mxu0 %v549
        %583 = vmatprep.subr.bf16.mxu0 %v552
        %584 = vmatpush1.bf16.msra.mxu0 %v551
        %585 = vmatprep.subr.bf16.mxu0 %v554
        %586 = vmatpush1.bf16.msra.mxu0 %v553
        %587 = vmatprep.subr.bf16.mxu0 %v556
        %588 = vmatpush1.bf16.msra.mxu0 %v555
        %589 = vmatprep.subr.bf16.mxu0 %v558
        %590 = vmatpush1.bf16.msra.mxu0 %v557
        %591 = vmatprep.subr.bf16.mxu0 0
        %592 = vmatpush1.bf16.msra.mxu0 0
        %593 = vmatprep.subr.bf16.mxu0 0
        %594 = vmatpush1.bf16.msra.mxu0 0
        %595 = vmatprep.subr.bf16.mxu0 0
        %596 = vmatpush1.bf16.msra.mxu0 0
        %597 = vmatprep.subr.bf16.mxu0 0
        %598 = vmatpush1.bf16.msra.mxu0 0
        %599 = vmatprep.subr.bf16.mxu0 0
        %600 = vmatpush1.bf16.msra.mxu0 0
        %601 = vmatprep.subr.bf16.mxu0 0
        %602 = vmatpush1.bf16.msra.mxu0 0
        %603 = vmatprep.subr.bf16.mxu0 0
        %604 = vmatpush1.bf16.msra.mxu0 0
        %605 = vmatprep.subr.bf16.mxu0 0
        %606 = vmatpush1.bf16.msra.mxu0 0
        %607 = vmatprep.mubr.bf16.mxu0 0
        %608 = vmatmul.mubr.bf16.gmra.mrb[0].mxu0 %v493
        %v609 = vpop.f32.mrb[0].mxu0
        %v610 = vadd.f32 %v481, %v609
        %v611 = vpop.f32.mrb[0].mxu0
        %v612 = vadd.f32 %v483, %v611
        %v613 = vpop.f32.mrb[0].mxu0
        %v614 = vadd.f32 %v485, %v613
        %v615 = vpop.f32.mrb[0].mxu0
        %v616 = vadd.f32 %v487, %v615
        %617 = vdwg.mxu0
        %s618 = scalar_lea.vmem %s265, 16 [#allocation2]
        %v619 = vld [vmem:[%s618] sm:$0xf]
        %v620 = vld [vmem:[%s618 + $0x4] sm:$0xf]
        %s621 = scalar_lea.vmem %s1, 256
        %v622 = vld [vmem:[%s621] sm:$0xff]
        %v623 = vld [vmem:[%s621 + $0x8] sm:$0xff]
        %v624 = vld [vmem:[%s621 + $0x10] sm:$0xff]
        %v625 = vld [vmem:[%s621 + $0x18] sm:$0xff]
        %v626 = vld [vmem:[%s621 + $0x20] sm:$0xff]
        %v627 = vld [vmem:[%s621 + $0x28] sm:$0xff]
        %v628 = vld [vmem:[%s621 + $0x30] sm:$0xff]
        %v629 = vld [vmem:[%s621 + $0x38] sm:$0xff]
        %v630 = vld [vmem:[%s621 + $0x40] sm:$0xff]
        %v631 = vld [vmem:[%s621 + $0x48] sm:$0xff]
        %v632 = vld [vmem:[%s621 + $0x50] sm:$0xff]
        %v633 = vld [vmem:[%s621 + $0x58] sm:$0xff]
        %v634 = vld [vmem:[%s621 + $0x60] sm:$0xff]
        %v635 = vld [vmem:[%s621 + $0x68] sm:$0xff]
        %v636 = vld [vmem:[%s621 + $0x70] sm:$0xff]
        %v637 = vld [vmem:[%s621 + $0x78] sm:$0xff]
        %v640 = vunpack.c.l.b16 %v619
        %v641 = vunpack.c.l.b16 %v620
        %v642 = vpack.c.b16 %v641, %v640
        %v660 = vunpack.c.l.b16 %v622
        %v661 = vunpack.c.h.b16 %v622
        %v662 = vunpack.c.l.b16 %v623
        %v663 = vunpack.c.h.b16 %v623
        %v664 = vunpack.c.l.b16 %v624
        %v665 = vunpack.c.h.b16 %v624
        %v666 = vunpack.c.l.b16 %v625
        %v667 = vunpack.c.h.b16 %v625
        %v668 = vunpack.c.l.b16 %v626
        %v669 = vunpack.c.h.b16 %v626
        %v670 = vunpack.c.l.b16 %v627
        %v671 = vunpack.c.h.b16 %v627
        %v672 = vunpack.c.l.b16 %v628
        %v673 = vunpack.c.h.b16 %v628
        %v674 = vunpack.c.l.b16 %v629
        %v675 = vunpack.c.h.b16 %v629
        %v676 = vunpack.c.l.b16 %v630
        %v677 = vunpack.c.h.b16 %v630
        %v678 = vunpack.c.l.b16 %v631
        %v679 = vunpack.c.h.b16 %v631
        %v680 = vunpack.c.l.b16 %v632
        %v681 = vunpack.c.h.b16 %v632
        %v682 = vunpack.c.l.b16 %v633
        %v683 = vunpack.c.h.b16 %v633
        %v684 = vunpack.c.l.b16 %v634
        %v685 = vunpack.c.h.b16 %v634
        %v686 = vunpack.c.l.b16 %v635
        %v687 = vunpack.c.h.b16 %v635
        %v688 = vunpack.c.l.b16 %v636
        %v689 = vunpack.c.h.b16 %v636
        %v690 = vunpack.c.l.b16 %v637
        %v691 = vunpack.c.h.b16 %v637
        %v692 = vpack.c.b16 %v662, %v660
        %v693 = vpack.c.b16 %v663, %v661
        %v694 = vpack.c.b16 %v666, %v664
        %v695 = vpack.c.b16 %v667, %v665
        %v696 = vpack.c.b16 %v670, %v668
        %v697 = vpack.c.b16 %v671, %v669
        %v698 = vpack.c.b16 %v674, %v672
        %v699 = vpack.c.b16 %v675, %v673
        %v700 = vpack.c.b16 %v678, %v676
        %v701 = vpack.c.b16 %v679, %v677
        %v702 = vpack.c.b16 %v682, %v680
        %v703 = vpack.c.b16 %v683, %v681
        %v704 = vpack.c.b16 %v686, %v684
        %v705 = vpack.c.b16 %v687, %v685
        %v706 = vpack.c.b16 %v690, %v688
        %v707 = vpack.c.b16 %v691, %v689
        %724 = vmatprep.subr.bf16.mxu0 %v693
        %725 = vmatpush1.bf16.msra.mxu0 %v692
        %726 = vmatprep.subr.bf16.mxu0 %v695
        %727 = vmatpush1.bf16.msra.mxu0 %v694
        %728 = vmatprep.subr.bf16.mxu0 %v697
        %729 = vmatpush1.bf16.msra.mxu0 %v696
        %730 = vmatprep.subr.bf16.mxu0 %v699
        %731 = vmatpush1.bf16.msra.mxu0 %v698
        %732 = vmatprep.subr.bf16.mxu0 %v701
        %733 = vmatpush1.bf16.msra.mxu0 %v700
        %734 = vmatprep.subr.bf16.mxu0 %v703
        %735 = vmatpush1.bf16.msra.mxu0 %v702
        %736 = vmatprep.subr.bf16.mxu0 %v705
        %737 = vmatpush1.bf16.msra.mxu0 %v704
        %738 = vmatprep.subr.bf16.mxu0 %v707
        %739 = vmatpush1.bf16.msra.mxu0 %v706
        %740 = vmatprep.subr.bf16.mxu0 0
        %741 = vmatpush1.bf16.msra.mxu0 0
        %742 = vmatprep.subr.bf16.mxu0 0
        %743 = vmatpush1.bf16.msra.mxu0 0
        %744 = vmatprep.subr.bf16.mxu0 0
        %745 = vmatpush1.bf16.msra.mxu0 0
        %746 = vmatprep.subr.bf16.mxu0 0
        %747 = vmatpush1.bf16.msra.mxu0 0
        %748 = vmatprep.subr.bf16.mxu0 0
        %749 = vmatpush1.bf16.msra.mxu0 0
        %750 = vmatprep.subr.bf16.mxu0 0
        %751 = vmatpush1.bf16.msra.mxu0 0
        %752 = vmatprep.subr.bf16.mxu0 0
        %753 = vmatpush1.bf16.msra.mxu0 0
        %754 = vmatprep.subr.bf16.mxu0 0
        %755 = vmatpush1.bf16.msra.mxu0 0
        %756 = vmatprep.mubr.bf16.mxu0 0
        %757 = vmatmul.mubr.bf16.gmra.mrb[0].mxu0 %v642
        %v758 = vpop.f32.mrb[0].mxu0
        %v759 = vadd.f32 0.0, %v758
        %v760 = vpop.f32.mrb[0].mxu0
        %v761 = vadd.f32 0.0, %v760
        %v762 = vpop.f32.mrb[0].mxu0
        %v763 = vadd.f32 0.0, %v762
        %v764 = vpop.f32.mrb[0].mxu0
        %v765 = vadd.f32 0.0, %v764
        %766 = vdwg.mxu0
        %v767 = vadd.f32 %v610, %v759
        %v768 = vadd.f32 %v612, %v761
        %v769 = vadd.f32 %v614, %v763
        %v770 = vadd.f32 %v616, %v765
        %s771 = scalar_lea.vmem %s265, 24 [#allocation2]
        %v772 = vld [vmem:[%s771] sm:$0xf]
        %v773 = vld [vmem:[%s771 + $0x4] sm:$0xf]
        %s774 = scalar_lea.vmem %s1, 384
        %v775 = vld [vmem:[%s774] sm:$0xff]
        %v776 = vld [vmem:[%s774 + $0x8] sm:$0xff]
        %v777 = vld [vmem:[%s774 + $0x10] sm:$0xff]
        %v778 = vld [vmem:[%s774 + $0x18] sm:$0xff]
        %v779 = vld [vmem:[%s774 + $0x20] sm:$0xff]
        %v780 = vld [vmem:[%s774 + $0x28] sm:$0xff]
        %v781 = vld [vmem:[%s774 + $0x30] sm:$0xff]
        %v782 = vld [vmem:[%s774 + $0x38] sm:$0xff]
        %v783 = vld [vmem:[%s774 + $0x40] sm:$0xff]
        %v784 = vld [vmem:[%s774 + $0x48] sm:$0xff]
        %v785 = vld [vmem:[%s774 + $0x50] sm:$0xff]
        %v786 = vld [vmem:[%s774 + $0x58] sm:$0xff]
        %v787 = vld [vmem:[%s774 + $0x60] sm:$0xff]
        %v788 = vld [vmem:[%s774 + $0x68] sm:$0xff]
        %v789 = vld [vmem:[%s774 + $0x70] sm:$0xff]
        %v790 = vld [vmem:[%s774 + $0x78] sm:$0xff]
        %v793 = vunpack.c.l.b16 %v772
        %v794 = vunpack.c.l.b16 %v773
        %v795 = vpack.c.b16 %v794, %v793
        %v813 = vunpack.c.l.b16 %v775
        %v814 = vunpack.c.h.b16 %v775
        %v815 = vunpack.c.l.b16 %v776
        %v816 = vunpack.c.h.b16 %v776
        %v817 = vunpack.c.l.b16 %v777
        %v818 = vunpack.c.h.b16 %v777
        %v819 = vunpack.c.l.b16 %v778
        %v820 = vunpack.c.h.b16 %v778
        %v821 = vunpack.c.l.b16 %v779
        %v822 = vunpack.c.h.b16 %v779
        %v823 = vunpack.c.l.b16 %v780
        %v824 = vunpack.c.h.b16 %v780
        %v825 = vunpack.c.l.b16 %v781
        %v826 = vunpack.c.h.b16 %v781
        %v827 = vunpack.c.l.b16 %v782
        %v828 = vunpack.c.h.b16 %v782
        %v829 = vunpack.c.l.b16 %v783
        %v830 = vunpack.c.h.b16 %v783
        %v831 = vunpack.c.l.b16 %v784
        %v832 = vunpack.c.h.b16 %v784
        %v833 = vunpack.c.l.b16 %v785
        %v834 = vunpack.c.h.b16 %v785
        %v835 = vunpack.c.l.b16 %v786
        %v836 = vunpack.c.h.b16 %v786
        %v837 = vunpack.c.l.b16 %v787
        %v838 = vunpack.c.h.b16 %v787
        %v839 = vunpack.c.l.b16 %v788
        %v840 = vunpack.c.h.b16 %v788
        %v841 = vunpack.c.l.b16 %v789
        %v842 = vunpack.c.h.b16 %v789
        %v843 = vunpack.c.l.b16 %v790
        %v844 = vunpack.c.h.b16 %v790
        %v845 = vpack.c.b16 %v815, %v813
        %v846 = vpack.c.b16 %v816, %v814
        %v847 = vpack.c.b16 %v819, %v817
        %v848 = vpack.c.b16 %v820, %v818
        %v849 = vpack.c.b16 %v823, %v821
        %v850 = vpack.c.b16 %v824, %v822
        %v851 = vpack.c.b16 %v827, %v825
        %v852 = vpack.c.b16 %v828, %v826
        %v853 = vpack.c.b16 %v831, %v829
        %v854 = vpack.c.b16 %v832, %v830
        %v855 = vpack.c.b16 %v835, %v833
        %v856 = vpack.c.b16 %v836, %v834
        %v857 = vpack.c.b16 %v839, %v837
        %v858 = vpack.c.b16 %v840, %v838
        %v859 = vpack.c.b16 %v843, %v841
        %v860 = vpack.c.b16 %v844, %v842
        %877 = vmatprep.subr.bf16.mxu0 %v846
        %878 = vmatpush1.bf16.msra.mxu0 %v845
        %879 = vmatprep.subr.bf16.mxu0 %v848
        %880 = vmatpush1.bf16.msra.mxu0 %v847
        %881 = vmatprep.subr.bf16.mxu0 %v850
        %882 = vmatpush1.bf16.msra.mxu0 %v849
        %883 = vmatprep.subr.bf16.mxu0 %v852
        %884 = vmatpush1.bf16.msra.mxu0 %v851
        %885 = vmatprep.subr.bf16.mxu0 %v854
        %886 = vmatpush1.bf16.msra.mxu0 %v853
        %887 = vmatprep.subr.bf16.mxu0 %v856
        %888 = vmatpush1.bf16.msra.mxu0 %v855
        %889 = vmatprep.subr.bf16.mxu0 %v858
        %890 = vmatpush1.bf16.msra.mxu0 %v857
        %891 = vmatprep.subr.bf16.mxu0 %v860
        %892 = vmatpush1.bf16.msra.mxu0 %v859
        %893 = vmatprep.subr.bf16.mxu0 0
        %894 = vmatpush1.bf16.msra.mxu0 0
        %895 = vmatprep.subr.bf16.mxu0 0
        %896 = vmatpush1.bf16.msra.mxu0 0
        %897 = vmatprep.subr.bf16.mxu0 0
        %898 = vmatpush1.bf16.msra.mxu0 0
        %899 = vmatprep.subr.bf16.mxu0 0
        %900 = vmatpush1.bf16.msra.mxu0 0
        %901 = vmatprep.subr.bf16.mxu0 0
        %902 = vmatpush1.bf16.msra.mxu0 0
        %903 = vmatprep.subr.bf16.mxu0 0
        %904 = vmatpush1.bf16.msra.mxu0 0
        %905 = vmatprep.subr.bf16.mxu0 0
        %906 = vmatpush1.bf16.msra.mxu0 0
        %907 = vmatprep.subr.bf16.mxu0 0
        %908 = vmatpush1.bf16.msra.mxu0 0
        %909 = vmatprep.mubr.bf16.mxu0 0
        %910 = vmatmul.mubr.bf16.gmra.mrb[0].mxu0 %v795
        %v911 = vpop.f32.mrb[0].mxu0
        %v912 = vadd.f32 0.0, %v911
        %v913 = vpop.f32.mrb[0].mxu0
        %v914 = vadd.f32 0.0, %v913
        %v915 = vpop.f32.mrb[0].mxu0
        %v916 = vadd.f32 0.0, %v915
        %v917 = vpop.f32.mrb[0].mxu0
        %v918 = vadd.f32 0.0, %v917
        %919 = vdwg.mxu0
        %v920 = vadd.f32 %v767, %v912
        %v921 = vadd.f32 %v768, %v914
        %v922 = vadd.f32 %v769, %v916
        %v923 = vadd.f32 %v770, %v918
        %v924 = vld [vmem:[%s2] sm:$0x3]
        %v926 = vlaneseq
        %v927 = vshrl.u32 %v926, 7
        %v928 = vsub.s32 0, %v927
        %v929 = vrot.slane %v924, %v928
        %v930 = vlaneseq
        %v931 = vshrl.u32 %v930, 7
        %v932 = vsub.s32 1, %v931
        %v933 = vrot.slane %v924, %v932
        %v936 = vadd.f32 %v920, %v929
        %v937 = vadd.f32 %v921, %v933
        %v938 = vadd.f32 %v922, %v929
        %v939 = vadd.f32 %v923, %v933
        %v940 = vmax.f32 %v936, 0.0
        %v941 = vmax.f32 %v937, 0.0
        %v942 = vmax.f32 %v938, 0.0
        %v943 = vmax.f32 %v939, 0.0
        %v944 = vpack.c.bf16 %v942, %v940
        %v945 = vpack.c.bf16 %v943, %v941
        %v948 = vunpack.c.l.b16 %v944
        %v949 = vunpack.c.l.b16 %v945
        %v950 = vunpack.c.h.b16 %v944
        %v951 = vunpack.c.h.b16 %v945
        %v952 = vpack.c.b16 %v949, %v948
        %v953 = vpack.c.b16 %v951, %v950
        %956 = vst [vmem:[%s310] sm:$0xff] %v952
        %957 = vst [vmem:[%s310 + $0x8] sm:$0xff] %v953
        %v958 = vadd.f32 %v940, %v942
        %v959 = vrot.slane %v958, 4
        %v960 = vadd.f32 %v958, %v959
        %v961 = vrot.slane %v960, 2
        %v962 = vadd.f32 %v960, %v961
        %v963 = vrot.slane %v962, 1
        %v964 = vadd.f32 %v962, %v963
        %v965 = vadd.f32 %v941, %v943
        %v966 = vrot.slane %v965, 4
        %v967 = vadd.f32 %v965, %v966
        %v968 = vrot.slane %v967, 2
        %v969 = vadd.f32 %v967, %v968
        %v970 = vrot.slane %v969, 1
        %v971 = vadd.f32 %v969, %v970
        %v974 = vcombine.low %v964, %v971
        %v976 = vunpack.c.l.s4 1966171168
        %v977 = vunpack.c.0.s8 %v976
        %v978 = vlaneseq
        %v979 = vshrl.u32 %v978, 7
        %v980 = vsub.s32 %v977, %v979
        %v981 = vrot.slane %v974, %v980
        %v983 = vunpack.c.l.s4 1966171168
        %v984 = vunpack.c.0.s8 %v983
        %v985 = vlaneseq
        %v986 = vshrl.u32 %v985, 7
        %v987 = vsub.s32 %v984, %v986
        %v988 = vrot.slane %v981, %v987
        %v990 = vlaneseq
        %vm991 = vcmp.ge.s32.totalorder %v990, 0
        %vm992 = vcmp.lt.s32.totalorder %v990, 256
        %vm993 = vmand %vm991, %vm992
        %994 = vst.msk [vmem:[%s318] ss:$8 sm:$0x3] %vm993, %v988
        %995 = vst.msk [vmem:[%s318] ss:$8 sm:$0x0] %vm993, %v988
        %v996 = vmul.f32 %v940, %v940
        %v997 = vmul.f32 %v941, %v941
        %v998 = vmul.f32 %v942, %v942
        %v999 = vmul.f32 %v943, %v943
        %v1000 = vadd.f32 %v996, %v998
        %v1001 = vrot.slane %v1000, 4
        %v1002 = vadd.f32 %v1000, %v1001
        %v1003 = vrot.slane %v1002, 2
        %v1004 = vadd.f32 %v1002, %v1003
        %v1005 = vrot.slane %v1004, 1
        %v1006 = vadd.f32 %v1004, %v1005
        %v1007 = vadd.f32 %v997, %v999
        %v1008 = vrot.slane %v1007, 4
        %v1009 = vadd.f32 %v1007, %v1008
        %v1010 = vrot.slane %v1009, 2
        %v1011 = vadd.f32 %v1009, %v1010
        %v1012 = vrot.slane %v1011, 1
        %v1013 = vadd.f32 %v1011, %v1012
        %v1016 = vcombine.low %v1006, %v1013
        %v1018 = vunpack.c.l.s4 1966171168
        %v1019 = vunpack.c.0.s8 %v1018
        %v1020 = vlaneseq
        %v1021 = vshrl.u32 %v1020, 7
        %v1022 = vsub.s32 %v1019, %v1021
        %v1023 = vrot.slane %v1016, %v1022
        %v1025 = vunpack.c.l.s4 1966171168
        %v1026 = vunpack.c.0.s8 %v1025
        %v1027 = vlaneseq
        %v1028 = vshrl.u32 %v1027, 7
        %v1029 = vsub.s32 %v1026, %v1028
        %v1030 = vrot.slane %v1023, %v1029
        %s1032 = scalar_lea.vmem %s318, 1
        %1033 = vst.msk [vmem:[%s1032] ss:$8 sm:$0x3] %vm993, %v1030
        %1034 = vst.msk [vmem:[%s1032] ss:$8 sm:$0x0] %vm993, %v1030
        %s1035 = smul.u32 2, %s21
        %p1036 = scmp.lt.s32.totalorder %s20, 3
        %s1037 = scalar_select %p1036, %s20, 3
        %p1038 = scmp.lt.s32.totalorder %s1035, 3
        %s1039 = scalar_select %p1038, %s1035, 3
        %s1040 = smul.addr %s1039, 2
        %s1041 = smul.addr %s1037, 8
        %s1042 = sadd.s32 %s1040, %s1041
        %s1043 = smul.addr %s1042, 4
        %s1044 = scalar_lea.vmem %s3, %s1043
        %s1045 = smul.u32 %s20, 2
        %s1046 = sadd.s32 %s1045, %s21
        %p1047 = scmp.lt.s32.totalorder %s1046, 7
        %s1048 = scalar_select %p1047, %s1046, 7
        %s1049 = smul.addr %s1048, 2
        %s1050 = smul.addr %s1049, 8
        %s1051 = scalar_lea.vmem %s4, %s1050
        // Predicated region
        $region74: #{discriminator_forward.5} parent=68 // pred_check
          %p1052 = pneg %p118
        $region75: #{discriminator_forward.5} parent=68 // pred_check_branch
          %1054 = sbr.rel (%p1052) target = $region77
        $region76: #{discriminator_forward.5} parent=68 // pred_region
          %s1055 = smul.u32 2, %s21
        $region77: #{discriminator_forward.5} parent=68 // pred_fallthru
          _
        // Predicated region
        $region78: #{discriminator_forward.5} parent=68 // pred_check
          %p1056 = pneg %p148
        $region79: #{discriminator_forward.5} parent=68 // pred_check_branch
          %1058 = sbr.rel (%p1056) target = $region81
        $region80: #{discriminator_forward.5} parent=68 // pred_region
          %s1059 = smul.u32 %s20, 2
          %s1060 = sadd.s32 %s1059, %s21
        $region81: #{discriminator_forward.5} parent=68 // pred_fallthru
          _
      $region69: #{discriminator_forward.5} parent=5 // pred_fallthru
        _
      %p1061 = scmp.le.s32.totalorder 2, %s11
      // Predicated region
      $region82: #{discriminator_forward.5} parent=5 // pred_check
        %p1062 = pneg %p1061
      $region83: #{discriminator_forward.5} parent=5 // pred_check_branch
        %1064 = sbr.rel (%p1062) target = $region85
      $region84: #{discriminator_forward.5} parent=5 // pred_region
        %s1065 = ssub.s32 %s11, 2
        // Predicated region
        $region86: #{discriminator_forward.5} parent=84 // pred_check
          %p1066 = pneg %p124
        $region87: #{discriminator_forward.5} parent=84 // pred_check_branch
          %1068 = sbr.rel (%p1066) target = $region89
        $region88: #{discriminator_forward.5} parent=84 // pred_region
          %s1069 = smul.u32 2, %s23
          %p1070 = scmp.lt.s32.totalorder %s22, 3
          %s1071 = scalar_select %p1070, %s22, 3
          %p1072 = scmp.lt.s32.totalorder %s1069, 3
          %s1073 = scalar_select %p1072, %s1069, 3
          %s1074 = smul.addr %s1073, 2
          %s1075 = smul.addr %s1071, 8
          %s1076 = sadd.s32 %s1074, %s1075
          %s1077 = smul.addr %s1076, 4
          %s1078 = scalar_lea.vmem %s3, %s1077
        $region89: #{discriminator_forward.5} parent=84 // pred_fallthru
          _
        // Predicated region
        $region90: #{discriminator_forward.5} parent=84 // pred_check
          %p1079 = pneg %p154
        $region91: #{discriminator_forward.5} parent=84 // pred_check_branch
          %1081 = sbr.rel (%p1079) target = $region93
        $region92: #{discriminator_forward.5} parent=84 // pred_region
          %s1082 = smul.u32 %s22, 2
          %s1083 = sadd.s32 %s1082, %s23
          %p1084 = scmp.lt.s32.totalorder %s1083, 7
          %s1085 = scalar_select %p1084, %s1083, 7
          %s1086 = smul.addr %s1085, 2
          %s1087 = smul.addr %s1086, 8
          %s1088 = scalar_lea.vmem %s4, %s1087
        $region93: #{discriminator_forward.5} parent=84 // pred_fallthru
          _
      $region85: #{discriminator_forward.5} parent=5 // pred_fallthru
        _
    $region6: #{discriminator_forward.5} parent=1 // loop_footer
      %s15 = sadd.s32 1, %s11
    $region7: #{discriminator_forward.5} parent=1 // loop_footer_branch
      %10 = sbr.rel target = $region3
    $region8: #{discriminator_forward.5} parent=1 // loop_exit
      _

// kernel: discriminator_forward.6
$region0: #{discriminator_forward.6}
  #allocation0 [shape = 'u32[]', space=smem, size = 0x4, offset = 0x4, fixed_abs, tag = 'smem constant byte address 0x4 - core index']
  #allocation1 [shape = 'u32[144,128]{1,0:T(1,128)}', space=vmem, size = 0x12000, scoped, tag = 'internal scratch']
  %s0 = inlined_call_operand.vmem [shape: bf16[4,32,256], index: 0, kind: input, shape index: {}]
  %s1 = inlined_call_operand.vmem [shape: bf16[4,256,512], index: 1, kind: input, shape index: {}]
  %s2 = inlined_call_operand.vmem [shape: f32[1,512], index: 2, kind: input, shape index: {}]
  %s3 = inlined_call_operand.vmem [shape: bf16[32,512], index: 3, kind: output, shape index: {0}]
  %s4 = inlined_call_operand.vmem [shape: f32[16,512], index: 4, kind: output, shape index: {1}]
  %5 = xla_tuple %s3, %s4
  %s6 = sld [smem:[#allocation0]]
  $region91: #{discriminator_forward.6} parent=0
    _
  %s8 = ssub.s32 1, %s6
  %s9 = scalar_select 0, %s8, %s6
  $region1: #{discriminator_forward.6} parent=0
    #allocation2 [shape = 'u8[65536]{0}', space=vmem, size = 0x10000, scoped, tag = 'input window, operand 0']
    loop: start=0, step=1, limit=4
    $region2: #{discriminator_forward.6} parent=1 // loop_pre_header
      _
    $region3: #{discriminator_forward.6} parent=1 // loop_header
      %s11 = sphi 0, %s15
      %p12 = scmp.ge.s32.totalorder %s11, 4
      %s21 = sphi 0, %s23
      %s24 = sphi 0, %s21
      %s25 = sphi 0, %s24
      %s41 = sphi 0, %s25
      %s45 = sphi 0, %s45
      %s47 = sphi 0, %s45
      %s48 = sphi 0, %s47
      %s62 = sphi 0, %s48
      %s66 = sphi 0, %s66
      %s68 = sphi 0, %s66
      %s69 = sphi 0, %s68
      %s83 = sphi 0, %s69
      %s89 = sphi 0, %s91
      %s92 = sphi 0, %s89
      %s93 = sphi 0, %s92
      %s109 = sphi 0, %s93
      %s115 = sphi 0, %s117
      %s118 = sphi 0, %s115
      %s119 = sphi 0, %s118
      %s135 = sphi 0, %s119
    $region4: #{discriminator_forward.6} parent=1 // loop_header_branch
      %14 = sbr.rel (%p12) target = $region8
    $region5: #{discriminator_forward.6} parent=1 // loop_body
      %s16 = ssub.s32 %s11, 1
      %s17 = ssub.s32 %s11, 2
      %s18 = sadd.s32 %s11, 1
      %s19 = ssub.s32 %s11, %s18
      %p20 = scmp.eq.s32.totalorder %s19, 0
      %s22 = sadd.s32 %s21, 1
      %s23 = scalar_select %p20, %s21, %s22
      %p26 = pneg %p20
      %p27 = scmp.eq.s32.totalorder %s11, 1
      %p28 = por %p26, %p27
      %p29 = scmp.ne.s32.totalorder %s21, %s24
      %p30 = scmp.eq.s32.totalorder %s11, 0
      %p31 = por %p29, %p30
      %p32 = scmp.ne.s32.totalorder %s21, %s24
      %p33 = scmp.eq.s32.totalorder %s16, 1
      %p34 = por %p32, %p33
      %p35 = scmp.ne.s32.totalorder %s24, %s25
      %p36 = scmp.eq.s32.totalorder %s16, 0
      %p37 = por %p35, %p36
      %p38 = scmp.ne.s32.totalorder %s24, %s25
      %p39 = scmp.eq.s32.totalorder %s17, 1
      %p40 = por %p38, %p39
      %p42 = scmp.ne.s32.totalorder %s25, %s41
      %p43 = scmp.eq.s32.totalorder %s17, 0
      %p44 = por %p42, %p43
      %s46 = sadd.s32 %s45, 1
      %p49 = scmp.eq.s32.totalorder %s11, 1
      %p50 = scmp.ne.s32.totalorder %s45, %s47
      %p51 = scmp.eq.s32.totalorder %s11, 0
      %p52 = por %p50, %p51
      %p53 = scmp.ne.s32.totalorder %s45, %s47
      %p54 = scmp.eq.s32.totalorder %s16, 1
      %p55 = por %p53, %p54
      %p56 = scmp.ne.s32.totalorder %s47, %s48
      %p57 = scmp.eq.s32.totalorder %s16, 0
      %p58 = por %p56, %p57
      %p59 = scmp.ne.s32.totalorder %s47, %s48
      %p60 = scmp.eq.s32.totalorder %s17, 1
      %p61 = por %p59, %p60
      %p63 = scmp.ne.s32.totalorder %s48, %s62
      %p64 = scmp.eq.s32.totalorder %s17, 0
      %p65 = por %p63, %p64
      %s67 = sadd.s32 %s66, 1
      %p70 = scmp.eq.s32.totalorder %s11, 1
      %p71 = scmp.ne.s32.totalorder %s66, %s68
      %p72 = scmp.eq.s32.totalorder %s11, 0
      %p73 = por %p71, %p72
      %p74 = scmp.ne.s32.totalorder %s66, %s68
      %p75 = scmp.eq.s32.totalorder %s16, 1
      %p76 = por %p74, %p75
      %p77 = scmp.ne.s32.totalorder %s68, %s69
      %p78 = scmp.eq.s32.totalorder %s16, 0
      %p79 = por %p77, %p78
      %p80 = scmp.ne.s32.totalorder %s68, %s69
      %p81 = scmp.eq.s32.totalorder %s17, 1
      %p82 = por %p80, %p81
      %p84 = scmp.ne.s32.totalorder %s69, %s83
      %p85 = scmp.eq.s32.totalorder %s17, 0
      %p86 = por %p84, %p85
      %s87 = ssub.s32 %s11, %s18
      %p88 = scmp.eq.s32.totalorder %s87, 0
      %s90 = sadd.s32 %s89, 1
      %s91 = scalar_select %p88, %s89, %s90
      %p94 = pneg %p88
      %p95 = scmp.eq.s32.totalorder %s11, 1
      %p96 = por %p94, %p95
      %p97 = scmp.ne.s32.totalorder %s89, %s92
      %p98 = scmp.eq.s32.totalorder %s11, 0
      %p99 = por %p97, %p98
      %p100 = scmp.ne.s32.totalorder %s89, %s92
      %p101 = scmp.eq.s32.totalorder %s16, 1
      %p102 = por %p100, %p101
      %p103 = scmp.ne.s32.totalorder %s92, %s93
      %p104 = scmp.eq.s32.totalorder %s16, 0
      %p105 = por %p103, %p104
      %p106 = scmp.ne.s32.totalorder %s92, %s93
      %p107 = scmp.eq.s32.totalorder %s17, 1
      %p108 = por %p106, %p107
      %p110 = scmp.ne.s32.totalorder %s93, %s109
      %p111 = scmp.eq.s32.totalorder %s17, 0
      %p112 = por %p110, %p111
      %s113 = ssub.s32 %s11, %s18
      %p114 = scmp.eq.s32.totalorder %s113, 0
      %s116 = sadd.s32 %s115, 1
      %s117 = scalar_select %p114, %s115, %s116
      %p120 = pneg %p114
      %p121 = scmp.eq.s32.totalorder %s11, 1
      %p122 = por %p120, %p121
      %p123 = scmp.ne.s32.totalorder %s115, %s118
      %p124 = scmp.eq.s32.totalorder %s11, 0
      %p125 = por %p123, %p124
      %p126 = scmp.ne.s32.totalorder %s115, %s118
      %p127 = scmp.eq.s32.totalorder %s16, 1
      %p128 = por %p126, %p127
      %p129 = scmp.ne.s32.totalorder %s118, %s119
      %p130 = scmp.eq.s32.totalorder %s16, 0
      %p131 = por %p129, %p130
      %p132 = scmp.ne.s32.totalorder %s118, %s119
      %p133 = scmp.eq.s32.totalorder %s17, 1
      %p134 = por %p132, %p133
      %p136 = scmp.ne.s32.totalorder %s119, %s135
      %p137 = scmp.eq.s32.totalorder %s17, 0
      %p138 = por %p136, %p137
      %p139 = scmp.le.s32.totalorder 1, %s11
      %p140 = scmp.lt.s32.totalorder %s11, 3
      %p141 = pnand %p139, %p140
      %p142 = pneg %p141
      // Predicated region
      $region9: #{discriminator_forward.6} parent=5 // pred_check
        _
      $region10: #{discriminator_forward.6} parent=5 // pred_check_branch
        %144 = sbr.rel (%p141) target = $region12
      $region11: #{discriminator_forward.6} parent=5 // pred_region
        %s145 = ssub.s32 %s11, 1
        // Predicated region
        $region13: #{discriminator_forward.6} parent=11 // pred_check
          %p146 = pneg %p58
        $region14: #{discriminator_forward.6} parent=11 // pred_check_branch
          %148 = sbr.rel (%p146) target = $region16
        $region15: #{discriminator_forward.6} parent=11 // pred_region
          _
        $region16: #{discriminator_forward.6} parent=11 // pred_fallthru
          _
        // Predicated region
        $region17: #{discriminator_forward.6} parent=11 // pred_check
          %p149 = pneg %p79
        $region18: #{discriminator_forward.6} parent=11 // pred_check_branch
          %151 = sbr.rel (%p149) target = $region20
        $region19: #{discriminator_forward.6} parent=11 // pred_region
          _
        $region20: #{discriminator_forward.6} parent=11 // pred_fallthru
          _
      $region12: #{discriminator_forward.6} parent=5 // pred_fallthru
        _
      %p152 = scmp.lt.s32.totalorder %s11, 2
      // Predicated region
      $region21: #{discriminator_forward.6} parent=5 // pred_check
        %p153 = pneg %p152
      $region22: #{discriminator_forward.6} parent=5 // pred_check_branch
        %155 = sbr.rel (%p153) target = $region24
      $region23: #{discriminator_forward.6} parent=5 // pred_region
        // Predicated region
        $region25: #{discriminator_forward.6} parent=23 // pred_check
          %p156 = pneg %p31
        $region26: #{discriminator_forward.6} parent=23 // pred_check_branch
          %158 = sbr.rel (%p156) target = $region28
        $region27: #{discriminator_forward.6} parent=23 // pred_region
          %s159 = sand.u32 %s21, 1
          %s160 = sand.u32 %s21, 1
          %s161 = smul.addr %s160, 64
          %s162 = scalar_lea.vmem [#allocation2], %s161
          %s163 = smul.u32 2, %s11
          %s164 = smul.addr %s163, 2
          %s165 = smul.addr %s164, 4
          %s166 = scalar_lea.vmem %s0, %s165
          // Predicated region
          $region29: #{discriminator_forward.6} parent=27 // pred_check
            _
          $region30: #{discriminator_forward.6} parent=27 // pred_check_branch
            %168 = sbr.rel (0) target = $region32
          $region31: #{discriminator_forward.6} parent=27 // pred_region
            // Predicated region
            $region33: #{discriminator_forward.6} parent=31 // pred_check
              _
            $region34: #{discriminator_forward.6} parent=31 // pred_check_branch
              %170 = sbr.rel (0) target = $region36
            $region35: #{discriminator_forward.6} parent=31 // pred_region
              // Predicated region
              $region48: #{discriminator_forward.6} parent=35 // pred_check
                _
              $region49: #{discriminator_forward.6} parent=35 // pred_check_branch
                %199 = sbr.rel (0) target = $region51
              $region50: #{discriminator_forward.6} parent=35 // pred_region
                loop: start=0, step=1, limit=1
                $region52: #{discriminator_forward.6} parent=50 // loop_pre_header
                  _
                $region53: #{discriminator_forward.6} parent=50 // loop_header
                  %s201 = sphi 0, %s205
                  %p202 = scmp.ge.s32.totalorder %s201, 1
                  %s206 = sphi %s166, %s166
                  %s207 = sphi %s162, %s162
                $region54: #{discriminator_forward.6} parent=50 // loop_header_branch
                  %204 = sbr.rel (%p202) target = $region58
                $region55: #{discriminator_forward.6} parent=50 // loop_body
                  %v208 = vld [vmem:[%s206] sm:$0xff]
                  %209 = vst [vmem:[%s207] sm:$0xff] %v208
                  %v210 = vld [vmem:[%s206 + $0x8] sm:$0xff]
                  %211 = vst [vmem:[%s207 + $0x8] sm:$0xff] %v210
                  %v212 = vld [vmem:[%s206 + $0x20] sm:$0xff]
                  %213 = vst [vmem:[%s207 + $0x10] sm:$0xff] %v212
                  %v214 = vld [vmem:[%s206 + $0x28] sm:$0xff]
                  %215 = vst [vmem:[%s207 + $0x18] sm:$0xff] %v214
                  %v216 = vld [vmem:[%s206 + $0x40] sm:$0xff]
                  %217 = vst [vmem:[%s207 + $0x20] sm:$0xff] %v216
                  %v218 = vld [vmem:[%s206 + $0x48] sm:$0xff]
                  %219 = vst [vmem:[%s207 + $0x28] sm:$0xff] %v218
                  %v220 = vld [vmem:[%s206 + $0x60] sm:$0xff]
                  %221 = vst [vmem:[%s207 + $0x30] sm:$0xff] %v220
                  %v222 = vld [vmem:[%s206 + $0x68] sm:$0xff]
                  %223 = vst [vmem:[%s207 + $0x38] sm:$0xff] %v222
                $region56: #{discriminator_forward.6} parent=50 // loop_footer
                  %s205 = sadd.s32 1, %s201
                $region57: #{discriminator_forward.6} parent=50 // loop_footer_branch
                  %200 = sbr.rel target = $region53
                $region58: #{discriminator_forward.6} parent=50 // loop_exit
                  _
              $region51: #{discriminator_forward.6} parent=35 // pred_fallthru
                _
              // Predicated region
              $region59: #{discriminator_forward.6} parent=35 // pred_check
                _
              $region60: #{discriminator_forward.6} parent=35 // pred_check_branch
                %225 = sbr.rel target = $region62
              $region61: #{discriminator_forward.6} parent=35 // pred_region
                _
              $region62: #{discriminator_forward.6} parent=35 // pred_fallthru
                _
            $region36: #{discriminator_forward.6} parent=31 // pred_fallthru
              _
            // Predicated region
            $region37: #{discriminator_forward.6} parent=31 // pred_check
              _
            $region38: #{discriminator_forward.6} parent=31 // pred_check_branch
              %172 = sbr.rel target = $region40
            $region39: #{discriminator_forward.6} parent=31 // pred_region
              loop: start=0, step=1, limit=1
              $region41: #{discriminator_forward.6} parent=39 // loop_pre_header
                _
              $region42: #{discriminator_forward.6} parent=39 // loop_header
                %s175 = sphi 0, %s179
                %p176 = scmp.ge.s32.totalorder %s175, 1
                %s180 = sphi %s166, %s166
                %s181 = sphi %s162, %s162
              $region43: #{discriminator_forward.6} parent=39 // loop_header_branch
                %178 = sbr.rel (%p176) target = $region47
              $region44: #{discriminator_forward.6} parent=39 // loop_body
                %v182 = vld [vmem:[%s180] sm:$0xff]
                %183 = vst [vmem:[%s181] sm:$0xff] %v182
                %v184 = vld [vmem:[%s180 + $0x8] sm:$0xff]
                %185 = vst [vmem:[%s181 + $0x8] sm:$0xff] %v184
                %v186 = vld [vmem:[%s180 + $0x20] sm:$0xff]
                %187 = vst [vmem:[%s181 + $0x10] sm:$0xff] %v186
                %v188 = vld [vmem:[%s180 + $0x28] sm:$0xff]
                %189 = vst [vmem:[%s181 + $0x18] sm:$0xff] %v188
                %v190 = vld [vmem:[%s180 + $0x40] sm:$0xff]
                %191 = vst [vmem:[%s181 + $0x20] sm:$0xff] %v190
                %v192 = vld [vmem:[%s180 + $0x48] sm:$0xff]
                %193 = vst [vmem:[%s181 + $0x28] sm:$0xff] %v192
                %v194 = vld [vmem:[%s180 + $0x60] sm:$0xff]
                %195 = vst [vmem:[%s181 + $0x30] sm:$0xff] %v194
                %v196 = vld [vmem:[%s180 + $0x68] sm:$0xff]
                %197 = vst [vmem:[%s181 + $0x38] sm:$0xff] %v196
              $region45: #{discriminator_forward.6} parent=39 // loop_footer
                %s179 = sadd.s32 1, %s175
              $region46: #{discriminator_forward.6} parent=39 // loop_footer_branch
                %174 = sbr.rel target = $region42
              $region47: #{discriminator_forward.6} parent=39 // loop_exit
                _
            $region40: #{discriminator_forward.6} parent=31 // pred_fallthru
              _
          $region32: #{discriminator_forward.6} parent=27 // pred_fallthru
            _
          %226 = vnop
        $region28: #{discriminator_forward.6} parent=23 // pred_fallthru
          _
      $region24: #{discriminator_forward.6} parent=5 // pred_fallthru
        _
      %p227 = scmp.le.s32.totalorder 1, %s11
      %p228 = scmp.lt.s32.totalorder %s11, 3
      %p229 = pnand %p227, %p228
      %p230 = pneg %p229
      // Predicated region
      $region63: #{discriminator_forward.6} parent=5 // pred_check
        _
      $region64: #{discriminator_forward.6} parent=5 // pred_check_branch
        %232 = sbr.rel (%p229) target = $region66
      $region65: #{discriminator_forward.6} parent=5 // pred_region
        %s233 = ssub.s32 %s11, 1
        %s234 = sand.u32 %s24, 1
        %s235 = sand.u32 %s24, 1
        %s236 = smul.addr %s235, 64
        %s237 = scalar_lea.vmem [#allocation2], %s236
        // Predicated region
        $region67: #{discriminator_forward.6} parent=65 // pred_check
          %p238 = pneg %p37
        $region68: #{discriminator_forward.6} parent=65 // pred_check_branch
          %240 = sbr.rel (%p238) target = $region70
        $region69: #{discriminator_forward.6} parent=65 // pred_region
          _
        $region70: #{discriminator_forward.6} parent=65 // pred_fallthru
          _
        %s241 = sand.u32 %s24, 1
        %s242 = sand.u32 %s24, 1
        %s243 = smul.addr %s242, 64
        %s244 = scalar_lea.vmem [#allocation2], %s243
        %p245 = pneg %p37
        %p246 = pneg %p34
        %p247 = pneg %p58
        %p248 = pneg %p55
        %p249 = pneg %p79
        %p250 = pneg %p76
        %p251 = pneg %p105
        %p252 = pneg %p102
        %s253 = smul.u32 2, %s16
        %p254 = scmp.lt.s32.totalorder %s253, 3
        %s255 = scalar_select %p254, %s253, 3
        %s256 = smul.addr %s255, 4
        %s257 = smul.addr %s256, 4
        %s258 = scalar_lea.vmem %s3, %s257
        %p259 = pneg %p131
        %p260 = pneg %p128
        %p261 = scmp.lt.s32.totalorder %s16, 1
        %s262 = scalar_select %p261, %s16, 1
        %s263 = smul.addr %s262, 4
        %s264 = smul.addr %s263, 8
        %s265 = scalar_lea.vmem %s4, %s264
        %s266 = smul.u32 2, %s16
        %s267 = smul.u32 2, %s16
        %p268 = scmp.lt.s32.totalorder %s267, 3
        %s269 = scalar_select %p268, %s267, 3
        %s270 = smul.addr %s269, 4
        %s271 = smul.addr %s270, 4
        %s272 = scalar_lea.vmem %s3, %s271
        %s273 = smul.u32 2, %s16
        %p274 = scmp.lt.s32.totalorder %s16, 1
        %s275 = scalar_select %p274, %s16, 1
        %s276 = smul.addr %s275, 4
        %s277 = smul.addr %s276, 8
        %s278 = scalar_lea.vmem %s4, %s277
        %v279 = vld [vmem:[%s237] sm:$0xff]
        %v280 = vld [vmem:[%s237 + $0x8] sm:$0xff]
        %v281 = vld [vmem:[%s1] sm:$0xff]
        %v282 = vld [vmem:[%s1 + $0x8] sm:$0xff]
        %v283 = vld [vmem:[%s1 + $0x10] sm:$0xff]
        %v284 = vld [vmem:[%s1 + $0x18] sm:$0xff]
        %v285 = vld [vmem:[%s1 + $0x20] sm:$0xff]
        %v286 = vld [vmem:[%s1 + $0x28] sm:$0xff]
        %v287 = vld [vmem:[%s1 + $0x30] sm:$0xff]
        %v288 = vld [vmem:[%s1 + $0x38] sm:$0xff]
        %v289 = vld [vmem:[%s1 + $0x40] sm:$0xff]
        %v290 = vld [vmem:[%s1 + $0x48] sm:$0xff]
        %v291 = vld [vmem:[%s1 + $0x50] sm:$0xff]
        %v292 = vld [vmem:[%s1 + $0x58] sm:$0xff]
        %v293 = vld [vmem:[%s1 + $0x60] sm:$0xff]
        %v294 = vld [vmem:[%s1 + $0x68] sm:$0xff]
        %v295 = vld [vmem:[%s1 + $0x70] sm:$0xff]
        %v296 = vld [vmem:[%s1 + $0x78] sm:$0xff]
        %v297 = vld [vmem:[%s1 + $0x80] sm:$0xff]
        %v298 = vld [vmem:[%s1 + $0x88] sm:$0xff]
        %v299 = vld [vmem:[%s1 + $0x90] sm:$0xff]
        %v300 = vld [vmem:[%s1 + $0x98] sm:$0xff]
        %v301 = vld [vmem:[%s1 + $0xa0] sm:$0xff]
        %v302 = vld [vmem:[%s1 + $0xa8] sm:$0xff]
        %v303 = vld [vmem:[%s1 + $0xb0] sm:$0xff]
        %v304 = vld [vmem:[%s1 + $0xb8] sm:$0xff]
        %v305 = vld [vmem:[%s1 + $0xc0] sm:$0xff]
        %v306 = vld [vmem:[%s1 + $0xc8] sm:$0xff]
        %v307 = vld [vmem:[%s1 + $0xd0] sm:$0xff]
        %v308 = vld [vmem:[%s1 + $0xd8] sm:$0xff]
        %v309 = vld [vmem:[%s1 + $0xe0] sm:$0xff]
        %v310 = vld [vmem:[%s1 + $0xe8] sm:$0xff]
        %v311 = vld [vmem:[%s1 + $0xf0] sm:$0xff]
        %v312 = vld [vmem:[%s1 + $0xf8] sm:$0xff]
        %v313 = vld [vmem:[%s1 + $0x100] sm:$0xff]
        %v314 = vld [vmem:[%s1 + $0x108] sm:$0xff]
        %v315 = vld [vmem:[%s1 + $0x110] sm:$0xff]
        %v316 = vld [vmem:[%s1 + $0x118] sm:$0xff]
        %v317 = vld [vmem:[%s1 + $0x120] sm:$0xff]
        %v318 = vld [vmem:[%s1 + $0x128] sm:$0xff]
        %v319 = vld [vmem:[%s1 + $0x130] sm:$0xff]
        %v320 = vld [vmem:[%s1 + $0x138] sm:$0xff]
        %v321 = vld [vmem:[%s1 + $0x140] sm:$0xff]
        %v322 = vld [vmem:[%s1 + $0x148] sm:$0xff]
        %v323 = vld [vmem:[%s1 + $0x150] sm:$0xff]
        %v324 = vld [vmem:[%s1 + $0x158] sm:$0xff]
        %v325 = vld [vmem:[%s1 + $0x160] sm:$0xff]
        %v326 = vld [vmem:[%s1 + $0x168] sm:$0xff]
        %v327 = vld [vmem:[%s1 + $0x170] sm:$0xff]
        %v328 = vld [vmem:[%s1 + $0x178] sm:$0xff]
        %v329 = vld [vmem:[%s1 + $0x180] sm:$0xff]
        %v330 = vld [vmem:[%s1 + $0x188] sm:$0xff]
        %v331 = vld [vmem:[%s1 + $0x190] sm:$0xff]
        %v332 = vld [vmem:[%s1 + $0x198] sm:$0xff]
        %v333 = vld [vmem:[%s1 + $0x1a0] sm:$0xff]
        %v334 = vld [vmem:[%s1 + $0x1a8] sm:$0xff]
        %v335 = vld [vmem:[%s1 + $0x1b0] sm:$0xff]
        %v336 = vld [vmem:[%s1 + $0x1b8] sm:$0xff]
        %v337 = vld [vmem:[%s1 + $0x1c0] sm:$0xff]
        %v338 = vld [vmem:[%s1 + $0x1c8] sm:$0xff]
        %v339 = vld [vmem:[%s1 + $0x1d0] sm:$0xff]
        %v340 = vld [vmem:[%s1 + $0x1d8] sm:$0xff]
        %v341 = vld [vmem:[%s1 + $0x1e0] sm:$0xff]
        %v342 = vld [vmem:[%s1 + $0x1e8] sm:$0xff]
        %v343 = vld [vmem:[%s1 + $0x1f0] sm:$0xff]
        %v344 = vld [vmem:[%s1 + $0x1f8] sm:$0xff]
        %s345 = scalar_lea.vmem %s237, 16 [#allocation2]
        %v346 = vld [vmem:[%s345] sm:$0xff]
        %v347 = vld [vmem:[%s345 + $0x8] sm:$0xff]
        %s348 = scalar_lea.vmem %s1, 512
        %v349 = vld [vmem:[%s348] sm:$0xff]
        %v350 = vld [vmem:[%s348 + $0x8] sm:$0xff]
        %v351 = vld [vmem:[%s348 + $0x10] sm:$0xff]
        %v352 = vld [vmem:[%s348 + $0x18] sm:$0xff]
        %v353 = vld [vmem:[%s348 + $0x20] sm:$0xff]
        %v354 = vld [vmem:[%s348 + $0x28] sm:$0xff]
        %v355 = vld [vmem:[%s348 + $0x30] sm:$0xff]
        %v356 = vld [vmem:[%s348 + $0x38] sm:$0xff]
        %v357 = vld [vmem:[%s348 + $0x40] sm:$0xff]
        %v358 = vld [vmem:[%s348 + $0x48] sm:$0xff]
        %v359 = vld [vmem:[%s348 + $0x50] sm:$0xff]
        %v360 = vld [vmem:[%s348 + $0x58] sm:$0xff]
        %v361 = vld [vmem:[%s348 + $0x60] sm:$0xff]
        %v362 = vld [vmem:[%s348 + $0x68] sm:$0xff]
        %v363 = vld [vmem:[%s348 + $0x70] sm:$0xff]
        %v364 = vld [vmem:[%s348 + $0x78] sm:$0xff]
        %v365 = vld [vmem:[%s348 + $0x80] sm:$0xff]
        %v366 = vld [vmem:[%s348 + $0x88] sm:$0xff]
        %v367 = vld [vmem:[%s348 + $0x90] sm:$0xff]
        %v368 = vld [vmem:[%s348 + $0x98] sm:$0xff]
        %v369 = vld [vmem:[%s348 + $0xa0] sm:$0xff]
        %v370 = vld [vmem:[%s348 + $0xa8] sm:$0xff]
        %v371 = vld [vmem:[%s348 + $0xb0] sm:$0xff]
        %v372 = vld [vmem:[%s348 + $0xb8] sm:$0xff]
        %v373 = vld [vmem:[%s348 + $0xc0] sm:$0xff]
        %v374 = vld [vmem:[%s348 + $0xc8] sm:$0xff]
        %v375 = vld [vmem:[%s348 + $0xd0] sm:$0xff]
        %v376 = vld [vmem:[%s348 + $0xd8] sm:$0xff]
        %v377 = vld [vmem:[%s348 + $0xe0] sm:$0xff]
        %v378 = vld [vmem:[%s348 + $0xe8] sm:$0xff]
        %v379 = vld [vmem:[%s348 + $0xf0] sm:$0xff]
        %v380 = vld [vmem:[%s348 + $0xf8] sm:$0xff]
        %v381 = vld [vmem:[%s348 + $0x100] sm:$0xff]
        %v382 = vld [vmem:[%s348 + $0x108] sm:$0xff]
        %v383 = vld [vmem:[%s348 + $0x110] sm:$0xff]
        %v384 = vld [vmem:[%s348 + $0x118] sm:$0xff]
        %v385 = vld [vmem:[%s348 + $0x120] sm:$0xff]
        %v386 = vld [vmem:[%s348 + $0x128] sm:$0xff]
        %v387 = vld [vmem:[%s348 + $0x130] sm:$0xff]
        %v388 = vld [vmem:[%s348 + $0x138] sm:$0xff]
        %v389 = vld [vmem:[%s348 + $0x140] sm:$0xff]
        %v390 = vld [vmem:[%s348 + $0x148] sm:$0xff]
        %v391 = vld [vmem:[%s348 + $0x150] sm:$0xff]
        %v392 = vld [vmem:[%s348 + $0x158] sm:$0xff]
        %v393 = vld [vmem:[%s348 + $0x160] sm:$0xff]
        %v394 = vld [vmem:[%s348 + $0x168] sm:$0xff]
        %v395 = vld [vmem:[%s348 + $0x170] sm:$0xff]
        %v396 = vld [vmem:[%s348 + $0x178] sm:$0xff]
        %v397 = vld [vmem:[%s348 + $0x180] sm:$0xff]
        %v398 = vld [vmem:[%s348 + $0x188] sm:$0xff]
        %v399 = vld [vmem:[%s348 + $0x190] sm:$0xff]
        %v400 = vld [vmem:[%s348 + $0x198] sm:$0xff]
        %v401 = vld [vmem:[%s348 + $0x1a0] sm:$0xff]
        %v402 = vld [vmem:[%s348 + $0x1a8] sm:$0xff]
        %v403 = vld [vmem:[%s348 + $0x1b0] sm:$0xff]
        %v404 = vld [vmem:[%s348 + $0x1b8] sm:$0xff]
        %v405 = vld [vmem:[%s348 + $0x1c0] sm:$0xff]
        %v406 = vld [vmem:[%s348 + $0x1c8] sm:$0xff]
        %v407 = vld [vmem:[%s348 + $0x1d0] sm:$0xff]
        %v408 = vld [vmem:[%s348 + $0x1d8] sm:$0xff]
        %v409 = vld [vmem:[%s348 + $0x1e0] sm:$0xff]
        %v410 = vld [vmem:[%s348 + $0x1e8] sm:$0xff]
        %v411 = vld [vmem:[%s348 + $0x1f0] sm:$0xff]
        %v412 = vld [vmem:[%s348 + $0x1f8] sm:$0xff]
        %v415 = vunpack.c.l.b16 %v346
        %v416 = vunpack.c.h.b16 %v346
        %v417 = vunpack.c.l.b16 %v347
        %v418 = vunpack.c.h.b16 %v347
        %v419 = vpack.c.b16 %v417, %v415
        %v420 = vpack.c.b16 %v418, %v416
        %v487 = vunpack.c.l.b16 %v349
        %v488 = vunpack.c.h.b16 %v349
        %v489 = vunpack.c.l.b16 %v350
        %v490 = vunpack.c.h.b16 %v350
        %v491 = vunpack.c.l.b16 %v351
        %v492 = vunpack.c.h.b16 %v351
        %v493 = vunpack.c.l.b16 %v352
        %v494 = vunpack.c.h.b16 %v352
        %v495 = vunpack.c.l.b16 %v353
        %v496 = vunpack.c.h.b16 %v353
        %v497 = vunpack.c.l.b16 %v354
        %v498 = vunpack.c.h.b16 %v354
        %v499 = vunpack.c.l.b16 %v355
        %v500 = vunpack.c.h.b16 %v355
        %v501 = vunpack.c.l.b16 %v356
        %v502 = vunpack.c.h.b16 %v356
        %v503 = vunpack.c.l.b16 %v357
        %v504 = vunpack.c.h.b16 %v357
        %v505 = vunpack.c.l.b16 %v358
        %v506 = vunpack.c.h.b16 %v358
        %v507 = vunpack.c.l.b16 %v359
        %v508 = vunpack.c.h.b16 %v359
        %v509 = vunpack.c.l.b16 %v360
        %v510 = vunpack.c.h.b16 %v360
        %v511 = vunpack.c.l.b16 %v361
        %v512 = vunpack.c.h.b16 %v361
        %v513 = vunpack.c.l.b16 %v362
        %v514 = vunpack.c.h.b16 %v362
        %v515 = vunpack.c.l.b16 %v363
        %v516 = vunpack.c.h.b16 %v363
        %v517 = vunpack.c.l.b16 %v364
        %v518 = vunpack.c.h.b16 %v364
        %v519 = vunpack.c.l.b16 %v365
        %v520 = vunpack.c.h.b16 %v365
        %v521 = vunpack.c.l.b16 %v366
        %v522 = vunpack.c.h.b16 %v366
        %v523 = vunpack.c.l.b16 %v367
        %v524 = vunpack.c.h.b16 %v367
        %v525 = vunpack.c.l.b16 %v368
        %v526 = vunpack.c.h.b16 %v368
        %v527 = vunpack.c.l.b16 %v369
        %v528 = vunpack.c.h.b16 %v369
        %v529 = vunpack.c.l.b16 %v370
        %v530 = vunpack.c.h.b16 %v370
        %v531 = vunpack.c.l.b16 %v371
        %v532 = vunpack.c.h.b16 %v371
        %v533 = vunpack.c.l.b16 %v372
        %v534 = vunpack.c.h.b16 %v372
        %v535 = vunpack.c.l.b16 %v373
        %v536 = vunpack.c.h.b16 %v373
        %v537 = vunpack.c.l.b16 %v374
        %v538 = vunpack.c.h.b16 %v374
        %v539 = vunpack.c.l.b16 %v375
        %v540 = vunpack.c.h.b16 %v375
        %v541 = vunpack.c.l.b16 %v376
        %v542 = vunpack.c.h.b16 %v376
        %v543 = vunpack.c.l.b16 %v377
        %v544 = vunpack.c.h.b16 %v377
        %v545 = vunpack.c.l.b16 %v378
        %v546 = vunpack.c.h.b16 %v378
        %v547 = vunpack.c.l.b16 %v379
        %v548 = vunpack.c.h.b16 %v379
        %v549 = vunpack.c.l.b16 %v380
        %v550 = vunpack.c.h.b16 %v380
        %v551 = vunpack.c.l.b16 %v381
        %v552 = vunpack.c.h.b16 %v381
        %v553 = vunpack.c.l.b16 %v382
        %v554 = vunpack.c.h.b16 %v382
        %v555 = vunpack.c.l.b16 %v383
        %v556 = vunpack.c.h.b16 %v383
        %v557 = vunpack.c.l.b16 %v384
        %v558 = vunpack.c.h.b16 %v384
        %v559 = vunpack.c.l.b16 %v385
        %v560 = vunpack.c.h.b16 %v385
        %v561 = vunpack.c.l.b16 %v386
        %v562 = vunpack.c.h.b16 %v386
        %v563 = vunpack.c.l.b16 %v387
        %v564 = vunpack.c.h.b16 %v387
        %v565 = vunpack.c.l.b16 %v388
        %v566 = vunpack.c.h.b16 %v388
        %v567 = vunpack.c.l.b16 %v389
        %v568 = vunpack.c.h.b16 %v389
        %v569 = vunpack.c.l.b16 %v390
        %v570 = vunpack.c.h.b16 %v390
        %v571 = vunpack.c.l.b16 %v391
        %v572 = vunpack.c.h.b16 %v391
        %v573 = vunpack.c.l.b16 %v392
        %v574 = vunpack.c.h.b16 %v392
        %v575 = vunpack.c.l.b16 %v393
        %v576 = vunpack.c.h.b16 %v393
        %v577 = vunpack.c.l.b16 %v394
        %v578 = vunpack.c.h.b16 %v394
        %v579 = vunpack.c.l.b16 %v395
        %v580 = vunpack.c.h.b16 %v395
        %v581 = vunpack.c.l.b16 %v396
        %v582 = vunpack.c.h.b16 %v396
        %v583 = vunpack.c.l.b16 %v397
        %v584 = vunpack.c.h.b16 %v397
        %v585 = vunpack.c.l.b16 %v398
        %v586 = vunpack.c.h.b16 %v398
        %v587 = vunpack.c.l.b16 %v399
        %v588 = vunpack.c.h.b16 %v399
        %v589 = vunpack.c.l.b16 %v400
        %v590 = vunpack.c.h.b16 %v400
        %v591 = vunpack.c.l.b16 %v401
        %v592 = vunpack.c.h.b16 %v401
        %v593 = vunpack.c.l.b16 %v402
        %v594 = vunpack.c.h.b16 %v402
        %v595 = vunpack.c.l.b16 %v403
        %v596 = vunpack.c.h.b16 %v403
        %v597 = vunpack.c.l.b16 %v404
        %v598 = vunpack.c.h.b16 %v404
        %v599 = vunpack.c.l.b16 %v405
        %v600 = vunpack.c.h.b16 %v405
        %v601 = vunpack.c.l.b16 %v406
        %v602 = vunpack.c.h.b16 %v406
        %v603 = vunpack.c.l.b16 %v407
        %v604 = vunpack.c.h.b16 %v407
        %v605 = vunpack.c.l.b16 %v408
        %v606 = vunpack.c.h.b16 %v408
        %v607 = vunpack.c.l.b16 %v409
        %v608 = vunpack.c.h.b16 %v409
        %v609 = vunpack.c.l.b16 %v410
        %v610 = vunpack.c.h.b16 %v410
        %v611 = vunpack.c.l.b16 %v411
        %v612 = vunpack.c.h.b16 %v411
        %v613 = vunpack.c.l.b16 %v412
        %v614 = vunpack.c.h.b16 %v412
        %v615 = vpack.c.b16 %v491, %v487
        %v616 = vpack.c.b16 %v492, %v488
        %v617 = vpack.c.b16 %v493, %v489
        %v618 = vpack.c.b16 %v494, %v490
        %v619 = vpack.c.b16 %v499, %v495
        %v620 = vpack.c.b16 %v500, %v496
        %v621 = vpack.c.b16 %v501, %v497
        %v622 = vpack.c.b16 %v502, %v498
        %v623 = vpack.c.b16 %v507, %v503
        %v624 = vpack.c.b16 %v508, %v504
        %v625 = vpack.c.b16 %v509, %v505
        %v626 = vpack.c.b16 %v510, %v506
        %v627 = vpack.c.b16 %v515, %v511
        %v628 = vpack.c.b16 %v516, %v512
        %v629 = vpack.c.b16 %v517, %v513
        %v630 = vpack.c.b16 %v518, %v514
        %v631 = vpack.c.b16 %v523, %v519
        %v632 = vpack.c.b16 %v524, %v520
        %v633 = vpack.c.b16 %v525, %v521
        %v634 = vpack.c.b16 %v526, %v522
        %v635 = vpack.c.b16 %v531, %v527
        %v636 = vpack.c.b16 %v532, %v528
        %v637 = vpack.c.b16 %v533, %v529
        %v638 = vpack.c.b16 %v534, %v530
        %v639 = vpack.c.b16 %v539, %v535
        %v640 = vpack.c.b16 %v540, %v536
        %v641 = vpack.c.b16 %v541, %v537
        %v642 = vpack.c.b16 %v542, %v538
        %v643 = vpack.c.b16 %v547, %v543
        %v644 = vpack.c.b16 %v548, %v544
        %v645 = vpack.c.b16 %v549, %v545
        %v646 = vpack.c.b16 %v550, %v546
        %v647 = vpack.c.b16 %v555, %v551
        %v648 = vpack.c.b16 %v556, %v552
        %v649 = vpack.c.b16 %v557, %v553
        %v650 = vpack.c.b16 %v558, %v554
        %v651 = vpack.c.b16 %v563, %v559
        %v652 = vpack.c.b16 %v564, %v560
        %v653 = vpack.c.b16 %v565, %v561
        %v654 = vpack.c.b16 %v566, %v562
        %v655 = vpack.c.b16 %v571, %v567
        %v656 = vpack.c.b16 %v572, %v568
        %v657 = vpack.c.b16 %v573, %v569
        %v658 = vpack.c.b16 %v574, %v570
        %v659 = vpack.c.b16 %v579, %v575
        %v660 = vpack.c.b16 %v580, %v576
        %v661 = vpack.c.b16 %v581, %v577
        %v662 = vpack.c.b16 %v582, %v578
        %v663 = vpack.c.b16 %v587, %v583
        %v664 = vpack.c.b16 %v588, %v584
        %v665 = vpack.c.b16 %v589, %v585
        %v666 = vpack.c.b16 %v590, %v586
        %v667 = vpack.c.b16 %v595, %v591
        %v668 = vpack.c.b16 %v596, %v592
        %v669 = vpack.c.b16 %v597, %v593
        %v670 = vpack.c.b16 %v598, %v594
        %v671 = vpack.c.b16 %v603, %v599
        %v672 = vpack.c.b16 %v604, %v600
        %v673 = vpack.c.b16 %v605, %v601
        %v674 = vpack.c.b16 %v606, %v602
        %v675 = vpack.c.b16 %v611, %v607
        %v676 = vpack.c.b16 %v612, %v608
        %v677 = vpack.c.b16 %v613, %v609
        %v678 = vpack.c.b16 %v614, %v610
        %743 = vmatprep.subr.bf16.mxu0 %v616
        %744 = vmatpush1.bf16.msra.mxu0 %v615
        %745 = vmatprep.subr.bf16.mxu0 %v620
        %746 = vmatpush1.bf16.msra.mxu0 %v619
        %747 = vmatprep.subr.bf16.mxu0 %v624
        %748 = vmatpush1.bf16.msra.mxu0 %v623
        %749 = vmatprep.subr.bf16.mxu0 %v628
        %750 = vmatpush1.bf16.msra.mxu0 %v627
        %751 = vmatprep.subr.bf16.mxu0 %v632
        %752 = vmatpush1.bf16.msra.mxu0 %v631
        %753 = vmatprep.subr.bf16.mxu0 %v636
        %754 = vmatpush1.bf16.msra.mxu0 %v635
        %755 = vmatprep.subr.bf16.mxu0 %v640
        %756 = vmatpush1.bf16.msra.mxu0 %v639
        %757 = vmatprep.subr.bf16.mxu0 %v644
        %758 = vmatpush1.bf16.msra.mxu0 %v643
        %759 = vmatprep.subr.bf16.mxu0 %v648
        %760 = vmatpush1.bf16.msra.mxu0 %v647
        %761 = vmatprep.subr.bf16.mxu0 %v652
        %762 = vmatpush1.bf16.msra.mxu0 %v651
        %763 = vmatprep.subr.bf16.mxu0 %v656
        %764 = vmatpush1.bf16.msra.mxu0 %v655
        %765 = vmatprep.subr.bf16.mxu0 %v660
        %766 = vmatpush1.bf16.msra.mxu0 %v659
        %767 = vmatprep.subr.bf16.mxu0 %v664
        %768 = vmatpush1.bf16.msra.mxu0 %v663
        %769 = vmatprep.subr.bf16.mxu0 %v668
        %770 = vmatpush1.bf16.msra.mxu0 %v667
        %771 = vmatprep.subr.bf16.mxu0 %v672
        %772 = vmatpush1.bf16.msra.mxu0 %v671
        %773 = vmatprep.subr.bf16.mxu0 %v676
        %774 = vmatpush1.bf16.msra.mxu0 %v675
        %775 = vmatprep.mubr.bf16.mxu0 %v420
        %776 = vmatmul.mubr.bf16.gmra.mrb[0].mxu0 %v419
        %v777 = vpop.f32.mrb[0].mxu0
        %v778 = vadd.f32 0.0, %v777
        %v779 = vpop.f32.mrb[0].mxu0
        %v780 = vadd.f32 0.0, %v779
        %v781 = vpop.f32.mrb[0].mxu0
        %v782 = vadd.f32 0.0, %v781
        %v783 = vpop.f32.mrb[0].mxu0
        %v784 = vadd.f32 0.0, %v783
        %785 = vdwg.mxu0
        %786 = vmatprep.subr.bf16.mxu0 %v618
        %787 = vmatpush1.bf16.msra.mxu0 %v617
        %788 = vmatprep.subr.bf16.mxu0 %v622
        %789 = vmatpush1.bf16.msra.mxu0 %v621
        %790 = vmatprep.subr.bf16.mxu0 %v626
        %791 = vmatpush1.bf16.msra.mxu0 %v625
        %792 = vmatprep.subr.bf16.mxu0 %v630
        %793 = vmatpush1.bf16.msra.mxu0 %v629
        %794 = vmatprep.subr.bf16.mxu0 %v634
        %795 = vmatpush1.bf16.msra.mxu0 %v633
        %796 = vmatprep.subr.bf16.mxu0 %v638
        %797 = vmatpush1.bf16.msra.mxu0 %v637
        %798 = vmatprep.subr.bf16.mxu0 %v642
        %799 = vmatpush1.bf16.msra.mxu0 %v641
        %800 = vmatprep.subr.bf16.mxu0 %v646
        %801 = vmatpush1.bf16.msra.mxu0 %v645
        %802 = vmatprep.subr.bf16.mxu0 %v650
        %803 = vmatpush1.bf16.msra.mxu0 %v649
        %804 = vmatprep.subr.bf16.mxu0 %v654
        %805 = vmatpush1.bf16.msra.mxu0 %v653
        %806 = vmatprep.subr.bf16.mxu0 %v658
        %807 = vmatpush1.bf16.msra.mxu0 %v657
        %808 = vmatprep.subr.bf16.mxu0 %v662
        %809 = vmatpush1.bf16.msra.mxu0 %v661
        %810 = vmatprep.subr.bf16.mxu0 %v666
        %811 = vmatpush1.bf16.msra.mxu0 %v665
        %812 = vmatprep.subr.bf16.mxu0 %v670
        %813 = vmatpush1.bf16.msra.mxu0 %v669
        %814 = vmatprep.subr.bf16.mxu0 %v674
        %815 = vmatpush1.bf16.msra.mxu0 %v673
        %816 = vmatprep.subr.bf16.mxu0 %v678
        %817 = vmatpush1.bf16.msra.mxu0 %v677
        %818 = vmatprep.mubr.bf16.mxu0 %v420
        %819 = vmatmul.mubr.bf16.gmra.mrb[0].mxu0 %v419
        %v820 = vpop.f32.mrb[0].mxu0
        %v821 = vadd.f32 0.0, %v820
        %v822 = vpop.f32.mrb[0].mxu0
        %v823 = vadd.f32 0.0, %v822
        %v824 = vpop.f32.mrb[0].mxu0
        %v825 = vadd.f32 0.0, %v824
        %v826 = vpop.f32.mrb[0].mxu0
        %v827 = vadd.f32 0.0, %v826
        %828 = vdwg.mxu0
        %v831 = vunpack.c.l.b16 %v279
        %v832 = vunpack.c.h.b16 %v279
        %v833 = vunpack.c.l.b16 %v280
        %v834 = vunpack.c.h.b16 %v280
        %v835 = vpack.c.b16 %v833, %v831
        %v836 = vpack.c.b16 %v834, %v832
        %v903 = vunpack.c.l.b16 %v281
        %v904 = vunpack.c.h.b16 %v281
        %v905 = vunpack.c.l.b16 %v282
        %v906 = vunpack.c.h.b16 %v282
        %v907 = vunpack.c.l.b16 %v283
        %v908 = vunpack.c.h.b16 %v283
        %v909 = vunpack.c.l.b16 %v284
        %v910 = vunpack.c.h.b16 %v284
        %v911 = vunpack.c.l.b16 %v285
        %v912 = vunpack.c.h.b16 %v285
        %v913 = vunpack.c.l.b16 %v286
        %v914 = vunpack.c.h.b16 %v286
        %v915 = vunpack.c.l.b16 %v287
        %v916 = vunpack.c.h.b16 %v287
        %v917 = vunpack.c.l.b16 %v288
        %v918 = vunpack.c.h.b16 %v288
        %v919 = vunpack.c.l.b16 %v289
        %v920 = vunpack.c.h.b16 %v289
        %v921 = vunpack.c.l.b16 %v290
        %v922 = vunpack.c.h.b16 %v290
        %v923 = vunpack.c.l.b16 %v291
        %v924 = vunpack.c.h.b16 %v291
        %v925 = vunpack.c.l.b16 %v292
        %v926 = vunpack.c.h.b16 %v292
        %v927 = vunpack.c.l.b16 %v293
        %v928 = vunpack.c.h.b16 %v293
        %v929 = vunpack.c.l.b16 %v294
        %v930 = vunpack.c.h.b16 %v294
        %v931 = vunpack.c.l.b16 %v295
        %v932 = vunpack.c.h.b16 %v295
        %v933 = vunpack.c.l.b16 %v296
        %v934 = vunpack.c.h.b16 %v296
        %v935 = vunpack.c.l.b16 %v297
        %v936 = vunpack.c.h.b16 %v297
        %v937 = vunpack.c.l.b16 %v298
        %v938 = vunpack.c.h.b16 %v298
        %v939 = vunpack.c.l.b16 %v299
        %v940 = vunpack.c.h.b16 %v299
        %v941 = vunpack.c.l.b16 %v300
        %v942 = vunpack.c.h.b16 %v300
        %v943 = vunpack.c.l.b16 %v301
        %v944 = vunpack.c.h.b16 %v301
        %v945 = vunpack.c.l.b16 %v302
        %v946 = vunpack.c.h.b16 %v302
        %v947 = vunpack.c.l.b16 %v303
        %v948 = vunpack.c.h.b16 %v303
        %v949 = vunpack.c.l.b16 %v304
        %v950 = vunpack.c.h.b16 %v304
        %v951 = vunpack.c.l.b16 %v305
        %v952 = vunpack.c.h.b16 %v305
        %v953 = vunpack.c.l.b16 %v306
        %v954 = vunpack.c.h.b16 %v306
        %v955 = vunpack.c.l.b16 %v307
        %v956 = vunpack.c.h.b16 %v307
        %v957 = vunpack.c.l.b16 %v308
        %v958 = vunpack.c.h.b16 %v308
        %v959 = vunpack.c.l.b16 %v309
        %v960 = vunpack.c.h.b16 %v309
        %v961 = vunpack.c.l.b16 %v310
        %v962 = vunpack.c.h.b16 %v310
        %v963 = vunpack.c.l.b16 %v311
        %v964 = vunpack.c.h.b16 %v311
        %v965 = vunpack.c.l.b16 %v312
        %v966 = vunpack.c.h.b16 %v312
        %v967 = vunpack.c.l.b16 %v313
        %v968 = vunpack.c.h.b16 %v313
        %v969 = vunpack.c.l.b16 %v314
        %v970 = vunpack.c.h.b16 %v314
        %v971 = vunpack.c.l.b16 %v315
        %v972 = vunpack.c.h.b16 %v315
        %v973 = vunpack.c.l.b16 %v316
        %v974 = vunpack.c.h.b16 %v316
        %v975 = vunpack.c.l.b16 %v317
        %v976 = vunpack.c.h.b16 %v317
        %v977 = vunpack.c.l.b16 %v318
        %v978 = vunpack.c.h.b16 %v318
        %v979 = vunpack.c.l.b16 %v319
        %v980 = vunpack.c.h.b16 %v319
        %v981 = vunpack.c.l.b16 %v320
        %v982 = vunpack.c.h.b16 %v320
        %v983 = vunpack.c.l.b16 %v321
        %v984 = vunpack.c.h.b16 %v321
        %v985 = vunpack.c.l.b16 %v322
        %v986 = vunpack.c.h.b16 %v322
        %v987 = vunpack.c.l.b16 %v323
        %v988 = vunpack.c.h.b16 %v323
        %v989 = vunpack.c.l.b16 %v324
        %v990 = vunpack.c.h.b16 %v324
        %v991 = vunpack.c.l.b16 %v325
        %v992 = vunpack.c.h.b16 %v325
        %v993 = vunpack.c.l.b16 %v326
        %v994 = vunpack.c.h.b16 %v326
        %v995 = vunpack.c.l.b16 %v327
        %v996 = vunpack.c.h.b16 %v327
        %v997 = vunpack.c.l.b16 %v328
        %v998 = vunpack.c.h.b16 %v328
        %v999 = vunpack.c.l.b16 %v329
        %v1000 = vunpack.c.h.b16 %v329
        %v1001 = vunpack.c.l.b16 %v330
        %v1002 = vunpack.c.h.b16 %v330
        %v1003 = vunpack.c.l.b16 %v331
        %v1004 = vunpack.c.h.b16 %v331
        %v1005 = vunpack.c.l.b16 %v332
        %v1006 = vunpack.c.h.b16 %v332
        %v1007 = vunpack.c.l.b16 %v333
        %v1008 = vunpack.c.h.b16 %v333
        %v1009 = vunpack.c.l.b16 %v334
        %v1010 = vunpack.c.h.b16 %v334
        %v1011 = vunpack.c.l.b16 %v335
        %v1012 = vunpack.c.h.b16 %v335
        %v1013 = vunpack.c.l.b16 %v336
        %v1014 = vunpack.c.h.b16 %v336
        %v1015 = vunpack.c.l.b16 %v337
        %v1016 = vunpack.c.h.b16 %v337
        %v1017 = vunpack.c.l.b16 %v338
        %v1018 = vunpack.c.h.b16 %v338
        %v1019 = vunpack.c.l.b16 %v339
        %v1020 = vunpack.c.h.b16 %v339
        %v1021 = vunpack.c.l.b16 %v340
        %v1022 = vunpack.c.h.b16 %v340
        %v1023 = vunpack.c.l.b16 %v341
        %v1024 = vunpack.c.h.b16 %v341
        %v1025 = vunpack.c.l.b16 %v342
        %v1026 = vunpack.c.h.b16 %v342
        %v1027 = vunpack.c.l.b16 %v343
        %v1028 = vunpack.c.h.b16 %v343
        %v1029 = vunpack.c.l.b16 %v344
        %v1030 = vunpack.c.h.b16 %v344
        %v1031 = vpack.c.b16 %v907, %v903
        %v1032 = vpack.c.b16 %v908, %v904
        %v1033 = vpack.c.b16 %v909, %v905
        %v1034 = vpack.c.b16 %v910, %v906
        %v1035 = vpack.c.b16 %v915, %v911
        %v1036 = vpack.c.b16 %v916, %v912
        %v1037 = vpack.c.b16 %v917, %v913
        %v1038 = vpack.c.b16 %v918, %v914
        %v1039 = vpack.c.b16 %v923, %v919
        %v1040 = vpack.c.b16 %v924, %v920
        %v1041 = vpack.c.b16 %v925, %v921
        %v1042 = vpack.c.b16 %v926, %v922
        %v1043 = vpack.c.b16 %v931, %v927
        %v1044 = vpack.c.b16 %v932, %v928
        %v1045 = vpack.c.b16 %v933, %v929
        %v1046 = vpack.c.b16 %v934, %v930
        %v1047 = vpack.c.b16 %v939, %v935
        %v1048 = vpack.c.b16 %v940, %v936
        %v1049 = vpack.c.b16 %v941, %v937
        %v1050 = vpack.c.b16 %v942, %v938
        %v1051 = vpack.c.b16 %v947, %v943
        %v1052 = vpack.c.b16 %v948, %v944
        %v1053 = vpack.c.b16 %v949, %v945
        %v1054 = vpack.c.b16 %v950, %v946
        %v1055 = vpack.c.b16 %v955, %v951
        %v1056 = vpack.c.b16 %v956, %v952
        %v1057 = vpack.c.b16 %v957, %v953
        %v1058 = vpack.c.b16 %v958, %v954
        %v1059 = vpack.c.b16 %v963, %v959
        %v1060 = vpack.c.b16 %v964, %v960
        %v1061 = vpack.c.b16 %v965, %v961
        %v1062 = vpack.c.b16 %v966, %v962
        %v1063 = vpack.c.b16 %v971, %v967
        %v1064 = vpack.c.b16 %v972, %v968
        %v1065 = vpack.c.b16 %v973, %v969
        %v1066 = vpack.c.b16 %v974, %v970
        %v1067 = vpack.c.b16 %v979, %v975
        %v1068 = vpack.c.b16 %v980, %v976
        %v1069 = vpack.c.b16 %v981, %v977
        %v1070 = vpack.c.b16 %v982, %v978
        %v1071 = vpack.c.b16 %v987, %v983
        %v1072 = vpack.c.b16 %v988, %v984
        %v1073 = vpack.c.b16 %v989, %v985
        %v1074 = vpack.c.b16 %v990, %v986
        %v1075 = vpack.c.b16 %v995, %v991
        %v1076 = vpack.c.b16 %v996, %v992
        %v1077 = vpack.c.b16 %v997, %v993
        %v1078 = vpack.c.b16 %v998, %v994
        %v1079 = vpack.c.b16 %v1003, %v999
        %v1080 = vpack.c.b16 %v1004, %v1000
        %v1081 = vpack.c.b16 %v1005, %v1001
        %v1082 = vpack.c.b16 %v1006, %v1002
        %v1083 = vpack.c.b16 %v1011, %v1007
        %v1084 = vpack.c.b16 %v1012, %v1008
        %v1085 = vpack.c.b16 %v1013, %v1009
        %v1086 = vpack.c.b16 %v1014, %v1010
        %v1087 = vpack.c.b16 %v1019, %v1015
        %v1088 = vpack.c.b16 %v1020, %v1016
        %v1089 = vpack.c.b16 %v1021, %v1017
        %v1090 = vpack.c.b16 %v1022, %v1018
        %v1091 = vpack.c.b16 %v1027, %v1023
        %v1092 = vpack.c.b16 %v1028, %v1024
        %v1093 = vpack.c.b16 %v1029, %v1025
        %v1094 = vpack.c.b16 %v1030, %v1026
        %1159 = vmatprep.subr.bf16.mxu0 %v1032
        %1160 = vmatpush1.bf16.msra.mxu0 %v1031
        %1161 = vmatprep.subr.bf16.mxu0 %v1036
        %1162 = vmatpush1.bf16.msra.mxu0 %v1035
        %1163 = vmatprep.subr.bf16.mxu0 %v1040
        %1164 = vmatpush1.bf16.msra.mxu0 %v1039
        %1165 = vmatprep.subr.bf16.mxu0 %v1044
        %1166 = vmatpush1.bf16.msra.mxu0 %v1043
        %1167 = vmatprep.subr.bf16.mxu0 %v1048
        %1168 = vmatpush1.bf16.msra.mxu0 %v1047
        %1169 = vmatprep.subr.bf16.mxu0 %v1052
        %1170 = vmatpush1.bf16.msra.mxu0 %v1051
        %1171 = vmatprep.subr.bf16.mxu0 %v1056
        %1172 = vmatpush1.bf16.msra.mxu0 %v1055
        %1173 = vmatprep.subr.bf16.mxu0 %v1060
        %1174 = vmatpush1.bf16.msra.mxu0 %v1059
        %1175 = vmatprep.subr.bf16.mxu0 %v1064
        %1176 = vmatpush1.bf16.msra.mxu0 %v1063
        %1177 = vmatprep.subr.bf16.mxu0 %v1068
        %1178 = vmatpush1.bf16.msra.mxu0 %v1067
        %1179 = vmatprep.subr.bf16.mxu0 %v1072
        %1180 = vmatpush1.bf16.msra.mxu0 %v1071
        %1181 = vmatprep.subr.bf16.mxu0 %v1076
        %1182 = vmatpush1.bf16.msra.mxu0 %v1075
        %1183 = vmatprep.subr.bf16.mxu0 %v1080
        %1184 = vmatpush1.bf16.msra.mxu0 %v1079
        %1185 = vmatprep.subr.bf16.mxu0 %v1084
        %1186 = vmatpush1.bf16.msra.mxu0 %v1083
        %1187 = vmatprep.subr.bf16.mxu0 %v1088
        %1188 = vmatpush1.bf16.msra.mxu0 %v1087
        %1189 = vmatprep.subr.bf16.mxu0 %v1092
        %1190 = vmatpush1.bf16.msra.mxu0 %v1091
        %1191 = vmatprep.mubr.bf16.mxu0 %v836
        %1192 = vmatmul.mubr.bf16.gmra.mrb[0].mxu0 %v835
        %v1193 = vpop.f32.mrb[0].mxu0
        %v1194 = vadd.f32 %v778, %v1193
        %v1195 = vpop.f32.mrb[0].mxu0
        %v1196 = vadd.f32 %v780, %v1195
        %v1197 = vpop.f32.mrb[0].mxu0
        %v1198 = vadd.f32 %v782, %v1197
        %v1199 = vpop.f32.mrb[0].mxu0
        %v1200 = vadd.f32 %v784, %v1199
        %1201 = vdwg.mxu0
        %1202 = vmatprep.subr.bf16.mxu0 %v1034
        %1203 = vmatpush1.bf16.msra.mxu0 %v1033
        %1204 = vmatprep.subr.bf16.mxu0 %v1038
        %1205 = vmatpush1.bf16.msra.mxu0 %v1037
        %1206 = vmatprep.subr.bf16.mxu0 %v1042
        %1207 = vmatpush1.bf16.msra.mxu0 %v1041
        %1208 = vmatprep.subr.bf16.mxu0 %v1046
        %1209 = vmatpush1.bf16.msra.mxu0 %v1045
        %1210 = vmatprep.subr.bf16.mxu0 %v1050
        %1211 = vmatpush1.bf16.msra.mxu0 %v1049
        %1212 = vmatprep.subr.bf16.mxu0 %v1054
        %1213 = vmatpush1.bf16.msra.mxu0 %v1053
        %1214 = vmatprep.subr.bf16.mxu0 %v1058
        %1215 = vmatpush1.bf16.msra.mxu0 %v1057
        %1216 = vmatprep.subr.bf16.mxu0 %v1062
        %1217 = vmatpush1.bf16.msra.mxu0 %v1061
        %1218 = vmatprep.subr.bf16.mxu0 %v1066
        %1219 = vmatpush1.bf16.msra.mxu0 %v1065
        %1220 = vmatprep.subr.bf16.mxu0 %v1070
        %1221 = vmatpush1.bf16.msra.mxu0 %v1069
        %1222 = vmatprep.subr.bf16.mxu0 %v1074
        %1223 = vmatpush1.bf16.msra.mxu0 %v1073
        %1224 = vmatprep.subr.bf16.mxu0 %v1078
        %1225 = vmatpush1.bf16.msra.mxu0 %v1077
        %1226 = vmatprep.subr.bf16.mxu0 %v1082
        %1227 = vmatpush1.bf16.msra.mxu0 %v1081
        %1228 = vmatprep.subr.bf16.mxu0 %v1086
        %1229 = vmatpush1.bf16.msra.mxu0 %v1085
        %1230 = vmatprep.subr.bf16.mxu0 %v1090
        %1231 = vmatpush1.bf16.msra.mxu0 %v1089
        %1232 = vmatprep.subr.bf16.mxu0 %v1094
        %1233 = vmatpush1.bf16.msra.mxu0 %v1093
        %1234 = vmatprep.mubr.bf16.mxu0 %v836
        %1235 = vmatmul.mubr.bf16.gmra.mrb[0].mxu0 %v835
        %v1236 = vpop.f32.mrb[0].mxu0
        %v1237 = vadd.f32 %v821, %v1236
        %v1238 = vpop.f32.mrb[0].mxu0
        %v1239 = vadd.f32 %v823, %v1238
        %v1240 = vpop.f32.mrb[0].mxu0
        %v1241 = vadd.f32 %v825, %v1240
        %v1242 = vpop.f32.mrb[0].mxu0
        %v1243 = vadd.f32 %v827, %v1242
        %1244 = vdwg.mxu0
        %s1245 = scalar_lea.vmem %s237, 32 [#allocation2]
        %v1246 = vld [vmem:[%s1245] sm:$0xff]
        %v1247 = vld [vmem:[%s1245 + $0x8] sm:$0xff]
        %s1248 = scalar_lea.vmem %s1, 1024
        %v1249 = vld [vmem:[%s1248] sm:$0xff]
        %v1250 = vld [vmem:[%s1248 + $0x8] sm:$0xff]
        %v1251 = vld [vmem:[%s1248 + $0x10] sm:$0xff]
        %v1252 = vld [vmem:[%s1248 + $0x18] sm:$0xff]
        %v1253 = vld [vmem:[%s1248 + $0x20] sm:$0xff]
        %v1254 = vld [vmem:[%s1248 + $0x28] sm:$0xff]
        %v1255 = vld [vmem:[%s1248 + $0x30] sm:$0xff]
        %v1256 = vld [vmem:[%s1248 + $0x38] sm:$0xff]
        %v1257 = vld [vmem:[%s1248 + $0x40] sm:$0xff]
        %v1258 = vld [vmem:[%s1248 + $0x48] sm:$0xff]
        %v1259 = vld [vmem:[%s1248 + $0x50] sm:$0xff]
        %v1260 = vld [vmem:[%s1248 + $0x58] sm:$0xff]
        %v1261 = vld [vmem:[%s1248 + $0x60] sm:$0xff]
        %v1262 = vld [vmem:[%s1248 + $0x68] sm:$0xff]
        %v1263 = vld [vmem:[%s1248 + $0x70] sm:$0xff]
        %v1264 = vld [vmem:[%s1248 + $0x78] sm:$0xff]
        %v1265 = vld [vmem:[%s1248 + $0x80] sm:$0xff]
        %v1266 = vld [vmem:[%s1248 + $0x88] sm:$0xff]
        %v1267 = vld [vmem:[%s1248 + $0x90] sm:$0xff]
        %v1268 = vld [vmem:[%s1248 + $0x98] sm:$0xff]
        %v1269 = vld [vmem:[%s1248 + $0xa0] sm:$0xff]
        %v1270 = vld [vmem:[%s1248 + $0xa8] sm:$0xff]
        %v1271 = vld [vmem:[%s1248 + $0xb0] sm:$0xff]
        %v1272 = vld [vmem:[%s1248 + $0xb8] sm:$0xff]
        %v1273 = vld [vmem:[%s1248 + $0xc0] sm:$0xff]
        %v1274 = vld [vmem:[%s1248 + $0xc8] sm:$0xff]
        %v1275 = vld [vmem:[%s1248 + $0xd0] sm:$0xff]
        %v1276 = vld [vmem:[%s1248 + $0xd8] sm:$0xff]
        %v1277 = vld [vmem:[%s1248 + $0xe0] sm:$0xff]
        %v1278 = vld [vmem:[%s1248 + $0xe8] sm:$0xff]
        %v1279 = vld [vmem:[%s1248 + $0xf0] sm:$0xff]
        %v1280 = vld [vmem:[%s1248 + $0xf8] sm:$0xff]
        %v1281 = vld [vmem:[%s1248 + $0x100] sm:$0xff]
        %v1282 = vld [vmem:[%s1248 + $0x108] sm:$0xff]
        %v1283 = vld [vmem:[%s1248 + $0x110] sm:$0xff]
        %v1284 = vld [vmem:[%s1248 + $0x118] sm:$0xff]
        %v1285 = vld [vmem:[%s1248 + $0x120] sm:$0xff]
        %v1286 = vld [vmem:[%s1248 + $0x128] sm:$0xff]
        %v1287 = vld [vmem:[%s1248 + $0x130] sm:$0xff]
        %v1288 = vld [vmem:[%s1248 + $0x138] sm:$0xff]
        %v1289 = vld [vmem:[%s1248 + $0x140] sm:$0xff]
        %v1290 = vld [vmem:[%s1248 + $0x148] sm:$0xff]
        %v1291 = vld [vmem:[%s1248 + $0x150] sm:$0xff]
        %v1292 = vld [vmem:[%s1248 + $0x158] sm:$0xff]
        %v1293 = vld [vmem:[%s1248 + $0x160] sm:$0xff]
        %v1294 = vld [vmem:[%s1248 + $0x168] sm:$0xff]
        %v1295 = vld [vmem:[%s1248 + $0x170] sm:$0xff]
        %v1296 = vld [vmem:[%s1248 + $0x178] sm:$0xff]
        %v1297 = vld [vmem:[%s1248 + $0x180] sm:$0xff]
        %v1298 = vld [vmem:[%s1248 + $0x188] sm:$0xff]
        %v1299 = vld [vmem:[%s1248 + $0x190] sm:$0xff]
        %v1300 = vld [vmem:[%s1248 + $0x198] sm:$0xff]
        %v1301 = vld [vmem:[%s1248 + $0x1a0] sm:$0xff]
        %v1302 = vld [vmem:[%s1248 + $0x1a8] sm:$0xff]
        %v1303 = vld [vmem:[%s1248 + $0x1b0] sm:$0xff]
        %v1304 = vld [vmem:[%s1248 + $0x1b8] sm:$0xff]
        %v1305 = vld [vmem:[%s1248 + $0x1c0] sm:$0xff]
        %v1306 = vld [vmem:[%s1248 + $0x1c8] sm:$0xff]
        %v1307 = vld [vmem:[%s1248 + $0x1d0] sm:$0xff]
        %v1308 = vld [vmem:[%s1248 + $0x1d8] sm:$0xff]
        %v1309 = vld [vmem:[%s1248 + $0x1e0] sm:$0xff]
        %v1310 = vld [vmem:[%s1248 + $0x1e8] sm:$0xff]
        %v1311 = vld [vmem:[%s1248 + $0x1f0] sm:$0xff]
        %v1312 = vld [vmem:[%s1248 + $0x1f8] sm:$0xff]
        %v1315 = vunpack.c.l.b16 %v1246
        %v1316 = vunpack.c.h.b16 %v1246
        %v1317 = vunpack.c.l.b16 %v1247
        %v1318 = vunpack.c.h.b16 %v1247
        %v1319 = vpack.c.b16 %v1317, %v1315
        %v1320 = vpack.c.b16 %v1318, %v1316
        %v1387 = vunpack.c.l.b16 %v1249
        %v1388 = vunpack.c.h.b16 %v1249
        %v1389 = vunpack.c.l.b16 %v1250
        %v1390 = vunpack.c.h.b16 %v1250
        %v1391 = vunpack.c.l.b16 %v1251
        %v1392 = vunpack.c.h.b16 %v1251
        %v1393 = vunpack.c.l.b16 %v1252
        %v1394 = vunpack.c.h.b16 %v1252
        %v1395 = vunpack.c.l.b16 %v1253
        %v1396 = vunpack.c.h.b16 %v1253
        %v1397 = vunpack.c.l.b16 %v1254
        %v1398 = vunpack.c.h.b16 %v1254
        %v1399 = vunpack.c.l.b16 %v1255
        %v1400 = vunpack.c.h.b16 %v1255
        %v1401 = vunpack.c.l.b16 %v1256
        %v1402 = vunpack.c.h.b16 %v1256
        %v1403 = vunpack.c.l.b16 %v1257
        %v1404 = vunpack.c.h.b16 %v1257
        %v1405 = vunpack.c.l.b16 %v1258
        %v1406 = vunpack.c.h.b16 %v1258
        %v1407 = vunpack.c.l.b16 %v1259
        %v1408 = vunpack.c.h.b16 %v1259
        %v1409 = vunpack.c.l.b16 %v1260
        %v1410 = vunpack.c.h.b16 %v1260
        %v1411 = vunpack.c.l.b16 %v1261
        %v1412 = vunpack.c.h.b16 %v1261
        %v1413 = vunpack.c.l.b16 %v1262
        %v1414 = vunpack.c.h.b16 %v1262
        %v1415 = vunpack.c.l.b16 %v1263
        %v1416 = vunpack.c.h.b16 %v1263
        %v1417 = vunpack.c.l.b16 %v1264
        %v1418 = vunpack.c.h.b16 %v1264
        %v1419 = vunpack.c.l.b16 %v1265
        %v1420 = vunpack.c.h.b16 %v1265
        %v1421 = vunpack.c.l.b16 %v1266
        %v1422 = vunpack.c.h.b16 %v1266
        %v1423 = vunpack.c.l.b16 %v1267
        %v1424 = vunpack.c.h.b16 %v1267
        %v1425 = vunpack.c.l.b16 %v1268
        %v1426 = vunpack.c.h.b16 %v1268
        %v1427 = vunpack.c.l.b16 %v1269
        %v1428 = vunpack.c.h.b16 %v1269
        %v1429 = vunpack.c.l.b16 %v1270
        %v1430 = vunpack.c.h.b16 %v1270
        %v1431 = vunpack.c.l.b16 %v1271
        %v1432 = vunpack.c.h.b16 %v1271
        %v1433 = vunpack.c.l.b16 %v1272
        %v1434 = vunpack.c.h.b16 %v1272
        %v1435 = vunpack.c.l.b16 %v1273
        %v1436 = vunpack.c.h.b16 %v1273
        %v1437 = vunpack.c.l.b16 %v1274
        %v1438 = vunpack.c.h.b16 %v1274
        %v1439 = vunpack.c.l.b16 %v1275
        %v1440 = vunpack.c.h.b16 %v1275
        %v1441 = vunpack.c.l.b16 %v1276
        %v1442 = vunpack.c.h.b16 %v1276
        %v1443 = vunpack.c.l.b16 %v1277
        %v1444 = vunpack.c.h.b16 %v1277
        %v1445 = vunpack.c.l.b16 %v1278
        %v1446 = vunpack.c.h.b16 %v1278
        %v1447 = vunpack.c.l.b16 %v1279
        %v1448 = vunpack.c.h.b16 %v1279
        %v1449 = vunpack.c.l.b16 %v1280
        %v1450 = vunpack.c.h.b16 %v1280
        %v1451 = vunpack.c.l.b16 %v1281
        %v1452 = vunpack.c.h.b16 %v1281
        %v1453 = vunpack.c.l.b16 %v1282
        %v1454 = vunpack.c.h.b16 %v1282
        %v1455 = vunpack.c.l.b16 %v1283
        %v1456 = vunpack.c.h.b16 %v1283
        %v1457 = vunpack.c.l.b16 %v1284
        %v1458 = vunpack.c.h.b16 %v1284
        %v1459 = vunpack.c.l.b16 %v1285
        %v1460 = vunpack.c.h.b16 %v1285
        %v1461 = vunpack.c.l.b16 %v1286
        %v1462 = vunpack.c.h.b16 %v1286
        %v1463 = vunpack.c.l.b16 %v1287
        %v1464 = vunpack.c.h.b16 %v1287
        %v1465 = vunpack.c.l.b16 %v1288
        %v1466 = vunpack.c.h.b16 %v1288
        %v1467 = vunpack.c.l.b16 %v1289
        %v1468 = vunpack.c.h.b16 %v1289
        %v1469 = vunpack.c.l.b16 %v1290
        %v1470 = vunpack.c.h.b16 %v1290
        %v1471 = vunpack.c.l.b16 %v1291
        %v1472 = vunpack.c.h.b16 %v1291
        %v1473 = vunpack.c.l.b16 %v1292
        %v1474 = vunpack.c.h.b16 %v1292
        %v1475 = vunpack.c.l.b16 %v1293
        %v1476 = vunpack.c.h.b16 %v1293
        %v1477 = vunpack.c.l.b16 %v1294
        %v1478 = vunpack.c.h.b16 %v1294
        %v1479 = vunpack.c.l.b16 %v1295
        %v1480 = vunpack.c.h.b16 %v1295
        %v1481 = vunpack.c.l.b16 %v1296
        %v1482 = vunpack.c.h.b16 %v1296
        %v1483 = vunpack.c.l.b16 %v1297
        %v1484 = vunpack.c.h.b16 %v1297
        %v1485 = vunpack.c.l.b16 %v1298
        %v1486 = vunpack.c.h.b16 %v1298
        %v1487 = vunpack.c.l.b16 %v1299
        %v1488 = vunpack.c.h.b16 %v1299
        %v1489 = vunpack.c.l.b16 %v1300
        %v1490 = vunpack.c.h.b16 %v1300
        %v1491 = vunpack.c.l.b16 %v1301
        %v1492 = vunpack.c.h.b16 %v1301
        %v1493 = vunpack.c.l.b16 %v1302
        %v1494 = vunpack.c.h.b16 %v1302
        %v1495 = vunpack.c.l.b16 %v1303
        %v1496 = vunpack.c.h.b16 %v1303
        %v1497 = vunpack.c.l.b16 %v1304
        %v1498 = vunpack.c.h.b16 %v1304
        %v1499 = vunpack.c.l.b16 %v1305
        %v1500 = vunpack.c.h.b16 %v1305
        %v1501 = vunpack.c.l.b16 %v1306
        %v1502 = vunpack.c.h.b16 %v1306
        %v1503 = vunpack.c.l.b16 %v1307
        %v1504 = vunpack.c.h.b16 %v1307
        %v1505 = vunpack.c.l.b16 %v1308
        %v1506 = vunpack.c.h.b16 %v1308
        %v1507 = vunpack.c.l.b16 %v1309
        %v1508 = vunpack.c.h.b16 %v1309
        %v1509 = vunpack.c.l.b16 %v1310
        %v1510 = vunpack.c.h.b16 %v1310
        %v1511 = vunpack.c.l.b16 %v1311
        %v1512 = vunpack.c.h.b16 %v1311
        %v1513 = vunpack.c.l.b16 %v1312
        %v1514 = vunpack.c.h.b16 %v1312
        %v1515 = vpack.c.b16 %v1391, %v1387
        %v1516 = vpack.c.b16 %v1392, %v1388
        %v1517 = vpack.c.b16 %v1393, %v1389
        %v1518 = vpack.c.b16 %v1394, %v1390
        %v1519 = vpack.c.b16 %v1399, %v1395
        %v1520 = vpack.c.b16 %v1400, %v1396
        %v1521 = vpack.c.b16 %v1401, %v1397
        %v1522 = vpack.c.b16 %v1402, %v1398
        %v1523 = vpack.c.b16 %v1407, %v1403
        %v1524 = vpack.c.b16 %v1408, %v1404
        %v1525 = vpack.c.b16 %v1409, %v1405
        %v1526 = vpack.c.b16 %v1410, %v1406
        %v1527 = vpack.c.b16 %v1415, %v1411
        %v1528 = vpack.c.b16 %v1416, %v1412
        %v1529 = vpack.c.b16 %v1417, %v1413
        %v1530 = vpack.c.b16 %v1418, %v1414
        %v1531 = vpack.c.b16 %v1423, %v1419
        %v1532 = vpack.c.b16 %v1424, %v1420
        %v1533 = vpack.c.b16 %v1425, %v1421
        %v1534 = vpack.c.b16 %v1426, %v1422
        %v1535 = vpack.c.b16 %v1431, %v1427
        %v1536 = vpack.c.b16 %v1432, %v1428
        %v1537 = vpack.c.b16 %v1433, %v1429
        %v1538 = vpack.c.b16 %v1434, %v1430
        %v1539 = vpack.c.b16 %v1439, %v1435
        %v1540 = vpack.c.b16 %v1440, %v1436
        %v1541 = vpack.c.b16 %v1441, %v1437
        %v1542 = vpack.c.b16 %v1442, %v1438
        %v1543 = vpack.c.b16 %v1447, %v1443
        %v1544 = vpack.c.b16 %v1448, %v1444
        %v1545 = vpack.c.b16 %v1449, %v1445
        %v1546 = vpack.c.b16 %v1450, %v1446
        %v1547 = vpack.c.b16 %v1455, %v1451
        %v1548 = vpack.c.b16 %v1456, %v1452
        %v1549 = vpack.c.b16 %v1457, %v1453
        %v1550 = vpack.c.b16 %v1458, %v1454
        %v1551 = vpack.c.b16 %v1463, %v1459
        %v1552 = vpack.c.b16 %v1464, %v1460
        %v1553 = vpack.c.b16 %v1465, %v1461
        %v1554 = vpack.c.b16 %v1466, %v1462
        %v1555 = vpack.c.b16 %v1471, %v1467
        %v1556 = vpack.c.b16 %v1472, %v1468
        %v1557 = vpack.c.b16 %v1473, %v1469
        %v1558 = vpack.c.b16 %v1474, %v1470
        %v1559 = vpack.c.b16 %v1479, %v1475
        %v1560 = vpack.c.b16 %v1480, %v1476
        %v1561 = vpack.c.b16 %v1481, %v1477
        %v1562 = vpack.c.b16 %v1482, %v1478
        %v1563 = vpack.c.b16 %v1487, %v1483
        %v1564 = vpack.c.b16 %v1488, %v1484
        %v1565 = vpack.c.b16 %v1489, %v1485
        %v1566 = vpack.c.b16 %v1490, %v1486
        %v1567 = vpack.c.b16 %v1495, %v1491
        %v1568 = vpack.c.b16 %v1496, %v1492
        %v1569 = vpack.c.b16 %v1497, %v1493
        %v1570 = vpack.c.b16 %v1498, %v1494
        %v1571 = vpack.c.b16 %v1503, %v1499
        %v1572 = vpack.c.b16 %v1504, %v1500
        %v1573 = vpack.c.b16 %v1505, %v1501
        %v1574 = vpack.c.b16 %v1506, %v1502
        %v1575 = vpack.c.b16 %v1511, %v1507
        %v1576 = vpack.c.b16 %v1512, %v1508
        %v1577 = vpack.c.b16 %v1513, %v1509
        %v1578 = vpack.c.b16 %v1514, %v1510
        %1643 = vmatprep.subr.bf16.mxu0 %v1516
        %1644 = vmatpush1.bf16.msra.mxu0 %v1515
        %1645 = vmatprep.subr.bf16.mxu0 %v1520
        %1646 = vmatpush1.bf16.msra.mxu0 %v1519
        %1647 = vmatprep.subr.bf16.mxu0 %v1524
        %1648 = vmatpush1.bf16.msra.mxu0 %v1523
        %1649 = vmatprep.subr.bf16.mxu0 %v1528
        %1650 = vmatpush1.bf16.msra.mxu0 %v1527
        %1651 = vmatprep.subr.bf16.mxu0 %v1532
        %1652 = vmatpush1.bf16.msra.mxu0 %v1531
        %1653 = vmatprep.subr.bf16.mxu0 %v1536
        %1654 = vmatpush1.bf16.msra.mxu0 %v1535
        %1655 = vmatprep.subr.bf16.mxu0 %v1540
        %1656 = vmatpush1.bf16.msra.mxu0 %v1539
        %1657 = vmatprep.subr.bf16.mxu0 %v1544
        %1658 = vmatpush1.bf16.msra.mxu0 %v1543
        %1659 = vmatprep.subr.bf16.mxu0 %v1548
        %1660 = vmatpush1.bf16.msra.mxu0 %v1547
        %1661 = vmatprep.subr.bf16.mxu0 %v1552
        %1662 = vmatpush1.bf16.msra.mxu0 %v1551
        %1663 = vmatprep.subr.bf16.mxu0 %v1556
        %1664 = vmatpush1.bf16.msra.mxu0 %v1555
        %1665 = vmatprep.subr.bf16.mxu0 %v1560
        %1666 = vmatpush1.bf16.msra.mxu0 %v1559
        %1667 = vmatprep.subr.bf16.mxu0 %v1564
        %1668 = vmatpush1.bf16.msra.mxu0 %v1563
        %1669 = vmatprep.subr.bf16.mxu0 %v1568
        %1670 = vmatpush1.bf16.msra.mxu0 %v1567
        %1671 = vmatprep.subr.bf16.mxu0 %v1572
        %1672 = vmatpush1.bf16.msra.mxu0 %v1571
        %1673 = vmatprep.subr.bf16.mxu0 %v1576
        %1674 = vmatpush1.bf16.msra.mxu0 %v1575
        %1675 = vmatprep.mubr.bf16.mxu0 %v1320
        %1676 = vmatmul.mubr.bf16.gmra.mrb[0].mxu0 %v1319
        %v1677 = vpop.f32.mrb[0].mxu0
        %v1678 = vadd.f32 0.0, %v1677
        %v1679 = vpop.f32.mrb[0].mxu0
        %v1680 = vadd.f32 0.0, %v1679
        %v1681 = vpop.f32.mrb[0].mxu0
        %v1682 = vadd.f32 0.0, %v1681
        %v1683 = vpop.f32.mrb[0].mxu0
        %v1684 = vadd.f32 0.0, %v1683
        %1685 = vdwg.mxu0
        %1686 = vmatprep.subr.bf16.mxu0 %v1518
        %1687 = vmatpush1.bf16.msra.mxu0 %v1517
        %1688 = vmatprep.subr.bf16.mxu0 %v1522
        %1689 = vmatpush1.bf16.msra.mxu0 %v1521
        %1690 = vmatprep.subr.bf16.mxu0 %v1526
        %1691 = vmatpush1.bf16.msra.mxu0 %v1525
        %1692 = vmatprep.subr.bf16.mxu0 %v1530
        %1693 = vmatpush1.bf16.msra.mxu0 %v1529
        %1694 = vmatprep.subr.bf16.mxu0 %v1534
        %1695 = vmatpush1.bf16.msra.mxu0 %v1533
        %1696 = vmatprep.subr.bf16.mxu0 %v1538
        %1697 = vmatpush1.bf16.msra.mxu0 %v1537
        %1698 = vmatprep.subr.bf16.mxu0 %v1542
        %1699 = vmatpush1.bf16.msra.mxu0 %v1541
        %1700 = vmatprep.subr.bf16.mxu0 %v1546
        %1701 = vmatpush1.bf16.msra.mxu0 %v1545
        %1702 = vmatprep.subr.bf16.mxu0 %v1550
        %1703 = vmatpush1.bf16.msra.mxu0 %v1549
        %1704 = vmatprep.subr.bf16.mxu0 %v1554
        %1705 = vmatpush1.bf16.msra.mxu0 %v1553
        %1706 = vmatprep.subr.bf16.mxu0 %v1558
        %1707 = vmatpush1.bf16.msra.mxu0 %v1557
        %1708 = vmatprep.subr.bf16.mxu0 %v1562
        %1709 = vmatpush1.bf16.msra.mxu0 %v1561
        %1710 = vmatprep.subr.bf16.mxu0 %v1566
        %1711 = vmatpush1.bf16.msra.mxu0 %v1565
        %1712 = vmatprep.subr.bf16.mxu0 %v1570
        %1713 = vmatpush1.bf16.msra.mxu0 %v1569
        %1714 = vmatprep.subr.bf16.mxu0 %v1574
        %1715 = vmatpush1.bf16.msra.mxu0 %v1573
        %1716 = vmatprep.subr.bf16.mxu0 %v1578
        %1717 = vmatpush1.bf16.msra.mxu0 %v1577
        %1718 = vmatprep.mubr.bf16.mxu0 %v1320
        %1719 = vmatmul.mubr.bf16.gmra.mrb[0].mxu0 %v1319
        %v1720 = vpop.f32.mrb[0].mxu0
        %v1721 = vadd.f32 0.0, %v1720
        %v1722 = vpop.f32.mrb[0].mxu0
        %v1723 = vadd.f32 0.0, %v1722
        %v1724 = vpop.f32.mrb[0].mxu0
        %v1725 = vadd.f32 0.0, %v1724
        %v1726 = vpop.f32.mrb[0].mxu0
        %v1727 = vadd.f32 0.0, %v1726
        %1728 = vdwg.mxu0
        %v1729 = vadd.f32 %v1194, %v1678
        %v1730 = vadd.f32 %v1196, %v1680
        %v1731 = vadd.f32 %v1237, %v1721
        %v1732 = vadd.f32 %v1239, %v1723
        %v1733 = vadd.f32 %v1198, %v1682
        %v1734 = vadd.f32 %v1200, %v1684
        %v1735 = vadd.f32 %v1241, %v1725
        %v1736 = vadd.f32 %v1243, %v1727
        %s1737 = scalar_lea.vmem %s237, 48 [#allocation2]
        %v1738 = vld [vmem:[%s1737] sm:$0xff]
        %v1739 = vld [vmem:[%s1737 + $0x8] sm:$0xff]
        %s1740 = scalar_lea.vmem %s1, 1536
        %v1741 = vld [vmem:[%s1740] sm:$0xff]
        %v1742 = vld [vmem:[%s1740 + $0x8] sm:$0xff]
        %v1743 = vld [vmem:[%s1740 + $0x10] sm:$0xff]
        %v1744 = vld [vmem:[%s1740 + $0x18] sm:$0xff]
        %v1745 = vld [vmem:[%s1740 + $0x20] sm:$0xff]
        %v1746 = vld [vmem:[%s1740 + $0x28] sm:$0xff]
        %v1747 = vld [vmem:[%s1740 + $0x30] sm:$0xff]
        %v1748 = vld [vmem:[%s1740 + $0x38] sm:$0xff]
        %v1749 = vld [vmem:[%s1740 + $0x40] sm:$0xff]
        %v1750 = vld [vmem:[%s1740 + $0x48] sm:$0xff]
        %v1751 = vld [vmem:[%s1740 + $0x50] sm:$0xff]
        %v1752 = vld [vmem:[%s1740 + $0x58] sm:$0xff]
        %v1753 = vld [vmem:[%s1740 + $0x60] sm:$0xff]
        %v1754 = vld [vmem:[%s1740 + $0x68] sm:$0xff]
        %v1755 = vld [vmem:[%s1740 + $0x70] sm:$0xff]
        %v1756 = vld [vmem:[%s1740 + $0x78] sm:$0xff]
        %v1757 = vld [vmem:[%s1740 + $0x80] sm:$0xff]
        %v1758 = vld [vmem:[%s1740 + $0x88] sm:$0xff]
        %v1759 = vld [vmem:[%s1740 + $0x90] sm:$0xff]
        %v1760 = vld [vmem:[%s1740 + $0x98] sm:$0xff]
        %v1761 = vld [vmem:[%s1740 + $0xa0] sm:$0xff]
        %v1762 = vld [vmem:[%s1740 + $0xa8] sm:$0xff]
        %v1763 = vld [vmem:[%s1740 + $0xb0] sm:$0xff]
        %v1764 = vld [vmem:[%s1740 + $0xb8] sm:$0xff]
        %v1765 = vld [vmem:[%s1740 + $0xc0] sm:$0xff]
        %v1766 = vld [vmem:[%s1740 + $0xc8] sm:$0xff]
        %v1767 = vld [vmem:[%s1740 + $0xd0] sm:$0xff]
        %v1768 = vld [vmem:[%s1740 + $0xd8] sm:$0xff]
        %v1769 = vld [vmem:[%s1740 + $0xe0] sm:$0xff]
        %v1770 = vld [vmem:[%s1740 + $0xe8] sm:$0xff]
        %v1771 = vld [vmem:[%s1740 + $0xf0] sm:$0xff]
        %v1772 = vld [vmem:[%s1740 + $0xf8] sm:$0xff]
        %v1773 = vld [vmem:[%s1740 + $0x100] sm:$0xff]
        %v1774 = vld [vmem:[%s1740 + $0x108] sm:$0xff]
        %v1775 = vld [vmem:[%s1740 + $0x110] sm:$0xff]
        %v1776 = vld [vmem:[%s1740 + $0x118] sm:$0xff]
        %v1777 = vld [vmem:[%s1740 + $0x120] sm:$0xff]
        %v1778 = vld [vmem:[%s1740 + $0x128] sm:$0xff]
        %v1779 = vld [vmem:[%s1740 + $0x130] sm:$0xff]
        %v1780 = vld [vmem:[%s1740 + $0x138] sm:$0xff]
        %v1781 = vld [vmem:[%s1740 + $0x140] sm:$0xff]
        %v1782 = vld [vmem:[%s1740 + $0x148] sm:$0xff]
        %v1783 = vld [vmem:[%s1740 + $0x150] sm:$0xff]
        %v1784 = vld [vmem:[%s1740 + $0x158] sm:$0xff]
        %v1785 = vld [vmem:[%s1740 + $0x160] sm:$0xff]
        %v1786 = vld [vmem:[%s1740 + $0x168] sm:$0xff]
        %v1787 = vld [vmem:[%s1740 + $0x170] sm:$0xff]
        %v1788 = vld [vmem:[%s1740 + $0x178] sm:$0xff]
        %v1789 = vld [vmem:[%s1740 + $0x180] sm:$0xff]
        %v1790 = vld [vmem:[%s1740 + $0x188] sm:$0xff]
        %v1791 = vld [vmem:[%s1740 + $0x190] sm:$0xff]
        %v1792 = vld [vmem:[%s1740 + $0x198] sm:$0xff]
        %v1793 = vld [vmem:[%s1740 + $0x1a0] sm:$0xff]
        %v1794 = vld [vmem:[%s1740 + $0x1a8] sm:$0xff]
        %v1795 = vld [vmem:[%s1740 + $0x1b0] sm:$0xff]
        %v1796 = vld [vmem:[%s1740 + $0x1b8] sm:$0xff]
        %v1797 = vld [vmem:[%s1740 + $0x1c0] sm:$0xff]
        %v1798 = vld [vmem:[%s1740 + $0x1c8] sm:$0xff]
        %v1799 = vld [vmem:[%s1740 + $0x1d0] sm:$0xff]
        %v1800 = vld [vmem:[%s1740 + $0x1d8] sm:$0xff]
        %v1801 = vld [vmem:[%s1740 + $0x1e0] sm:$0xff]
        %v1802 = vld [vmem:[%s1740 + $0x1e8] sm:$0xff]
        %v1803 = vld [vmem:[%s1740 + $0x1f0] sm:$0xff]
        %v1804 = vld [vmem:[%s1740 + $0x1f8] sm:$0xff]
        %v1807 = vunpack.c.l.b16 %v1738
        %v1808 = vunpack.c.h.b16 %v1738
        %v1809 = vunpack.c.l.b16 %v1739
        %v1810 = vunpack.c.h.b16 %v1739
        %v1811 = vpack.c.b16 %v1809, %v1807
        %v1812 = vpack.c.b16 %v1810, %v1808
        %v1879 = vunpack.c.l.b16 %v1741
        %v1880 = vunpack.c.h.b16 %v1741
        %v1881 = vunpack.c.l.b16 %v1742
        %v1882 = vunpack.c.h.b16 %v1742
        %v1883 = vunpack.c.l.b16 %v1743
        %v1884 = vunpack.c.h.b16 %v1743
        %v1885 = vunpack.c.l.b16 %v1744
        %v1886 = vunpack.c.h.b16 %v1744
        %v1887 = vunpack.c.l.b16 %v1745
        %v1888 = vunpack.c.h.b16 %v1745
        %v1889 = vunpack.c.l.b16 %v1746
        %v1890 = vunpack.c.h.b16 %v1746
        %v1891 = vunpack.c.l.b16 %v1747
        %v1892 = vunpack.c.h.b16 %v1747
        %v1893 = vunpack.c.l.b16 %v1748
        %v1894 = vunpack.c.h.b16 %v1748
        %v1895 = vunpack.c.l.b16 %v1749
        %v1896 = vunpack.c.h.b16 %v1749
        %v1897 = vunpack.c.l.b16 %v1750
        %v1898 = vunpack.c.h.b16 %v1750
        %v1899 = vunpack.c.l.b16 %v1751
        %v1900 = vunpack.c.h.b16 %v1751
        %v1901 = vunpack.c.l.b16 %v1752
        %v1902 = vunpack.c.h.b16 %v1752
        %v1903 = vunpack.c.l.b16 %v1753
        %v1904 = vunpack.c.h.b16 %v1753
        %v1905 = vunpack.c.l.b16 %v1754
        %v1906 = vunpack.c.h.b16 %v1754
        %v1907 = vunpack.c.l.b16 %v1755
        %v1908 = vunpack.c.h.b16 %v1755
        %v1909 = vunpack.c.l.b16 %v1756
        %v1910 = vunpack.c.h.b16 %v1756
        %v1911 = vunpack.c.l.b16 %v1757
        %v1912 = vunpack.c.h.b16 %v1757
        %v1913 = vunpack.c.l.b16 %v1758
        %v1914 = vunpack.c.h.b16 %v1758
        %v1915 = vunpack.c.l.b16 %v1759
        %v1916 = vunpack.c.h.b16 %v1759
        %v1917 = vunpack.c.l.b16 %v1760
        %v1918 = vunpack.c.h.b16 %v1760
        %v1919 = vunpack.c.l.b16 %v1761
        %v1920 = vunpack.c.h.b16 %v1761
        %v1921 = vunpack.c.l.b16 %v1762
        %v1922 = vunpack.c.h.b16 %v1762
        %v1923 = vunpack.c.l.b16 %v1763
        %v1924 = vunpack.c.h.b16 %v1763
        %v1925 = vunpack.c.l.b16 %v1764
        %v1926 = vunpack.c.h.b16 %v1764
        %v1927 = vunpack.c.l.b16 %v1765
        %v1928 = vunpack.c.h.b16 %v1765
        %v1929 = vunpack.c.l.b16 %v1766
        %v1930 = vunpack.c.h.b16 %v1766
        %v1931 = vunpack.c.l.b16 %v1767
        %v1932 = vunpack.c.h.b16 %v1767
        %v1933 = vunpack.c.l.b16 %v1768
        %v1934 = vunpack.c.h.b16 %v1768
        %v1935 = vunpack.c.l.b16 %v1769
        %v1936 = vunpack.c.h.b16 %v1769
        %v1937 = vunpack.c.l.b16 %v1770
        %v1938 = vunpack.c.h.b16 %v1770
        %v1939 = vunpack.c.l.b16 %v1771
        %v1940 = vunpack.c.h.b16 %v1771
        %v1941 = vunpack.c.l.b16 %v1772
        %v1942 = vunpack.c.h.b16 %v1772
        %v1943 = vunpack.c.l.b16 %v1773
        %v1944 = vunpack.c.h.b16 %v1773
        %v1945 = vunpack.c.l.b16 %v1774
        %v1946 = vunpack.c.h.b16 %v1774
        %v1947 = vunpack.c.l.b16 %v1775
        %v1948 = vunpack.c.h.b16 %v1775
        %v1949 = vunpack.c.l.b16 %v1776
        %v1950 = vunpack.c.h.b16 %v1776
        %v1951 = vunpack.c.l.b16 %v1777
        %v1952 = vunpack.c.h.b16 %v1777
        %v1953 = vunpack.c.l.b16 %v1778
        %v1954 = vunpack.c.h.b16 %v1778
        %v1955 = vunpack.c.l.b16 %v1779
        %v1956 = vunpack.c.h.b16 %v1779
        %v1957 = vunpack.c.l.b16 %v1780
        %v1958 = vunpack.c.h.b16 %v1780
        %v1959 = vunpack.c.l.b16 %v1781
        %v1960 = vunpack.c.h.b16 %v1781
        %v1961 = vunpack.c.l.b16 %v1782
        %v1962 = vunpack.c.h.b16 %v1782
        %v1963 = vunpack.c.l.b16 %v1783
        %v1964 = vunpack.c.h.b16 %v1783
        %v1965 = vunpack.c.l.b16 %v1784
        %v1966 = vunpack.c.h.b16 %v1784
        %v1967 = vunpack.c.l.b16 %v1785
        %v1968 = vunpack.c.h.b16 %v1785
        %v1969 = vunpack.c.l.b16 %v1786
        %v1970 = vunpack.c.h.b16 %v1786
        %v1971 = vunpack.c.l.b16 %v1787
        %v1972 = vunpack.c.h.b16 %v1787
        %v1973 = vunpack.c.l.b16 %v1788
        %v1974 = vunpack.c.h.b16 %v1788
        %v1975 = vunpack.c.l.b16 %v1789
        %v1976 = vunpack.c.h.b16 %v1789
        %v1977 = vunpack.c.l.b16 %v1790
        %v1978 = vunpack.c.h.b16 %v1790
        %v1979 = vunpack.c.l.b16 %v1791
        %v1980 = vunpack.c.h.b16 %v1791
        %v1981 = vunpack.c.l.b16 %v1792
        %v1982 = vunpack.c.h.b16 %v1792
        %v1983 = vunpack.c.l.b16 %v1793
        %v1984 = vunpack.c.h.b16 %v1793
        %v1985 = vunpack.c.l.b16 %v1794
        %v1986 = vunpack.c.h.b16 %v1794
        %v1987 = vunpack.c.l.b16 %v1795
        %v1988 = vunpack.c.h.b16 %v1795
        %v1989 = vunpack.c.l.b16 %v1796
        %v1990 = vunpack.c.h.b16 %v1796
        %v1991 = vunpack.c.l.b16 %v1797
        %v1992 = vunpack.c.h.b16 %v1797
        %v1993 = vunpack.c.l.b16 %v1798
        %v1994 = vunpack.c.h.b16 %v1798
        %v1995 = vunpack.c.l.b16 %v1799
        %v1996 = vunpack.c.h.b16 %v1799
        %v1997 = vunpack.c.l.b16 %v1800
        %v1998 = vunpack.c.h.b16 %v1800
        %v1999 = vunpack.c.l.b16 %v1801
        %v2000 = vunpack.c.h.b16 %v1801
        %v2001 = vunpack.c.l.b16 %v1802
        %v2002 = vunpack.c.h.b16 %v1802
        %v2003 = vunpack.c.l.b16 %v1803
        %v2004 = vunpack.c.h.b16 %v1803
        %v2005 = vunpack.c.l.b16 %v1804
        %v2006 = vunpack.c.h.b16 %v1804
        %v2007 = vpack.c.b16 %v1883, %v1879
        %v2008 = vpack.c.b16 %v1884, %v1880
        %v2009 = vpack.c.b16 %v1885, %v1881
        %v2010 = vpack.c.b16 %v1886, %v1882
        %v2011 = vpack.c.b16 %v1891, %v1887
        %v2012 = vpack.c.b16 %v1892, %v1888
        %v2013 = vpack.c.b16 %v1893, %v1889
        %v2014 = vpack.c.b16 %v1894, %v1890
        %v2015 = vpack.c.b16 %v1899, %v1895
        %v2016 = vpack.c.b16 %v1900, %v1896
        %v2017 = vpack.c.b16 %v1901, %v1897
        %v2018 = vpack.c.b16 %v1902, %v1898
        %v2019 = vpack.c.b16 %v1907, %v1903
        %v2020 = vpack.c.b16 %v1908, %v1904
        %v2021 = vpack.c.b16 %v1909, %v1905
        %v2022 = vpack.c.b16 %v1910, %v1906
        %v2023 = vpack.c.b16 %v1915, %v1911
        %v2024 = vpack.c.b16 %v1916, %v1912
        %v2025 = vpack.c.b16 %v1917, %v1913
        %v2026 = vpack.c.b16 %v1918, %v1914
        %v2027 = vpack.c.b16 %v1923, %v1919
        %v2028 = vpack.c.b16 %v1924, %v1920
        %v2029 = vpack.c.b16 %v1925, %v1921
        %v2030 = vpack.c.b16 %v1926, %v1922
        %v2031 = vpack.c.b16 %v1931, %v1927
        %v2032 = vpack.c.b16 %v1932, %v1928
        %v2033 = vpack.c.b16 %v1933, %v1929
        %v2034 = vpack.c.b16 %v1934, %v1930
        %v2035 = vpack.c.b16 %v1939, %v1935
        %v2036 = vpack.c.b16 %v1940, %v1936
        %v2037 = vpack.c.b16 %v1941, %v1937
        %v2038 = vpack.c.b16 %v1942, %v1938
        %v2039 = vpack.c.b16 %v1947, %v1943
        %v2040 = vpack.c.b16 %v1948, %v1944
        %v2041 = vpack.c.b16 %v1949, %v1945
        %v2042 = vpack.c.b16 %v1950, %v1946
        %v2043 = vpack.c.b16 %v1955, %v1951
        %v2044 = vpack.c.b16 %v1956, %v1952
        %v2045 = vpack.c.b16 %v1957, %v1953
        %v2046 = vpack.c.b16 %v1958, %v1954
        %v2047 = vpack.c.b16 %v1963, %v1959
        %v2048 = vpack.c.b16 %v1964, %v1960
        %v2049 = vpack.c.b16 %v1965, %v1961
        %v2050 = vpack.c.b16 %v1966, %v1962
        %v2051 = vpack.c.b16 %v1971, %v1967
        %v2052 = vpack.c.b16 %v1972, %v1968
        %v2053 = vpack.c.b16 %v1973, %v1969
        %v2054 = vpack.c.b16 %v1974, %v1970
        %v2055 = vpack.c.b16 %v1979, %v1975
        %v2056 = vpack.c.b16 %v1980, %v1976
        %v2057 = vpack.c.b16 %v1981, %v1977
        %v2058 = vpack.c.b16 %v1982, %v1978
        %v2059 = vpack.c.b16 %v1987, %v1983
        %v2060 = vpack.c.b16 %v1988, %v1984
        %v2061 = vpack.c.b16 %v1989, %v1985
        %v2062 = vpack.c.b16 %v1990, %v1986
        %v2063 = vpack.c.b16 %v1995, %v1991
        %v2064 = vpack.c.b16 %v1996, %v1992
        %v2065 = vpack.c.b16 %v1997, %v1993
        %v2066 = vpack.c.b16 %v1998, %v1994
        %v2067 = vpack.c.b16 %v2003, %v1999
        %v2068 = vpack.c.b16 %v2004, %v2000
        %v2069 = vpack.c.b16 %v2005, %v2001
        %v2070 = vpack.c.b16 %v2006, %v2002
        %2135 = vmatprep.subr.bf16.mxu0 %v2008
        %2136 = vmatpush1.bf16.msra.mxu0 %v2007
        %2137 = vmatprep.subr.bf16.mxu0 %v2012
        %2138 = vmatpush1.bf16.msra.mxu0 %v2011
        %2139 = vmatprep.subr.bf16.mxu0 %v2016
        %2140 = vmatpush1.bf16.msra.mxu0 %v2015
        %2141 = vmatprep.subr.bf16.mxu0 %v2020
        %2142 = vmatpush1.bf16.msra.mxu0 %v2019
        %2143 = vmatprep.subr.bf16.mxu0 %v2024
        %2144 = vmatpush1.bf16.msra.mxu0 %v2023
        %2145 = vmatprep.subr.bf16.mxu0 %v2028
        %2146 = vmatpush1.bf16.msra.mxu0 %v2027
        %2147 = vmatprep.subr.bf16.mxu0 %v2032
        %2148 = vmatpush1.bf16.msra.mxu0 %v2031
        %2149 = vmatprep.subr.bf16.mxu0 %v2036
        %2150 = vmatpush1.bf16.msra.mxu0 %v2035
        %2151 = vmatprep.subr.bf16.mxu0 %v2040
        %2152 = vmatpush1.bf16.msra.mxu0 %v2039
        %2153 = vmatprep.subr.bf16.mxu0 %v2044
        %2154 = vmatpush1.bf16.msra.mxu0 %v2043
        %2155 = vmatprep.subr.bf16.mxu0 %v2048
        %2156 = vmatpush1.bf16.msra.mxu0 %v2047
        %2157 = vmatprep.subr.bf16.mxu0 %v2052
        %2158 = vmatpush1.bf16.msra.mxu0 %v2051
        %2159 = vmatprep.subr.bf16.mxu0 %v2056
        %2160 = vmatpush1.bf16.msra.mxu0 %v2055
        %2161 = vmatprep.subr.bf16.mxu0 %v2060
        %2162 = vmatpush1.bf16.msra.mxu0 %v2059
        %2163 = vmatprep.subr.bf16.mxu0 %v2064
        %2164 = vmatpush1.bf16.msra.mxu0 %v2063
        %2165 = vmatprep.subr.bf16.mxu0 %v2068
        %2166 = vmatpush1.bf16.msra.mxu0 %v2067
        %2167 = vmatprep.mubr.bf16.mxu0 %v1812
        %2168 = vmatmul.mubr.bf16.gmra.mrb[0].mxu0 %v1811
        %v2169 = vpop.f32.mrb[0].mxu0
        %v2170 = vadd.f32 0.0, %v2169
        %v2171 = vpop.f32.mrb[0].mxu0
        %v2172 = vadd.f32 0.0, %v2171
        %v2173 = vpop.f32.mrb[0].mxu0
        %v2174 = vadd.f32 0.0, %v2173
        %v2175 = vpop.f32.mrb[0].mxu0
        %v2176 = vadd.f32 0.0, %v2175
        %2177 = vdwg.mxu0
        %2178 = vmatprep.subr.bf16.mxu0 %v2010
        %2179 = vmatpush1.bf16.msra.mxu0 %v2009
        %2180 = vmatprep.subr.bf16.mxu0 %v2014
        %2181 = vmatpush1.bf16.msra.mxu0 %v2013
        %2182 = vmatprep.subr.bf16.mxu0 %v2018
        %2183 = vmatpush1.bf16.msra.mxu0 %v2017
        %2184 = vmatprep.subr.bf16.mxu0 %v2022
        %2185 = vmatpush1.bf16.msra.mxu0 %v2021
        %2186 = vmatprep.subr.bf16.mxu0 %v2026
        %2187 = vmatpush1.bf16.msra.mxu0 %v2025
        %2188 = vmatprep.subr.bf16.mxu0 %v2030
        %2189 = vmatpush1.bf16.msra.mxu0 %v2029
        %2190 = vmatprep.subr.bf16.mxu0 %v2034
        %2191 = vmatpush1.bf16.msra.mxu0 %v2033
        %2192 = vmatprep.subr.bf16.mxu0 %v2038
        %2193 = vmatpush1.bf16.msra.mxu0 %v2037
        %2194 = vmatprep.subr.bf16.mxu0 %v2042
        %2195 = vmatpush1.bf16.msra.mxu0 %v2041
        %2196 = vmatprep.subr.bf16.mxu0 %v2046
        %2197 = vmatpush1.bf16.msra.mxu0 %v2045
        %2198 = vmatprep.subr.bf16.mxu0 %v2050
        %2199 = vmatpush1.bf16.msra.mxu0 %v2049
        %2200 = vmatprep.subr.bf16.mxu0 %v2054
        %2201 = vmatpush1.bf16.msra.mxu0 %v2053
        %2202 = vmatprep.subr.bf16.mxu0 %v2058
        %2203 = vmatpush1.bf16.msra.mxu0 %v2057
        %2204 = vmatprep.subr.bf16.mxu0 %v2062
        %2205 = vmatpush1.bf16.msra.mxu0 %v2061
        %2206 = vmatprep.subr.bf16.mxu0 %v2066
        %2207 = vmatpush1.bf16.msra.mxu0 %v2065
        %2208 = vmatprep.subr.bf16.mxu0 %v2070
        %2209 = vmatpush1.bf16.msra.mxu0 %v2069
        %2210 = vmatprep.mubr.bf16.mxu0 %v1812
        %2211 = vmatmul.mubr.bf16.gmra.mrb[0].mxu0 %v1811
        %v2212 = vpop.f32.mrb[0].mxu0
        %v2213 = vadd.f32 0.0, %v2212
        %v2214 = vpop.f32.mrb[0].mxu0
        %v2215 = vadd.f32 0.0, %v2214
        %v2216 = vpop.f32.mrb[0].mxu0
        %v2217 = vadd.f32 0.0, %v2216
        %v2218 = vpop.f32.mrb[0].mxu0
        %v2219 = vadd.f32 0.0, %v2218
        %2220 = vdwg.mxu0
        %v2221 = vadd.f32 %v1729, %v2170
        %v2222 = vadd.f32 %v1730, %v2172
        %v2223 = vadd.f32 %v1731, %v2213
        %v2224 = vadd.f32 %v1732, %v2215
        %v2225 = vadd.f32 %v1733, %v2174
        %v2226 = vadd.f32 %v1734, %v2176
        %v2227 = vadd.f32 %v1735, %v2217
        %v2228 = vadd.f32 %v1736, %v2219
        %v2229 = vld [vmem:[%s2] sm:$0xf]
        %v2231 = vlaneseq
        %v2232 = vshrl.u32 %v2231, 7
        %v2233 = vsub.s32 0, %v2232
        %v2234 = vrot.slane %v2229, %v2233
        %v2235 = vlaneseq
        %v2236 = vshrl.u32 %v2235, 7
        %v2237 = vsub.s32 1, %v2236
        %v2238 = vrot.slane %v2229, %v2237
        %v2239 = vlaneseq
        %v2240 = vshrl.u32 %v2239, 7
        %v2241 = vsub.s32 2, %v2240
        %v2242 = vrot.slane %v2229, %v2241
        %v2243 = vlaneseq
        %v2244 = vshrl.u32 %v2243, 7
        %v2245 = vsub.s32 3, %v2244
        %v2246 = vrot.slane %v2229, %v2245
        %v2251 = vadd.f32 %v2221, %v2234
        %v2252 = vadd.f32 %v2222, %v2238
        %v2253 = vadd.f32 %v2223, %v2242
        %v2254 = vadd.f32 %v2224, %v2246
        %v2255 = vadd.f32 %v2225, %v2234
        %v2256 = vadd.f32 %v2226, %v2238
        %v2257 = vadd.f32 %v2227, %v2242
        %v2258 = vadd.f32 %v2228, %v2246
        %v2259 = vmax.f32 %v2251, 0.0
        %v2260 = vmax.f32 %v2252, 0.0
        %v2261 = vmax.f32 %v2253, 0.0
        %v2262 = vmax.f32 %v2254, 0.0
        %v2263 = vmax.f32 %v2255, 0.0
        %v2264 = vmax.f32 %v2256, 0.0
        %v2265 = vmax.f32 %v2257, 0.0
        %v2266 = vmax.f32 %v2258, 0.0
        %v2267 = vpack.c.bf16 %v2263, %v2259
        %v2268 = vpack.c.bf16 %v2264, %v2260
        %v2269 = vpack.c.bf16 %v2265, %v2261
        %v2270 = vpack.c.bf16 %v2266, %v2262
        %v2275 = vunpack.c.l.b16 %v2267
        %v2276 = vunpack.c.l.b16 %v2268
        %v2277 = vunpack.c.l.b16 %v2269
        %v2278 = vunpack.c.l.b16 %v2270
        %v2279 = vunpack.c.h.b16 %v2267
        %v2280 = vunpack.c.h.b16 %v2268
        %v2281 = vunpack.c.h.b16 %v2269
        %v2282 = vunpack.c.h.b16 %v2270
        %v2283 = vpack.c.b16 %v2276, %v2275
        %v2284 = vpack.c.b16 %v2278, %v2277
        %v2285 = vpack.c.b16 %v2280, %v2279
        %v2286 = vpack.c.b16 %v2282, %v2281
        %2291 = vst [vmem:[%s272] sm:$0xff] %v2283
        %2292 = vst [vmem:[%s272 + $0x8] sm:$0xff] %v2284
        %2293 = vst [vmem:[%s272 + $0x10] sm:$0xff] %v2285
        %2294 = vst [vmem:[%s272 + $0x18] sm:$0xff] %v2286
        %v2295 = vadd.f32 %v2259, %v2263
        %v2296 = vrot.slane %v2295, 4
        %v2297 = vadd.f32 %v2295, %v2296
        %v2298 = vrot.slane %v2297, 2
        %v2299 = vadd.f32 %v2297, %v2298
        %v2300 = vrot.slane %v2299, 1
        %v2301 = vadd.f32 %v2299, %v2300
        %v2302 = vadd.f32 %v2260, %v2264
        %v2303 = vrot.slane %v2302, 4
        %v2304 = vadd.f32 %v2302, %v2303
        %v2305 = vrot.slane %v2304, 2
        %v2306 = vadd.f32 %v2304, %v2305
        %v2307 = vrot.slane %v2306, 1
        %v2308 = vadd.f32 %v2306, %v2307
        %v2309 = vadd.f32 %v2261, %v2265
        %v2310 = vrot.slane %v2309, 4
        %v2311 = vadd.f32 %v2309, %v2310
        %v2312 = vrot.slane %v2311, 2
        %v2313 = vadd.f32 %v2311, %v2312
        %v2314 = vrot.slane %v2313, 1
        %v2315 = vadd.f32 %v2313, %v2314
        %v2316 = vadd.f32 %v2262, %v2266
        %v2317 = vrot.slane %v2316, 4
        %v2318 = vadd.f32 %v2316, %v2317
        %v2319 = vrot.slane %v2318, 2
        %v2320 = vadd.f32 %v2318, %v2319
        %v2321 = vrot.slane %v2320, 1
        %v2322 = vadd.f32 %v2320, %v2321
        %v2327 = vcombine.low %v2301, %v2308
        %v2328 = vcombine.low %v2315, %v2322
        %v2330 = vunpack.c.l.s4 1966171168
        %v2331 = vunpack.c.0.s8 %v2330
        %v2332 = vlaneseq
        %v2333 = vshrl.u32 %v2332, 7
        %v2334 = vsub.s32 %v2331, %v2333
        %v2335 = vrot.slane %v2327, %v2334
        %v2337 = vunpack.c.l.s4 1966171168
        %v2338 = vunpack.c.0.s8 %v2337
        %v2339 = vlaneseq
        %v2340 = vshrl.u32 %v2339, 7
        %v2341 = vsub.s32 %v2338, %v2340
        %v2342 = vrot.slane %v2328, %v2341
        %v2343 = vcombine.low %v2335, %v2342
        %v2345 = vunpack.c.l.s4 1966171168
        %v2346 = vunpack.c.0.s8 %v2345
        %v2347 = vlaneseq
        %v2348 = vshrl.u32 %v2347, 7
        %v2349 = vsub.s32 %v2346, %v2348
        %v2350 = vrot.slane %v2343, %v2349
        %v2352 = vlaneseq
        %vm2353 = vcmp.ge.s32.totalorder %v2352, 0
        %vm2354 = vcmp.lt.s32.totalorder %v2352, 512
        %vm2355 = vmand %vm2353, %vm2354
        %2356 = vst.msk [vmem:[%s278] ss:$8 sm:$0xf] %vm2355, %v2350
        %2357 = vst.msk [vmem:[%s278] ss:$8 sm:$0x0] %vm2355, %v2350
        %v2358 = vmul.f32 %v2259, %v2259
        %v2359 = vmul.f32 %v2260, %v2260
        %v2360 = vmul.f32 %v2261, %v2261
        %v2361 = vmul.f32 %v2262, %v2262
        %v2362 = vmul.f32 %v2263, %v2263
        %v2363 = vmul.f32 %v2264, %v2264
        %v2364 = vmul.f32 %v2265, %v2265
        %v2365 = vmul.f32 %v2266, %v2266
        %v2366 = vadd.f32 %v2358, %v2362
        %v2367 = vrot.slane %v2366, 4
        %v2368 = vadd.f32 %v2366, %v2367
        %v2369 = vrot.slane %v2368, 2
        %v2370 = vadd.f32 %v2368, %v2369
        %v2371 = vrot.slane %v2370, 1
        %v2372 = vadd.f32 %v2370, %v2371
        %v2373 = vadd.f32 %v2359, %v2363
        %v2374 = vrot.slane %v2373, 4
        %v2375 = vadd.f32 %v2373, %v2374
        %v2376 = vrot.slane %v2375, 2
        %v2377 = vadd.f32 %v2375, %v2376
        %v2378 = vrot.slane %v2377, 1
        %v2379 = vadd.f32 %v2377, %v2378
        %v2380 = vadd.f32 %v2360, %v2364
        %v2381 = vrot.slane %v2380, 4
        %v2382 = vadd.f32 %v2380, %v2381
        %v2383 = vrot.slane %v2382, 2
        %v2384 = vadd.f32 %v2382, %v2383
        %v2385 = vrot.slane %v2384, 1
        %v2386 = vadd.f32 %v2384, %v2385
        %v2387 = vadd.f32 %v2361, %v2365
        %v2388 = vrot.slane %v2387, 4
        %v2389 = vadd.f32 %v2387, %v2388
        %v2390 = vrot.slane %v2389, 2
        %v2391 = vadd.f32 %v2389, %v2390
        %v2392 = vrot.slane %v2391, 1
        %v2393 = vadd.f32 %v2391, %v2392
        %v2398 = vcombine.low %v2372, %v2379
        %v2399 = vcombine.low %v2386, %v2393
        %v2401 = vunpack.c.l.s4 1966171168
        %v2402 = vunpack.c.0.s8 %v2401
        %v2403 = vlaneseq
        %v2404 = vshrl.u32 %v2403, 7
        %v2405 = vsub.s32 %v2402, %v2404
        %v2406 = vrot.slane %v2398, %v2405
        %v2408 = vunpack.c.l.s4 1966171168
        %v2409 = vunpack.c.0.s8 %v2408
        %v2410 = vlaneseq
        %v2411 = vshrl.u32 %v2410, 7
        %v2412 = vsub.s32 %v2409, %v2411
        %v2413 = vrot.slane %v2399, %v2412
        %v2414 = vcombine.low %v2406, %v2413
        %v2416 = vunpack.c.l.s4 1966171168
        %v2417 = vunpack.c.0.s8 %v2416
        %v2418 = vlaneseq
        %v2419 = vshrl.u32 %v2418, 7
        %v2420 = vsub.s32 %v2417, %v2419
        %v2421 = vrot.slane %v2414, %v2420
        %s2423 = scalar_lea.vmem %s278, 1
        %2424 = vst.msk [vmem:[%s2423] ss:$8 sm:$0xf] %vm2355, %v2421
        %2425 = vst.msk [vmem:[%s2423] ss:$8 sm:$0x0] %vm2355, %v2421
        %s2426 = smul.u32 2, %s16
        %p2427 = scmp.lt.s32.totalorder %s2426, 3
        %s2428 = scalar_select %p2427, %s2426, 3
        %s2429 = smul.addr %s2428, 4
        %s2430 = smul.addr %s2429, 4
        %s2431 = scalar_lea.vmem %s3, %s2430
        %p2432 = scmp.lt.s32.totalorder %s16, 1
        %s2433 = scalar_select %p2432, %s16, 1
        %s2434 = smul.addr %s2433, 4
        %s2435 = smul.addr %s2434, 8
        %s2436 = scalar_lea.vmem %s4, %s2435
        // Predicated region
        $region71: #{discriminator_forward.6} parent=65 // pred_check
          %p2437 = pneg %p102
        $region72: #{discriminator_forward.6} parent=65 // pred_check_branch
          %2439 = sbr.rel (%p2437) target = $region74
        $region73: #{discriminator_forward.6} parent=65 // pred_region
          %s2440 = smul.u32 2, %s16
        $region74: #{discriminator_forward.6} parent=65 // pred_fallthru
          _
        // Predicated region
        $region75: #{discriminator_forward.6} parent=65 // pred_check
          %p2441 = pneg %p128
        $region76: #{discriminator_forward.6} parent=65 // pred_check_branch
          %2443 = sbr.rel (%p2441) target = $region78
        $region77: #{discriminator_forward.6} parent=65 // pred_region
          _
        $region78: #{discriminator_forward.6} parent=65 // pred_fallthru
          _
      $region66: #{discriminator_forward.6} parent=5 // pred_fallthru
        _
      %p2444 = scmp.le.s32.totalorder 2, %s11
      // Predicated region
      $region79: #{discriminator_forward.6} parent=5 // pred_check
        %p2445 = pneg %p2444
      $region80: #{discriminator_forward.6} parent=5 // pred_check_branch
        %2447 = sbr.rel (%p2445) target = $region82
      $region81: #{discriminator_forward.6} parent=5 // pred_region
        %s2448 = ssub.s32 %s11, 2
        // Predicated region
        $region83: #{discriminator_forward.6} parent=81 // pred_check
          %p2449 = pneg %p108
        $region84: #{discriminator_forward.6} parent=81 // pred_check_branch
          %2451 = sbr.rel (%p2449) target = $region86
        $region85: #{discriminator_forward.6} parent=81 // pred_region
          %s2452 = smul.u32 2, %s17
          %p2453 = scmp.lt.s32.totalorder %s2452, 3
          %s2454 = scalar_select %p2453, %s2452, 3
          %s2455 = smul.addr %s2454, 4
          %s2456 = smul.addr %s2455, 4
          %s2457 = scalar_lea.vmem %s3, %s2456
        $region86: #{discriminator_forward.6} parent=81 // pred_fallthru
          _
        // Predicated region
        $region87: #{discriminator_forward.6} parent=81 // pred_check
          %p2458 = pneg %p134
        $region88: #{discriminator_forward.6} parent=81 // pred_check_branch
          %2460 = sbr.rel (%p2458) target = $region90
        $region89: #{discriminator_forward.6} parent=81 // pred_region
          %p2461 = scmp.lt.s32.totalorder %s17, 1
          %s2462 = scalar_select %p2461, %s17, 1
          %s2463 = smul.addr %s2462, 4
          %s2464 = smul.addr %s2463, 8
          %s2465 = scalar_lea.vmem %s4, %s2464
        $region90: #{discriminator_forward.6} parent=81 // pred_fallthru
          _
      $region82: #{discriminator_forward.6} parent=5 // pred_fallthru
        _
    $region6: #{discriminator_forward.6} parent=1 // loop_footer
      %s15 = sadd.s32 1, %s11
    $region7: #{discriminator_forward.6} parent=1 // loop_footer_branch
      %10 = sbr.rel target = $region3
    $region8: #{discriminator_forward.6} parent=1 // loop_exit
      _

// kernel: mul.54
$region0: #{mul.54}
  #allocation0 [shape = 's32[1]{0}', space=sflag, size = 0x4, scoped, tag = 'scoped memory for mul.54']
  %s0 = inlined_call_operand.vmem [shape: f32[1,8192], index: 0, kind: input, shape index: {}]
  %s1 = inlined_call_operand.vmem [shape: f32[1,8192], index: 1, kind: input, shape index: {}]
  %s2 = inlined_call_operand.vmem [shape: f32[1,8192], index: 2, kind: output, shape index: {}]
  %v3 = vld [vmem:[%s0] sm:$0x1]
  %v4 = vld [vmem:[%s1] sm:$0x1]
  %5 = xla_tuple %v3, %v4
  %6 = xla_tuple %5
  %v7 = vmul.f32 %v3, %v4
  %8 = xla_tuple %v7
  %9 = vst [vmem:[%s2] sm:$0x1] %v7
  %s10 = scalar_lea.vmem %s0, 1
  %v11 = vld [vmem:[%s10] sm:$0x1]
  %s12 = scalar_lea.vmem %s1, 1
  %v13 = vld [vmem:[%s12] sm:$0x1]
  %14 = xla_tuple %v11, %v13
  %15 = xla_tuple %14
  %v16 = vmul.f32 %v11, %v13
  %17 = xla_tuple %v16
  %s18 = scalar_lea.vmem %s2, 1
  %19 = vst [vmem:[%s18] sm:$0x1] %v16
  %s20 = scalar_lea.vmem %s0, 2
  %v21 = vld [vmem:[%s20] sm:$0x1]
  %s22 = scalar_lea.vmem %s1, 2
  %v23 = vld [vmem:[%s22] sm:$0x1]
  %24 = xla_tuple %v21, %v23
  %25 = xla_tuple %24
  %v26 = vmul.f32 %v21, %v23
  %27 = xla_tuple %v26
  %s28 = scalar_lea.vmem %s2, 2
  %29 = vst [vmem:[%s28] sm:$0x1] %v26
  %s30 = scalar_lea.vmem %s0, 3
  %v31 = vld [vmem:[%s30] sm:$0x1]
  %s32 = scalar_lea.vmem %s1, 3
  %v33 = vld [vmem:[%s32] sm:$0x1]
  %34 = xla_tuple %v31, %v33
  %35 = xla_tuple %34
  %v36 = vmul.f32 %v31, %v33
  %37 = xla_tuple %v36
  %s38 = scalar_lea.vmem %s2, 3
  %39 = vst [vmem:[%s38] sm:$0x1] %v36
  %s40 = scalar_lea.vmem %s0, 4
  %v41 = vld [vmem:[%s40] sm:$0x1]
  %s42 = scalar_lea.vmem %s1, 4
  %v43 = vld [vmem:[%s42] sm:$0x1]
  %44 = xla_tuple %v41, %v43
  %45 = xla_tuple %44
  %v46 = vmul.f32 %v41, %v43
  %47 = xla_tuple %v46
  %s48 = scalar_lea.vmem %s2, 4
  %49 = vst [vmem:[%s48] sm:$0x1] %v46
  %s50 = scalar_lea.vmem %s0, 5
  %v51 = vld [vmem:[%s50] sm:$0x1]
  %s52 = scalar_lea.vmem %s1, 5
  %v53 = vld [vmem:[%s52] sm:$0x1]
  %54 = xla_tuple %v51, %v53
  %55 = xla_tuple %54
  %v56 = vmul.f32 %v51, %v53
  %57 = xla_tuple %v56
  %s58 = scalar_lea.vmem %s2, 5
  %59 = vst [vmem:[%s58] sm:$0x1] %v56
  %s60 = scalar_lea.vmem %s0, 6
  %v61 = vld [vmem:[%s60] sm:$0x1]
  %s62 = scalar_lea.vmem %s1, 6
  %v63 = vld [vmem:[%s62] sm:$0x1]
  %64 = xla_tuple %v61, %v63
  %65 = xla_tuple %64
  %v66 = vmul.f32 %v61, %v63
  %67 = xla_tuple %v66
  %s68 = scalar_lea.vmem %s2, 6
  %69 = vst [vmem:[%s68] sm:$0x1] %v66
  %s70 = scalar_lea.vmem %s0, 7
  %v71 = vld [vmem:[%s70] sm:$0x1]
  %s72 = scalar_lea.vmem %s1, 7
  %v73 = vld [vmem:[%s72] sm:$0x1]
  %74 = xla_tuple %v71, %v73
  %75 = xla_tuple %74
  %v76 = vmul.f32 %v71, %v73
  %77 = xla_tuple %v76
  %s78 = scalar_lea.vmem %s2, 7
  %79 = vst [vmem:[%s78] sm:$0x1] %v76
  %s80 = scalar_lea.vmem %s0, 8
  %v81 = vld [vmem:[%s80] sm:$0x1]
  %s82 = scalar_lea.vmem %s1, 8
  %v83 = vld [vmem:[%s82] sm:$0x1]
  %84 = xla_tuple %v81, %v83
  %85 = xla_tuple %84
  %v86 = vmul.f32 %v81, %v83
  %87 = xla_tuple %v86
  %s88 = scalar_lea.vmem %s2, 8
  %89 = vst [vmem:[%s88] sm:$0x1] %v86
  %s90 = scalar_lea.vmem %s0, 9
  %v91 = vld [vmem:[%s90] sm:$0x1]
  %s92 = scalar_lea.vmem %s1, 9
  %v93 = vld [vmem:[%s92] sm:$0x1]
  %94 = xla_tuple %v91, %v93
  %95 = xla_tuple %94
  %v96 = vmul.f32 %v91, %v93
  %97 = xla_tuple %v96
  %s98 = scalar_lea.vmem %s2, 9
  %99 = vst [vmem:[%s98] sm:$0x1] %v96
  %s100 = scalar_lea.vmem %s0, 10
  %v101 = vld [vmem:[%s100] sm:$0x1]
  %s102 = scalar_lea.vmem %s1, 10
  %v103 = vld [vmem:[%s102] sm:$0x1]
  %104 = xla_tuple %v101, %v103
  %105 = xla_tuple %104
  %v106 = vmul.f32 %v101, %v103
  %107 = xla_tuple %v106
  %s108 = scalar_lea.vmem %s2, 10
  %109 = vst [vmem:[%s108] sm:$0x1] %v106
  %s110 = scalar_lea.vmem %s0, 11
  %v111 = vld [vmem:[%s110] sm:$0x1]
  %s112 = scalar_lea.vmem %s1, 11
  %v113 = vld [vmem:[%s112] sm:$0x1]
  %114 = xla_tuple %v111, %v113
  %115 = xla_tuple %114
  %v116 = vmul.f32 %v111, %v113
  %117 = xla_tuple %v116
  %s118 = scalar_lea.vmem %s2, 11
  %119 = vst [vmem:[%s118] sm:$0x1] %v116
  %s120 = scalar_lea.vmem %s0, 12
  %v121 = vld [vmem:[%s120] sm:$0x1]
  %s122 = scalar_lea.vmem %s1, 12
  %v123 = vld [vmem:[%s122] sm:$0x1]
  %124 = xla_tuple %v121, %v123
  %125 = xla_tuple %124
  %v126 = vmul.f32 %v121, %v123
  %127 = xla_tuple %v126
  %s128 = scalar_lea.vmem %s2, 12
  %129 = vst [vmem:[%s128] sm:$0x1] %v126
  %s130 = scalar_lea.vmem %s0, 13
  %v131 = vld [vmem:[%s130] sm:$0x1]
  %s132 = scalar_lea.vmem %s1, 13
  %v133 = vld [vmem:[%s132] sm:$0x1]
  %134 = xla_tuple %v131, %v133
  %135 = xla_tuple %134
  %v136 = vmul.f32 %v131, %v133
  %137 = xla_tuple %v136
  %s138 = scalar_lea.vmem %s2, 13
  %139 = vst [vmem:[%s138] sm:$0x1] %v136
  %s140 = scalar_lea.vmem %s0, 14
  %v141 = vld [vmem:[%s140] sm:$0x1]
  %s142 = scalar_lea.vmem %s1, 14
  %v143 = vld [vmem:[%s142] sm:$0x1]
  %144 = xla_tuple %v141, %v143
  %145 = xla_tuple %144
  %v146 = vmul.f32 %v141, %v143
  %147 = xla_tuple %v146
  %s148 = scalar_lea.vmem %s2, 14
  %149 = vst [vmem:[%s148] sm:$0x1] %v146
  %s150 = scalar_lea.vmem %s0, 15
  %v151 = vld [vmem:[%s150] sm:$0x1]
  %s152 = scalar_lea.vmem %s1, 15
  %v153 = vld [vmem:[%s152] sm:$0x1]
  %154 = xla_tuple %v151, %v153
  %155 = xla_tuple %154
  %v156 = vmul.f32 %v151, %v153
  %157 = xla_tuple %v156
  %s158 = scalar_lea.vmem %s2, 15
  %159 = vst [vmem:[%s158] sm:$0x1] %v156
  %s160 = scalar_lea.vmem %s0, 16
  %v161 = vld [vmem:[%s160] sm:$0x1]
  %s162 = scalar_lea.vmem %s1, 16
  %v163 = vld [vmem:[%s162] sm:$0x1]
  %164 = xla_tuple %v161, %v163
  %165 = xla_tuple %164
  %v166 = vmul.f32 %v161, %v163
  %167 = xla_tuple %v166
  %s168 = scalar_lea.vmem %s2, 16
  %169 = vst [vmem:[%s168] sm:$0x1] %v166
  %s170 = scalar_lea.vmem %s0, 17
  %v171 = vld [vmem:[%s170] sm:$0x1]
  %s172 = scalar_lea.vmem %s1, 17
  %v173 = vld [vmem:[%s172] sm:$0x1]
  %174 = xla_tuple %v171, %v173
  %175 = xla_tuple %174
  %v176 = vmul.f32 %v171, %v173
  %177 = xla_tuple %v176
  %s178 = scalar_lea.vmem %s2, 17
  %179 = vst [vmem:[%s178] sm:$0x1] %v176
  %s180 = scalar_lea.vmem %s0, 18
  %v181 = vld [vmem:[%s180] sm:$0x1]
  %s182 = scalar_lea.vmem %s1, 18
  %v183 = vld [vmem:[%s182] sm:$0x1]
  %184 = xla_tuple %v181, %v183
  %185 = xla_tuple %184
  %v186 = vmul.f32 %v181, %v183
  %187 = xla_tuple %v186
  %s188 = scalar_lea.vmem %s2, 18
  %189 = vst [vmem:[%s188] sm:$0x1] %v186
  %s190 = scalar_lea.vmem %s0, 19
  %v191 = vld [vmem:[%s190] sm:$0x1]
  %s192 = scalar_lea.vmem %s1, 19
  %v193 = vld [vmem:[%s192] sm:$0x1]
  %194 = xla_tuple %v191, %v193
  %195 = xla_tuple %194
  %v196 = vmul.f32 %v191, %v193
  %197 = xla_tuple %v196
  %s198 = scalar_lea.vmem %s2, 19
  %199 = vst [vmem:[%s198] sm:$0x1] %v196
  %s200 = scalar_lea.vmem %s0, 20
  %v201 = vld [vmem:[%s200] sm:$0x1]
  %s202 = scalar_lea.vmem %s1, 20
  %v203 = vld [vmem:[%s202] sm:$0x1]
  %204 = xla_tuple %v201, %v203
  %205 = xla_tuple %204
  %v206 = vmul.f32 %v201, %v203
  %207 = xla_tuple %v206
  %s208 = scalar_lea.vmem %s2, 20
  %209 = vst [vmem:[%s208] sm:$0x1] %v206
  %s210 = scalar_lea.vmem %s0, 21
  %v211 = vld [vmem:[%s210] sm:$0x1]
  %s212 = scalar_lea.vmem %s1, 21
  %v213 = vld [vmem:[%s212] sm:$0x1]
  %214 = xla_tuple %v211, %v213
  %215 = xla_tuple %214
  %v216 = vmul.f32 %v211, %v213
  %217 = xla_tuple %v216
  %s218 = scalar_lea.vmem %s2, 21
  %219 = vst [vmem:[%s218] sm:$0x1] %v216
  %s220 = scalar_lea.vmem %s0, 22
  %v221 = vld [vmem:[%s220] sm:$0x1]
  %s222 = scalar_lea.vmem %s1, 22
  %v223 = vld [vmem:[%s222] sm:$0x1]
  %224 = xla_tuple %v221, %v223
  %225 = xla_tuple %224
  %v226 = vmul.f32 %v221, %v223
  %227 = xla_tuple %v226
  %s228 = scalar_lea.vmem %s2, 22
  %229 = vst [vmem:[%s228] sm:$0x1] %v226
  %s230 = scalar_lea.vmem %s0, 23
  %v231 = vld [vmem:[%s230] sm:$0x1]
  %s232 = scalar_lea.vmem %s1, 23
  %v233 = vld [vmem:[%s232] sm:$0x1]
  %234 = xla_tuple %v231, %v233
  %235 = xla_tuple %234
  %v236 = vmul.f32 %v231, %v233
  %237 = xla_tuple %v236
  %s238 = scalar_lea.vmem %s2, 23
  %239 = vst [vmem:[%s238] sm:$0x1] %v236
  %s240 = scalar_lea.vmem %s0, 24
  %v241 = vld [vmem:[%s240] sm:$0x1]
  %s242 = scalar_lea.vmem %s1, 24
  %v243 = vld [vmem:[%s242] sm:$0x1]
  %244 = xla_tuple %v241, %v243
  %245 = xla_tuple %244
  %v246 = vmul.f32 %v241, %v243
  %247 = xla_tuple %v246
  %s248 = scalar_lea.vmem %s2, 24
  %249 = vst [vmem:[%s248] sm:$0x1] %v246
  %s250 = scalar_lea.vmem %s0, 25
  %v251 = vld [vmem:[%s250] sm:$0x1]
  %s252 = scalar_lea.vmem %s1, 25
  %v253 = vld [vmem:[%s252] sm:$0x1]
  %254 = xla_tuple %v251, %v253
  %255 = xla_tuple %254
  %v256 = vmul.f32 %v251, %v253
  %257 = xla_tuple %v256
  %s258 = scalar_lea.vmem %s2, 25
  %259 = vst [vmem:[%s258] sm:$0x1] %v256
  %s260 = scalar_lea.vmem %s0, 26
  %v261 = vld [vmem:[%s260] sm:$0x1]
  %s262 = scalar_lea.vmem %s1, 26
  %v263 = vld [vmem:[%s262] sm:$0x1]
  %264 = xla_tuple %v261, %v263
  %265 = xla_tuple %264
  %v266 = vmul.f32 %v261, %v263
  %267 = xla_tuple %v266
  %s268 = scalar_lea.vmem %s2, 26
  %269 = vst [vmem:[%s268] sm:$0x1] %v266
  %s270 = scalar_lea.vmem %s0, 27
  %v271 = vld [vmem:[%s270] sm:$0x1]
  %s272 = scalar_lea.vmem %s1, 27
  %v273 = vld [vmem:[%s272] sm:$0x1]
  %274 = xla_tuple %v271, %v273
  %275 = xla_tuple %274
  %v276 = vmul.f32 %v271, %v273
  %277 = xla_tuple %v276
  %s278 = scalar_lea.vmem %s2, 27
  %279 = vst [vmem:[%s278] sm:$0x1] %v276
  %s280 = scalar_lea.vmem %s0, 28
  %v281 = vld [vmem:[%s280] sm:$0x1]
  %s282 = scalar_lea.vmem %s1, 28
  %v283 = vld [vmem:[%s282] sm:$0x1]
  %284 = xla_tuple %v281, %v283
  %285 = xla_tuple %284
  %v286 = vmul.f32 %v281, %v283
  %287 = xla_tuple %v286
  %s288 = scalar_lea.vmem %s2, 28
  %289 = vst [vmem:[%s288] sm:$0x1] %v286
  %s290 = scalar_lea.vmem %s0, 29
  %v291 = vld [vmem:[%s290] sm:$0x1]
  %s292 = scalar_lea.vmem %s1, 29
  %v293 = vld [vmem:[%s292] sm:$0x1]
  %294 = xla_tuple %v291, %v293
  %295 = xla_tuple %294
  %v296 = vmul.f32 %v291, %v293
  %297 = xla_tuple %v296
  %s298 = scalar_lea.vmem %s2, 29
  %299 = vst [vmem:[%s298] sm:$0x1] %v296
  %s300 = scalar_lea.vmem %s0, 30
  %v301 = vld [vmem:[%s300] sm:$0x1]
  %s302 = scalar_lea.vmem %s1, 30
  %v303 = vld [vmem:[%s302] sm:$0x1]
  %304 = xla_tuple %v301, %v303
  %305 = xla_tuple %304
  %v306 = vmul.f32 %v301, %v303
  %307 = xla_tuple %v306
  %s308 = scalar_lea.vmem %s2, 30
  %309 = vst [vmem:[%s308] sm:$0x1] %v306
  %s310 = scalar_lea.vmem %s0, 31
  %v311 = vld [vmem:[%s310] sm:$0x1]
  %s312 = scalar_lea.vmem %s1, 31
  %v313 = vld [vmem:[%s312] sm:$0x1]
  %314 = xla_tuple %v311, %v313
  %315 = xla_tuple %314
  %v316 = vmul.f32 %v311, %v313
  %317 = xla_tuple %v316
  %s318 = scalar_lea.vmem %s2, 31
  %319 = vst [vmem:[%s318] sm:$0x1] %v316
  %s320 = scalar_lea.vmem %s0, 32
  %v321 = vld [vmem:[%s320] sm:$0x1]
  %s322 = scalar_lea.vmem %s1, 32
  %v323 = vld [vmem:[%s322] sm:$0x1]
  %324 = xla_tuple %v321, %v323
  %325 = xla_tuple %324
  %v326 = vmul.f32 %v321, %v323
  %327 = xla_tuple %v326
  %s328 = scalar_lea.vmem %s2, 32
  %329 = vst [vmem:[%s328] sm:$0x1] %v326
  %s330 = scalar_lea.vmem %s0, 33
  %v331 = vld [vmem:[%s330] sm:$0x1]
  %s332 = scalar_lea.vmem %s1, 33
  %v333 = vld [vmem:[%s332] sm:$0x1]
  %334 = xla_tuple %v331, %v333
  %335 = xla_tuple %334
  %v336 = vmul.f32 %v331, %v333
  %337 = xla_tuple %v336
  %s338 = scalar_lea.vmem %s2, 33
  %339 = vst [vmem:[%s338] sm:$0x1] %v336
  %s340 = scalar_lea.vmem %s0, 34
  %v341 = vld [vmem:[%s340] sm:$0x1]
  %s342 = scalar_lea.vmem %s1, 34
  %v343 = vld [vmem:[%s342] sm:$0x1]
  %344 = xla_tuple %v341, %v343
  %345 = xla_tuple %344
  %v346 = vmul.f32 %v341, %v343
  %347 = xla_tuple %v346
  %s348 = scalar_lea.vmem %s2, 34
  %349 = vst [vmem:[%s348] sm:$0x1] %v346
  %s350 = scalar_lea.vmem %s0, 35
  %v351 = vld [vmem:[%s350] sm:$0x1]
  %s352 = scalar_lea.vmem %s1, 35
  %v353 = vld [vmem:[%s352] sm:$0x1]
  %354 = xla_tuple %v351, %v353
  %355 = xla_tuple %354
  %v356 = vmul.f32 %v351, %v353
  %357 = xla_tuple %v356
  %s358 = scalar_lea.vmem %s2, 35
  %359 = vst [vmem:[%s358] sm:$0x1] %v356
  %s360 = scalar_lea.vmem %s0, 36
  %v361 = vld [vmem:[%s360] sm:$0x1]
  %s362 = scalar_lea.vmem %s1, 36
  %v363 = vld [vmem:[%s362] sm:$0x1]
  %364 = xla_tuple %v361, %v363
  %365 = xla_tuple %364
  %v366 = vmul.f32 %v361, %v363
  %367 = xla_tuple %v366
  %s368 = scalar_lea.vmem %s2, 36
  %369 = vst [vmem:[%s368] sm:$0x1] %v366
  %s370 = scalar_lea.vmem %s0, 37
  %v371 = vld [vmem:[%s370] sm:$0x1]
  %s372 = scalar_lea.vmem %s1, 37
  %v373 = vld [vmem:[%s372] sm:$0x1]
  %374 = xla_tuple %v371, %v373
  %375 = xla_tuple %374
  %v376 = vmul.f32 %v371, %v373
  %377 = xla_tuple %v376
  %s378 = scalar_lea.vmem %s2, 37
  %379 = vst [vmem:[%s378] sm:$0x1] %v376
  %s380 = scalar_lea.vmem %s0, 38
  %v381 = vld [vmem:[%s380] sm:$0x1]
  %s382 = scalar_lea.vmem %s1, 38
  %v383 = vld [vmem:[%s382] sm:$0x1]
  %384 = xla_tuple %v381, %v383
  %385 = xla_tuple %384
  %v386 = vmul.f32 %v381, %v383
  %387 = xla_tuple %v386
  %s388 = scalar_lea.vmem %s2, 38
  %389 = vst [vmem:[%s388] sm:$0x1] %v386
  %s390 = scalar_lea.vmem %s0, 39
  %v391 = vld [vmem:[%s390] sm:$0x1]
  %s392 = scalar_lea.vmem %s1, 39
  %v393 = vld [vmem:[%s392] sm:$0x1]
  %394 = xla_tuple %v391, %v393
  %395 = xla_tuple %394
  %v396 = vmul.f32 %v391, %v393
  %397 = xla_tuple %v396
  %s398 = scalar_lea.vmem %s2, 39
  %399 = vst [vmem:[%s398] sm:$0x1] %v396
  %s400 = scalar_lea.vmem %s0, 40
  %v401 = vld [vmem:[%s400] sm:$0x1]
  %s402 = scalar_lea.vmem %s1, 40
  %v403 = vld [vmem:[%s402] sm:$0x1]
  %404 = xla_tuple %v401, %v403
  %405 = xla_tuple %404
  %v406 = vmul.f32 %v401, %v403
  %407 = xla_tuple %v406
  %s408 = scalar_lea.vmem %s2, 40
  %409 = vst [vmem:[%s408] sm:$0x1] %v406
  %s410 = scalar_lea.vmem %s0, 41
  %v411 = vld [vmem:[%s410] sm:$0x1]
  %s412 = scalar_lea.vmem %s1, 41
  %v413 = vld [vmem:[%s412] sm:$0x1]
  %414 = xla_tuple %v411, %v413
  %415 = xla_tuple %414
  %v416 = vmul.f32 %v411, %v413
  %417 = xla_tuple %v416
  %s418 = scalar_lea.vmem %s2, 41
  %419 = vst [vmem:[%s418] sm:$0x1] %v416
  %s420 = scalar_lea.vmem %s0, 42
  %v421 = vld [vmem:[%s420] sm:$0x1]
  %s422 = scalar_lea.vmem %s1, 42
  %v423 = vld [vmem:[%s422] sm:$0x1]
  %424 = xla_tuple %v421, %v423
  %425 = xla_tuple %424
  %v426 = vmul.f32 %v421, %v423
  %427 = xla_tuple %v426
  %s428 = scalar_lea.vmem %s2, 42
  %429 = vst [vmem:[%s428] sm:$0x1] %v426
  %s430 = scalar_lea.vmem %s0, 43
  %v431 = vld [vmem:[%s430] sm:$0x1]
  %s432 = scalar_lea.vmem %s1, 43
  %v433 = vld [vmem:[%s432] sm:$0x1]
  %434 = xla_tuple %v431, %v433
  %435 = xla_tuple %434
  %v436 = vmul.f32 %v431, %v433
  %437 = xla_tuple %v436
  %s438 = scalar_lea.vmem %s2, 43
  %439 = vst [vmem:[%s438] sm:$0x1] %v436
  %s440 = scalar_lea.vmem %s0, 44
  %v441 = vld [vmem:[%s440] sm:$0x1]
  %s442 = scalar_lea.vmem %s1, 44
  %v443 = vld [vmem:[%s442] sm:$0x1]
  %444 = xla_tuple %v441, %v443
  %445 = xla_tuple %444
  %v446 = vmul.f32 %v441, %v443
  %447 = xla_tuple %v446
  %s448 = scalar_lea.vmem %s2, 44
  %449 = vst [vmem:[%s448] sm:$0x1] %v446
  %s450 = scalar_lea.vmem %s0, 45
  %v451 = vld [vmem:[%s450] sm:$0x1]
  %s452 = scalar_lea.vmem %s1, 45
  %v453 = vld [vmem:[%s452] sm:$0x1]
  %454 = xla_tuple %v451, %v453
  %455 = xla_tuple %454
  %v456 = vmul.f32 %v451, %v453
  %457 = xla_tuple %v456
  %s458 = scalar_lea.vmem %s2, 45
  %459 = vst [vmem:[%s458] sm:$0x1] %v456
  %s460 = scalar_lea.vmem %s0, 46
  %v461 = vld [vmem:[%s460] sm:$0x1]
  %s462 = scalar_lea.vmem %s1, 46
  %v463 = vld [vmem:[%s462] sm:$0x1]
  %464 = xla_tuple %v461, %v463
  %465 = xla_tuple %464
  %v466 = vmul.f32 %v461, %v463
  %467 = xla_tuple %v466
  %s468 = scalar_lea.vmem %s2, 46
  %469 = vst [vmem:[%s468] sm:$0x1] %v466
  %s470 = scalar_lea.vmem %s0, 47
  %v471 = vld [vmem:[%s470] sm:$0x1]
  %s472 = scalar_lea.vmem %s1, 47
  %v473 = vld [vmem:[%s472] sm:$0x1]
  %474 = xla_tuple %v471, %v473
  %475 = xla_tuple %474
  %v476 = vmul.f32 %v471, %v473
  %477 = xla_tuple %v476
  %s478 = scalar_lea.vmem %s2, 47
  %479 = vst [vmem:[%s478] sm:$0x1] %v476
  %s480 = scalar_lea.vmem %s0, 48
  %v481 = vld [vmem:[%s480] sm:$0x1]
  %s482 = scalar_lea.vmem %s1, 48
  %v483 = vld [vmem:[%s482] sm:$0x1]
  %484 = xla_tuple %v481, %v483
  %485 = xla_tuple %484
  %v486 = vmul.f32 %v481, %v483
  %487 = xla_tuple %v486
  %s488 = scalar_lea.vmem %s2, 48
  %489 = vst [vmem:[%s488] sm:$0x1] %v486
  %s490 = scalar_lea.vmem %s0, 49
  %v491 = vld [vmem:[%s490] sm:$0x1]
  %s492 = scalar_lea.vmem %s1, 49
  %v493 = vld [vmem:[%s492] sm:$0x1]
  %494 = xla_tuple %v491, %v493
  %495 = xla_tuple %494
  %v496 = vmul.f32 %v491, %v493
  %497 = xla_tuple %v496
  %s498 = scalar_lea.vmem %s2, 49
  %499 = vst [vmem:[%s498] sm:$0x1] %v496
  %s500 = scalar_lea.vmem %s0, 50
  %v501 = vld [vmem:[%s500] sm:$0x1]
  %s502 = scalar_lea.vmem %s1, 50
  %v503 = vld [vmem:[%s502] sm:$0x1]
  %504 = xla_tuple %v501, %v503
  %505 = xla_tuple %504
  %v506 = vmul.f32 %v501, %v503
  %507 = xla_tuple %v506
  %s508 = scalar_lea.vmem %s2, 50
  %509 = vst [vmem:[%s508] sm:$0x1] %v506
  %s510 = scalar_lea.vmem %s0, 51
  %v511 = vld [vmem:[%s510] sm:$0x1]
  %s512 = scalar_lea.vmem %s1, 51
  %v513 = vld [vmem:[%s512] sm:$0x1]
  %514 = xla_tuple %v511, %v513
  %515 = xla_tuple %514
  %v516 = vmul.f32 %v511, %v513
  %517 = xla_tuple %v516
  %s518 = scalar_lea.vmem %s2, 51
  %519 = vst [vmem:[%s518] sm:$0x1] %v516
  %s520 = scalar_lea.vmem %s0, 52
  %v521 = vld [vmem:[%s520] sm:$0x1]
  %s522 = scalar_lea.vmem %s1, 52
  %v523 = vld [vmem:[%s522] sm:$0x1]
  %524 = xla_tuple %v521, %v523
  %525 = xla_tuple %524
  %v526 = vmul.f32 %v521, %v523
  %527 = xla_tuple %v526
  %s528 = scalar_lea.vmem %s2, 52
  %529 = vst [vmem:[%s528] sm:$0x1] %v526
  %s530 = scalar_lea.vmem %s0, 53
  %v531 = vld [vmem:[%s530] sm:$0x1]
  %s532 = scalar_lea.vmem %s1, 53
  %v533 = vld [vmem:[%s532] sm:$0x1]
  %534 = xla_tuple %v531, %v533
  %535 = xla_tuple %534
  %v536 = vmul.f32 %v531, %v533
  %537 = xla_tuple %v536
  %s538 = scalar_lea.vmem %s2, 53
  %539 = vst [vmem:[%s538] sm:$0x1] %v536
  %s540 = scalar_lea.vmem %s0, 54
  %v541 = vld [vmem:[%s540] sm:$0x1]
  %s542 = scalar_lea.vmem %s1, 54
  %v543 = vld [vmem:[%s542] sm:$0x1]
  %544 = xla_tuple %v541, %v543
  %545 = xla_tuple %544
  %v546 = vmul.f32 %v541, %v543
  %547 = xla_tuple %v546
  %s548 = scalar_lea.vmem %s2, 54
  %549 = vst [vmem:[%s548] sm:$0x1] %v546
  %s550 = scalar_lea.vmem %s0, 55
  %v551 = vld [vmem:[%s550] sm:$0x1]
  %s552 = scalar_lea.vmem %s1, 55
  %v553 = vld [vmem:[%s552] sm:$0x1]
  %554 = xla_tuple %v551, %v553
  %555 = xla_tuple %554
  %v556 = vmul.f32 %v551, %v553
  %557 = xla_tuple %v556
  %s558 = scalar_lea.vmem %s2, 55
  %559 = vst [vmem:[%s558] sm:$0x1] %v556
  %s560 = scalar_lea.vmem %s0, 56
  %v561 = vld [vmem:[%s560] sm:$0x1]
  %s562 = scalar_lea.vmem %s1, 56
  %v563 = vld [vmem:[%s562] sm:$0x1]
  %564 = xla_tuple %v561, %v563
  %565 = xla_tuple %564
  %v566 = vmul.f32 %v561, %v563
  %567 = xla_tuple %v566
  %s568 = scalar_lea.vmem %s2, 56
  %569 = vst [vmem:[%s568] sm:$0x1] %v566
  %s570 = scalar_lea.vmem %s0, 57
  %v571 = vld [vmem:[%s570] sm:$0x1]
  %s572 = scalar_lea.vmem %s1, 57
  %v573 = vld [vmem:[%s572] sm:$0x1]
  %574 = xla_tuple %v571, %v573
  %575 = xla_tuple %574
  %v576 = vmul.f32 %v571, %v573
  %577 = xla_tuple %v576
  %s578 = scalar_lea.vmem %s2, 57
  %579 = vst [vmem:[%s578] sm:$0x1] %v576
  %s580 = scalar_lea.vmem %s0, 58
  %v581 = vld [vmem:[%s580] sm:$0x1]
  %s582 = scalar_lea.vmem %s1, 58
  %v583 = vld [vmem:[%s582] sm:$0x1]
  %584 = xla_tuple %v581, %v583
  %585 = xla_tuple %584
  %v586 = vmul.f32 %v581, %v583
  %587 = xla_tuple %v586
  %s588 = scalar_lea.vmem %s2, 58
  %589 = vst [vmem:[%s588] sm:$0x1] %v586
  %s590 = scalar_lea.vmem %s0, 59
  %v591 = vld [vmem:[%s590] sm:$0x1]
  %s592 = scalar_lea.vmem %s1, 59
  %v593 = vld [vmem:[%s592] sm:$0x1]
  %594 = xla_tuple %v591, %v593
  %595 = xla_tuple %594
  %v596 = vmul.f32 %v591, %v593
  %597 = xla_tuple %v596
  %s598 = scalar_lea.vmem %s2, 59
  %599 = vst [vmem:[%s598] sm:$0x1] %v596
  %s600 = scalar_lea.vmem %s0, 60
  %v601 = vld [vmem:[%s600] sm:$0x1]
  %s602 = scalar_lea.vmem %s1, 60
  %v603 = vld [vmem:[%s602] sm:$0x1]
  %604 = xla_tuple %v601, %v603
  %605 = xla_tuple %604
  %v606 = vmul.f32 %v601, %v603
  %607 = xla_tuple %v606
  %s608 = scalar_lea.vmem %s2, 60
  %609 = vst [vmem:[%s608] sm:$0x1] %v606
  %s610 = scalar_lea.vmem %s0, 61
  %v611 = vld [vmem:[%s610] sm:$0x1]
  %s612 = scalar_lea.vmem %s1, 61
  %v613 = vld [vmem:[%s612] sm:$0x1]
  %614 = xla_tuple %v611, %v613
  %615 = xla_tuple %614
  %v616 = vmul.f32 %v611, %v613
  %617 = xla_tuple %v616
  %s618 = scalar_lea.vmem %s2, 61
  %619 = vst [vmem:[%s618] sm:$0x1] %v616
  %s620 = scalar_lea.vmem %s0, 62
  %v621 = vld [vmem:[%s620] sm:$0x1]
  %s622 = scalar_lea.vmem %s1, 62
  %v623 = vld [vmem:[%s622] sm:$0x1]
  %624 = xla_tuple %v621, %v623
  %625 = xla_tuple %624
  %v626 = vmul.f32 %v621, %v623
  %627 = xla_tuple %v626
  %s628 = scalar_lea.vmem %s2, 62
  %629 = vst [vmem:[%s628] sm:$0x1] %v626
  %s630 = scalar_lea.vmem %s0, 63
  %v631 = vld [vmem:[%s630] sm:$0x1]
  %s632 = scalar_lea.vmem %s1, 63
  %v633 = vld [vmem:[%s632] sm:$0x1]
  %634 = xla_tuple %v631, %v633
  %635 = xla_tuple %634
  %v636 = vmul.f32 %v631, %v633
  %637 = xla_tuple %v636
  %s638 = scalar_lea.vmem %s2, 63
  %639 = vst [vmem:[%s638] sm:$0x1] %v636

// kernel: discriminator_forward.7
$region0: #{discriminator_forward.7}
  #allocation0 [shape = 'u32[]', space=smem, size = 0x4, offset = 0x4, fixed_abs, tag = 'smem constant byte address 0x4 - core index']
  #allocation1 [shape = 'u32[144,128]{1,0:T(1,128)}', space=vmem, size = 0x12000, scoped, tag = 'internal scratch']
  #allocation2 [shape = 'f32[1,1]{1,0:T(1,128)S(1)}', space=vmem, size = 0x200, scoped, tag = 'scoped memory for discriminator_forward.7']
  %s0 = inlined_call_operand.vmem [shape: bf16[2,8192], index: 0, kind: input, shape index: {}]
  %s1 = inlined_call_operand.vmem [shape: f32[1,8192], index: 1, kind: input, shape index: {}]
  %s2 = inlined_call_operand.<no memory space> [shape: f32[1,1], index: 2, kind: input, shape index: {}]
  %s3 = inlined_call_operand.vmem [shape: f32[2,1], index: 3, kind: output, shape index: {}]
  %s4 = sld [smem:[#allocation0]]
  $region22: #{discriminator_forward.7} parent=0
    _
  %s6 = ssub.s32 1, %s4
  %s7 = scalar_select 0, %s6, %s4
  %v8 = vstv %s2
  %9 = vst [vmem:[#allocation2] sm:$0x1] %v8
  // Predicated region
  $region2: #{discriminator_forward.7} parent=0 // pred_check
    _
  $region3: #{discriminator_forward.7} parent=0 // pred_check_branch
    %11 = sbr.rel (0) target = $region5
  $region4: #{discriminator_forward.7} parent=0 // pred_region
    _
  $region5: #{discriminator_forward.7} parent=0 // pred_fallthru
    _
  // Predicated region
  $region6: #{discriminator_forward.7} parent=0 // pred_check
    _
  $region7: #{discriminator_forward.7} parent=0 // pred_check_branch
    %13 = sbr.rel (0) target = $region9
  $region8: #{discriminator_forward.7} parent=0 // pred_region
    _
  $region9: #{discriminator_forward.7} parent=0 // pred_fallthru
    _
  // Predicated region
  $region10: #{discriminator_forward.7} parent=0 // pred_check
    _
  $region11: #{discriminator_forward.7} parent=0 // pred_check_branch
    %15 = sbr.rel (0) target = $region13
  $region12: #{discriminator_forward.7} parent=0 // pred_region
    _
  $region13: #{discriminator_forward.7} parent=0 // pred_fallthru
    _
  %v16 = vld [vmem:[%s0] sm:$0xff]
  %v17 = vld [vmem:[%s0 + $0x8] sm:$0xff]
  %v18 = vld [vmem:[%s0 + $0x10] sm:$0xff]
  %v19 = vld [vmem:[%s0 + $0x18] sm:$0xff]
  %v20 = vld [vmem:[%s0 + $0x20] sm:$0xff]
  %v21 = vld [vmem:[%s0 + $0x28] sm:$0xff]
  %v22 = vld [vmem:[%s0 + $0x30] sm:$0xff]
  %v23 = vld [vmem:[%s0 + $0x38] sm:$0xff]
  %v24 = vunpack.c.l.bf16 %v16
  %v25 = vunpack.c.h.bf16 %v16
  %v26 = vunpack.c.l.bf16 %v17
  %v27 = vunpack.c.h.bf16 %v17
  %v28 = vunpack.c.l.bf16 %v18
  %v29 = vunpack.c.h.bf16 %v18
  %v30 = vunpack.c.l.bf16 %v19
  %v31 = vunpack.c.h.bf16 %v19
  %v32 = vunpack.c.l.bf16 %v20
  %v33 = vunpack.c.h.bf16 %v20
  %v34 = vunpack.c.l.bf16 %v21
  %v35 = vunpack.c.h.bf16 %v21
  %v36 = vunpack.c.l.bf16 %v22
  %v37 = vunpack.c.h.bf16 %v22
  %v38 = vunpack.c.l.bf16 %v23
  %v39 = vunpack.c.h.bf16 %v23
  %v40 = vld [vmem:[%s1] sm:$0xff]
  %v41 = vld [vmem:[%s1 + $0x8] sm:$0xff]
  %v42 = vld [vmem:[%s1 + $0x10] sm:$0xff]
  %v43 = vld [vmem:[%s1 + $0x18] sm:$0xff]
  %v44 = vld [vmem:[%s1 + $0x20] sm:$0xff]
  %v45 = vld [vmem:[%s1 + $0x28] sm:$0xff]
  %v46 = vld [vmem:[%s1 + $0x30] sm:$0xff]
  %v47 = vld [vmem:[%s1 + $0x38] sm:$0xff]
  %v56 = vlaneseq
  %v57 = vshrl.u32 %v56, 7
  %v58 = vsub.s32 0, %v57
  %v59 = vrot.slane %v40, %v58
  %v60 = vlaneseq
  %v61 = vshrl.u32 %v60, 7
  %v62 = vsub.s32 1, %v61
  %v63 = vrot.slane %v40, %v62
  %v64 = vlaneseq
  %v65 = vshrl.u32 %v64, 7
  %v66 = vsub.s32 2, %v65
  %v67 = vrot.slane %v40, %v66
  %v68 = vlaneseq
  %v69 = vshrl.u32 %v68, 7
  %v70 = vsub.s32 3, %v69
  %v71 = vrot.slane %v40, %v70
  %v72 = vlaneseq
  %v73 = vshrl.u32 %v72, 7
  %v74 = vsub.s32 4, %v73
  %v75 = vrot.slane %v40, %v74
  %v76 = vlaneseq
  %v77 = vshrl.u32 %v76, 7
  %v78 = vsub.s32 5, %v77
  %v79 = vrot.slane %v40, %v78
  %v80 = vlaneseq
  %v81 = vshrl.u32 %v80, 7
  %v82 = vsub.s32 6, %v81
  %v83 = vrot.slane %v40, %v82
  %v84 = vlaneseq
  %v85 = vshrl.u32 %v84, 7
  %v86 = vsub.s32 7, %v85
  %v87 = vrot.slane %v40, %v86
  %v88 = vlaneseq
  %v89 = vshrl.u32 %v88, 7
  %v90 = vsub.s32 0, %v89
  %v91 = vrot.slane %v41, %v90
  %v92 = vlaneseq
  %v93 = vshrl.u32 %v92, 7
  %v94 = vsub.s32 1, %v93
  %v95 = vrot.slane %v41, %v94
  %v96 = vlaneseq
  %v97 = vshrl.u32 %v96, 7
  %v98 = vsub.s32 2, %v97
  %v99 = vrot.slane %v41, %v98
  %v100 = vlaneseq
  %v101 = vshrl.u32 %v100, 7
  %v102 = vsub.s32 3, %v101
  %v103 = vrot.slane %v41, %v102
  %v104 = vlaneseq
  %v105 = vshrl.u32 %v104, 7
  %v106 = vsub.s32 4, %v105
  %v107 = vrot.slane %v41, %v106
  %v108 = vlaneseq
  %v109 = vshrl.u32 %v108, 7
  %v110 = vsub.s32 5, %v109
  %v111 = vrot.slane %v41, %v110
  %v112 = vlaneseq
  %v113 = vshrl.u32 %v112, 7
  %v114 = vsub.s32 6, %v113
  %v115 = vrot.slane %v41, %v114
  %v116 = vlaneseq
  %v117 = vshrl.u32 %v116, 7
  %v118 = vsub.s32 7, %v117
  %v119 = vrot.slane %v41, %v118
  %v120 = vlaneseq
  %v121 = vshrl.u32 %v120, 7
  %v122 = vsub.s32 0, %v121
  %v123 = vrot.slane %v42, %v122
  %v124 = vlaneseq
  %v125 = vshrl.u32 %v124, 7
  %v126 = vsub.s32 1, %v125
  %v127 = vrot.slane %v42, %v126
  %v128 = vlaneseq
  %v129 = vshrl.u32 %v128, 7
  %v130 = vsub.s32 2, %v129
  %v131 = vrot.slane %v42, %v130
  %v132 = vlaneseq
  %v133 = vshrl.u32 %v132, 7
  %v134 = vsub.s32 3, %v133
  %v135 = vrot.slane %v42, %v134
  %v136 = vlaneseq
  %v137 = vshrl.u32 %v136, 7
  %v138 = vsub.s32 4, %v137
  %v139 = vrot.slane %v42, %v138
  %v140 = vlaneseq
  %v141 = vshrl.u32 %v140, 7
  %v142 = vsub.s32 5, %v141
  %v143 = vrot.slane %v42, %v142
  %v144 = vlaneseq
  %v145 = vshrl.u32 %v144, 7
  %v146 = vsub.s32 6, %v145
  %v147 = vrot.slane %v42, %v146
  %v148 = vlaneseq
  %v149 = vshrl.u32 %v148, 7
  %v150 = vsub.s32 7, %v149
  %v151 = vrot.slane %v42, %v150
  %v152 = vlaneseq
  %v153 = vshrl.u32 %v152, 7
  %v154 = vsub.s32 0, %v153
  %v155 = vrot.slane %v43, %v154
  %v156 = vlaneseq
  %v157 = vshrl.u32 %v156, 7
  %v158 = vsub.s32 1, %v157
  %v159 = vrot.slane %v43, %v158
  %v160 = vlaneseq
  %v161 = vshrl.u32 %v160, 7
  %v162 = vsub.s32 2, %v161
  %v163 = vrot.slane %v43, %v162
  %v164 = vlaneseq
  %v165 = vshrl.u32 %v164, 7
  %v166 = vsub.s32 3, %v165
  %v167 = vrot.slane %v43, %v166
  %v168 = vlaneseq
  %v169 = vshrl.u32 %v168, 7
  %v170 = vsub.s32 4, %v169
  %v171 = vrot.slane %v43, %v170
  %v172 = vlaneseq
  %v173 = vshrl.u32 %v172, 7
  %v174 = vsub.s32 5, %v173
  %v175 = vrot.slane %v43, %v174
  %v176 = vlaneseq
  %v177 = vshrl.u32 %v176, 7
  %v178 = vsub.s32 6, %v177
  %v179 = vrot.slane %v43, %v178
  %v180 = vlaneseq
  %v181 = vshrl.u32 %v180, 7
  %v182 = vsub.s32 7, %v181
  %v183 = vrot.slane %v43, %v182
  %v184 = vlaneseq
  %v185 = vshrl.u32 %v184, 7
  %v186 = vsub.s32 0, %v185
  %v187 = vrot.slane %v44, %v186
  %v188 = vlaneseq
  %v189 = vshrl.u32 %v188, 7
  %v190 = vsub.s32 1, %v189
  %v191 = vrot.slane %v44, %v190
  %v192 = vlaneseq
  %v193 = vshrl.u32 %v192, 7
  %v194 = vsub.s32 2, %v193
  %v195 = vrot.slane %v44, %v194
  %v196 = vlaneseq
  %v197 = vshrl.u32 %v196, 7
  %v198 = vsub.s32 3, %v197
  %v199 = vrot.slane %v44, %v198
  %v200 = vlaneseq
  %v201 = vshrl.u32 %v200, 7
  %v202 = vsub.s32 4, %v201
  %v203 = vrot.slane %v44, %v202
  %v204 = vlaneseq
  %v205 = vshrl.u32 %v204, 7
  %v206 = vsub.s32 5, %v205
  %v207 = vrot.slane %v44, %v206
  %v208 = vlaneseq
  %v209 = vshrl.u32 %v208, 7
  %v210 = vsub.s32 6, %v209
  %v211 = vrot.slane %v44, %v210
  %v212 = vlaneseq
  %v213 = vshrl.u32 %v212, 7
  %v214 = vsub.s32 7, %v213
  %v215 = vrot.slane %v44, %v214
  %v216 = vlaneseq
  %v217 = vshrl.u32 %v216, 7
  %v218 = vsub.s32 0, %v217
  %v219 = vrot.slane %v45, %v218
  %v220 = vlaneseq
  %v221 = vshrl.u32 %v220, 7
  %v222 = vsub.s32 1, %v221
  %v223 = vrot.slane %v45, %v222
  %v224 = vlaneseq
  %v225 = vshrl.u32 %v224, 7
  %v226 = vsub.s32 2, %v225
  %v227 = vrot.slane %v45, %v226
  %v228 = vlaneseq
  %v229 = vshrl.u32 %v228, 7
  %v230 = vsub.s32 3, %v229
  %v231 = vrot.slane %v45, %v230
  %v232 = vlaneseq
  %v233 = vshrl.u32 %v232, 7
  %v234 = vsub.s32 4, %v233
  %v235 = vrot.slane %v45, %v234
  %v236 = vlaneseq
  %v237 = vshrl.u32 %v236, 7
  %v238 = vsub.s32 5, %v237
  %v239 = vrot.slane %v45, %v238
  %v240 = vlaneseq
  %v241 = vshrl.u32 %v240, 7
  %v242 = vsub.s32 6, %v241
  %v243 = vrot.slane %v45, %v242
  %v244 = vlaneseq
  %v245 = vshrl.u32 %v244, 7
  %v246 = vsub.s32 7, %v245
  %v247 = vrot.slane %v45, %v246
  %v248 = vlaneseq
  %v249 = vshrl.u32 %v248, 7
  %v250 = vsub.s32 0, %v249
  %v251 = vrot.slane %v46, %v250
  %v252 = vlaneseq
  %v253 = vshrl.u32 %v252, 7
  %v254 = vsub.s32 1, %v253
  %v255 = vrot.slane %v46, %v254
  %v256 = vlaneseq
  %v257 = vshrl.u32 %v256, 7
  %v258 = vsub.s32 2, %v257
  %v259 = vrot.slane %v46, %v258
  %v260 = vlaneseq
  %v261 = vshrl.u32 %v260, 7
  %v262 = vsub.s32 3, %v261
  %v263 = vrot.slane %v46, %v262
  %v264 = vlaneseq
  %v265 = vshrl.u32 %v264, 7
  %v266 = vsub.s32 4, %v265
  %v267 = vrot.slane %v46, %v266
  %v268 = vlaneseq
  %v269 = vshrl.u32 %v268, 7
  %v270 = vsub.s32 5, %v269
  %v271 = vrot.slane %v46, %v270
  %v272 = vlaneseq
  %v273 = vshrl.u32 %v272, 7
  %v274 = vsub.s32 6, %v273
  %v275 = vrot.slane %v46, %v274
  %v276 = vlaneseq
  %v277 = vshrl.u32 %v276, 7
  %v278 = vsub.s32 7, %v277
  %v279 = vrot.slane %v46, %v278
  %v280 = vlaneseq
  %v281 = vshrl.u32 %v280, 7
  %v282 = vsub.s32 0, %v281
  %v283 = vrot.slane %v47, %v282
  %v284 = vlaneseq
  %v285 = vshrl.u32 %v284, 7
  %v286 = vsub.s32 1, %v285
  %v287 = vrot.slane %v47, %v286
  %v288 = vlaneseq
  %v289 = vshrl.u32 %v288, 7
  %v290 = vsub.s32 2, %v289
  %v291 = vrot.slane %v47, %v290
  %v292 = vlaneseq
  %v293 = vshrl.u32 %v292, 7
  %v294 = vsub.s32 3, %v293
  %v295 = vrot.slane %v47, %v294
  %v296 = vlaneseq
  %v297 = vshrl.u32 %v296, 7
  %v298 = vsub.s32 4, %v297
  %v299 = vrot.slane %v47, %v298
  %v300 = vlaneseq
  %v301 = vshrl.u32 %v300, 7
  %v302 = vsub.s32 5, %v301
  %v303 = vrot.slane %v47, %v302
  %v304 = vlaneseq
  %v305 = vshrl.u32 %v304, 7
  %v306 = vsub.s32 6, %v305
  %v307 = vrot.slane %v47, %v306
  %v308 = vlaneseq
  %v309 = vshrl.u32 %v308, 7
  %v310 = vsub.s32 7, %v309
  %v311 = vrot.slane %v47, %v310
  %v312 = vcombine.low %v59, %v63
  %v313 = vcombine.low %v67, %v71
  %v315 = vunpack.c.l.s4 1983009808
  %v316 = vunpack.c.0.s8 %v315
  %v317 = vlaneseq
  %v318 = vshrl.u32 %v317, 7
  %v319 = vsub.s32 %v316, %v318
  %v320 = vrot.slane %v312, %v319
  %v322 = vunpack.c.l.s4 1983009808
  %v323 = vunpack.c.0.s8 %v322
  %v324 = vlaneseq
  %v325 = vshrl.u32 %v324, 7
  %v326 = vsub.s32 %v323, %v325
  %v327 = vrot.slane %v313, %v326
  %v328 = vcombine.low %v320, %v327
  %v329 = vcombine.low %v75, %v79
  %v330 = vcombine.low %v83, %v87
  %v332 = vunpack.c.l.s4 1983009808
  %v333 = vunpack.c.0.s8 %v332
  %v334 = vlaneseq
  %v335 = vshrl.u32 %v334, 7
  %v336 = vsub.s32 %v333, %v335
  %v337 = vrot.slane %v329, %v336
  %v339 = vunpack.c.l.s4 1983009808
  %v340 = vunpack.c.0.s8 %v339
  %v341 = vlaneseq
  %v342 = vshrl.u32 %v341, 7
  %v343 = vsub.s32 %v340, %v342
  %v344 = vrot.slane %v330, %v343
  %v345 = vcombine.low %v337, %v344
  %v346 = vcombine.low %v91, %v95
  %v347 = vcombine.low %v99, %v103
  %v349 = vunpack.c.l.s4 1983009808
  %v350 = vunpack.c.0.s8 %v349
  %v351 = vlaneseq
  %v352 = vshrl.u32 %v351, 7
  %v353 = vsub.s32 %v350, %v352
  %v354 = vrot.slane %v346, %v353
  %v356 = vunpack.c.l.s4 1983009808
  %v357 = vunpack.c.0.s8 %v356
  %v358 = vlaneseq
  %v359 = vshrl.u32 %v358, 7
  %v360 = vsub.s32 %v357, %v359
  %v361 = vrot.slane %v347, %v360
  %v362 = vcombine.low %v354, %v361
  %v363 = vcombine.low %v107, %v111
  %v364 = vcombine.low %v115, %v119
  %v366 = vunpack.c.l.s4 1983009808
  %v367 = vunpack.c.0.s8 %v366
  %v368 = vlaneseq
  %v369 = vshrl.u32 %v368, 7
  %v370 = vsub.s32 %v367, %v369
  %v371 = vrot.slane %v363, %v370
  %v373 = vunpack.c.l.s4 1983009808
  %v374 = vunpack.c.0.s8 %v373
  %v375 = vlaneseq
  %v376 = vshrl.u32 %v375, 7
  %v377 = vsub.s32 %v374, %v376
  %v378 = vrot.slane %v364, %v377
  %v379 = vcombine.low %v371, %v378
  %v380 = vcombine.low %v123, %v127
  %v381 = vcombine.low %v131, %v135
  %v383 = vunpack.c.l.s4 1983009808
  %v384 = vunpack.c.0.s8 %v383
  %v385 = vlaneseq
  %v386 = vshrl.u32 %v385, 7
  %v387 = vsub.s32 %v384, %v386
  %v388 = vrot.slane %v380, %v387
  %v390 = vunpack.c.l.s4 1983009808
  %v391 = vunpack.c.0.s8 %v390
  %v392 = vlaneseq
  %v393 = vshrl.u32 %v392, 7
  %v394 = vsub.s32 %v391, %v393
  %v395 = vrot.slane %v381, %v394
  %v396 = vcombine.low %v388, %v395
  %v397 = vcombine.low %v139, %v143
  %v398 = vcombine.low %v147, %v151
  %v400 = vunpack.c.l.s4 1983009808
  %v401 = vunpack.c.0.s8 %v400
  %v402 = vlaneseq
  %v403 = vshrl.u32 %v402, 7
  %v404 = vsub.s32 %v401, %v403
  %v405 = vrot.slane %v397, %v404
  %v407 = vunpack.c.l.s4 1983009808
  %v408 = vunpack.c.0.s8 %v407
  %v409 = vlaneseq
  %v410 = vshrl.u32 %v409, 7
  %v411 = vsub.s32 %v408, %v410
  %v412 = vrot.slane %v398, %v411
  %v413 = vcombine.low %v405, %v412
  %v414 = vcombine.low %v155, %v159
  %v415 = vcombine.low %v163, %v167
  %v417 = vunpack.c.l.s4 1983009808
  %v418 = vunpack.c.0.s8 %v417
  %v419 = vlaneseq
  %v420 = vshrl.u32 %v419, 7
  %v421 = vsub.s32 %v418, %v420
  %v422 = vrot.slane %v414, %v421
  %v424 = vunpack.c.l.s4 1983009808
  %v425 = vunpack.c.0.s8 %v424
  %v426 = vlaneseq
  %v427 = vshrl.u32 %v426, 7
  %v428 = vsub.s32 %v425, %v427
  %v429 = vrot.slane %v415, %v428
  %v430 = vcombine.low %v422, %v429
  %v431 = vcombine.low %v171, %v175
  %v432 = vcombine.low %v179, %v183
  %v434 = vunpack.c.l.s4 1983009808
  %v435 = vunpack.c.0.s8 %v434
  %v436 = vlaneseq
  %v437 = vshrl.u32 %v436, 7
  %v438 = vsub.s32 %v435, %v437
  %v439 = vrot.slane %v431, %v438
  %v441 = vunpack.c.l.s4 1983009808
  %v442 = vunpack.c.0.s8 %v441
  %v443 = vlaneseq
  %v444 = vshrl.u32 %v443, 7
  %v445 = vsub.s32 %v442, %v444
  %v446 = vrot.slane %v432, %v445
  %v447 = vcombine.low %v439, %v446
  %v448 = vcombine.low %v187, %v191
  %v449 = vcombine.low %v195, %v199
  %v451 = vunpack.c.l.s4 1983009808
  %v452 = vunpack.c.0.s8 %v451
  %v453 = vlaneseq
  %v454 = vshrl.u32 %v453, 7
  %v455 = vsub.s32 %v452, %v454
  %v456 = vrot.slane %v448, %v455
  %v458 = vunpack.c.l.s4 1983009808
  %v459 = vunpack.c.0.s8 %v458
  %v460 = vlaneseq
  %v461 = vshrl.u32 %v460, 7
  %v462 = vsub.s32 %v459, %v461
  %v463 = vrot.slane %v449, %v462
  %v464 = vcombine.low %v456, %v463
  %v465 = vcombine.low %v203, %v207
  %v466 = vcombine.low %v211, %v215
  %v468 = vunpack.c.l.s4 1983009808
  %v469 = vunpack.c.0.s8 %v468
  %v470 = vlaneseq
  %v471 = vshrl.u32 %v470, 7
  %v472 = vsub.s32 %v469, %v471
  %v473 = vrot.slane %v465, %v472
  %v475 = vunpack.c.l.s4 1983009808
  %v476 = vunpack.c.0.s8 %v475
  %v477 = vlaneseq
  %v478 = vshrl.u32 %v477, 7
  %v479 = vsub.s32 %v476, %v478
  %v480 = vrot.slane %v466, %v479
  %v481 = vcombine.low %v473, %v480
  %v482 = vcombine.low %v219, %v223
  %v483 = vcombine.low %v227, %v231
  %v485 = vunpack.c.l.s4 1983009808
  %v486 = vunpack.c.0.s8 %v485
  %v487 = vlaneseq
  %v488 = vshrl.u32 %v487, 7
  %v489 = vsub.s32 %v486, %v488
  %v490 = vrot.slane %v482, %v489
  %v492 = vunpack.c.l.s4 1983009808
  %v493 = vunpack.c.0.s8 %v492
  %v494 = vlaneseq
  %v495 = vshrl.u32 %v494, 7
  %v496 = vsub.s32 %v493, %v495
  %v497 = vrot.slane %v483, %v496
  %v498 = vcombine.low %v490, %v497
  %v499 = vcombine.low %v235, %v239
  %v500 = vcombine.low %v243, %v247
  %v502 = vunpack.c.l.s4 1983009808
  %v503 = vunpack.c.0.s8 %v502
  %v504 = vlaneseq
  %v505 = vshrl.u32 %v504, 7
  %v506 = vsub.s32 %v503, %v505
  %v507 = vrot.slane %v499, %v506
  %v509 = vunpack.c.l.s4 1983009808
  %v510 = vunpack.c.0.s8 %v509
  %v511 = vlaneseq
  %v512 = vshrl.u32 %v511, 7
  %v513 = vsub.s32 %v510, %v512
  %v514 = vrot.slane %v500, %v513
  %v515 = vcombine.low %v507, %v514
  %v516 = vcombine.low %v251, %v255
  %v517 = vcombine.low %v259, %v263
  %v519 = vunpack.c.l.s4 1983009808
  %v520 = vunpack.c.0.s8 %v519
  %v521 = vlaneseq
  %v522 = vshrl.u32 %v521, 7
  %v523 = vsub.s32 %v520, %v522
  %v524 = vrot.slane %v516, %v523
  %v526 = vunpack.c.l.s4 1983009808
  %v527 = vunpack.c.0.s8 %v526
  %v528 = vlaneseq
  %v529 = vshrl.u32 %v528, 7
  %v530 = vsub.s32 %v527, %v529
  %v531 = vrot.slane %v517, %v530
  %v532 = vcombine.low %v524, %v531
  %v533 = vcombine.low %v267, %v271
  %v534 = vcombine.low %v275, %v279
  %v536 = vunpack.c.l.s4 1983009808
  %v537 = vunpack.c.0.s8 %v536
  %v538 = vlaneseq
  %v539 = vshrl.u32 %v538, 7
  %v540 = vsub.s32 %v537, %v539
  %v541 = vrot.slane %v533, %v540
  %v543 = vunpack.c.l.s4 1983009808
  %v544 = vunpack.c.0.s8 %v543
  %v545 = vlaneseq
  %v546 = vshrl.u32 %v545, 7
  %v547 = vsub.s32 %v544, %v546
  %v548 = vrot.slane %v534, %v547
  %v549 = vcombine.low %v541, %v548
  %v550 = vcombine.low %v283, %v287
  %v551 = vcombine.low %v291, %v295
  %v553 = vunpack.c.l.s4 1983009808
  %v554 = vunpack.c.0.s8 %v553
  %v555 = vlaneseq
  %v556 = vshrl.u32 %v555, 7
  %v557 = vsub.s32 %v554, %v556
  %v558 = vrot.slane %v550, %v557
  %v560 = vunpack.c.l.s4 1983009808
  %v561 = vunpack.c.0.s8 %v560
  %v562 = vlaneseq
  %v563 = vshrl.u32 %v562, 7
  %v564 = vsub.s32 %v561, %v563
  %v565 = vrot.slane %v551, %v564
  %v566 = vcombine.low %v558, %v565
  %v567 = vcombine.low %v299, %v303
  %v568 = vcombine.low %v307, %v311
  %v570 = vunpack.c.l.s4 1983009808
  %v571 = vunpack.c.0.s8 %v570
  %v572 = vlaneseq
  %v573 = vshrl.u32 %v572, 7
  %v574 = vsub.s32 %v571, %v573
  %v575 = vrot.slane %v567, %v574
  %v577 = vunpack.c.l.s4 1983009808
  %v578 = vunpack.c.0.s8 %v577
  %v579 = vlaneseq
  %v580 = vshrl.u32 %v579, 7
  %v581 = vsub.s32 %v578, %v580
  %v582 = vrot.slane %v568, %v581
  %v583 = vcombine.low %v575, %v582
  %v600 = vmul.f32 %v24, %v328
  %v601 = vmul.f32 %v25, %v345
  %v602 = vmul.f32 %v26, %v362
  %v603 = vmul.f32 %v27, %v379
  %v604 = vmul.f32 %v28, %v396
  %v605 = vmul.f32 %v29, %v413
  %v606 = vmul.f32 %v30, %v430
  %v607 = vmul.f32 %v31, %v447
  %v608 = vmul.f32 %v32, %v464
  %v609 = vmul.f32 %v33, %v481
  %v610 = vmul.f32 %v34, %v498
  %v611 = vmul.f32 %v35, %v515
  %v612 = vmul.f32 %v36, %v532
  %v613 = vmul.f32 %v37, %v549
  %v614 = vmul.f32 %v38, %v566
  %v615 = vmul.f32 %v39, %v583
  %v632 = vcombine.high %v600, %v600
  %v634 = vunpack.c.l.s4 1983009808
  %v635 = vunpack.c.0.s8 %v634
  %v636 = vlaneseq
  %v637 = vshrl.u32 %v636, 7
  %v638 = vsub.s32 %v635, %v637
  %v639 = vrot.slane %v600, %v638
  %v641 = vunpack.c.l.s4 1983009808
  %v642 = vunpack.c.0.s8 %v641
  %v643 = vlaneseq
  %v644 = vshrl.u32 %v643, 7
  %v645 = vsub.s32 %v642, %v644
  %v646 = vrot.slane %v632, %v645
  %v647 = vcombine.high %v639, %v639
  %v648 = vcombine.high %v646, %v646
  %v649 = vcombine.high %v601, %v601
  %v651 = vunpack.c.l.s4 1983009808
  %v652 = vunpack.c.0.s8 %v651
  %v653 = vlaneseq
  %v654 = vshrl.u32 %v653, 7
  %v655 = vsub.s32 %v652, %v654
  %v656 = vrot.slane %v601, %v655
  %v658 = vunpack.c.l.s4 1983009808
  %v659 = vunpack.c.0.s8 %v658
  %v660 = vlaneseq
  %v661 = vshrl.u32 %v660, 7
  %v662 = vsub.s32 %v659, %v661
  %v663 = vrot.slane %v649, %v662
  %v664 = vcombine.high %v656, %v656
  %v665 = vcombine.high %v663, %v663
  %v666 = vcombine.high %v602, %v602
  %v668 = vunpack.c.l.s4 1983009808
  %v669 = vunpack.c.0.s8 %v668
  %v670 = vlaneseq
  %v671 = vshrl.u32 %v670, 7
  %v672 = vsub.s32 %v669, %v671
  %v673 = vrot.slane %v602, %v672
  %v675 = vunpack.c.l.s4 1983009808
  %v676 = vunpack.c.0.s8 %v675
  %v677 = vlaneseq
  %v678 = vshrl.u32 %v677, 7
  %v679 = vsub.s32 %v676, %v678
  %v680 = vrot.slane %v666, %v679
  %v681 = vcombine.high %v673, %v673
  %v682 = vcombine.high %v680, %v680
  %v683 = vcombine.high %v603, %v603
  %v685 = vunpack.c.l.s4 1983009808
  %v686 = vunpack.c.0.s8 %v685
  %v687 = vlaneseq
  %v688 = vshrl.u32 %v687, 7
  %v689 = vsub.s32 %v686, %v688
  %v690 = vrot.slane %v603, %v689
  %v692 = vunpack.c.l.s4 1983009808
  %v693 = vunpack.c.0.s8 %v692
  %v694 = vlaneseq
  %v695 = vshrl.u32 %v694, 7
  %v696 = vsub.s32 %v693, %v695
  %v697 = vrot.slane %v683, %v696
  %v698 = vcombine.high %v690, %v690
  %v699 = vcombine.high %v697, %v697
  %v700 = vcombine.high %v604, %v604
  %v702 = vunpack.c.l.s4 1983009808
  %v703 = vunpack.c.0.s8 %v702
  %v704 = vlaneseq
  %v705 = vshrl.u32 %v704, 7
  %v706 = vsub.s32 %v703, %v705
  %v707 = vrot.slane %v604, %v706
  %v709 = vunpack.c.l.s4 1983009808
  %v710 = vunpack.c.0.s8 %v709
  %v711 = vlaneseq
  %v712 = vshrl.u32 %v711, 7
  %v713 = vsub.s32 %v710, %v712
  %v714 = vrot.slane %v700, %v713
  %v715 = vcombine.high %v707, %v707
  %v716 = vcombine.high %v714, %v714
  %v717 = vcombine.high %v605, %v605
  %v719 = vunpack.c.l.s4 1983009808
  %v720 = vunpack.c.0.s8 %v719
  %v721 = vlaneseq
  %v722 = vshrl.u32 %v721, 7
  %v723 = vsub.s32 %v720, %v722
  %v724 = vrot.slane %v605, %v723
  %v726 = vunpack.c.l.s4 1983009808
  %v727 = vunpack.c.0.s8 %v726
  %v728 = vlaneseq
  %v729 = vshrl.u32 %v728, 7
  %v730 = vsub.s32 %v727, %v729
  %v731 = vrot.slane %v717, %v730
  %v732 = vcombine.high %v724, %v724
  %v733 = vcombine.high %v731, %v731
  %v734 = vcombine.high %v606, %v606
  %v736 = vunpack.c.l.s4 1983009808
  %v737 = vunpack.c.0.s8 %v736
  %v738 = vlaneseq
  %v739 = vshrl.u32 %v738, 7
  %v740 = vsub.s32 %v737, %v739
  %v741 = vrot.slane %v606, %v740
  %v743 = vunpack.c.l.s4 1983009808
  %v744 = vunpack.c.0.s8 %v743
  %v745 = vlaneseq
  %v746 = vshrl.u32 %v745, 7
  %v747 = vsub.s32 %v744, %v746
  %v748 = vrot.slane %v734, %v747
  %v749 = vcombine.high %v741, %v741
  %v750 = vcombine.high %v748, %v748
  %v751 = vcombine.high %v607, %v607
  %v753 = vunpack.c.l.s4 1983009808
  %v754 = vunpack.c.0.s8 %v753
  %v755 = vlaneseq
  %v756 = vshrl.u32 %v755, 7
  %v757 = vsub.s32 %v754, %v756
  %v758 = vrot.slane %v607, %v757
  %v760 = vunpack.c.l.s4 1983009808
  %v761 = vunpack.c.0.s8 %v760
  %v762 = vlaneseq
  %v763 = vshrl.u32 %v762, 7
  %v764 = vsub.s32 %v761, %v763
  %v765 = vrot.slane %v751, %v764
  %v766 = vcombine.high %v758, %v758
  %v767 = vcombine.high %v765, %v765
  %v768 = vcombine.high %v608, %v608
  %v770 = vunpack.c.l.s4 1983009808
  %v771 = vunpack.c.0.s8 %v770
  %v772 = vlaneseq
  %v773 = vshrl.u32 %v772, 7
  %v774 = vsub.s32 %v771, %v773
  %v775 = vrot.slane %v608, %v774
  %v777 = vunpack.c.l.s4 1983009808
  %v778 = vunpack.c.0.s8 %v777
  %v779 = vlaneseq
  %v780 = vshrl.u32 %v779, 7
  %v781 = vsub.s32 %v778, %v780
  %v782 = vrot.slane %v768, %v781
  %v783 = vcombine.high %v775, %v775
  %v784 = vcombine.high %v782, %v782
  %v785 = vcombine.high %v609, %v609
  %v787 = vunpack.c.l.s4 1983009808
  %v788 = vunpack.c.0.s8 %v787
  %v789 = vlaneseq
  %v790 = vshrl.u32 %v789, 7
  %v791 = vsub.s32 %v788, %v790
  %v792 = vrot.slane %v609, %v791
  %v794 = vunpack.c.l.s4 1983009808
  %v795 = vunpack.c.0.s8 %v794
  %v796 = vlaneseq
  %v797 = vshrl.u32 %v796, 7
  %v798 = vsub.s32 %v795, %v797
  %v799 = vrot.slane %v785, %v798
  %v800 = vcombine.high %v792, %v792
  %v801 = vcombine.high %v799, %v799
  %v802 = vcombine.high %v610, %v610
  %v804 = vunpack.c.l.s4 1983009808
  %v805 = vunpack.c.0.s8 %v804
  %v806 = vlaneseq
  %v807 = vshrl.u32 %v806, 7
  %v808 = vsub.s32 %v805, %v807
  %v809 = vrot.slane %v610, %v808
  %v811 = vunpack.c.l.s4 1983009808
  %v812 = vunpack.c.0.s8 %v811
  %v813 = vlaneseq
  %v814 = vshrl.u32 %v813, 7
  %v815 = vsub.s32 %v812, %v814
  %v816 = vrot.slane %v802, %v815
  %v817 = vcombine.high %v809, %v809
  %v818 = vcombine.high %v816, %v816
  %v819 = vcombine.high %v611, %v611
  %v821 = vunpack.c.l.s4 1983009808
  %v822 = vunpack.c.0.s8 %v821
  %v823 = vlaneseq
  %v824 = vshrl.u32 %v823, 7
  %v825 = vsub.s32 %v822, %v824
  %v826 = vrot.slane %v611, %v825
  %v828 = vunpack.c.l.s4 1983009808
  %v829 = vunpack.c.0.s8 %v828
  %v830 = vlaneseq
  %v831 = vshrl.u32 %v830, 7
  %v832 = vsub.s32 %v829, %v831
  %v833 = vrot.slane %v819, %v832
  %v834 = vcombine.high %v826, %v826
  %v835 = vcombine.high %v833, %v833
  %v836 = vcombine.high %v612, %v612
  %v838 = vunpack.c.l.s4 1983009808
  %v839 = vunpack.c.0.s8 %v838
  %v840 = vlaneseq
  %v841 = vshrl.u32 %v840, 7
  %v842 = vsub.s32 %v839, %v841
  %v843 = vrot.slane %v612, %v842
  %v845 = vunpack.c.l.s4 1983009808
  %v846 = vunpack.c.0.s8 %v845
  %v847 = vlaneseq
  %v848 = vshrl.u32 %v847, 7
  %v849 = vsub.s32 %v846, %v848
  %v850 = vrot.slane %v836, %v849
  %v851 = vcombine.high %v843, %v843
  %v852 = vcombine.high %v850, %v850
  %v853 = vcombine.high %v613, %v613
  %v855 = vunpack.c.l.s4 1983009808
  %v856 = vunpack.c.0.s8 %v855
  %v857 = vlaneseq
  %v858 = vshrl.u32 %v857, 7
  %v859 = vsub.s32 %v856, %v858
  %v860 = vrot.slane %v613, %v859
  %v862 = vunpack.c.l.s4 1983009808
  %v863 = vunpack.c.0.s8 %v862
  %v864 = vlaneseq
  %v865 = vshrl.u32 %v864, 7
  %v866 = vsub.s32 %v863, %v865
  %v867 = vrot.slane %v853, %v866
  %v868 = vcombine.high %v860, %v860
  %v869 = vcombine.high %v867, %v867
  %v870 = vcombine.high %v614, %v614
  %v872 = vunpack.c.l.s4 1983009808
  %v873 = vunpack.c.0.s8 %v872
  %v874 = vlaneseq
  %v875 = vshrl.u32 %v874, 7
  %v876 = vsub.s32 %v873, %v875
  %v877 = vrot.slane %v614, %v876
  %v879 = vunpack.c.l.s4 1983009808
  %v880 = vunpack.c.0.s8 %v879
  %v881 = vlaneseq
  %v882 = vshrl.u32 %v881, 7
  %v883 = vsub.s32 %v880, %v882
  %v884 = vrot.slane %v870, %v883
  %v885 = vcombine.high %v877, %v877
  %v886 = vcombine.high %v884, %v884
  %v887 = vcombine.high %v615, %v615
  %v889 = vunpack.c.l.s4 1983009808
  %v890 = vunpack.c.0.s8 %v889
  %v891 = vlaneseq
  %v892 = vshrl.u32 %v891, 7
  %v893 = vsub.s32 %v890, %v892
  %v894 = vrot.slane %v615, %v893
  %v896 = vunpack.c.l.s4 1983009808
  %v897 = vunpack.c.0.s8 %v896
  %v898 = vlaneseq
  %v899 = vshrl.u32 %v898, 7
  %v900 = vsub.s32 %v897, %v899
  %v901 = vrot.slane %v887, %v900
  %v902 = vcombine.high %v894, %v894
  %v903 = vcombine.high %v901, %v901
  %vm968 = vcmask 1041408
  %v969 = vsel %vm968, %v639, 0.0
  %v970 = vsel %vm968, %v647, 0.0
  %v971 = vadd.f32 %v969, %v970
  %v972 = vsel %vm968, %v646, 0.0
  %v973 = vadd.f32 %v971, %v972
  %v974 = vsel %vm968, %v648, 0.0
  %v975 = vadd.f32 %v973, %v974
  %v976 = vsel %vm968, %v656, 0.0
  %v977 = vadd.f32 %v975, %v976
  %v978 = vsel %vm968, %v664, 0.0
  %v979 = vadd.f32 %v977, %v978
  %v980 = vsel %vm968, %v663, 0.0
  %v981 = vadd.f32 %v979, %v980
  %v982 = vsel %vm968, %v665, 0.0
  %v983 = vadd.f32 %v981, %v982
  %v984 = vsel %vm968, %v673, 0.0
  %v985 = vadd.f32 %v983, %v984
  %v986 = vsel %vm968, %v681, 0.0
  %v987 = vadd.f32 %v985, %v986
  %v988 = vsel %vm968, %v680, 0.0
  %v989 = vadd.f32 %v987, %v988
  %v990 = vsel %vm968, %v682, 0.0
  %v991 = vadd.f32 %v989, %v990
  %v992 = vsel %vm968, %v690, 0.0
  %v993 = vadd.f32 %v991, %v992
  %v994 = vsel %vm968, %v698, 0.0
  %v995 = vadd.f32 %v993, %v994
  %v996 = vsel %vm968, %v697, 0.0
  %v997 = vadd.f32 %v995, %v996
  %v998 = vsel %vm968, %v699, 0.0
  %v999 = vadd.f32 %v997, %v998
  %v1000 = vsel %vm968, %v707, 0.0
  %v1001 = vadd.f32 %v999, %v1000
  %v1002 = vsel %vm968, %v715, 0.0
  %v1003 = vadd.f32 %v1001, %v1002
  %v1004 = vsel %vm968, %v714, 0.0
  %v1005 = vadd.f32 %v1003, %v1004
  %v1006 = vsel %vm968, %v716, 0.0
  %v1007 = vadd.f32 %v1005, %v1006
  %v1008 = vsel %vm968, %v724, 0.0
  %v1009 = vadd.f32 %v1007, %v1008
  %v1010 = vsel %vm968, %v732, 0.0
  %v1011 = vadd.f32 %v1009, %v1010
  %v1012 = vsel %vm968, %v731, 0.0
  %v1013 = vadd.f32 %v1011, %v1012
  %v1014 = vsel %vm968, %v733, 0.0
  %v1015 = vadd.f32 %v1013, %v1014
  %v1016 = vsel %vm968, %v741, 0.0
  %v1017 = vadd.f32 %v1015, %v1016
  %v1018 = vsel %vm968, %v749, 0.0
  %v1019 = vadd.f32 %v1017, %v1018
  %v1020 = vsel %vm968, %v748, 0.0
  %v1021 = vadd.f32 %v1019, %v1020
  %v1022 = vsel %vm968, %v750, 0.0
  %v1023 = vadd.f32 %v1021, %v1022
  %v1024 = vsel %vm968, %v758, 0.0
  %v1025 = vadd.f32 %v1023, %v1024
  %v1026 = vsel %vm968, %v766, 0.0
  %v1027 = vadd.f32 %v1025, %v1026
  %v1028 = vsel %vm968, %v765, 0.0
  %v1029 = vadd.f32 %v1027, %v1028
  %v1030 = vsel %vm968, %v767, 0.0
  %v1031 = vadd.f32 %v1029, %v1030
  %v1032 = vsel %vm968, %v775, 0.0
  %v1033 = vadd.f32 %v1031, %v1032
  %v1034 = vsel %vm968, %v783, 0.0
  %v1035 = vadd.f32 %v1033, %v1034
  %v1036 = vsel %vm968, %v782, 0.0
  %v1037 = vadd.f32 %v1035, %v1036
  %v1038 = vsel %vm968, %v784, 0.0
  %v1039 = vadd.f32 %v1037, %v1038
  %v1040 = vsel %vm968, %v792, 0.0
  %v1041 = vadd.f32 %v1039, %v1040
  %v1042 = vsel %vm968, %v800, 0.0
  %v1043 = vadd.f32 %v1041, %v1042
  %v1044 = vsel %vm968, %v799, 0.0
  %v1045 = vadd.f32 %v1043, %v1044
  %v1046 = vsel %vm968, %v801, 0.0
  %v1047 = vadd.f32 %v1045, %v1046
  %v1048 = vsel %vm968, %v809, 0.0
  %v1049 = vadd.f32 %v1047, %v1048
  %v1050 = vsel %vm968, %v817, 0.0
  %v1051 = vadd.f32 %v1049, %v1050
  %v1052 = vsel %vm968, %v816, 0.0
  %v1053 = vadd.f32 %v1051, %v1052
  %v1054 = vsel %vm968, %v818, 0.0
  %v1055 = vadd.f32 %v1053, %v1054
  %v1056 = vsel %vm968, %v826, 0.0
  %v1057 = vadd.f32 %v1055, %v1056
  %v1058 = vsel %vm968, %v834, 0.0
  %v1059 = vadd.f32 %v1057, %v1058
  %v1060 = vsel %vm968, %v833, 0.0
  %v1061 = vadd.f32 %v1059, %v1060
  %v1062 = vsel %vm968, %v835, 0.0
  %v1063 = vadd.f32 %v1061, %v1062
  %v1064 = vsel %vm968, %v843, 0.0
  %v1065 = vadd.f32 %v1063, %v1064
  %v1066 = vsel %vm968, %v851, 0.0
  %v1067 = vadd.f32 %v1065, %v1066
  %v1068 = vsel %vm968, %v850, 0.0
  %v1069 = vadd.f32 %v1067, %v1068
  %v1070 = vsel %vm968, %v852, 0.0
  %v1071 = vadd.f32 %v1069, %v1070
  %v1072 = vsel %vm968, %v860, 0.0
  %v1073 = vadd.f32 %v1071, %v1072
  %v1074 = vsel %vm968, %v868, 0.0
  %v1075 = vadd.f32 %v1073, %v1074
  %v1076 = vsel %vm968, %v867, 0.0
  %v1077 = vadd.f32 %v1075, %v1076
  %v1078 = vsel %vm968, %v869, 0.0
  %v1079 = vadd.f32 %v1077, %v1078
  %v1080 = vsel %vm968, %v877, 0.0
  %v1081 = vadd.f32 %v1079, %v1080
  %v1082 = vsel %vm968, %v885, 0.0
  %v1083 = vadd.f32 %v1081, %v1082
  %v1084 = vsel %vm968, %v884, 0.0
  %v1085 = vadd.f32 %v1083, %v1084
  %v1086 = vsel %vm968, %v886, 0.0
  %v1087 = vadd.f32 %v1085, %v1086
  %v1088 = vsel %vm968, %v894, 0.0
  %v1089 = vadd.f32 %v1087, %v1088
  %v1090 = vsel %vm968, %v902, 0.0
  %v1091 = vadd.f32 %v1089, %v1090
  %v1092 = vsel %vm968, %v901, 0.0
  %v1093 = vadd.f32 %v1091, %v1092
  %v1094 = vsel %vm968, %v903, 0.0
  %v1095 = vadd.f32 %v1093, %v1094
  %1096 = vadd.xlane.f32.xlu0 %v1095
  %v1097 = vpop.xlane.xlu0 %1096
  %v1098 = vld [vmem:[#allocation2] sm:$0x1]
  %v1100 = vlaneseq
  %v1101 = vshrl.u32 %v1100, 7
  %v1102 = vsub.s32 0, %v1101
  %v1103 = vrot.slane %v1098, %v1102
  %v1105 = vadd.f32 %v1097, %v1103
  %v1106 = vxor.u32 %v1105, 2147483648
  %v1107 = vmul.f32 %v1106, 1.442695
  %v1108 = vpow.pop %v1107
  %v1109 = vadd.f32 %v1108, 1.0
  %v1110 = vrcp.pop %v1109
  %v1111 = vmul.f32 1.0, %v1110
  %vm1112 = vcmask 1024
  %1113 = vst.msk [vmem:[%s3] sm:$0x3] %vm1112, %v1111
  // Predicated region
  $region14: #{discriminator_forward.7} parent=0 // pred_check
    _
  $region15: #{discriminator_forward.7} parent=0 // pred_check_branch
    %1115 = sbr.rel (0) target = $region17
  $region16: #{discriminator_forward.7} parent=0 // pred_region
    _
  $region17: #{discriminator_forward.7} parent=0 // pred_fallthru
    _
  // Predicated region
  $region18: #{discriminator_forward.7} parent=0 // pred_check
    _
  $region19: #{discriminator_forward.7} parent=0 // pred_check_branch
    %1117 = sbr.rel (0) target = $region21
  $region20: #{discriminator_forward.7} parent=0 // pred_region
    _
  $region21: #{discriminator_forward.7} parent=0 // pred_fallthru
    _

</llo_original>
